<compile_context>
chip_gen: v7x
topology: tpu7x:2x2x1
jax: 0.10.0
libtpu: 0.0.40
codegen_flags: <defaults>
</compile_context>

<pallas_src>
import jax
import jax.numpy as jnp
from jax.experimental import pallas as pl
from jax.experimental.pallas import tpu as pltpu

BN_EPS = 1e-5


# ----------------------------------------------------------------------------
# helpers (plain-JAX glue)
# ----------------------------------------------------------------------------
def _act_dtype(c):
    """bf16 once there are >=16 channels (full packed sublane tile), else f32."""
    return jnp.bfloat16 if c >= 16 else jnp.float32


def conv_weight_matrix(w):
    """(cout, cin, kh, kw) torch layout -> (cout, kh*kw*cin), (tap, cin) cols."""
    cout, cin, kh, kw = w.shape
    return jnp.transpose(w, (0, 2, 3, 1)).reshape(cout, kh * kw * cin)


def im2col_T(x2d, N, H, W, kh, kw, stride, pad_h, pad_w, pad_value=0.0):
    """x2d: (C, N*H*W) -> A (kh*kw*C, N*Ho*Wo), plus (Ho, Wo).

    Taps are stacked on the leading axis so the final reshape is a plain
    row-major view (no XLA transpose copy); row order matches
    conv_weight_matrix's column order.
    """
    C = x2d.shape[0]
    x4 = x2d.reshape(C, N, H, W)
    xp = jnp.pad(x4, ((0, 0), (0, 0), (pad_h, pad_h), (pad_w, pad_w)),
                 constant_values=pad_value)
    Ho = (H + 2 * pad_h - kh) // stride + 1
    Wo = (W + 2 * pad_w - kw) // stride + 1
    taps = []
    for i in range(kh):
        for j in range(kw):
            taps.append(xp[:, :, i:i + stride * Ho:stride,
                           j:j + stride * Wo:stride])
    A = jnp.stack(taps, axis=0).reshape(kh * kw * C, N * Ho * Wo)
    return A, Ho, Wo


# ----------------------------------------------------------------------------
# Pallas kernels
# ----------------------------------------------------------------------------
def _make_conv_bn_kernel(has_res):
    """out = ReLU( BN_batchstats(W@A + b) (+ res) ); single full-M step."""
    def kernel(*refs):
        if has_res:
            a_ref, w_ref, b_ref, g_ref, be_ref, res_ref, o_ref = refs
        else:
            a_ref, w_ref, b_ref, g_ref, be_ref, o_ref = refs
        y = jnp.dot(w_ref[...], a_ref[...],
                    preferred_element_type=jnp.float32)
        y = y + b_ref[...]                                   # (cout, M)
        inv_m = 1.0 / y.shape[1]
        mean = jnp.sum(y, axis=1, keepdims=True) * inv_m
        d = y - mean
        var = jnp.sum(d * d, axis=1, keepdims=True) * inv_m  # biased variance
        scale = g_ref[...] * jax.lax.rsqrt(var + BN_EPS)     # EUP rsqrt
        out = d * scale + be_ref[...]
        if has_res:
            out = out + res_ref[...].astype(jnp.float32)
        out = jnp.maximum(out, 0.0)
        o_ref[...] = out.astype(o_ref.dtype)
    return kernel


def _make_conv_bn_skip_kernel(n_bn):
    """Projection block conv1: combined (2*cout, K) weights.

    Top n_bn rows -> BN(batch stats)+ReLU output, bottom rows -> raw skip
    (the folded 1x1 stride-2 downsample conv output, bias included).
    """
    def kernel(a_ref, w_ref, b_ref, g_ref, be_ref, o_ref, skip_ref):
        y = jnp.dot(w_ref[...], a_ref[...],
                    preferred_element_type=jnp.float32)
        y = y + b_ref[...]                                   # (2*cout, M)
        skip_ref[...] = y[n_bn:].astype(skip_ref.dtype)
        ybn = y[:n_bn]
        inv_m = 1.0 / ybn.shape[1]
        mean = jnp.sum(ybn, axis=1, keepdims=True) * inv_m
        d = ybn - mean
        var = jnp.sum(d * d, axis=1, keepdims=True) * inv_m
        scale = g_ref[...] * jax.lax.rsqrt(var + BN_EPS)
        o_ref[...] = jnp.maximum(d * scale + be_ref[...], 0.0).astype(o_ref.dtype)
    return kernel


def _maxpool_kernel(t_ref, o_ref):
    o_ref[...] = jnp.max(t_ref[...], axis=0).astype(o_ref.dtype)


def _gap_fc_kernel(x_ref, w_ref, b_ref, o_ref):
    feat = jnp.mean(x_ref[...].astype(jnp.float32), axis=-1)        # (C, N)
    y = jnp.dot(w_ref[...], feat, preferred_element_type=jnp.float32)
    o_ref[...] = y + b_ref[...]


# ----------------------------------------------------------------------------
# Pallas wrappers  (all single grid step, full-array blocks -- arrays are tiny)
# ----------------------------------------------------------------------------
def conv_bn_relu(A, Wm, b, gamma, beta, res=None, out_dtype=jnp.bfloat16):
    """Fused conv-as-matmul + bias + BN(batch stats) + (residual) + ReLU."""
    K, M = A.shape
    cout = Wm.shape[0]
    args = [A.astype(jnp.bfloat16), Wm.astype(jnp.bfloat16),
            b.reshape(cout, 1).astype(jnp.float32),
            gamma.reshape(cout, 1).astype(jnp.float32),
            beta.reshape(cout, 1).astype(jnp.float32)]
    in_specs = [pl.BlockSpec((K, M), lambda i: (0, 0)),
                pl.BlockSpec((cout, K), lambda i: (0, 0)),
                pl.BlockSpec((cout, 1), lambda i: (0, 0)),
                pl.BlockSpec((cout, 1), lambda i: (0, 0)),
                pl.BlockSpec((cout, 1), lambda i: (0, 0))]
    if res is not None:
        args.append(res)
        in_specs.append(pl.BlockSpec((cout, M), lambda i: (0, 0)))
    return pl.pallas_call(
        _make_conv_bn_kernel(res is not None),
        grid=(1,),
        in_specs=in_specs,
        out_specs=pl.BlockSpec((cout, M), lambda i: (0, 0)),
        out_shape=jax.ShapeDtypeStruct((cout, M), out_dtype),
        compiler_params=pltpu.CompilerParams(
            dimension_semantics=("arbitrary",)),
    )(*args)


def conv_bn_relu_proj(A, Wcm, bc, gamma, beta, cout, out_dtype=jnp.bfloat16):
    """Projection-block conv1 with the 1x1 stride-2 downsample folded in."""
    K, M = A.shape
    ctot = Wcm.shape[0]                                     # 2 * cout
    out, skip = pl.pallas_call(
        _make_conv_bn_skip_kernel(cout),
        grid=(1,),
        in_specs=[pl.BlockSpec((K, M), lambda i: (0, 0)),
                  pl.BlockSpec((ctot, K), lambda i: (0, 0)),
                  pl.BlockSpec((ctot, 1), lambda i: (0, 0)),
                  pl.BlockSpec((cout, 1), lambda i: (0, 0)),
                  pl.BlockSpec((cout, 1), lambda i: (0, 0))],
        out_specs=[pl.BlockSpec((cout, M), lambda i: (0, 0)),
                   pl.BlockSpec((cout, M), lambda i: (0, 0))],
        out_shape=(jax.ShapeDtypeStruct((cout, M), out_dtype),
                   jax.ShapeDtypeStruct((cout, M), jnp.float32)),
        compiler_params=pltpu.CompilerParams(
            dimension_semantics=("arbitrary",)),
    )(A.astype(jnp.bfloat16), Wcm.astype(jnp.bfloat16),
      bc.reshape(ctot, 1).astype(jnp.float32),
      gamma.reshape(cout, 1).astype(jnp.float32),
      beta.reshape(cout, 1).astype(jnp.float32))
    return out, skip


def maxpool2d(x2d, N, H, W, k=3, stride=2, pad=1):
    C = x2d.shape[0]
    x4 = x2d.reshape(C, N, H, W)
    xp = jnp.pad(x4, ((0, 0), (0, 0), (pad, pad), (pad, pad)),
                 constant_values=float("-inf"))
    Ho = (H + 2 * pad - k) // stride + 1
    Wo = (W + 2 * pad - k) // stride + 1
    taps = [xp[:, :, i:i + stride * Ho:stride, j:j + stride * Wo:stride]
            for i in range(k) for j in range(k)]
    T = jnp.stack(taps, axis=0).reshape(k * k, C, N * Ho * Wo)
    M = N * Ho * Wo
    out = pl.pallas_call(
        _maxpool_kernel,
        grid=(1,),
        in_specs=[pl.BlockSpec((k * k, C, M), lambda i: (0, 0, 0))],
        out_specs=pl.BlockSpec((C, M), lambda i: (0, 0)),
        out_shape=jax.ShapeDtypeStruct((C, M), x2d.dtype),
    )(T)
    return out, Ho, Wo


def gap_fc(x2d, N, H, W, fc_w, fc_b):
    """Global average pool over (H,W) + final Linear, fused (tiny)."""
    C, _ = x2d.shape
    HW = H * W
    x3 = x2d.reshape(C, N, HW)
    ncls = fc_w.shape[0]
    ncls_p = ((ncls + 7) // 8) * 8
    wp = jnp.zeros((ncls_p, C), jnp.float32).at[:ncls].set(
        fc_w.astype(jnp.float32))
    bp = jnp.zeros((ncls_p, 1), jnp.float32).at[:ncls, 0].set(
        fc_b.astype(jnp.float32))
    out = pl.pallas_call(
        _gap_fc_kernel,
        grid=(1,),
        in_specs=[pl.BlockSpec((C, N, HW), lambda i: (0, 0, 0)),
                  pl.BlockSpec((ncls_p, C), lambda i: (0, 0)),
                  pl.BlockSpec((ncls_p, 1), lambda i: (0, 0))],
        out_specs=pl.BlockSpec((ncls_p, N), lambda i: (0, 0)),
        out_shape=jax.ShapeDtypeStruct((ncls_p, N), jnp.float32),
    )(x3, wp, bp)
    return out[:ncls].T                                     # (N, n_class)


# ----------------------------------------------------------------------------
# sigs2IID  (STFT feature extraction -- plain-JAX glue, no Pallas FFT)
# ----------------------------------------------------------------------------
def sigs2IID_jax(signal):
    sample_rate = 16000
    win_len = int(sample_rate * 0.256)          # 4096
    win_shift = win_len // 2                    # 2048
    nfft = win_len
    nfft_valid = nfft // 2 + 1
    fre_used_ratio = 2000 / (sample_rate / 2)
    nf = int(nfft_valid * fre_used_ratio)       # 512
    nb, nch, nsample = signal.shape
    nt = int(nsample / win_shift) + 1

    n = jnp.arange(win_len, dtype=jnp.float32)
    window = 0.5 * (1.0 - jnp.cos(2.0 * jnp.pi * n / win_len))  # periodic Hann

    pad = nfft // 2
    sig_p = jnp.pad(signal, ((0, 0), (0, 0), (pad, pad)), mode='reflect')
    starts = jnp.arange(nt) * win_shift
    idx = starts[:, None] + jnp.arange(win_len)[None, :]        # (nt, win_len)
    frames = sig_p[:, :, idx] * window                          # (nb,nch,nt,L)
    spec = jnp.fft.rfft(frames, n=nfft, axis=-1)[..., :nf]      # (nb,nch,nt,nf)

    tiny = 1e-20                                                # avoid log10(0)
    mag0 = jnp.maximum(jnp.abs(spec[:, 0]), tiny)
    mag1 = jnp.maximum(jnp.abs(spec[:, 1]), tiny)
    iid = 20.0 * (jnp.log10(mag0) - jnp.log10(mag1))
    iid = jnp.transpose(iid, (0, 2, 1))                         # (nb, nf, nt)
    maxabs = jnp.max(jnp.abs(iid), axis=(1, 2), keepdims=True)
    eps = jnp.finfo(jnp.float32).eps
    return (iid / (maxabs + eps)).astype(jnp.float32)


# ----------------------------------------------------------------------------
# Model: parameters + forward
# ----------------------------------------------------------------------------
BLOCK_CFG = [(8, 8, False), (8, 8, False), (8, 16, True), (16, 16, False),
             (16, 32, True), (32, 32, False), (32, 64, True), (64, 64, False)]


def init_params(n_class, n_channel=8, seed=0):
    keys = iter(jax.random.split(jax.random.PRNGKey(seed), 64))

    def conv_w(cout, cin, kh, kw):
        return jax.random.normal(next(keys), (cout, cin, kh, kw),
                                 jnp.float32) * 0.05

    def vec(m):
        return jax.random.normal(next(keys), (m,), jnp.float32) * 0.05

    p = {
        'conv1_wm': conv_weight_matrix(conv_w(n_channel, 1, 7, 7)).astype(
            jnp.bfloat16),
        'conv1_b': vec(n_channel),
        'bn1_g': jnp.ones((n_channel,), jnp.float32),
        'bn1_b': jnp.zeros((n_channel,), jnp.float32),
    }
    blocks = []
    for cin, cout, proj in BLOCK_CFG:
        w1m = conv_weight_matrix(conv_w(cout, cin, 3, 3))
        b1 = vec(cout)
        blk = dict(
            g1=jnp.ones((cout,), jnp.float32),
            be1=jnp.zeros((cout,), jnp.float32),
            w2m=conv_weight_matrix(conv_w(cout, cout, 3, 3)).astype(
                jnp.bfloat16),
            b2=vec(cout),
            g2=jnp.ones((cout,), jnp.float32),
            be2=jnp.zeros((cout,), jnp.float32),
        )
        if proj:
            # Fold the 1x1 stride-2 downsample conv into conv1's matmul:
            # its im2col equals conv1's centre-tap rows (columns 4*cin..5*cin).
            wd = conv_w(cout, cin, 1, 1).reshape(cout, cin)
            bd = vec(cout)
            wc = jnp.zeros((2 * cout, 9 * cin), jnp.float32)
            wc = wc.at[:cout].set(w1m)
            wc = wc.at[cout:, 4 * cin:5 * cin].set(wd)
            blk['w1dm'] = wc.astype(jnp.bfloat16)
            blk['b1d'] = jnp.concatenate([b1, bd])
        else:
            blk['w1m'] = w1m.astype(jnp.bfloat16)
            blk['b1'] = b1
        blocks.append(blk)
    p['blocks'] = blocks
    p['fc_w'] = jax.random.normal(next(keys), (n_class, n_channel * 8),
                                  jnp.float32) * 0.05
    p['fc_b'] = vec(n_class)
    return p


def residual_block(x, N, H, W, blk, projection):
    stride = 2 if projection else 1
    cout = blk['g1'].shape[0]
    act_dt = _act_dtype(cout)

    # conv1 (+ folded downsample if projection) + BN + ReLU, single kernel.
    A1, Ho, Wo = im2col_T(x, N, H, W, 3, 3, stride, 1, 1)
    if projection:
        h, skip = conv_bn_relu_proj(A1, blk['w1dm'], blk['b1d'],
                                    blk['g1'], blk['be1'], cout,
                                    out_dtype=act_dt)
    else:
        h = conv_bn_relu(A1, blk['w1m'], blk['b1'], blk['g1'], blk['be1'],
                         out_dtype=act_dt)
        skip = x                                             # identity

    # conv2 + BN + residual + ReLU, single kernel.
    A2, Ho2, Wo2 = im2col_T(h, N, Ho, Wo, 3, 3, 1, 1, 1)
    out = conv_bn_relu(A2, blk['w2m'], blk['b2'], blk['g2'], blk['be2'],
                       res=skip, out_dtype=act_dt)
    return out, Ho2, Wo2


def resnet_iid_forward(signal, params):
    iid = sigs2IID_jax(signal)                          # (N, nf, nt)
    N, H, W = iid.shape
    x = iid.reshape(1, N * H * W)                       # (C=1, M) channel-major

    # stem: conv 7x7 stride 1 pad (3,2) + BN + ReLU  (cout=8 -> keep f32)
    A, H, W = im2col_T(x, N, H, W, 7, 7, 1, 3, 2)
    x = conv_bn_relu(A, params['conv1_wm'], params['conv1_b'],
                     params['bn1_g'], params['bn1_b'],
                     out_dtype=jnp.float32)

    x, H, W = maxpool2d(x, N, H, W, k=3, stride=2, pad=1)

    for blk, (_, _, proj) in zip(params['blocks'], BLOCK_CFG):
        x, H, W = residual_block(x, N, H, W, blk, proj)

    return gap_fc(x, N, H, W, params['fc_w'], params['fc_b'])   # (N, n_class)


# ----------------------------------------------------------------------------
if __name__ == "__main__":
    n_class = 5
    nb, nch, nsample = 2, 2, 8192                # 2-channel audio, 0.512 s
    key = jax.random.PRNGKey(0)
    x = jax.random.normal(key, (nb, nch, nsample), jnp.float32)

    params = init_params(n_class)
    out = jax.jit(resnet_iid_forward)(x, params)
    out = jax.block_until_ready(out)

    assert out.shape == (nb, n_class), out.shape
    assert bool(jnp.all(jnp.isfinite(out)))
    print("KERNEL_OK")
</pallas_src>

<mosaic_0001>
module attributes {stable_mosaic.version = 11 : i64} {
  func.func private @main(%arg0: i32) attributes {dimension_semantics = [#tpu.dimension_semantics<core_parallel>], iteration_bounds = array<i64: 2>, tpu.core_type = #tpu.core_type<sc_scalar_subcore>, window_params = []} {
    return
  }
}

module attributes {stable_mosaic.version = 11 : i64} {
  func.func private @main(%arg0: i32) attributes {dimension_semantics = [#tpu.dimension_semantics<core_parallel>], iteration_bounds = array<i64: 2>, tpu.core_type = #tpu.core_type<sc_scalar_subcore>, window_params = []} {
    return
  }
}

module attributes {stable_mosaic.version = 11 : i64} {
  func.func @kernel(%arg0: i32, %arg1: memref<49x3072xbf16, #tpu.memory_space<vmem>>, %arg2: memref<8x49xbf16, #tpu.memory_space<vmem>>, %arg3: memref<8x1xf32, #tpu.memory_space<vmem>>, %arg4: memref<8x1xf32, #tpu.memory_space<vmem>>, %arg5: memref<8x1xf32, #tpu.memory_space<vmem>>, %arg6: memref<8x3072xf32, #tpu.memory_space<vmem>>) attributes {dimension_semantics = [#tpu.dimension_semantics<arbitrary>], iteration_bounds = array<i64: 1>, scalar_prefetch = 0 : i64, scratch_operands = 0 : i64, tpu.core_type = #tpu.core_type<tc>, window_params = [{pipeline_mode = #tpu.pipeline_mode<synchronous>, transform_indices = @transform_0, window_bounds = array<i64: 49, 3072>}, {pipeline_mode = #tpu.pipeline_mode<synchronous>, transform_indices = @transform_1, window_bounds = array<i64: 8, 49>}, {pipeline_mode = #tpu.pipeline_mode<synchronous>, transform_indices = @transform_2, window_bounds = array<i64: 8, 1>}, {pipeline_mode = #tpu.pipeline_mode<synchronous>, transform_indices = @transform_3, window_bounds = array<i64: 8, 1>}, {pipeline_mode = #tpu.pipeline_mode<synchronous>, transform_indices = @transform_4, window_bounds = array<i64: 8, 1>}, {pipeline_mode = #tpu.pipeline_mode<synchronous>, transform_indices = @transform_5, window_bounds = array<i64: 8, 3072>}]} {
    %c0 = arith.constant 0 : index
    %c0_0 = arith.constant 0 : index
    %0 = vector.load %arg2[%c0, %c0_0] : memref<8x49xbf16, #tpu.memory_space<vmem>>, vector<8x49xbf16>
    %c0_1 = arith.constant 0 : index
    %c0_2 = arith.constant 0 : index
    %1 = vector.load %arg1[%c0_1, %c0_2] : memref<49x3072xbf16, #tpu.memory_space<vmem>>, vector<49x3072xbf16>
    %cst = arith.constant dense<0.000000e+00> : vector<8x3072xf32>
    %2 = tpu.matmul %0, %1, %cst {dimension_numbers = #tpu.dot_dimension_numbers<[1], [0], [0], [1], [0, 0, 1, 1], [], []>} : vector<8x49xbf16>, vector<49x3072xbf16>, vector<8x3072xf32> -> vector<8x3072xf32>
    %c0_3 = arith.constant 0 : index
    %c0_4 = arith.constant 0 : index
    %3 = vector.load %arg3[%c0_3, %c0_4] : memref<8x1xf32, #tpu.memory_space<vmem>>, vector<8x1xf32>
    %4 = vector.broadcast %3 : vector<8x1xf32> to vector<8x3072xf32>
    %5 = arith.addf %2, %4 : vector<8x3072xf32>
    %cst_5 = arith.constant dense<0.000000e+00> : vector<8xf32>
    %6 = vector.multi_reduction <add>, %5, %cst_5 [1] : vector<8x3072xf32> to vector<8xf32>
    %7 = vector.shape_cast %6 : vector<8xf32> to vector<8x1xf32>
    %cst_6 = arith.constant 3.25520843E-4 : f32
    %8 = vector.broadcast %cst_6 : f32 to vector<8x1xf32>
    %9 = arith.mulf %7, %8 : vector<8x1xf32>
    %10 = vector.broadcast %9 : vector<8x1xf32> to vector<8x3072xf32>
    %11 = arith.subf %5, %10 : vector<8x3072xf32>
    %12 = arith.mulf %11, %11 : vector<8x3072xf32>
    %cst_7 = arith.constant dense<0.000000e+00> : vector<8xf32>
    %13 = vector.multi_reduction <add>, %12, %cst_7 [1] : vector<8x3072xf32> to vector<8xf32>
    %14 = vector.shape_cast %13 : vector<8xf32> to vector<8x1xf32>
    %cst_8 = arith.constant 3.25520843E-4 : f32
    %15 = vector.broadcast %cst_8 : f32 to vector<8x1xf32>
    %16 = arith.mulf %14, %15 : vector<8x1xf32>
    %c0_9 = arith.constant 0 : index
    %c0_10 = arith.constant 0 : index
    %17 = vector.load %arg4[%c0_9, %c0_10] : memref<8x1xf32, #tpu.memory_space<vmem>>, vector<8x1xf32>
    %cst_11 = arith.constant 9.99999974E-6 : f32
    %18 = vector.broadcast %cst_11 : f32 to vector<8x1xf32>
    %19 = arith.addf %16, %18 : vector<8x1xf32>
    %20 = math.rsqrt %19 : vector<8x1xf32>
    %21 = arith.mulf %17, %20 : vector<8x1xf32>
    %22 = vector.broadcast %21 : vector<8x1xf32> to vector<8x3072xf32>
    %23 = arith.mulf %11, %22 : vector<8x3072xf32>
    %c0_12 = arith.constant 0 : index
    %c0_13 = arith.constant 0 : index
    %24 = vector.load %arg5[%c0_12, %c0_13] : memref<8x1xf32, #tpu.memory_space<vmem>>, vector<8x1xf32>
    %25 = vector.broadcast %24 : vector<8x1xf32> to vector<8x3072xf32>
    %26 = arith.addf %23, %25 : vector<8x3072xf32>
    %cst_14 = arith.constant 0.000000e+00 : f32
    %27 = vector.broadcast %cst_14 : f32 to vector<8x3072xf32>
    %28 = arith.maximumf %26, %27 : vector<8x3072xf32>
    %c0_15 = arith.constant 0 : index
    %c0_16 = arith.constant 0 : index
    %29 = vector.load %arg6[%c0_15, %c0_16] : memref<8x3072xf32, #tpu.memory_space<vmem>>, vector<8x3072xf32>
    tpu.vector_store %arg6[%c0_15, %c0_16], %28 {strides = array<i32>} : memref<8x3072xf32, #tpu.memory_space<vmem>>, vector<8x3072xf32>,
    return
  }
  func.func @transform_0(%arg0: i32) -> (i32, i32) {
    %c0_i32 = arith.constant 0 : i32
    %c0_i32_0 = arith.constant 0 : i32
    %c0_i32_1 = arith.constant 0 : i32
    return %c0_i32, %c0_i32_0 : i32, i32
  }
  func.func @transform_1(%arg0: i32) -> (i32, i32) {
    %c0_i32 = arith.constant 0 : i32
    %c0_i32_0 = arith.constant 0 : i32
    %c0_i32_1 = arith.constant 0 : i32
    return %c0_i32, %c0_i32_0 : i32, i32
  }
  func.func @transform_2(%arg0: i32) -> (i32, i32) {
    %c0_i32 = arith.constant 0 : i32
    %c0_i32_0 = arith.constant 0 : i32
    %c0_i32_1 = arith.constant 0 : i32
    return %c0_i32, %c0_i32_0 : i32, i32
  }
  func.func @transform_3(%arg0: i32) -> (i32, i32) {
    %c0_i32 = arith.constant 0 : i32
    %c0_i32_0 = arith.constant 0 : i32
    %c0_i32_1 = arith.constant 0 : i32
    return %c0_i32, %c0_i32_0 : i32, i32
  }
  func.func @transform_4(%arg0: i32) -> (i32, i32) {
    %c0_i32 = arith.constant 0 : i32
    %c0_i32_0 = arith.constant 0 : i32
    %c0_i32_1 = arith.constant 0 : i32
    return %c0_i32, %c0_i32_0 : i32, i32
  }
  func.func @transform_5(%arg0: i32) -> (i32, i32) {
    %c0_i32 = arith.constant 0 : i32
    %c0_i32_0 = arith.constant 0 : i32
    %c0_i32_1 = arith.constant 0 : i32
    return %c0_i32, %c0_i32_0 : i32, i32
  }
}

module attributes {stable_mosaic.version = 11 : i64} {
  func.func @_maxpool_kernel(%arg0: i32, %arg1: memref<9x8x1024xf32, #tpu.memory_space<vmem>>, %arg2: memref<8x1024xf32, #tpu.memory_space<vmem>>) attributes {dimension_semantics = [#tpu.dimension_semantics<arbitrary>], iteration_bounds = array<i64: 1>, scalar_prefetch = 0 : i64, scratch_operands = 0 : i64, tpu.core_type = #tpu.core_type<tc>, window_params = [{pipeline_mode = #tpu.pipeline_mode<synchronous>, transform_indices = @transform_0, window_bounds = array<i64: 9, 8, 1024>}, {pipeline_mode = #tpu.pipeline_mode<synchronous>, transform_indices = @transform_1, window_bounds = array<i64: 8, 1024>}]} {
    %c0 = arith.constant 0 : index
    %c0_0 = arith.constant 0 : index
    %c0_1 = arith.constant 0 : index
    %0 = vector.load %arg1[%c0, %c0_0, %c0_1] : memref<9x8x1024xf32, #tpu.memory_space<vmem>>, vector<9x8x1024xf32>
    %cst = arith.constant dense<0xFF800000> : vector<8x1024xf32>
    %1 = vector.multi_reduction <maximumf>, %0, %cst [0] : vector<9x8x1024xf32> to vector<8x1024xf32>
    %c0_2 = arith.constant 0 : index
    %c0_3 = arith.constant 0 : index
    %2 = vector.load %arg2[%c0_2, %c0_3] : memref<8x1024xf32, #tpu.memory_space<vmem>>, vector<8x1024xf32>
    tpu.vector_store %arg2[%c0_2, %c0_3], %1 {strides = array<i32>} : memref<8x1024xf32, #tpu.memory_space<vmem>>, vector<8x1024xf32>,
    return
  }
  func.func @transform_0(%arg0: i32) -> (i32, i32, i32) {
    %c0_i32 = arith.constant 0 : i32
    %c0_i32_0 = arith.constant 0 : i32
    %c0_i32_1 = arith.constant 0 : i32
    %c0_i32_2 = arith.constant 0 : i32
    return %c0_i32, %c0_i32_0, %c0_i32_1 : i32, i32, i32
  }
  func.func @transform_1(%arg0: i32) -> (i32, i32) {
    %c0_i32 = arith.constant 0 : i32
    %c0_i32_0 = arith.constant 0 : i32
    %c0_i32_1 = arith.constant 0 : i32
    return %c0_i32, %c0_i32_0 : i32, i32
  }
}

module attributes {stable_mosaic.version = 11 : i64} {
  func.func @kernel(%arg0: i32, %arg1: memref<72x1024xbf16, #tpu.memory_space<vmem>>, %arg2: memref<8x72xbf16, #tpu.memory_space<vmem>>, %arg3: memref<8x1xf32, #tpu.memory_space<vmem>>, %arg4: memref<8x1xf32, #tpu.memory_space<vmem>>, %arg5: memref<8x1xf32, #tpu.memory_space<vmem>>, %arg6: memref<8x1024xf32, #tpu.memory_space<vmem>>) attributes {dimension_semantics = [#tpu.dimension_semantics<arbitrary>], iteration_bounds = array<i64: 1>, scalar_prefetch = 0 : i64, scratch_operands = 0 : i64, tpu.core_type = #tpu.core_type<tc>, window_params = [{pipeline_mode = #tpu.pipeline_mode<synchronous>, transform_indices = @transform_0, window_bounds = array<i64: 72, 1024>}, {pipeline_mode = #tpu.pipeline_mode<synchronous>, transform_indices = @transform_1, window_bounds = array<i64: 8, 72>}, {pipeline_mode = #tpu.pipeline_mode<synchronous>, transform_indices = @transform_2, window_bounds = array<i64: 8, 1>}, {pipeline_mode = #tpu.pipeline_mode<synchronous>, transform_indices = @transform_3, window_bounds = array<i64: 8, 1>}, {pipeline_mode = #tpu.pipeline_mode<synchronous>, transform_indices = @transform_4, window_bounds = array<i64: 8, 1>}, {pipeline_mode = #tpu.pipeline_mode<synchronous>, transform_indices = @transform_5, window_bounds = array<i64: 8, 1024>}]} {
    %c0 = arith.constant 0 : index
    %c0_0 = arith.constant 0 : index
    %0 = vector.load %arg2[%c0, %c0_0] : memref<8x72xbf16, #tpu.memory_space<vmem>>, vector<8x72xbf16>
    %c0_1 = arith.constant 0 : index
    %c0_2 = arith.constant 0 : index
    %1 = vector.load %arg1[%c0_1, %c0_2] : memref<72x1024xbf16, #tpu.memory_space<vmem>>, vector<72x1024xbf16>
    %cst = arith.constant dense<0.000000e+00> : vector<8x1024xf32>
    %2 = tpu.matmul %0, %1, %cst {dimension_numbers = #tpu.dot_dimension_numbers<[1], [0], [0], [1], [0, 0, 1, 1], [], []>} : vector<8x72xbf16>, vector<72x1024xbf16>, vector<8x1024xf32> -> vector<8x1024xf32>
    %c0_3 = arith.constant 0 : index
    %c0_4 = arith.constant 0 : index
    %3 = vector.load %arg3[%c0_3, %c0_4] : memref<8x1xf32, #tpu.memory_space<vmem>>, vector<8x1xf32>
    %4 = vector.broadcast %3 : vector<8x1xf32> to vector<8x1024xf32>
    %5 = arith.addf %2, %4 : vector<8x1024xf32>
    %cst_5 = arith.constant dense<0.000000e+00> : vector<8xf32>
    %6 = vector.multi_reduction <add>, %5, %cst_5 [1] : vector<8x1024xf32> to vector<8xf32>
    %7 = vector.shape_cast %6 : vector<8xf32> to vector<8x1xf32>
    %cst_6 = arith.constant 9.765625E-4 : f32
    %8 = vector.broadcast %cst_6 : f32 to vector<8x1xf32>
    %9 = arith.mulf %7, %8 : vector<8x1xf32>
    %10 = vector.broadcast %9 : vector<8x1xf32> to vector<8x1024xf32>
    %11 = arith.subf %5, %10 : vector<8x1024xf32>
    %12 = arith.mulf %11, %11 : vector<8x1024xf32>
    %cst_7 = arith.constant dense<0.000000e+00> : vector<8xf32>
    %13 = vector.multi_reduction <add>, %12, %cst_7 [1] : vector<8x1024xf32> to vector<8xf32>
    %14 = vector.shape_cast %13 : vector<8xf32> to vector<8x1xf32>
    %cst_8 = arith.constant 9.765625E-4 : f32
    %15 = vector.broadcast %cst_8 : f32 to vector<8x1xf32>
    %16 = arith.mulf %14, %15 : vector<8x1xf32>
    %c0_9 = arith.constant 0 : index
    %c0_10 = arith.constant 0 : index
    %17 = vector.load %arg4[%c0_9, %c0_10] : memref<8x1xf32, #tpu.memory_space<vmem>>, vector<8x1xf32>
    %cst_11 = arith.constant 9.99999974E-6 : f32
    %18 = vector.broadcast %cst_11 : f32 to vector<8x1xf32>
    %19 = arith.addf %16, %18 : vector<8x1xf32>
    %20 = math.rsqrt %19 : vector<8x1xf32>
    %21 = arith.mulf %17, %20 : vector<8x1xf32>
    %22 = vector.broadcast %21 : vector<8x1xf32> to vector<8x1024xf32>
    %23 = arith.mulf %11, %22 : vector<8x1024xf32>
    %c0_12 = arith.constant 0 : index
    %c0_13 = arith.constant 0 : index
    %24 = vector.load %arg5[%c0_12, %c0_13] : memref<8x1xf32, #tpu.memory_space<vmem>>, vector<8x1xf32>
    %25 = vector.broadcast %24 : vector<8x1xf32> to vector<8x1024xf32>
    %26 = arith.addf %23, %25 : vector<8x1024xf32>
    %cst_14 = arith.constant 0.000000e+00 : f32
    %27 = vector.broadcast %cst_14 : f32 to vector<8x1024xf32>
    %28 = arith.maximumf %26, %27 : vector<8x1024xf32>
    %c0_15 = arith.constant 0 : index
    %c0_16 = arith.constant 0 : index
    %29 = vector.load %arg6[%c0_15, %c0_16] : memref<8x1024xf32, #tpu.memory_space<vmem>>, vector<8x1024xf32>
    tpu.vector_store %arg6[%c0_15, %c0_16], %28 {strides = array<i32>} : memref<8x1024xf32, #tpu.memory_space<vmem>>, vector<8x1024xf32>,
    return
  }
  func.func @transform_0(%arg0: i32) -> (i32, i32) {
    %c0_i32 = arith.constant 0 : i32
    %c0_i32_0 = arith.constant 0 : i32
    %c0_i32_1 = arith.constant 0 : i32
    return %c0_i32, %c0_i32_0 : i32, i32
  }
  func.func @transform_1(%arg0: i32) -> (i32, i32) {
    %c0_i32 = arith.constant 0 : i32
    %c0_i32_0 = arith.constant 0 : i32
    %c0_i32_1 = arith.constant 0 : i32
    return %c0_i32, %c0_i32_0 : i32, i32
  }
  func.func @transform_2(%arg0: i32) -> (i32, i32) {
    %c0_i32 = arith.constant 0 : i32
    %c0_i32_0 = arith.constant 0 : i32
    %c0_i32_1 = arith.constant 0 : i32
    return %c0_i32, %c0_i32_0 : i32, i32
  }
  func.func @transform_3(%arg0: i32) -> (i32, i32) {
    %c0_i32 = arith.constant 0 : i32
    %c0_i32_0 = arith.constant 0 : i32
    %c0_i32_1 = arith.constant 0 : i32
    return %c0_i32, %c0_i32_0 : i32, i32
  }
  func.func @transform_4(%arg0: i32) -> (i32, i32) {
    %c0_i32 = arith.constant 0 : i32
    %c0_i32_0 = arith.constant 0 : i32
    %c0_i32_1 = arith.constant 0 : i32
    return %c0_i32, %c0_i32_0 : i32, i32
  }
  func.func @transform_5(%arg0: i32) -> (i32, i32) {
    %c0_i32 = arith.constant 0 : i32
    %c0_i32_0 = arith.constant 0 : i32
    %c0_i32_1 = arith.constant 0 : i32
    return %c0_i32, %c0_i32_0 : i32, i32
  }
}

module attributes {stable_mosaic.version = 11 : i64} {
  func.func @kernel(%arg0: i32, %arg1: memref<72x1024xbf16, #tpu.memory_space<vmem>>, %arg2: memref<8x72xbf16, #tpu.memory_space<vmem>>, %arg3: memref<8x1xf32, #tpu.memory_space<vmem>>, %arg4: memref<8x1xf32, #tpu.memory_space<vmem>>, %arg5: memref<8x1xf32, #tpu.memory_space<vmem>>, %arg6: memref<8x1024xf32, #tpu.memory_space<vmem>>, %arg7: memref<8x1024xf32, #tpu.memory_space<vmem>>) attributes {dimension_semantics = [#tpu.dimension_semantics<arbitrary>], iteration_bounds = array<i64: 1>, scalar_prefetch = 0 : i64, scratch_operands = 0 : i64, tpu.core_type = #tpu.core_type<tc>, window_params = [{pipeline_mode = #tpu.pipeline_mode<synchronous>, transform_indices = @transform_0, window_bounds = array<i64: 72, 1024>}, {pipeline_mode = #tpu.pipeline_mode<synchronous>, transform_indices = @transform_1, window_bounds = array<i64: 8, 72>}, {pipeline_mode = #tpu.pipeline_mode<synchronous>, transform_indices = @transform_2, window_bounds = array<i64: 8, 1>}, {pipeline_mode = #tpu.pipeline_mode<synchronous>, transform_indices = @transform_3, window_bounds = array<i64: 8, 1>}, {pipeline_mode = #tpu.pipeline_mode<synchronous>, transform_indices = @transform_4, window_bounds = array<i64: 8, 1>}, {pipeline_mode = #tpu.pipeline_mode<synchronous>, transform_indices = @transform_5, window_bounds = array<i64: 8, 1024>}, {pipeline_mode = #tpu.pipeline_mode<synchronous>, transform_indices = @transform_6, window_bounds = array<i64: 8, 1024>}]} {
    %c0 = arith.constant 0 : index
    %c0_0 = arith.constant 0 : index
    %0 = vector.load %arg2[%c0, %c0_0] : memref<8x72xbf16, #tpu.memory_space<vmem>>, vector<8x72xbf16>
    %c0_1 = arith.constant 0 : index
    %c0_2 = arith.constant 0 : index
    %1 = vector.load %arg1[%c0_1, %c0_2] : memref<72x1024xbf16, #tpu.memory_space<vmem>>, vector<72x1024xbf16>
    %cst = arith.constant dense<0.000000e+00> : vector<8x1024xf32>
    %2 = tpu.matmul %0, %1, %cst {dimension_numbers = #tpu.dot_dimension_numbers<[1], [0], [0], [1], [0, 0, 1, 1], [], []>} : vector<8x72xbf16>, vector<72x1024xbf16>, vector<8x1024xf32> -> vector<8x1024xf32>
    %c0_3 = arith.constant 0 : index
    %c0_4 = arith.constant 0 : index
    %3 = vector.load %arg3[%c0_3, %c0_4] : memref<8x1xf32, #tpu.memory_space<vmem>>, vector<8x1xf32>
    %4 = vector.broadcast %3 : vector<8x1xf32> to vector<8x1024xf32>
    %5 = arith.addf %2, %4 : vector<8x1024xf32>
    %cst_5 = arith.constant dense<0.000000e+00> : vector<8xf32>
    %6 = vector.multi_reduction <add>, %5, %cst_5 [1] : vector<8x1024xf32> to vector<8xf32>
    %7 = vector.shape_cast %6 : vector<8xf32> to vector<8x1xf32>
    %cst_6 = arith.constant 9.765625E-4 : f32
    %8 = vector.broadcast %cst_6 : f32 to vector<8x1xf32>
    %9 = arith.mulf %7, %8 : vector<8x1xf32>
    %10 = vector.broadcast %9 : vector<8x1xf32> to vector<8x1024xf32>
    %11 = arith.subf %5, %10 : vector<8x1024xf32>
    %12 = arith.mulf %11, %11 : vector<8x1024xf32>
    %cst_7 = arith.constant dense<0.000000e+00> : vector<8xf32>
    %13 = vector.multi_reduction <add>, %12, %cst_7 [1] : vector<8x1024xf32> to vector<8xf32>
    %14 = vector.shape_cast %13 : vector<8xf32> to vector<8x1xf32>
    %cst_8 = arith.constant 9.765625E-4 : f32
    %15 = vector.broadcast %cst_8 : f32 to vector<8x1xf32>
    %16 = arith.mulf %14, %15 : vector<8x1xf32>
    %c0_9 = arith.constant 0 : index
    %c0_10 = arith.constant 0 : index
    %17 = vector.load %arg4[%c0_9, %c0_10] : memref<8x1xf32, #tpu.memory_space<vmem>>, vector<8x1xf32>
    %cst_11 = arith.constant 9.99999974E-6 : f32
    %18 = vector.broadcast %cst_11 : f32 to vector<8x1xf32>
    %19 = arith.addf %16, %18 : vector<8x1xf32>
    %20 = math.rsqrt %19 : vector<8x1xf32>
    %21 = arith.mulf %17, %20 : vector<8x1xf32>
    %22 = vector.broadcast %21 : vector<8x1xf32> to vector<8x1024xf32>
    %23 = arith.mulf %11, %22 : vector<8x1024xf32>
    %c0_12 = arith.constant 0 : index
    %c0_13 = arith.constant 0 : index
    %24 = vector.load %arg5[%c0_12, %c0_13] : memref<8x1xf32, #tpu.memory_space<vmem>>, vector<8x1xf32>
    %25 = vector.broadcast %24 : vector<8x1xf32> to vector<8x1024xf32>
    %26 = arith.addf %23, %25 : vector<8x1024xf32>
    %c0_14 = arith.constant 0 : index
    %c0_15 = arith.constant 0 : index
    %27 = vector.load %arg6[%c0_14, %c0_15] : memref<8x1024xf32, #tpu.memory_space<vmem>>, vector<8x1024xf32>
    %28 = arith.addf %26, %27 : vector<8x1024xf32>
    %cst_16 = arith.constant 0.000000e+00 : f32
    %29 = vector.broadcast %cst_16 : f32 to vector<8x1024xf32>
    %30 = arith.maximumf %28, %29 : vector<8x1024xf32>
    %c0_17 = arith.constant 0 : index
    %c0_18 = arith.constant 0 : index
    %31 = vector.load %arg7[%c0_17, %c0_18] : memref<8x1024xf32, #tpu.memory_space<vmem>>, vector<8x1024xf32>
    tpu.vector_store %arg7[%c0_17, %c0_18], %30 {strides = array<i32>} : memref<8x1024xf32, #tpu.memory_space<vmem>>, vector<8x1024xf32>,
    return
  }
  func.func @transform_0(%arg0: i32) -> (i32, i32) {
    %c0_i32 = arith.constant 0 : i32
    %c0_i32_0 = arith.constant 0 : i32
    %c0_i32_1 = arith.constant 0 : i32
    return %c0_i32, %c0_i32_0 : i32, i32
  }
  func.func @transform_1(%arg0: i32) -> (i32, i32) {
    %c0_i32 = arith.constant 0 : i32
    %c0_i32_0 = arith.constant 0 : i32
    %c0_i32_1 = arith.constant 0 : i32
    return %c0_i32, %c0_i32_0 : i32, i32
  }
  func.func @transform_2(%arg0: i32) -> (i32, i32) {
    %c0_i32 = arith.constant 0 : i32
    %c0_i32_0 = arith.constant 0 : i32
    %c0_i32_1 = arith.constant 0 : i32
    return %c0_i32, %c0_i32_0 : i32, i32
  }
  func.func @transform_3(%arg0: i32) -> (i32, i32) {
    %c0_i32 = arith.constant 0 : i32
    %c0_i32_0 = arith.constant 0 : i32
    %c0_i32_1 = arith.constant 0 : i32
    return %c0_i32, %c0_i32_0 : i32, i32
  }
  func.func @transform_4(%arg0: i32) -> (i32, i32) {
    %c0_i32 = arith.constant 0 : i32
    %c0_i32_0 = arith.constant 0 : i32
    %c0_i32_1 = arith.constant 0 : i32
    return %c0_i32, %c0_i32_0 : i32, i32
  }
  func.func @transform_5(%arg0: i32) -> (i32, i32) {
    %c0_i32 = arith.constant 0 : i32
    %c0_i32_0 = arith.constant 0 : i32
    %c0_i32_1 = arith.constant 0 : i32
    return %c0_i32, %c0_i32_0 : i32, i32
  }
  func.func @transform_6(%arg0: i32) -> (i32, i32) {
    %c0_i32 = arith.constant 0 : i32
    %c0_i32_0 = arith.constant 0 : i32
    %c0_i32_1 = arith.constant 0 : i32
    return %c0_i32, %c0_i32_0 : i32, i32
  }
}

module attributes {stable_mosaic.version = 11 : i64} {
  func.func @kernel(%arg0: i32, %arg1: memref<72x256xbf16, #tpu.memory_space<vmem>>, %arg2: memref<32x72xbf16, #tpu.memory_space<vmem>>, %arg3: memref<32x1xf32, #tpu.memory_space<vmem>>, %arg4: memref<16x1xf32, #tpu.memory_space<vmem>>, %arg5: memref<16x1xf32, #tpu.memory_space<vmem>>, %arg6: memref<16x256xbf16, #tpu.memory_space<vmem>>, %arg7: memref<16x256xf32, #tpu.memory_space<vmem>>) attributes {dimension_semantics = [#tpu.dimension_semantics<arbitrary>], iteration_bounds = array<i64: 1>, scalar_prefetch = 0 : i64, scratch_operands = 0 : i64, tpu.core_type = #tpu.core_type<tc>, window_params = [{pipeline_mode = #tpu.pipeline_mode<synchronous>, transform_indices = @transform_0, window_bounds = array<i64: 72, 256>}, {pipeline_mode = #tpu.pipeline_mode<synchronous>, transform_indices = @transform_1, window_bounds = array<i64: 32, 72>}, {pipeline_mode = #tpu.pipeline_mode<synchronous>, transform_indices = @transform_2, window_bounds = array<i64: 32, 1>}, {pipeline_mode = #tpu.pipeline_mode<synchronous>, transform_indices = @transform_3, window_bounds = array<i64: 16, 1>}, {pipeline_mode = #tpu.pipeline_mode<synchronous>, transform_indices = @transform_4, window_bounds = array<i64: 16, 1>}, {pipeline_mode = #tpu.pipeline_mode<synchronous>, transform_indices = @transform_5, window_bounds = array<i64: 16, 256>}, {pipeline_mode = #tpu.pipeline_mode<synchronous>, transform_indices = @transform_6, window_bounds = array<i64: 16, 256>}]} {
    %c0 = arith.constant 0 : index
    %c0_0 = arith.constant 0 : index
    %0 = vector.load %arg2[%c0, %c0_0] : memref<32x72xbf16, #tpu.memory_space<vmem>>, vector<32x72xbf16>
    %c0_1 = arith.constant 0 : index
    %c0_2 = arith.constant 0 : index
    %1 = vector.load %arg1[%c0_1, %c0_2] : memref<72x256xbf16, #tpu.memory_space<vmem>>, vector<72x256xbf16>
    %cst = arith.constant dense<0.000000e+00> : vector<32x256xf32>
    %2 = tpu.matmul %0, %1, %cst {dimension_numbers = #tpu.dot_dimension_numbers<[1], [0], [0], [1], [0, 0, 1, 1], [], []>} : vector<32x72xbf16>, vector<72x256xbf16>, vector<32x256xf32> -> vector<32x256xf32>
    %c0_3 = arith.constant 0 : index
    %c0_4 = arith.constant 0 : index
    %3 = vector.load %arg3[%c0_3, %c0_4] : memref<32x1xf32, #tpu.memory_space<vmem>>, vector<32x1xf32>
    %4 = vector.broadcast %3 : vector<32x1xf32> to vector<32x256xf32>
    %5 = arith.addf %2, %4 : vector<32x256xf32>
    %6 = vector.extract_strided_slice %5 {offsets = [16, 0], sizes = [16, 256], strides = [1, 1]} : vector<32x256xf32> to vector<16x256xf32>
    %c0_5 = arith.constant 0 : index
    %c0_6 = arith.constant 0 : index
    %7 = vector.load %arg7[%c0_5, %c0_6] : memref<16x256xf32, #tpu.memory_space<vmem>>, vector<16x256xf32>
    tpu.vector_store %arg7[%c0_5, %c0_6], %6 {strides = array<i32>} : memref<16x256xf32, #tpu.memory_space<vmem>>, vector<16x256xf32>,
    %8 = vector.extract_strided_slice %5 {offsets = [0, 0], sizes = [16, 256], strides = [1, 1]} : vector<32x256xf32> to vector<16x256xf32>
    %cst_7 = arith.constant dense<0.000000e+00> : vector<16xf32>
    %9 = vector.multi_reduction <add>, %8, %cst_7 [1] : vector<16x256xf32> to vector<16xf32>
    %10 = vector.shape_cast %9 : vector<16xf32> to vector<16x1xf32>
    %cst_8 = arith.constant 3.906250e-03 : f32
    %11 = vector.broadcast %cst_8 : f32 to vector<16x1xf32>
    %12 = arith.mulf %10, %11 : vector<16x1xf32>
    %13 = vector.broadcast %12 : vector<16x1xf32> to vector<16x256xf32>
    %14 = arith.subf %8, %13 : vector<16x256xf32>
    %15 = arith.mulf %14, %14 : vector<16x256xf32>
    %cst_9 = arith.constant dense<0.000000e+00> : vector<16xf32>
    %16 = vector.multi_reduction <add>, %15, %cst_9 [1] : vector<16x256xf32> to vector<16xf32>
    %17 = vector.shape_cast %16 : vector<16xf32> to vector<16x1xf32>
    %cst_10 = arith.constant 3.906250e-03 : f32
    %18 = vector.broadcast %cst_10 : f32 to vector<16x1xf32>
    %19 = arith.mulf %17, %18 : vector<16x1xf32>
    %c0_11 = arith.constant 0 : index
    %c0_12 = arith.constant 0 : index
    %20 = vector.load %arg4[%c0_11, %c0_12] : memref<16x1xf32, #tpu.memory_space<vmem>>, vector<16x1xf32>
    %cst_13 = arith.constant 9.99999974E-6 : f32
    %21 = vector.broadcast %cst_13 : f32 to vector<16x1xf32>
    %22 = arith.addf %19, %21 : vector<16x1xf32>
    %23 = math.rsqrt %22 : vector<16x1xf32>
    %24 = arith.mulf %20, %23 : vector<16x1xf32>
    %25 = vector.broadcast %24 : vector<16x1xf32> to vector<16x256xf32>
    %26 = arith.mulf %14, %25 : vector<16x256xf32>
    %c0_14 = arith.constant 0 : index
    %c0_15 = arith.constant 0 : index
    %27 = vector.load %arg5[%c0_14, %c0_15] : memref<16x1xf32, #tpu.memory_space<vmem>>, vector<16x1xf32>
    %28 = vector.broadcast %27 : vector<16x1xf32> to vector<16x256xf32>
    %29 = arith.addf %26, %28 : vector<16x256xf32>
    %cst_16 = arith.constant 0.000000e+00 : f32
    %30 = vector.broadcast %cst_16 : f32 to vector<16x256xf32>
    %31 = arith.maximumf %29, %30 : vector<16x256xf32>
    %32 = arith.truncf %31 : vector<16x256xf32> to vector<16x256xbf16>
    %c0_17 = arith.constant 0 : index
    %c0_18 = arith.constant 0 : index
    %33 = vector.load %arg6[%c0_17, %c0_18] : memref<16x256xbf16, #tpu.memory_space<vmem>>, vector<16x256xbf16>
    tpu.vector_store %arg6[%c0_17, %c0_18], %32 {strides = array<i32>} : memref<16x256xbf16, #tpu.memory_space<vmem>>, vector<16x256xbf16>,
    return
  }
  func.func @transform_0(%arg0: i32) -> (i32, i32) {
    %c0_i32 = arith.constant 0 : i32
    %c0_i32_0 = arith.constant 0 : i32
    %c0_i32_1 = arith.constant 0 : i32
    return %c0_i32, %c0_i32_0 : i32, i32
  }
  func.func @transform_1(%arg0: i32) -> (i32, i32) {
    %c0_i32 = arith.constant 0 : i32
    %c0_i32_0 = arith.constant 0 : i32
    %c0_i32_1 = arith.constant 0 : i32
    return %c0_i32, %c0_i32_0 : i32, i32
  }
  func.func @transform_2(%arg0: i32) -> (i32, i32) {
    %c0_i32 = arith.constant 0 : i32
    %c0_i32_0 = arith.constant 0 : i32
    %c0_i32_1 = arith.constant 0 : i32
    return %c0_i32, %c0_i32_0 : i32, i32
  }
  func.func @transform_3(%arg0: i32) -> (i32, i32) {
    %c0_i32 = arith.constant 0 : i32
    %c0_i32_0 = arith.constant 0 : i32
    %c0_i32_1 = arith.constant 0 : i32
    return %c0_i32, %c0_i32_0 : i32, i32
  }
  func.func @transform_4(%arg0: i32) -> (i32, i32) {
    %c0_i32 = arith.constant 0 : i32
    %c0_i32_0 = arith.constant 0 : i32
    %c0_i32_1 = arith.constant 0 : i32
    return %c0_i32, %c0_i32_0 : i32, i32
  }
  func.func @transform_5(%arg0: i32) -> (i32, i32) {
    %c0_i32 = arith.constant 0 : i32
    %c0_i32_0 = arith.constant 0 : i32
    %c0_i32_1 = arith.constant 0 : i32
    return %c0_i32, %c0_i32_0 : i32, i32
  }
  func.func @transform_6(%arg0: i32) -> (i32, i32) {
    %c0_i32 = arith.constant 0 : i32
    %c0_i32_0 = arith.constant 0 : i32
    %c0_i32_1 = arith.constant 0 : i32
    return %c0_i32, %c0_i32_0 : i32, i32
  }
}

module attributes {stable_mosaic.version = 11 : i64} {
  func.func @kernel(%arg0: i32, %arg1: memref<144x256xbf16, #tpu.memory_space<vmem>>, %arg2: memref<16x144xbf16, #tpu.memory_space<vmem>>, %arg3: memref<16x1xf32, #tpu.memory_space<vmem>>, %arg4: memref<16x1xf32, #tpu.memory_space<vmem>>, %arg5: memref<16x1xf32, #tpu.memory_space<vmem>>, %arg6: memref<16x256xf32, #tpu.memory_space<vmem>>, %arg7: memref<16x256xbf16, #tpu.memory_space<vmem>>) attributes {dimension_semantics = [#tpu.dimension_semantics<arbitrary>], iteration_bounds = array<i64: 1>, scalar_prefetch = 0 : i64, scratch_operands = 0 : i64, tpu.core_type = #tpu.core_type<tc>, window_params = [{pipeline_mode = #tpu.pipeline_mode<synchronous>, transform_indices = @transform_0, window_bounds = array<i64: 144, 256>}, {pipeline_mode = #tpu.pipeline_mode<synchronous>, transform_indices = @transform_1, window_bounds = array<i64: 16, 144>}, {pipeline_mode = #tpu.pipeline_mode<synchronous>, transform_indices = @transform_2, window_bounds = array<i64: 16, 1>}, {pipeline_mode = #tpu.pipeline_mode<synchronous>, transform_indices = @transform_3, window_bounds = array<i64: 16, 1>}, {pipeline_mode = #tpu.pipeline_mode<synchronous>, transform_indices = @transform_4, window_bounds = array<i64: 16, 1>}, {pipeline_mode = #tpu.pipeline_mode<synchronous>, transform_indices = @transform_5, window_bounds = array<i64: 16, 256>}, {pipeline_mode = #tpu.pipeline_mode<synchronous>, transform_indices = @transform_6, window_bounds = array<i64: 16, 256>}]} {
    %c0 = arith.constant 0 : index
    %c0_0 = arith.constant 0 : index
    %0 = vector.load %arg2[%c0, %c0_0] : memref<16x144xbf16, #tpu.memory_space<vmem>>, vector<16x144xbf16>
    %c0_1 = arith.constant 0 : index
    %c0_2 = arith.constant 0 : index
    %1 = vector.load %arg1[%c0_1, %c0_2] : memref<144x256xbf16, #tpu.memory_space<vmem>>, vector<144x256xbf16>
    %cst = arith.constant dense<0.000000e+00> : vector<16x256xf32>
    %2 = tpu.matmul %0, %1, %cst {dimension_numbers = #tpu.dot_dimension_numbers<[1], [0], [0], [1], [0, 0, 1, 1], [], []>} : vector<16x144xbf16>, vector<144x256xbf16>, vector<16x256xf32> -> vector<16x256xf32>
    %c0_3 = arith.constant 0 : index
    %c0_4 = arith.constant 0 : index
    %3 = vector.load %arg3[%c0_3, %c0_4] : memref<16x1xf32, #tpu.memory_space<vmem>>, vector<16x1xf32>
    %4 = vector.broadcast %3 : vector<16x1xf32> to vector<16x256xf32>
    %5 = arith.addf %2, %4 : vector<16x256xf32>
    %cst_5 = arith.constant dense<0.000000e+00> : vector<16xf32>
    %6 = vector.multi_reduction <add>, %5, %cst_5 [1] : vector<16x256xf32> to vector<16xf32>
    %7 = vector.shape_cast %6 : vector<16xf32> to vector<16x1xf32>
    %cst_6 = arith.constant 3.906250e-03 : f32
    %8 = vector.broadcast %cst_6 : f32 to vector<16x1xf32>
    %9 = arith.mulf %7, %8 : vector<16x1xf32>
    %10 = vector.broadcast %9 : vector<16x1xf32> to vector<16x256xf32>
    %11 = arith.subf %5, %10 : vector<16x256xf32>
    %12 = arith.mulf %11, %11 : vector<16x256xf32>
    %cst_7 = arith.constant dense<0.000000e+00> : vector<16xf32>
    %13 = vector.multi_reduction <add>, %12, %cst_7 [1] : vector<16x256xf32> to vector<16xf32>
    %14 = vector.shape_cast %13 : vector<16xf32> to vector<16x1xf32>
    %cst_8 = arith.constant 3.906250e-03 : f32
    %15 = vector.broadcast %cst_8 : f32 to vector<16x1xf32>
    %16 = arith.mulf %14, %15 : vector<16x1xf32>
    %c0_9 = arith.constant 0 : index
    %c0_10 = arith.constant 0 : index
    %17 = vector.load %arg4[%c0_9, %c0_10] : memref<16x1xf32, #tpu.memory_space<vmem>>, vector<16x1xf32>
    %cst_11 = arith.constant 9.99999974E-6 : f32
    %18 = vector.broadcast %cst_11 : f32 to vector<16x1xf32>
    %19 = arith.addf %16, %18 : vector<16x1xf32>
    %20 = math.rsqrt %19 : vector<16x1xf32>
    %21 = arith.mulf %17, %20 : vector<16x1xf32>
    %22 = vector.broadcast %21 : vector<16x1xf32> to vector<16x256xf32>
    %23 = arith.mulf %11, %22 : vector<16x256xf32>
    %c0_12 = arith.constant 0 : index
    %c0_13 = arith.constant 0 : index
    %24 = vector.load %arg5[%c0_12, %c0_13] : memref<16x1xf32, #tpu.memory_space<vmem>>, vector<16x1xf32>
    %25 = vector.broadcast %24 : vector<16x1xf32> to vector<16x256xf32>
    %26 = arith.addf %23, %25 : vector<16x256xf32>
    %c0_14 = arith.constant 0 : index
    %c0_15 = arith.constant 0 : index
    %27 = vector.load %arg6[%c0_14, %c0_15] : memref<16x256xf32, #tpu.memory_space<vmem>>, vector<16x256xf32>
    %28 = arith.addf %26, %27 : vector<16x256xf32>
    %cst_16 = arith.constant 0.000000e+00 : f32
    %29 = vector.broadcast %cst_16 : f32 to vector<16x256xf32>
    %30 = arith.maximumf %28, %29 : vector<16x256xf32>
    %31 = arith.truncf %30 : vector<16x256xf32> to vector<16x256xbf16>
    %c0_17 = arith.constant 0 : index
    %c0_18 = arith.constant 0 : index
    %32 = vector.load %arg7[%c0_17, %c0_18] : memref<16x256xbf16, #tpu.memory_space<vmem>>, vector<16x256xbf16>
    tpu.vector_store %arg7[%c0_17, %c0_18], %31 {strides = array<i32>} : memref<16x256xbf16, #tpu.memory_space<vmem>>, vector<16x256xbf16>,
    return
  }
  func.func @transform_0(%arg0: i32) -> (i32, i32) {
    %c0_i32 = arith.constant 0 : i32
    %c0_i32_0 = arith.constant 0 : i32
    %c0_i32_1 = arith.constant 0 : i32
    return %c0_i32, %c0_i32_0 : i32, i32
  }
  func.func @transform_1(%arg0: i32) -> (i32, i32) {
    %c0_i32 = arith.constant 0 : i32
    %c0_i32_0 = arith.constant 0 : i32
    %c0_i32_1 = arith.constant 0 : i32
    return %c0_i32, %c0_i32_0 : i32, i32
  }
  func.func @transform_2(%arg0: i32) -> (i32, i32) {
    %c0_i32 = arith.constant 0 : i32
    %c0_i32_0 = arith.constant 0 : i32
    %c0_i32_1 = arith.constant 0 : i32
    return %c0_i32, %c0_i32_0 : i32, i32
  }
  func.func @transform_3(%arg0: i32) -> (i32, i32) {
    %c0_i32 = arith.constant 0 : i32
    %c0_i32_0 = arith.constant 0 : i32
    %c0_i32_1 = arith.constant 0 : i32
    return %c0_i32, %c0_i32_0 : i32, i32
  }
  func.func @transform_4(%arg0: i32) -> (i32, i32) {
    %c0_i32 = arith.constant 0 : i32
    %c0_i32_0 = arith.constant 0 : i32
    %c0_i32_1 = arith.constant 0 : i32
    return %c0_i32, %c0_i32_0 : i32, i32
  }
  func.func @transform_5(%arg0: i32) -> (i32, i32) {
    %c0_i32 = arith.constant 0 : i32
    %c0_i32_0 = arith.constant 0 : i32
    %c0_i32_1 = arith.constant 0 : i32
    return %c0_i32, %c0_i32_0 : i32, i32
  }
  func.func @transform_6(%arg0: i32) -> (i32, i32) {
    %c0_i32 = arith.constant 0 : i32
    %c0_i32_0 = arith.constant 0 : i32
    %c0_i32_1 = arith.constant 0 : i32
    return %c0_i32, %c0_i32_0 : i32, i32
  }
}

module attributes {stable_mosaic.version = 11 : i64} {
  func.func @kernel(%arg0: i32, %arg1: memref<144x256xbf16, #tpu.memory_space<vmem>>, %arg2: memref<16x144xbf16, #tpu.memory_space<vmem>>, %arg3: memref<16x1xf32, #tpu.memory_space<vmem>>, %arg4: memref<16x1xf32, #tpu.memory_space<vmem>>, %arg5: memref<16x1xf32, #tpu.memory_space<vmem>>, %arg6: memref<16x256xbf16, #tpu.memory_space<vmem>>) attributes {dimension_semantics = [#tpu.dimension_semantics<arbitrary>], iteration_bounds = array<i64: 1>, scalar_prefetch = 0 : i64, scratch_operands = 0 : i64, tpu.core_type = #tpu.core_type<tc>, window_params = [{pipeline_mode = #tpu.pipeline_mode<synchronous>, transform_indices = @transform_0, window_bounds = array<i64: 144, 256>}, {pipeline_mode = #tpu.pipeline_mode<synchronous>, transform_indices = @transform_1, window_bounds = array<i64: 16, 144>}, {pipeline_mode = #tpu.pipeline_mode<synchronous>, transform_indices = @transform_2, window_bounds = array<i64: 16, 1>}, {pipeline_mode = #tpu.pipeline_mode<synchronous>, transform_indices = @transform_3, window_bounds = array<i64: 16, 1>}, {pipeline_mode = #tpu.pipeline_mode<synchronous>, transform_indices = @transform_4, window_bounds = array<i64: 16, 1>}, {pipeline_mode = #tpu.pipeline_mode<synchronous>, transform_indices = @transform_5, window_bounds = array<i64: 16, 256>}]} {
    %c0 = arith.constant 0 : index
    %c0_0 = arith.constant 0 : index
    %0 = vector.load %arg2[%c0, %c0_0] : memref<16x144xbf16, #tpu.memory_space<vmem>>, vector<16x144xbf16>
    %c0_1 = arith.constant 0 : index
    %c0_2 = arith.constant 0 : index
    %1 = vector.load %arg1[%c0_1, %c0_2] : memref<144x256xbf16, #tpu.memory_space<vmem>>, vector<144x256xbf16>
    %cst = arith.constant dense<0.000000e+00> : vector<16x256xf32>
    %2 = tpu.matmul %0, %1, %cst {dimension_numbers = #tpu.dot_dimension_numbers<[1], [0], [0], [1], [0, 0, 1, 1], [], []>} : vector<16x144xbf16>, vector<144x256xbf16>, vector<16x256xf32> -> vector<16x256xf32>
    %c0_3 = arith.constant 0 : index
    %c0_4 = arith.constant 0 : index
    %3 = vector.load %arg3[%c0_3, %c0_4] : memref<16x1xf32, #tpu.memory_space<vmem>>, vector<16x1xf32>
    %4 = vector.broadcast %3 : vector<16x1xf32> to vector<16x256xf32>
    %5 = arith.addf %2, %4 : vector<16x256xf32>
    %cst_5 = arith.constant dense<0.000000e+00> : vector<16xf32>
    %6 = vector.multi_reduction <add>, %5, %cst_5 [1] : vector<16x256xf32> to vector<16xf32>
    %7 = vector.shape_cast %6 : vector<16xf32> to vector<16x1xf32>
    %cst_6 = arith.constant 3.906250e-03 : f32
    %8 = vector.broadcast %cst_6 : f32 to vector<16x1xf32>
    %9 = arith.mulf %7, %8 : vector<16x1xf32>
    %10 = vector.broadcast %9 : vector<16x1xf32> to vector<16x256xf32>
    %11 = arith.subf %5, %10 : vector<16x256xf32>
    %12 = arith.mulf %11, %11 : vector<16x256xf32>
    %cst_7 = arith.constant dense<0.000000e+00> : vector<16xf32>
    %13 = vector.multi_reduction <add>, %12, %cst_7 [1] : vector<16x256xf32> to vector<16xf32>
    %14 = vector.shape_cast %13 : vector<16xf32> to vector<16x1xf32>
    %cst_8 = arith.constant 3.906250e-03 : f32
    %15 = vector.broadcast %cst_8 : f32 to vector<16x1xf32>
    %16 = arith.mulf %14, %15 : vector<16x1xf32>
    %c0_9 = arith.constant 0 : index
    %c0_10 = arith.constant 0 : index
    %17 = vector.load %arg4[%c0_9, %c0_10] : memref<16x1xf32, #tpu.memory_space<vmem>>, vector<16x1xf32>
    %cst_11 = arith.constant 9.99999974E-6 : f32
    %18 = vector.broadcast %cst_11 : f32 to vector<16x1xf32>
    %19 = arith.addf %16, %18 : vector<16x1xf32>
    %20 = math.rsqrt %19 : vector<16x1xf32>
    %21 = arith.mulf %17, %20 : vector<16x1xf32>
    %22 = vector.broadcast %21 : vector<16x1xf32> to vector<16x256xf32>
    %23 = arith.mulf %11, %22 : vector<16x256xf32>
    %c0_12 = arith.constant 0 : index
    %c0_13 = arith.constant 0 : index
    %24 = vector.load %arg5[%c0_12, %c0_13] : memref<16x1xf32, #tpu.memory_space<vmem>>, vector<16x1xf32>
    %25 = vector.broadcast %24 : vector<16x1xf32> to vector<16x256xf32>
    %26 = arith.addf %23, %25 : vector<16x256xf32>
    %cst_14 = arith.constant 0.000000e+00 : f32
    %27 = vector.broadcast %cst_14 : f32 to vector<16x256xf32>
    %28 = arith.maximumf %26, %27 : vector<16x256xf32>
    %29 = arith.truncf %28 : vector<16x256xf32> to vector<16x256xbf16>
    %c0_15 = arith.constant 0 : index
    %c0_16 = arith.constant 0 : index
    %30 = vector.load %arg6[%c0_15, %c0_16] : memref<16x256xbf16, #tpu.memory_space<vmem>>, vector<16x256xbf16>
    tpu.vector_store %arg6[%c0_15, %c0_16], %29 {strides = array<i32>} : memref<16x256xbf16, #tpu.memory_space<vmem>>, vector<16x256xbf16>,
    return
  }
  func.func @transform_0(%arg0: i32) -> (i32, i32) {
    %c0_i32 = arith.constant 0 : i32
    %c0_i32_0 = arith.constant 0 : i32
    %c0_i32_1 = arith.constant 0 : i32
    return %c0_i32, %c0_i32_0 : i32, i32
  }
  func.func @transform_1(%arg0: i32) -> (i32, i32) {
    %c0_i32 = arith.constant 0 : i32
    %c0_i32_0 = arith.constant 0 : i32
    %c0_i32_1 = arith.constant 0 : i32
    return %c0_i32, %c0_i32_0 : i32, i32
  }
  func.func @transform_2(%arg0: i32) -> (i32, i32) {
    %c0_i32 = arith.constant 0 : i32
    %c0_i32_0 = arith.constant 0 : i32
    %c0_i32_1 = arith.constant 0 : i32
    return %c0_i32, %c0_i32_0 : i32, i32
  }
  func.func @transform_3(%arg0: i32) -> (i32, i32) {
    %c0_i32 = arith.constant 0 : i32
    %c0_i32_0 = arith.constant 0 : i32
    %c0_i32_1 = arith.constant 0 : i32
    return %c0_i32, %c0_i32_0 : i32, i32
  }
  func.func @transform_4(%arg0: i32) -> (i32, i32) {
    %c0_i32 = arith.constant 0 : i32
    %c0_i32_0 = arith.constant 0 : i32
    %c0_i32_1 = arith.constant 0 : i32
    return %c0_i32, %c0_i32_0 : i32, i32
  }
  func.func @transform_5(%arg0: i32) -> (i32, i32) {
    %c0_i32 = arith.constant 0 : i32
    %c0_i32_0 = arith.constant 0 : i32
    %c0_i32_1 = arith.constant 0 : i32
    return %c0_i32, %c0_i32_0 : i32, i32
  }
}

module attributes {stable_mosaic.version = 11 : i64} {
  func.func @kernel(%arg0: i32, %arg1: memref<144x256xbf16, #tpu.memory_space<vmem>>, %arg2: memref<16x144xbf16, #tpu.memory_space<vmem>>, %arg3: memref<16x1xf32, #tpu.memory_space<vmem>>, %arg4: memref<16x1xf32, #tpu.memory_space<vmem>>, %arg5: memref<16x1xf32, #tpu.memory_space<vmem>>, %arg6: memref<16x256xbf16, #tpu.memory_space<vmem>>, %arg7: memref<16x256xbf16, #tpu.memory_space<vmem>>) attributes {dimension_semantics = [#tpu.dimension_semantics<arbitrary>], iteration_bounds = array<i64: 1>, scalar_prefetch = 0 : i64, scratch_operands = 0 : i64, tpu.core_type = #tpu.core_type<tc>, window_params = [{pipeline_mode = #tpu.pipeline_mode<synchronous>, transform_indices = @transform_0, window_bounds = array<i64: 144, 256>}, {pipeline_mode = #tpu.pipeline_mode<synchronous>, transform_indices = @transform_1, window_bounds = array<i64: 16, 144>}, {pipeline_mode = #tpu.pipeline_mode<synchronous>, transform_indices = @transform_2, window_bounds = array<i64: 16, 1>}, {pipeline_mode = #tpu.pipeline_mode<synchronous>, transform_indices = @transform_3, window_bounds = array<i64: 16, 1>}, {pipeline_mode = #tpu.pipeline_mode<synchronous>, transform_indices = @transform_4, window_bounds = array<i64: 16, 1>}, {pipeline_mode = #tpu.pipeline_mode<synchronous>, transform_indices = @transform_5, window_bounds = array<i64: 16, 256>}, {pipeline_mode = #tpu.pipeline_mode<synchronous>, transform_indices = @transform_6, window_bounds = array<i64: 16, 256>}]} {
    %c0 = arith.constant 0 : index
    %c0_0 = arith.constant 0 : index
    %0 = vector.load %arg2[%c0, %c0_0] : memref<16x144xbf16, #tpu.memory_space<vmem>>, vector<16x144xbf16>
    %c0_1 = arith.constant 0 : index
    %c0_2 = arith.constant 0 : index
    %1 = vector.load %arg1[%c0_1, %c0_2] : memref<144x256xbf16, #tpu.memory_space<vmem>>, vector<144x256xbf16>
    %cst = arith.constant dense<0.000000e+00> : vector<16x256xf32>
    %2 = tpu.matmul %0, %1, %cst {dimension_numbers = #tpu.dot_dimension_numbers<[1], [0], [0], [1], [0, 0, 1, 1], [], []>} : vector<16x144xbf16>, vector<144x256xbf16>, vector<16x256xf32> -> vector<16x256xf32>
    %c0_3 = arith.constant 0 : index
    %c0_4 = arith.constant 0 : index
    %3 = vector.load %arg3[%c0_3, %c0_4] : memref<16x1xf32, #tpu.memory_space<vmem>>, vector<16x1xf32>
    %4 = vector.broadcast %3 : vector<16x1xf32> to vector<16x256xf32>
    %5 = arith.addf %2, %4 : vector<16x256xf32>
    %cst_5 = arith.constant dense<0.000000e+00> : vector<16xf32>
    %6 = vector.multi_reduction <add>, %5, %cst_5 [1] : vector<16x256xf32> to vector<16xf32>
    %7 = vector.shape_cast %6 : vector<16xf32> to vector<16x1xf32>
    %cst_6 = arith.constant 3.906250e-03 : f32
    %8 = vector.broadcast %cst_6 : f32 to vector<16x1xf32>
    %9 = arith.mulf %7, %8 : vector<16x1xf32>
    %10 = vector.broadcast %9 : vector<16x1xf32> to vector<16x256xf32>
    %11 = arith.subf %5, %10 : vector<16x256xf32>
    %12 = arith.mulf %11, %11 : vector<16x256xf32>
    %cst_7 = arith.constant dense<0.000000e+00> : vector<16xf32>
    %13 = vector.multi_reduction <add>, %12, %cst_7 [1] : vector<16x256xf32> to vector<16xf32>
    %14 = vector.shape_cast %13 : vector<16xf32> to vector<16x1xf32>
    %cst_8 = arith.constant 3.906250e-03 : f32
    %15 = vector.broadcast %cst_8 : f32 to vector<16x1xf32>
    %16 = arith.mulf %14, %15 : vector<16x1xf32>
    %c0_9 = arith.constant 0 : index
    %c0_10 = arith.constant 0 : index
    %17 = vector.load %arg4[%c0_9, %c0_10] : memref<16x1xf32, #tpu.memory_space<vmem>>, vector<16x1xf32>
    %cst_11 = arith.constant 9.99999974E-6 : f32
    %18 = vector.broadcast %cst_11 : f32 to vector<16x1xf32>
    %19 = arith.addf %16, %18 : vector<16x1xf32>
    %20 = math.rsqrt %19 : vector<16x1xf32>
    %21 = arith.mulf %17, %20 : vector<16x1xf32>
    %22 = vector.broadcast %21 : vector<16x1xf32> to vector<16x256xf32>
    %23 = arith.mulf %11, %22 : vector<16x256xf32>
    %c0_12 = arith.constant 0 : index
    %c0_13 = arith.constant 0 : index
    %24 = vector.load %arg5[%c0_12, %c0_13] : memref<16x1xf32, #tpu.memory_space<vmem>>, vector<16x1xf32>
    %25 = vector.broadcast %24 : vector<16x1xf32> to vector<16x256xf32>
    %26 = arith.addf %23, %25 : vector<16x256xf32>
    %c0_14 = arith.constant 0 : index
    %c0_15 = arith.constant 0 : index
    %27 = vector.load %arg6[%c0_14, %c0_15] : memref<16x256xbf16, #tpu.memory_space<vmem>>, vector<16x256xbf16>
    %28 = arith.extf %27 : vector<16x256xbf16> to vector<16x256xf32>
    %29 = arith.addf %26, %28 : vector<16x256xf32>
    %cst_16 = arith.constant 0.000000e+00 : f32
    %30 = vector.broadcast %cst_16 : f32 to vector<16x256xf32>
    %31 = arith.maximumf %29, %30 : vector<16x256xf32>
    %32 = arith.truncf %31 : vector<16x256xf32> to vector<16x256xbf16>
    %c0_17 = arith.constant 0 : index
    %c0_18 = arith.constant 0 : index
    %33 = vector.load %arg7[%c0_17, %c0_18] : memref<16x256xbf16, #tpu.memory_space<vmem>>, vector<16x256xbf16>
    tpu.vector_store %arg7[%c0_17, %c0_18], %32 {strides = array<i32>} : memref<16x256xbf16, #tpu.memory_space<vmem>>, vector<16x256xbf16>,
    return
  }
  func.func @transform_0(%arg0: i32) -> (i32, i32) {
    %c0_i32 = arith.constant 0 : i32
    %c0_i32_0 = arith.constant 0 : i32
    %c0_i32_1 = arith.constant 0 : i32
    return %c0_i32, %c0_i32_0 : i32, i32
  }
  func.func @transform_1(%arg0: i32) -> (i32, i32) {
    %c0_i32 = arith.constant 0 : i32
    %c0_i32_0 = arith.constant 0 : i32
    %c0_i32_1 = arith.constant 0 : i32
    return %c0_i32, %c0_i32_0 : i32, i32
  }
  func.func @transform_2(%arg0: i32) -> (i32, i32) {
    %c0_i32 = arith.constant 0 : i32
    %c0_i32_0 = arith.constant 0 : i32
    %c0_i32_1 = arith.constant 0 : i32
    return %c0_i32, %c0_i32_0 : i32, i32
  }
  func.func @transform_3(%arg0: i32) -> (i32, i32) {
    %c0_i32 = arith.constant 0 : i32
    %c0_i32_0 = arith.constant 0 : i32
    %c0_i32_1 = arith.constant 0 : i32
    return %c0_i32, %c0_i32_0 : i32, i32
  }
  func.func @transform_4(%arg0: i32) -> (i32, i32) {
    %c0_i32 = arith.constant 0 : i32
    %c0_i32_0 = arith.constant 0 : i32
    %c0_i32_1 = arith.constant 0 : i32
    return %c0_i32, %c0_i32_0 : i32, i32
  }
  func.func @transform_5(%arg0: i32) -> (i32, i32) {
    %c0_i32 = arith.constant 0 : i32
    %c0_i32_0 = arith.constant 0 : i32
    %c0_i32_1 = arith.constant 0 : i32
    return %c0_i32, %c0_i32_0 : i32, i32
  }
  func.func @transform_6(%arg0: i32) -> (i32, i32) {
    %c0_i32 = arith.constant 0 : i32
    %c0_i32_0 = arith.constant 0 : i32
    %c0_i32_1 = arith.constant 0 : i32
    return %c0_i32, %c0_i32_0 : i32, i32
  }
}

module attributes {stable_mosaic.version = 11 : i64} {
  func.func @kernel(%arg0: i32, %arg1: memref<144x128xbf16, #tpu.memory_space<vmem>>, %arg2: memref<64x144xbf16, #tpu.memory_space<vmem>>, %arg3: memref<64x1xf32, #tpu.memory_space<vmem>>, %arg4: memref<32x1xf32, #tpu.memory_space<vmem>>, %arg5: memref<32x1xf32, #tpu.memory_space<vmem>>, %arg6: memref<32x128xbf16, #tpu.memory_space<vmem>>, %arg7: memref<32x128xf32, #tpu.memory_space<vmem>>) attributes {dimension_semantics = [#tpu.dimension_semantics<arbitrary>], iteration_bounds = array<i64: 1>, scalar_prefetch = 0 : i64, scratch_operands = 0 : i64, tpu.core_type = #tpu.core_type<tc>, window_params = [{pipeline_mode = #tpu.pipeline_mode<synchronous>, transform_indices = @transform_0, window_bounds = array<i64: 144, 128>}, {pipeline_mode = #tpu.pipeline_mode<synchronous>, transform_indices = @transform_1, window_bounds = array<i64: 64, 144>}, {pipeline_mode = #tpu.pipeline_mode<synchronous>, transform_indices = @transform_2, window_bounds = array<i64: 64, 1>}, {pipeline_mode = #tpu.pipeline_mode<synchronous>, transform_indices = @transform_3, window_bounds = array<i64: 32, 1>}, {pipeline_mode = #tpu.pipeline_mode<synchronous>, transform_indices = @transform_4, window_bounds = array<i64: 32, 1>}, {pipeline_mode = #tpu.pipeline_mode<synchronous>, transform_indices = @transform_5, window_bounds = array<i64: 32, 128>}, {pipeline_mode = #tpu.pipeline_mode<synchronous>, transform_indices = @transform_6, window_bounds = array<i64: 32, 128>}]} {
    %c0 = arith.constant 0 : index
    %c0_0 = arith.constant 0 : index
    %0 = vector.load %arg2[%c0, %c0_0] : memref<64x144xbf16, #tpu.memory_space<vmem>>, vector<64x144xbf16>
    %c0_1 = arith.constant 0 : index
    %c0_2 = arith.constant 0 : index
    %1 = vector.load %arg1[%c0_1, %c0_2] : memref<144x128xbf16, #tpu.memory_space<vmem>>, vector<144x128xbf16>
    %cst = arith.constant dense<0.000000e+00> : vector<64x128xf32>
    %2 = tpu.matmul %0, %1, %cst {dimension_numbers = #tpu.dot_dimension_numbers<[1], [0], [0], [1], [0, 0, 1, 1], [], []>} : vector<64x144xbf16>, vector<144x128xbf16>, vector<64x128xf32> -> vector<64x128xf32>
    %c0_3 = arith.constant 0 : index
    %c0_4 = arith.constant 0 : index
    %3 = vector.load %arg3[%c0_3, %c0_4] : memref<64x1xf32, #tpu.memory_space<vmem>>, vector<64x1xf32>
    %4 = vector.broadcast %3 : vector<64x1xf32> to vector<64x128xf32>
    %5 = arith.addf %2, %4 : vector<64x128xf32>
    %6 = vector.extract_strided_slice %5 {offsets = [32, 0], sizes = [32, 128], strides = [1, 1]} : vector<64x128xf32> to vector<32x128xf32>
    %c0_5 = arith.constant 0 : index
    %c0_6 = arith.constant 0 : index
    %7 = vector.load %arg7[%c0_5, %c0_6] : memref<32x128xf32, #tpu.memory_space<vmem>>, vector<32x128xf32>
    tpu.vector_store %arg7[%c0_5, %c0_6], %6 {strides = array<i32>} : memref<32x128xf32, #tpu.memory_space<vmem>>, vector<32x128xf32>,
    %8 = vector.extract_strided_slice %5 {offsets = [0, 0], sizes = [32, 128], strides = [1, 1]} : vector<64x128xf32> to vector<32x128xf32>
    %cst_7 = arith.constant dense<0.000000e+00> : vector<32xf32>
    %9 = vector.multi_reduction <add>, %8, %cst_7 [1] : vector<32x128xf32> to vector<32xf32>
    %10 = vector.shape_cast %9 : vector<32xf32> to vector<32x1xf32>
    %cst_8 = arith.constant 7.812500e-03 : f32
    %11 = vector.broadcast %cst_8 : f32 to vector<32x1xf32>
    %12 = arith.mulf %10, %11 : vector<32x1xf32>
    %13 = vector.broadcast %12 : vector<32x1xf32> to vector<32x128xf32>
    %14 = arith.subf %8, %13 : vector<32x128xf32>
    %15 = arith.mulf %14, %14 : vector<32x128xf32>
    %cst_9 = arith.constant dense<0.000000e+00> : vector<32xf32>
    %16 = vector.multi_reduction <add>, %15, %cst_9 [1] : vector<32x128xf32> to vector<32xf32>
    %17 = vector.shape_cast %16 : vector<32xf32> to vector<32x1xf32>
    %cst_10 = arith.constant 7.812500e-03 : f32
    %18 = vector.broadcast %cst_10 : f32 to vector<32x1xf32>
    %19 = arith.mulf %17, %18 : vector<32x1xf32>
    %c0_11 = arith.constant 0 : index
    %c0_12 = arith.constant 0 : index
    %20 = vector.load %arg4[%c0_11, %c0_12] : memref<32x1xf32, #tpu.memory_space<vmem>>, vector<32x1xf32>
    %cst_13 = arith.constant 9.99999974E-6 : f32
    %21 = vector.broadcast %cst_13 : f32 to vector<32x1xf32>
    %22 = arith.addf %19, %21 : vector<32x1xf32>
    %23 = math.rsqrt %22 : vector<32x1xf32>
    %24 = arith.mulf %20, %23 : vector<32x1xf32>
    %25 = vector.broadcast %24 : vector<32x1xf32> to vector<32x128xf32>
    %26 = arith.mulf %14, %25 : vector<32x128xf32>
    %c0_14 = arith.constant 0 : index
    %c0_15 = arith.constant 0 : index
    %27 = vector.load %arg5[%c0_14, %c0_15] : memref<32x1xf32, #tpu.memory_space<vmem>>, vector<32x1xf32>
    %28 = vector.broadcast %27 : vector<32x1xf32> to vector<32x128xf32>
    %29 = arith.addf %26, %28 : vector<32x128xf32>
    %cst_16 = arith.constant 0.000000e+00 : f32
    %30 = vector.broadcast %cst_16 : f32 to vector<32x128xf32>
    %31 = arith.maximumf %29, %30 : vector<32x128xf32>
    %32 = arith.truncf %31 : vector<32x128xf32> to vector<32x128xbf16>
    %c0_17 = arith.constant 0 : index
    %c0_18 = arith.constant 0 : index
    %33 = vector.load %arg6[%c0_17, %c0_18] : memref<32x128xbf16, #tpu.memory_space<vmem>>, vector<32x128xbf16>
    tpu.vector_store %arg6[%c0_17, %c0_18], %32 {strides = array<i32>} : memref<32x128xbf16, #tpu.memory_space<vmem>>, vector<32x128xbf16>,
    return
  }
  func.func @transform_0(%arg0: i32) -> (i32, i32) {
    %c0_i32 = arith.constant 0 : i32
    %c0_i32_0 = arith.constant 0 : i32
    %c0_i32_1 = arith.constant 0 : i32
    return %c0_i32, %c0_i32_0 : i32, i32
  }
  func.func @transform_1(%arg0: i32) -> (i32, i32) {
    %c0_i32 = arith.constant 0 : i32
    %c0_i32_0 = arith.constant 0 : i32
    %c0_i32_1 = arith.constant 0 : i32
    return %c0_i32, %c0_i32_0 : i32, i32
  }
  func.func @transform_2(%arg0: i32) -> (i32, i32) {
    %c0_i32 = arith.constant 0 : i32
    %c0_i32_0 = arith.constant 0 : i32
    %c0_i32_1 = arith.constant 0 : i32
    return %c0_i32, %c0_i32_0 : i32, i32
  }
  func.func @transform_3(%arg0: i32) -> (i32, i32) {
    %c0_i32 = arith.constant 0 : i32
    %c0_i32_0 = arith.constant 0 : i32
    %c0_i32_1 = arith.constant 0 : i32
    return %c0_i32, %c0_i32_0 : i32, i32
  }
  func.func @transform_4(%arg0: i32) -> (i32, i32) {
    %c0_i32 = arith.constant 0 : i32
    %c0_i32_0 = arith.constant 0 : i32
    %c0_i32_1 = arith.constant 0 : i32
    return %c0_i32, %c0_i32_0 : i32, i32
  }
  func.func @transform_5(%arg0: i32) -> (i32, i32) {
    %c0_i32 = arith.constant 0 : i32
    %c0_i32_0 = arith.constant 0 : i32
    %c0_i32_1 = arith.constant 0 : i32
    return %c0_i32, %c0_i32_0 : i32, i32
  }
  func.func @transform_6(%arg0: i32) -> (i32, i32) {
    %c0_i32 = arith.constant 0 : i32
    %c0_i32_0 = arith.constant 0 : i32
    %c0_i32_1 = arith.constant 0 : i32
    return %c0_i32, %c0_i32_0 : i32, i32
  }
}

module attributes {stable_mosaic.version = 11 : i64} {
  func.func @kernel(%arg0: i32, %arg1: memref<288x128xbf16, #tpu.memory_space<vmem>>, %arg2: memref<32x288xbf16, #tpu.memory_space<vmem>>, %arg3: memref<32x1xf32, #tpu.memory_space<vmem>>, %arg4: memref<32x1xf32, #tpu.memory_space<vmem>>, %arg5: memref<32x1xf32, #tpu.memory_space<vmem>>, %arg6: memref<32x128xf32, #tpu.memory_space<vmem>>, %arg7: memref<32x128xbf16, #tpu.memory_space<vmem>>) attributes {dimension_semantics = [#tpu.dimension_semantics<arbitrary>], iteration_bounds = array<i64: 1>, scalar_prefetch = 0 : i64, scratch_operands = 0 : i64, tpu.core_type = #tpu.core_type<tc>, window_params = [{pipeline_mode = #tpu.pipeline_mode<synchronous>, transform_indices = @transform_0, window_bounds = array<i64: 288, 128>}, {pipeline_mode = #tpu.pipeline_mode<synchronous>, transform_indices = @transform_1, window_bounds = array<i64: 32, 288>}, {pipeline_mode = #tpu.pipeline_mode<synchronous>, transform_indices = @transform_2, window_bounds = array<i64: 32, 1>}, {pipeline_mode = #tpu.pipeline_mode<synchronous>, transform_indices = @transform_3, window_bounds = array<i64: 32, 1>}, {pipeline_mode = #tpu.pipeline_mode<synchronous>, transform_indices = @transform_4, window_bounds = array<i64: 32, 1>}, {pipeline_mode = #tpu.pipeline_mode<synchronous>, transform_indices = @transform_5, window_bounds = array<i64: 32, 128>}, {pipeline_mode = #tpu.pipeline_mode<synchronous>, transform_indices = @transform_6, window_bounds = array<i64: 32, 128>}]} {
    %c0 = arith.constant 0 : index
    %c0_0 = arith.constant 0 : index
    %0 = vector.load %arg2[%c0, %c0_0] : memref<32x288xbf16, #tpu.memory_space<vmem>>, vector<32x288xbf16>
    %c0_1 = arith.constant 0 : index
    %c0_2 = arith.constant 0 : index
    %1 = vector.load %arg1[%c0_1, %c0_2] : memref<288x128xbf16, #tpu.memory_space<vmem>>, vector<288x128xbf16>
    %cst = arith.constant dense<0.000000e+00> : vector<32x128xf32>
    %2 = tpu.matmul %0, %1, %cst {dimension_numbers = #tpu.dot_dimension_numbers<[1], [0], [0], [1], [0, 0, 1, 1], [], []>} : vector<32x288xbf16>, vector<288x128xbf16>, vector<32x128xf32> -> vector<32x128xf32>
    %c0_3 = arith.constant 0 : index
    %c0_4 = arith.constant 0 : index
    %3 = vector.load %arg3[%c0_3, %c0_4] : memref<32x1xf32, #tpu.memory_space<vmem>>, vector<32x1xf32>
    %4 = vector.broadcast %3 : vector<32x1xf32> to vector<32x128xf32>
    %5 = arith.addf %2, %4 : vector<32x128xf32>
    %cst_5 = arith.constant dense<0.000000e+00> : vector<32xf32>
    %6 = vector.multi_reduction <add>, %5, %cst_5 [1] : vector<32x128xf32> to vector<32xf32>
    %7 = vector.shape_cast %6 : vector<32xf32> to vector<32x1xf32>
    %cst_6 = arith.constant 7.812500e-03 : f32
    %8 = vector.broadcast %cst_6 : f32 to vector<32x1xf32>
    %9 = arith.mulf %7, %8 : vector<32x1xf32>
    %10 = vector.broadcast %9 : vector<32x1xf32> to vector<32x128xf32>
    %11 = arith.subf %5, %10 : vector<32x128xf32>
    %12 = arith.mulf %11, %11 : vector<32x128xf32>
    %cst_7 = arith.constant dense<0.000000e+00> : vector<32xf32>
    %13 = vector.multi_reduction <add>, %12, %cst_7 [1] : vector<32x128xf32> to vector<32xf32>
    %14 = vector.shape_cast %13 : vector<32xf32> to vector<32x1xf32>
    %cst_8 = arith.constant 7.812500e-03 : f32
    %15 = vector.broadcast %cst_8 : f32 to vector<32x1xf32>
    %16 = arith.mulf %14, %15 : vector<32x1xf32>
    %c0_9 = arith.constant 0 : index
    %c0_10 = arith.constant 0 : index
    %17 = vector.load %arg4[%c0_9, %c0_10] : memref<32x1xf32, #tpu.memory_space<vmem>>, vector<32x1xf32>
    %cst_11 = arith.constant 9.99999974E-6 : f32
    %18 = vector.broadcast %cst_11 : f32 to vector<32x1xf32>
    %19 = arith.addf %16, %18 : vector<32x1xf32>
    %20 = math.rsqrt %19 : vector<32x1xf32>
    %21 = arith.mulf %17, %20 : vector<32x1xf32>
    %22 = vector.broadcast %21 : vector<32x1xf32> to vector<32x128xf32>
    %23 = arith.mulf %11, %22 : vector<32x128xf32>
    %c0_12 = arith.constant 0 : index
    %c0_13 = arith.constant 0 : index
    %24 = vector.load %arg5[%c0_12, %c0_13] : memref<32x1xf32, #tpu.memory_space<vmem>>, vector<32x1xf32>
    %25 = vector.broadcast %24 : vector<32x1xf32> to vector<32x128xf32>
    %26 = arith.addf %23, %25 : vector<32x128xf32>
    %c0_14 = arith.constant 0 : index
    %c0_15 = arith.constant 0 : index
    %27 = vector.load %arg6[%c0_14, %c0_15] : memref<32x128xf32, #tpu.memory_space<vmem>>, vector<32x128xf32>
    %28 = arith.addf %26, %27 : vector<32x128xf32>
    %cst_16 = arith.constant 0.000000e+00 : f32
    %29 = vector.broadcast %cst_16 : f32 to vector<32x128xf32>
    %30 = arith.maximumf %28, %29 : vector<32x128xf32>
    %31 = arith.truncf %30 : vector<32x128xf32> to vector<32x128xbf16>
    %c0_17 = arith.constant 0 : index
    %c0_18 = arith.constant 0 : index
    %32 = vector.load %arg7[%c0_17, %c0_18] : memref<32x128xbf16, #tpu.memory_space<vmem>>, vector<32x128xbf16>
    tpu.vector_store %arg7[%c0_17, %c0_18], %31 {strides = array<i32>} : memref<32x128xbf16, #tpu.memory_space<vmem>>, vector<32x128xbf16>,
    return
  }
  func.func @transform_0(%arg0: i32) -> (i32, i32) {
    %c0_i32 = arith.constant 0 : i32
    %c0_i32_0 = arith.constant 0 : i32
    %c0_i32_1 = arith.constant 0 : i32
    return %c0_i32, %c0_i32_0 : i32, i32
  }
  func.func @transform_1(%arg0: i32) -> (i32, i32) {
    %c0_i32 = arith.constant 0 : i32
    %c0_i32_0 = arith.constant 0 : i32
    %c0_i32_1 = arith.constant 0 : i32
    return %c0_i32, %c0_i32_0 : i32, i32
  }
  func.func @transform_2(%arg0: i32) -> (i32, i32) {
    %c0_i32 = arith.constant 0 : i32
    %c0_i32_0 = arith.constant 0 : i32
    %c0_i32_1 = arith.constant 0 : i32
    return %c0_i32, %c0_i32_0 : i32, i32
  }
  func.func @transform_3(%arg0: i32) -> (i32, i32) {
    %c0_i32 = arith.constant 0 : i32
    %c0_i32_0 = arith.constant 0 : i32
    %c0_i32_1 = arith.constant 0 : i32
    return %c0_i32, %c0_i32_0 : i32, i32
  }
  func.func @transform_4(%arg0: i32) -> (i32, i32) {
    %c0_i32 = arith.constant 0 : i32
    %c0_i32_0 = arith.constant 0 : i32
    %c0_i32_1 = arith.constant 0 : i32
    return %c0_i32, %c0_i32_0 : i32, i32
  }
  func.func @transform_5(%arg0: i32) -> (i32, i32) {
    %c0_i32 = arith.constant 0 : i32
    %c0_i32_0 = arith.constant 0 : i32
    %c0_i32_1 = arith.constant 0 : i32
    return %c0_i32, %c0_i32_0 : i32, i32
  }
  func.func @transform_6(%arg0: i32) -> (i32, i32) {
    %c0_i32 = arith.constant 0 : i32
    %c0_i32_0 = arith.constant 0 : i32
    %c0_i32_1 = arith.constant 0 : i32
    return %c0_i32, %c0_i32_0 : i32, i32
  }
}

module attributes {stable_mosaic.version = 11 : i64} {
  func.func @kernel(%arg0: i32, %arg1: memref<288x128xbf16, #tpu.memory_space<vmem>>, %arg2: memref<32x288xbf16, #tpu.memory_space<vmem>>, %arg3: memref<32x1xf32, #tpu.memory_space<vmem>>, %arg4: memref<32x1xf32, #tpu.memory_space<vmem>>, %arg5: memref<32x1xf32, #tpu.memory_space<vmem>>, %arg6: memref<32x128xbf16, #tpu.memory_space<vmem>>, %arg7: memref<32x128xbf16, #tpu.memory_space<vmem>>) attributes {dimension_semantics = [#tpu.dimension_semantics<arbitrary>], iteration_bounds = array<i64: 1>, scalar_prefetch = 0 : i64, scratch_operands = 0 : i64, tpu.core_type = #tpu.core_type<tc>, window_params = [{pipeline_mode = #tpu.pipeline_mode<synchronous>, transform_indices = @transform_0, window_bounds = array<i64: 288, 128>}, {pipeline_mode = #tpu.pipeline_mode<synchronous>, transform_indices = @transform_1, window_bounds = array<i64: 32, 288>}, {pipeline_mode = #tpu.pipeline_mode<synchronous>, transform_indices = @transform_2, window_bounds = array<i64: 32, 1>}, {pipeline_mode = #tpu.pipeline_mode<synchronous>, transform_indices = @transform_3, window_bounds = array<i64: 32, 1>}, {pipeline_mode = #tpu.pipeline_mode<synchronous>, transform_indices = @transform_4, window_bounds = array<i64: 32, 1>}, {pipeline_mode = #tpu.pipeline_mode<synchronous>, transform_indices = @transform_5, window_bounds = array<i64: 32, 128>}, {pipeline_mode = #tpu.pipeline_mode<synchronous>, transform_indices = @transform_6, window_bounds = array<i64: 32, 128>}]} {
    %c0 = arith.constant 0 : index
    %c0_0 = arith.constant 0 : index
    %0 = vector.load %arg2[%c0, %c0_0] : memref<32x288xbf16, #tpu.memory_space<vmem>>, vector<32x288xbf16>
    %c0_1 = arith.constant 0 : index
    %c0_2 = arith.constant 0 : index
    %1 = vector.load %arg1[%c0_1, %c0_2] : memref<288x128xbf16, #tpu.memory_space<vmem>>, vector<288x128xbf16>
    %cst = arith.constant dense<0.000000e+00> : vector<32x128xf32>
    %2 = tpu.matmul %0, %1, %cst {dimension_numbers = #tpu.dot_dimension_numbers<[1], [0], [0], [1], [0, 0, 1, 1], [], []>} : vector<32x288xbf16>, vector<288x128xbf16>, vector<32x128xf32> -> vector<32x128xf32>
    %c0_3 = arith.constant 0 : index
    %c0_4 = arith.constant 0 : index
    %3 = vector.load %arg3[%c0_3, %c0_4] : memref<32x1xf32, #tpu.memory_space<vmem>>, vector<32x1xf32>
    %4 = vector.broadcast %3 : vector<32x1xf32> to vector<32x128xf32>
    %5 = arith.addf %2, %4 : vector<32x128xf32>
    %cst_5 = arith.constant dense<0.000000e+00> : vector<32xf32>
    %6 = vector.multi_reduction <add>, %5, %cst_5 [1] : vector<32x128xf32> to vector<32xf32>
    %7 = vector.shape_cast %6 : vector<32xf32> to vector<32x1xf32>
    %cst_6 = arith.constant 7.812500e-03 : f32
    %8 = vector.broadcast %cst_6 : f32 to vector<32x1xf32>
    %9 = arith.mulf %7, %8 : vector<32x1xf32>
    %10 = vector.broadcast %9 : vector<32x1xf32> to vector<32x128xf32>
    %11 = arith.subf %5, %10 : vector<32x128xf32>
    %12 = arith.mulf %11, %11 : vector<32x128xf32>
    %cst_7 = arith.constant dense<0.000000e+00> : vector<32xf32>
    %13 = vector.multi_reduction <add>, %12, %cst_7 [1] : vector<32x128xf32> to vector<32xf32>
    %14 = vector.shape_cast %13 : vector<32xf32> to vector<32x1xf32>
    %cst_8 = arith.constant 7.812500e-03 : f32
    %15 = vector.broadcast %cst_8 : f32 to vector<32x1xf32>
    %16 = arith.mulf %14, %15 : vector<32x1xf32>
    %c0_9 = arith.constant 0 : index
    %c0_10 = arith.constant 0 : index
    %17 = vector.load %arg4[%c0_9, %c0_10] : memref<32x1xf32, #tpu.memory_space<vmem>>, vector<32x1xf32>
    %cst_11 = arith.constant 9.99999974E-6 : f32
    %18 = vector.broadcast %cst_11 : f32 to vector<32x1xf32>
    %19 = arith.addf %16, %18 : vector<32x1xf32>
    %20 = math.rsqrt %19 : vector<32x1xf32>
    %21 = arith.mulf %17, %20 : vector<32x1xf32>
    %22 = vector.broadcast %21 : vector<32x1xf32> to vector<32x128xf32>
    %23 = arith.mulf %11, %22 : vector<32x128xf32>
    %c0_12 = arith.constant 0 : index
    %c0_13 = arith.constant 0 : index
    %24 = vector.load %arg5[%c0_12, %c0_13] : memref<32x1xf32, #tpu.memory_space<vmem>>, vector<32x1xf32>
    %25 = vector.broadcast %24 : vector<32x1xf32> to vector<32x128xf32>
    %26 = arith.addf %23, %25 : vector<32x128xf32>
    %c0_14 = arith.constant 0 : index
    %c0_15 = arith.constant 0 : index
    %27 = vector.load %arg6[%c0_14, %c0_15] : memref<32x128xbf16, #tpu.memory_space<vmem>>, vector<32x128xbf16>
    %28 = arith.extf %27 : vector<32x128xbf16> to vector<32x128xf32>
    %29 = arith.addf %26, %28 : vector<32x128xf32>
    %cst_16 = arith.constant 0.000000e+00 : f32
    %30 = vector.broadcast %cst_16 : f32 to vector<32x128xf32>
    %31 = arith.maximumf %29, %30 : vector<32x128xf32>
    %32 = arith.truncf %31 : vector<32x128xf32> to vector<32x128xbf16>
    %c0_17 = arith.constant 0 : index
    %c0_18 = arith.constant 0 : index
    %33 = vector.load %arg7[%c0_17, %c0_18] : memref<32x128xbf16, #tpu.memory_space<vmem>>, vector<32x128xbf16>
    tpu.vector_store %arg7[%c0_17, %c0_18], %32 {strides = array<i32>} : memref<32x128xbf16, #tpu.memory_space<vmem>>, vector<32x128xbf16>,
    return
  }
  func.func @transform_0(%arg0: i32) -> (i32, i32) {
    %c0_i32 = arith.constant 0 : i32
    %c0_i32_0 = arith.constant 0 : i32
    %c0_i32_1 = arith.constant 0 : i32
    return %c0_i32, %c0_i32_0 : i32, i32
  }
  func.func @transform_1(%arg0: i32) -> (i32, i32) {
    %c0_i32 = arith.constant 0 : i32
    %c0_i32_0 = arith.constant 0 : i32
    %c0_i32_1 = arith.constant 0 : i32
    return %c0_i32, %c0_i32_0 : i32, i32
  }
  func.func @transform_2(%arg0: i32) -> (i32, i32) {
    %c0_i32 = arith.constant 0 : i32
    %c0_i32_0 = arith.constant 0 : i32
    %c0_i32_1 = arith.constant 0 : i32
    return %c0_i32, %c0_i32_0 : i32, i32
  }
  func.func @transform_3(%arg0: i32) -> (i32, i32) {
    %c0_i32 = arith.constant 0 : i32
    %c0_i32_0 = arith.constant 0 : i32
    %c0_i32_1 = arith.constant 0 : i32
    return %c0_i32, %c0_i32_0 : i32, i32
  }
  func.func @transform_4(%arg0: i32) -> (i32, i32) {
    %c0_i32 = arith.constant 0 : i32
    %c0_i32_0 = arith.constant 0 : i32
    %c0_i32_1 = arith.constant 0 : i32
    return %c0_i32, %c0_i32_0 : i32, i32
  }
  func.func @transform_5(%arg0: i32) -> (i32, i32) {
    %c0_i32 = arith.constant 0 : i32
    %c0_i32_0 = arith.constant 0 : i32
    %c0_i32_1 = arith.constant 0 : i32
    return %c0_i32, %c0_i32_0 : i32, i32
  }
  func.func @transform_6(%arg0: i32) -> (i32, i32) {
    %c0_i32 = arith.constant 0 : i32
    %c0_i32_0 = arith.constant 0 : i32
    %c0_i32_1 = arith.constant 0 : i32
    return %c0_i32, %c0_i32_0 : i32, i32
  }
}

module attributes {stable_mosaic.version = 11 : i64} {
  func.func @kernel(%arg0: i32, %arg1: memref<288x128xbf16, #tpu.memory_space<vmem>>, %arg2: memref<32x288xbf16, #tpu.memory_space<vmem>>, %arg3: memref<32x1xf32, #tpu.memory_space<vmem>>, %arg4: memref<32x1xf32, #tpu.memory_space<vmem>>, %arg5: memref<32x1xf32, #tpu.memory_space<vmem>>, %arg6: memref<32x128xbf16, #tpu.memory_space<vmem>>) attributes {dimension_semantics = [#tpu.dimension_semantics<arbitrary>], iteration_bounds = array<i64: 1>, scalar_prefetch = 0 : i64, scratch_operands = 0 : i64, tpu.core_type = #tpu.core_type<tc>, window_params = [{pipeline_mode = #tpu.pipeline_mode<synchronous>, transform_indices = @transform_0, window_bounds = array<i64: 288, 128>}, {pipeline_mode = #tpu.pipeline_mode<synchronous>, transform_indices = @transform_1, window_bounds = array<i64: 32, 288>}, {pipeline_mode = #tpu.pipeline_mode<synchronous>, transform_indices = @transform_2, window_bounds = array<i64: 32, 1>}, {pipeline_mode = #tpu.pipeline_mode<synchronous>, transform_indices = @transform_3, window_bounds = array<i64: 32, 1>}, {pipeline_mode = #tpu.pipeline_mode<synchronous>, transform_indices = @transform_4, window_bounds = array<i64: 32, 1>}, {pipeline_mode = #tpu.pipeline_mode<synchronous>, transform_indices = @transform_5, window_bounds = array<i64: 32, 128>}]} {
    %c0 = arith.constant 0 : index
    %c0_0 = arith.constant 0 : index
    %0 = vector.load %arg2[%c0, %c0_0] : memref<32x288xbf16, #tpu.memory_space<vmem>>, vector<32x288xbf16>
    %c0_1 = arith.constant 0 : index
    %c0_2 = arith.constant 0 : index
    %1 = vector.load %arg1[%c0_1, %c0_2] : memref<288x128xbf16, #tpu.memory_space<vmem>>, vector<288x128xbf16>
    %cst = arith.constant dense<0.000000e+00> : vector<32x128xf32>
    %2 = tpu.matmul %0, %1, %cst {dimension_numbers = #tpu.dot_dimension_numbers<[1], [0], [0], [1], [0, 0, 1, 1], [], []>} : vector<32x288xbf16>, vector<288x128xbf16>, vector<32x128xf32> -> vector<32x128xf32>
    %c0_3 = arith.constant 0 : index
    %c0_4 = arith.constant 0 : index
    %3 = vector.load %arg3[%c0_3, %c0_4] : memref<32x1xf32, #tpu.memory_space<vmem>>, vector<32x1xf32>
    %4 = vector.broadcast %3 : vector<32x1xf32> to vector<32x128xf32>
    %5 = arith.addf %2, %4 : vector<32x128xf32>
    %cst_5 = arith.constant dense<0.000000e+00> : vector<32xf32>
    %6 = vector.multi_reduction <add>, %5, %cst_5 [1] : vector<32x128xf32> to vector<32xf32>
    %7 = vector.shape_cast %6 : vector<32xf32> to vector<32x1xf32>
    %cst_6 = arith.constant 7.812500e-03 : f32
    %8 = vector.broadcast %cst_6 : f32 to vector<32x1xf32>
    %9 = arith.mulf %7, %8 : vector<32x1xf32>
    %10 = vector.broadcast %9 : vector<32x1xf32> to vector<32x128xf32>
    %11 = arith.subf %5, %10 : vector<32x128xf32>
    %12 = arith.mulf %11, %11 : vector<32x128xf32>
    %cst_7 = arith.constant dense<0.000000e+00> : vector<32xf32>
    %13 = vector.multi_reduction <add>, %12, %cst_7 [1] : vector<32x128xf32> to vector<32xf32>
    %14 = vector.shape_cast %13 : vector<32xf32> to vector<32x1xf32>
    %cst_8 = arith.constant 7.812500e-03 : f32
    %15 = vector.broadcast %cst_8 : f32 to vector<32x1xf32>
    %16 = arith.mulf %14, %15 : vector<32x1xf32>
    %c0_9 = arith.constant 0 : index
    %c0_10 = arith.constant 0 : index
    %17 = vector.load %arg4[%c0_9, %c0_10] : memref<32x1xf32, #tpu.memory_space<vmem>>, vector<32x1xf32>
    %cst_11 = arith.constant 9.99999974E-6 : f32
    %18 = vector.broadcast %cst_11 : f32 to vector<32x1xf32>
    %19 = arith.addf %16, %18 : vector<32x1xf32>
    %20 = math.rsqrt %19 : vector<32x1xf32>
    %21 = arith.mulf %17, %20 : vector<32x1xf32>
    %22 = vector.broadcast %21 : vector<32x1xf32> to vector<32x128xf32>
    %23 = arith.mulf %11, %22 : vector<32x128xf32>
    %c0_12 = arith.constant 0 : index
    %c0_13 = arith.constant 0 : index
    %24 = vector.load %arg5[%c0_12, %c0_13] : memref<32x1xf32, #tpu.memory_space<vmem>>, vector<32x1xf32>
    %25 = vector.broadcast %24 : vector<32x1xf32> to vector<32x128xf32>
    %26 = arith.addf %23, %25 : vector<32x128xf32>
    %cst_14 = arith.constant 0.000000e+00 : f32
    %27 = vector.broadcast %cst_14 : f32 to vector<32x128xf32>
    %28 = arith.maximumf %26, %27 : vector<32x128xf32>
    %29 = arith.truncf %28 : vector<32x128xf32> to vector<32x128xbf16>
    %c0_15 = arith.constant 0 : index
    %c0_16 = arith.constant 0 : index
    %30 = vector.load %arg6[%c0_15, %c0_16] : memref<32x128xbf16, #tpu.memory_space<vmem>>, vector<32x128xbf16>
    tpu.vector_store %arg6[%c0_15, %c0_16], %29 {strides = array<i32>} : memref<32x128xbf16, #tpu.memory_space<vmem>>, vector<32x128xbf16>,
    return
  }
  func.func @transform_0(%arg0: i32) -> (i32, i32) {
    %c0_i32 = arith.constant 0 : i32
    %c0_i32_0 = arith.constant 0 : i32
    %c0_i32_1 = arith.constant 0 : i32
    return %c0_i32, %c0_i32_0 : i32, i32
  }
  func.func @transform_1(%arg0: i32) -> (i32, i32) {
    %c0_i32 = arith.constant 0 : i32
    %c0_i32_0 = arith.constant 0 : i32
    %c0_i32_1 = arith.constant 0 : i32
    return %c0_i32, %c0_i32_0 : i32, i32
  }
  func.func @transform_2(%arg0: i32) -> (i32, i32) {
    %c0_i32 = arith.constant 0 : i32
    %c0_i32_0 = arith.constant 0 : i32
    %c0_i32_1 = arith.constant 0 : i32
    return %c0_i32, %c0_i32_0 : i32, i32
  }
  func.func @transform_3(%arg0: i32) -> (i32, i32) {
    %c0_i32 = arith.constant 0 : i32
    %c0_i32_0 = arith.constant 0 : i32
    %c0_i32_1 = arith.constant 0 : i32
    return %c0_i32, %c0_i32_0 : i32, i32
  }
  func.func @transform_4(%arg0: i32) -> (i32, i32) {
    %c0_i32 = arith.constant 0 : i32
    %c0_i32_0 = arith.constant 0 : i32
    %c0_i32_1 = arith.constant 0 : i32
    return %c0_i32, %c0_i32_0 : i32, i32
  }
  func.func @transform_5(%arg0: i32) -> (i32, i32) {
    %c0_i32 = arith.constant 0 : i32
    %c0_i32_0 = arith.constant 0 : i32
    %c0_i32_1 = arith.constant 0 : i32
    return %c0_i32, %c0_i32_0 : i32, i32
  }
}

module attributes {stable_mosaic.version = 11 : i64} {
  func.func @kernel(%arg0: i32, %arg1: memref<288x64xbf16, #tpu.memory_space<vmem>>, %arg2: memref<128x288xbf16, #tpu.memory_space<vmem>>, %arg3: memref<128x1xf32, #tpu.memory_space<vmem>>, %arg4: memref<64x1xf32, #tpu.memory_space<vmem>>, %arg5: memref<64x1xf32, #tpu.memory_space<vmem>>, %arg6: memref<64x64xbf16, #tpu.memory_space<vmem>>, %arg7: memref<64x64xf32, #tpu.memory_space<vmem>>) attributes {dimension_semantics = [#tpu.dimension_semantics<arbitrary>], iteration_bounds = array<i64: 1>, scalar_prefetch = 0 : i64, scratch_operands = 0 : i64, tpu.core_type = #tpu.core_type<tc>, window_params = [{pipeline_mode = #tpu.pipeline_mode<synchronous>, transform_indices = @transform_0, window_bounds = array<i64: 288, 64>}, {pipeline_mode = #tpu.pipeline_mode<synchronous>, transform_indices = @transform_1, window_bounds = array<i64: 128, 288>}, {pipeline_mode = #tpu.pipeline_mode<synchronous>, transform_indices = @transform_2, window_bounds = array<i64: 128, 1>}, {pipeline_mode = #tpu.pipeline_mode<synchronous>, transform_indices = @transform_3, window_bounds = array<i64: 64, 1>}, {pipeline_mode = #tpu.pipeline_mode<synchronous>, transform_indices = @transform_4, window_bounds = array<i64: 64, 1>}, {pipeline_mode = #tpu.pipeline_mode<synchronous>, transform_indices = @transform_5, window_bounds = array<i64: 64, 64>}, {pipeline_mode = #tpu.pipeline_mode<synchronous>, transform_indices = @transform_6, window_bounds = array<i64: 64, 64>}]} {
    %c0 = arith.constant 0 : index
    %c0_0 = arith.constant 0 : index
    %0 = vector.load %arg2[%c0, %c0_0] : memref<128x288xbf16, #tpu.memory_space<vmem>>, vector<128x288xbf16>
    %c0_1 = arith.constant 0 : index
    %c0_2 = arith.constant 0 : index
    %1 = vector.load %arg1[%c0_1, %c0_2] : memref<288x64xbf16, #tpu.memory_space<vmem>>, vector<288x64xbf16>
    %cst = arith.constant dense<0.000000e+00> : vector<128x64xf32>
    %2 = tpu.matmul %0, %1, %cst {dimension_numbers = #tpu.dot_dimension_numbers<[1], [0], [0], [1], [0, 0, 1, 1], [], []>} : vector<128x288xbf16>, vector<288x64xbf16>, vector<128x64xf32> -> vector<128x64xf32>
    %c0_3 = arith.constant 0 : index
    %c0_4 = arith.constant 0 : index
    %3 = vector.load %arg3[%c0_3, %c0_4] : memref<128x1xf32, #tpu.memory_space<vmem>>, vector<128x1xf32>
    %4 = vector.broadcast %3 : vector<128x1xf32> to vector<128x64xf32>
    %5 = arith.addf %2, %4 : vector<128x64xf32>
    %6 = vector.extract_strided_slice %5 {offsets = [64, 0], sizes = [64, 64], strides = [1, 1]} : vector<128x64xf32> to vector<64x64xf32>
    %c0_5 = arith.constant 0 : index
    %c0_6 = arith.constant 0 : index
    %7 = vector.load %arg7[%c0_5, %c0_6] : memref<64x64xf32, #tpu.memory_space<vmem>>, vector<64x64xf32>
    tpu.vector_store %arg7[%c0_5, %c0_6], %6 {strides = array<i32>} : memref<64x64xf32, #tpu.memory_space<vmem>>, vector<64x64xf32>,
    %8 = vector.extract_strided_slice %5 {offsets = [0, 0], sizes = [64, 64], strides = [1, 1]} : vector<128x64xf32> to vector<64x64xf32>
    %cst_7 = arith.constant dense<0.000000e+00> : vector<64xf32>
    %9 = vector.multi_reduction <add>, %8, %cst_7 [1] : vector<64x64xf32> to vector<64xf32>
    %10 = vector.shape_cast %9 : vector<64xf32> to vector<64x1xf32>
    %cst_8 = arith.constant 1.562500e-02 : f32
    %11 = vector.broadcast %cst_8 : f32 to vector<64x1xf32>
    %12 = arith.mulf %10, %11 : vector<64x1xf32>
    %13 = vector.broadcast %12 : vector<64x1xf32> to vector<64x64xf32>
    %14 = arith.subf %8, %13 : vector<64x64xf32>
    %15 = arith.mulf %14, %14 : vector<64x64xf32>
    %cst_9 = arith.constant dense<0.000000e+00> : vector<64xf32>
    %16 = vector.multi_reduction <add>, %15, %cst_9 [1] : vector<64x64xf32> to vector<64xf32>
    %17 = vector.shape_cast %16 : vector<64xf32> to vector<64x1xf32>
    %cst_10 = arith.constant 1.562500e-02 : f32
    %18 = vector.broadcast %cst_10 : f32 to vector<64x1xf32>
    %19 = arith.mulf %17, %18 : vector<64x1xf32>
    %c0_11 = arith.constant 0 : index
    %c0_12 = arith.constant 0 : index
    %20 = vector.load %arg4[%c0_11, %c0_12] : memref<64x1xf32, #tpu.memory_space<vmem>>, vector<64x1xf32>
    %cst_13 = arith.constant 9.99999974E-6 : f32
    %21 = vector.broadcast %cst_13 : f32 to vector<64x1xf32>
    %22 = arith.addf %19, %21 : vector<64x1xf32>
    %23 = math.rsqrt %22 : vector<64x1xf32>
    %24 = arith.mulf %20, %23 : vector<64x1xf32>
    %25 = vector.broadcast %24 : vector<64x1xf32> to vector<64x64xf32>
    %26 = arith.mulf %14, %25 : vector<64x64xf32>
    %c0_14 = arith.constant 0 : index
    %c0_15 = arith.constant 0 : index
    %27 = vector.load %arg5[%c0_14, %c0_15] : memref<64x1xf32, #tpu.memory_space<vmem>>, vector<64x1xf32>
    %28 = vector.broadcast %27 : vector<64x1xf32> to vector<64x64xf32>
    %29 = arith.addf %26, %28 : vector<64x64xf32>
    %cst_16 = arith.constant 0.000000e+00 : f32
    %30 = vector.broadcast %cst_16 : f32 to vector<64x64xf32>
    %31 = arith.maximumf %29, %30 : vector<64x64xf32>
    %32 = arith.truncf %31 : vector<64x64xf32> to vector<64x64xbf16>
    %c0_17 = arith.constant 0 : index
    %c0_18 = arith.constant 0 : index
    %33 = vector.load %arg6[%c0_17, %c0_18] : memref<64x64xbf16, #tpu.memory_space<vmem>>, vector<64x64xbf16>
    tpu.vector_store %arg6[%c0_17, %c0_18], %32 {strides = array<i32>} : memref<64x64xbf16, #tpu.memory_space<vmem>>, vector<64x64xbf16>,
    return
  }
  func.func @transform_0(%arg0: i32) -> (i32, i32) {
    %c0_i32 = arith.constant 0 : i32
    %c0_i32_0 = arith.constant 0 : i32
    %c0_i32_1 = arith.constant 0 : i32
    return %c0_i32, %c0_i32_0 : i32, i32
  }
  func.func @transform_1(%arg0: i32) -> (i32, i32) {
    %c0_i32 = arith.constant 0 : i32
    %c0_i32_0 = arith.constant 0 : i32
    %c0_i32_1 = arith.constant 0 : i32
    return %c0_i32, %c0_i32_0 : i32, i32
  }
  func.func @transform_2(%arg0: i32) -> (i32, i32) {
    %c0_i32 = arith.constant 0 : i32
    %c0_i32_0 = arith.constant 0 : i32
    %c0_i32_1 = arith.constant 0 : i32
    return %c0_i32, %c0_i32_0 : i32, i32
  }
  func.func @transform_3(%arg0: i32) -> (i32, i32) {
    %c0_i32 = arith.constant 0 : i32
    %c0_i32_0 = arith.constant 0 : i32
    %c0_i32_1 = arith.constant 0 : i32
    return %c0_i32, %c0_i32_0 : i32, i32
  }
  func.func @transform_4(%arg0: i32) -> (i32, i32) {
    %c0_i32 = arith.constant 0 : i32
    %c0_i32_0 = arith.constant 0 : i32
    %c0_i32_1 = arith.constant 0 : i32
    return %c0_i32, %c0_i32_0 : i32, i32
  }
  func.func @transform_5(%arg0: i32) -> (i32, i32) {
    %c0_i32 = arith.constant 0 : i32
    %c0_i32_0 = arith.constant 0 : i32
    %c0_i32_1 = arith.constant 0 : i32
    return %c0_i32, %c0_i32_0 : i32, i32
  }
  func.func @transform_6(%arg0: i32) -> (i32, i32) {
    %c0_i32 = arith.constant 0 : i32
    %c0_i32_0 = arith.constant 0 : i32
    %c0_i32_1 = arith.constant 0 : i32
    return %c0_i32, %c0_i32_0 : i32, i32
  }
}

module attributes {stable_mosaic.version = 11 : i64} {
  func.func @kernel(%arg0: i32, %arg1: memref<576x64xbf16, #tpu.memory_space<vmem>>, %arg2: memref<64x576xbf16, #tpu.memory_space<vmem>>, %arg3: memref<64x1xf32, #tpu.memory_space<vmem>>, %arg4: memref<64x1xf32, #tpu.memory_space<vmem>>, %arg5: memref<64x1xf32, #tpu.memory_space<vmem>>, %arg6: memref<64x64xf32, #tpu.memory_space<vmem>>, %arg7: memref<64x64xbf16, #tpu.memory_space<vmem>>) attributes {dimension_semantics = [#tpu.dimension_semantics<arbitrary>], iteration_bounds = array<i64: 1>, scalar_prefetch = 0 : i64, scratch_operands = 0 : i64, tpu.core_type = #tpu.core_type<tc>, window_params = [{pipeline_mode = #tpu.pipeline_mode<synchronous>, transform_indices = @transform_0, window_bounds = array<i64: 576, 64>}, {pipeline_mode = #tpu.pipeline_mode<synchronous>, transform_indices = @transform_1, window_bounds = array<i64: 64, 576>}, {pipeline_mode = #tpu.pipeline_mode<synchronous>, transform_indices = @transform_2, window_bounds = array<i64: 64, 1>}, {pipeline_mode = #tpu.pipeline_mode<synchronous>, transform_indices = @transform_3, window_bounds = array<i64: 64, 1>}, {pipeline_mode = #tpu.pipeline_mode<synchronous>, transform_indices = @transform_4, window_bounds = array<i64: 64, 1>}, {pipeline_mode = #tpu.pipeline_mode<synchronous>, transform_indices = @transform_5, window_bounds = array<i64: 64, 64>}, {pipeline_mode = #tpu.pipeline_mode<synchronous>, transform_indices = @transform_6, window_bounds = array<i64: 64, 64>}]} {
    %c0 = arith.constant 0 : index
    %c0_0 = arith.constant 0 : index
    %0 = vector.load %arg2[%c0, %c0_0] : memref<64x576xbf16, #tpu.memory_space<vmem>>, vector<64x576xbf16>
    %c0_1 = arith.constant 0 : index
    %c0_2 = arith.constant 0 : index
    %1 = vector.load %arg1[%c0_1, %c0_2] : memref<576x64xbf16, #tpu.memory_space<vmem>>, vector<576x64xbf16>
    %cst = arith.constant dense<0.000000e+00> : vector<64x64xf32>
    %2 = tpu.matmul %0, %1, %cst {dimension_numbers = #tpu.dot_dimension_numbers<[1], [0], [0], [1], [0, 0, 1, 1], [], []>} : vector<64x576xbf16>, vector<576x64xbf16>, vector<64x64xf32> -> vector<64x64xf32>
    %c0_3 = arith.constant 0 : index
    %c0_4 = arith.constant 0 : index
    %3 = vector.load %arg3[%c0_3, %c0_4] : memref<64x1xf32, #tpu.memory_space<vmem>>, vector<64x1xf32>
    %4 = vector.broadcast %3 : vector<64x1xf32> to vector<64x64xf32>
    %5 = arith.addf %2, %4 : vector<64x64xf32>
    %cst_5 = arith.constant dense<0.000000e+00> : vector<64xf32>
    %6 = vector.multi_reduction <add>, %5, %cst_5 [1] : vector<64x64xf32> to vector<64xf32>
    %7 = vector.shape_cast %6 : vector<64xf32> to vector<64x1xf32>
    %cst_6 = arith.constant 1.562500e-02 : f32
    %8 = vector.broadcast %cst_6 : f32 to vector<64x1xf32>
    %9 = arith.mulf %7, %8 : vector<64x1xf32>
    %10 = vector.broadcast %9 : vector<64x1xf32> to vector<64x64xf32>
    %11 = arith.subf %5, %10 : vector<64x64xf32>
    %12 = arith.mulf %11, %11 : vector<64x64xf32>
    %cst_7 = arith.constant dense<0.000000e+00> : vector<64xf32>
    %13 = vector.multi_reduction <add>, %12, %cst_7 [1] : vector<64x64xf32> to vector<64xf32>
    %14 = vector.shape_cast %13 : vector<64xf32> to vector<64x1xf32>
    %cst_8 = arith.constant 1.562500e-02 : f32
    %15 = vector.broadcast %cst_8 : f32 to vector<64x1xf32>
    %16 = arith.mulf %14, %15 : vector<64x1xf32>
    %c0_9 = arith.constant 0 : index
    %c0_10 = arith.constant 0 : index
    %17 = vector.load %arg4[%c0_9, %c0_10] : memref<64x1xf32, #tpu.memory_space<vmem>>, vector<64x1xf32>
    %cst_11 = arith.constant 9.99999974E-6 : f32
    %18 = vector.broadcast %cst_11 : f32 to vector<64x1xf32>
    %19 = arith.addf %16, %18 : vector<64x1xf32>
    %20 = math.rsqrt %19 : vector<64x1xf32>
    %21 = arith.mulf %17, %20 : vector<64x1xf32>
    %22 = vector.broadcast %21 : vector<64x1xf32> to vector<64x64xf32>
    %23 = arith.mulf %11, %22 : vector<64x64xf32>
    %c0_12 = arith.constant 0 : index
    %c0_13 = arith.constant 0 : index
    %24 = vector.load %arg5[%c0_12, %c0_13] : memref<64x1xf32, #tpu.memory_space<vmem>>, vector<64x1xf32>
    %25 = vector.broadcast %24 : vector<64x1xf32> to vector<64x64xf32>
    %26 = arith.addf %23, %25 : vector<64x64xf32>
    %c0_14 = arith.constant 0 : index
    %c0_15 = arith.constant 0 : index
    %27 = vector.load %arg6[%c0_14, %c0_15] : memref<64x64xf32, #tpu.memory_space<vmem>>, vector<64x64xf32>
    %28 = arith.addf %26, %27 : vector<64x64xf32>
    %cst_16 = arith.constant 0.000000e+00 : f32
    %29 = vector.broadcast %cst_16 : f32 to vector<64x64xf32>
    %30 = arith.maximumf %28, %29 : vector<64x64xf32>
    %31 = arith.truncf %30 : vector<64x64xf32> to vector<64x64xbf16>
    %c0_17 = arith.constant 0 : index
    %c0_18 = arith.constant 0 : index
    %32 = vector.load %arg7[%c0_17, %c0_18] : memref<64x64xbf16, #tpu.memory_space<vmem>>, vector<64x64xbf16>
    tpu.vector_store %arg7[%c0_17, %c0_18], %31 {strides = array<i32>} : memref<64x64xbf16, #tpu.memory_space<vmem>>, vector<64x64xbf16>,
    return
  }
  func.func @transform_0(%arg0: i32) -> (i32, i32) {
    %c0_i32 = arith.constant 0 : i32
    %c0_i32_0 = arith.constant 0 : i32
    %c0_i32_1 = arith.constant 0 : i32
    return %c0_i32, %c0_i32_0 : i32, i32
  }
  func.func @transform_1(%arg0: i32) -> (i32, i32) {
    %c0_i32 = arith.constant 0 : i32
    %c0_i32_0 = arith.constant 0 : i32
    %c0_i32_1 = arith.constant 0 : i32
    return %c0_i32, %c0_i32_0 : i32, i32
  }
  func.func @transform_2(%arg0: i32) -> (i32, i32) {
    %c0_i32 = arith.constant 0 : i32
    %c0_i32_0 = arith.constant 0 : i32
    %c0_i32_1 = arith.constant 0 : i32
    return %c0_i32, %c0_i32_0 : i32, i32
  }
  func.func @transform_3(%arg0: i32) -> (i32, i32) {
    %c0_i32 = arith.constant 0 : i32
    %c0_i32_0 = arith.constant 0 : i32
    %c0_i32_1 = arith.constant 0 : i32
    return %c0_i32, %c0_i32_0 : i32, i32
  }
  func.func @transform_4(%arg0: i32) -> (i32, i32) {
    %c0_i32 = arith.constant 0 : i32
    %c0_i32_0 = arith.constant 0 : i32
    %c0_i32_1 = arith.constant 0 : i32
    return %c0_i32, %c0_i32_0 : i32, i32
  }
  func.func @transform_5(%arg0: i32) -> (i32, i32) {
    %c0_i32 = arith.constant 0 : i32
    %c0_i32_0 = arith.constant 0 : i32
    %c0_i32_1 = arith.constant 0 : i32
    return %c0_i32, %c0_i32_0 : i32, i32
  }
  func.func @transform_6(%arg0: i32) -> (i32, i32) {
    %c0_i32 = arith.constant 0 : i32
    %c0_i32_0 = arith.constant 0 : i32
    %c0_i32_1 = arith.constant 0 : i32
    return %c0_i32, %c0_i32_0 : i32, i32
  }
}

module attributes {stable_mosaic.version = 11 : i64} {
  func.func @kernel(%arg0: i32, %arg1: memref<576x64xbf16, #tpu.memory_space<vmem>>, %arg2: memref<64x576xbf16, #tpu.memory_space<vmem>>, %arg3: memref<64x1xf32, #tpu.memory_space<vmem>>, %arg4: memref<64x1xf32, #tpu.memory_space<vmem>>, %arg5: memref<64x1xf32, #tpu.memory_space<vmem>>, %arg6: memref<64x64xbf16, #tpu.memory_space<vmem>>) attributes {dimension_semantics = [#tpu.dimension_semantics<arbitrary>], iteration_bounds = array<i64: 1>, scalar_prefetch = 0 : i64, scratch_operands = 0 : i64, tpu.core_type = #tpu.core_type<tc>, window_params = [{pipeline_mode = #tpu.pipeline_mode<synchronous>, transform_indices = @transform_0, window_bounds = array<i64: 576, 64>}, {pipeline_mode = #tpu.pipeline_mode<synchronous>, transform_indices = @transform_1, window_bounds = array<i64: 64, 576>}, {pipeline_mode = #tpu.pipeline_mode<synchronous>, transform_indices = @transform_2, window_bounds = array<i64: 64, 1>}, {pipeline_mode = #tpu.pipeline_mode<synchronous>, transform_indices = @transform_3, window_bounds = array<i64: 64, 1>}, {pipeline_mode = #tpu.pipeline_mode<synchronous>, transform_indices = @transform_4, window_bounds = array<i64: 64, 1>}, {pipeline_mode = #tpu.pipeline_mode<synchronous>, transform_indices = @transform_5, window_bounds = array<i64: 64, 64>}]} {
    %c0 = arith.constant 0 : index
    %c0_0 = arith.constant 0 : index
    %0 = vector.load %arg2[%c0, %c0_0] : memref<64x576xbf16, #tpu.memory_space<vmem>>, vector<64x576xbf16>
    %c0_1 = arith.constant 0 : index
    %c0_2 = arith.constant 0 : index
    %1 = vector.load %arg1[%c0_1, %c0_2] : memref<576x64xbf16, #tpu.memory_space<vmem>>, vector<576x64xbf16>
    %cst = arith.constant dense<0.000000e+00> : vector<64x64xf32>
    %2 = tpu.matmul %0, %1, %cst {dimension_numbers = #tpu.dot_dimension_numbers<[1], [0], [0], [1], [0, 0, 1, 1], [], []>} : vector<64x576xbf16>, vector<576x64xbf16>, vector<64x64xf32> -> vector<64x64xf32>
    %c0_3 = arith.constant 0 : index
    %c0_4 = arith.constant 0 : index
    %3 = vector.load %arg3[%c0_3, %c0_4] : memref<64x1xf32, #tpu.memory_space<vmem>>, vector<64x1xf32>
    %4 = vector.broadcast %3 : vector<64x1xf32> to vector<64x64xf32>
    %5 = arith.addf %2, %4 : vector<64x64xf32>
    %cst_5 = arith.constant dense<0.000000e+00> : vector<64xf32>
    %6 = vector.multi_reduction <add>, %5, %cst_5 [1] : vector<64x64xf32> to vector<64xf32>
    %7 = vector.shape_cast %6 : vector<64xf32> to vector<64x1xf32>
    %cst_6 = arith.constant 1.562500e-02 : f32
    %8 = vector.broadcast %cst_6 : f32 to vector<64x1xf32>
    %9 = arith.mulf %7, %8 : vector<64x1xf32>
    %10 = vector.broadcast %9 : vector<64x1xf32> to vector<64x64xf32>
    %11 = arith.subf %5, %10 : vector<64x64xf32>
    %12 = arith.mulf %11, %11 : vector<64x64xf32>
    %cst_7 = arith.constant dense<0.000000e+00> : vector<64xf32>
    %13 = vector.multi_reduction <add>, %12, %cst_7 [1] : vector<64x64xf32> to vector<64xf32>
    %14 = vector.shape_cast %13 : vector<64xf32> to vector<64x1xf32>
    %cst_8 = arith.constant 1.562500e-02 : f32
    %15 = vector.broadcast %cst_8 : f32 to vector<64x1xf32>
    %16 = arith.mulf %14, %15 : vector<64x1xf32>
    %c0_9 = arith.constant 0 : index
    %c0_10 = arith.constant 0 : index
    %17 = vector.load %arg4[%c0_9, %c0_10] : memref<64x1xf32, #tpu.memory_space<vmem>>, vector<64x1xf32>
    %cst_11 = arith.constant 9.99999974E-6 : f32
    %18 = vector.broadcast %cst_11 : f32 to vector<64x1xf32>
    %19 = arith.addf %16, %18 : vector<64x1xf32>
    %20 = math.rsqrt %19 : vector<64x1xf32>
    %21 = arith.mulf %17, %20 : vector<64x1xf32>
    %22 = vector.broadcast %21 : vector<64x1xf32> to vector<64x64xf32>
    %23 = arith.mulf %11, %22 : vector<64x64xf32>
    %c0_12 = arith.constant 0 : index
    %c0_13 = arith.constant 0 : index
    %24 = vector.load %arg5[%c0_12, %c0_13] : memref<64x1xf32, #tpu.memory_space<vmem>>, vector<64x1xf32>
    %25 = vector.broadcast %24 : vector<64x1xf32> to vector<64x64xf32>
    %26 = arith.addf %23, %25 : vector<64x64xf32>
    %cst_14 = arith.constant 0.000000e+00 : f32
    %27 = vector.broadcast %cst_14 : f32 to vector<64x64xf32>
    %28 = arith.maximumf %26, %27 : vector<64x64xf32>
    %29 = arith.truncf %28 : vector<64x64xf32> to vector<64x64xbf16>
    %c0_15 = arith.constant 0 : index
    %c0_16 = arith.constant 0 : index
    %30 = vector.load %arg6[%c0_15, %c0_16] : memref<64x64xbf16, #tpu.memory_space<vmem>>, vector<64x64xbf16>
    tpu.vector_store %arg6[%c0_15, %c0_16], %29 {strides = array<i32>} : memref<64x64xbf16, #tpu.memory_space<vmem>>, vector<64x64xbf16>,
    return
  }
  func.func @transform_0(%arg0: i32) -> (i32, i32) {
    %c0_i32 = arith.constant 0 : i32
    %c0_i32_0 = arith.constant 0 : i32
    %c0_i32_1 = arith.constant 0 : i32
    return %c0_i32, %c0_i32_0 : i32, i32
  }
  func.func @transform_1(%arg0: i32) -> (i32, i32) {
    %c0_i32 = arith.constant 0 : i32
    %c0_i32_0 = arith.constant 0 : i32
    %c0_i32_1 = arith.constant 0 : i32
    return %c0_i32, %c0_i32_0 : i32, i32
  }
  func.func @transform_2(%arg0: i32) -> (i32, i32) {
    %c0_i32 = arith.constant 0 : i32
    %c0_i32_0 = arith.constant 0 : i32
    %c0_i32_1 = arith.constant 0 : i32
    return %c0_i32, %c0_i32_0 : i32, i32
  }
  func.func @transform_3(%arg0: i32) -> (i32, i32) {
    %c0_i32 = arith.constant 0 : i32
    %c0_i32_0 = arith.constant 0 : i32
    %c0_i32_1 = arith.constant 0 : i32
    return %c0_i32, %c0_i32_0 : i32, i32
  }
  func.func @transform_4(%arg0: i32) -> (i32, i32) {
    %c0_i32 = arith.constant 0 : i32
    %c0_i32_0 = arith.constant 0 : i32
    %c0_i32_1 = arith.constant 0 : i32
    return %c0_i32, %c0_i32_0 : i32, i32
  }
  func.func @transform_5(%arg0: i32) -> (i32, i32) {
    %c0_i32 = arith.constant 0 : i32
    %c0_i32_0 = arith.constant 0 : i32
    %c0_i32_1 = arith.constant 0 : i32
    return %c0_i32, %c0_i32_0 : i32, i32
  }
}

module attributes {stable_mosaic.version = 11 : i64} {
  func.func @kernel(%arg0: i32, %arg1: memref<576x64xbf16, #tpu.memory_space<vmem>>, %arg2: memref<64x576xbf16, #tpu.memory_space<vmem>>, %arg3: memref<64x1xf32, #tpu.memory_space<vmem>>, %arg4: memref<64x1xf32, #tpu.memory_space<vmem>>, %arg5: memref<64x1xf32, #tpu.memory_space<vmem>>, %arg6: memref<64x64xbf16, #tpu.memory_space<vmem>>, %arg7: memref<64x64xbf16, #tpu.memory_space<vmem>>) attributes {dimension_semantics = [#tpu.dimension_semantics<arbitrary>], iteration_bounds = array<i64: 1>, scalar_prefetch = 0 : i64, scratch_operands = 0 : i64, tpu.core_type = #tpu.core_type<tc>, window_params = [{pipeline_mode = #tpu.pipeline_mode<synchronous>, transform_indices = @transform_0, window_bounds = array<i64: 576, 64>}, {pipeline_mode = #tpu.pipeline_mode<synchronous>, transform_indices = @transform_1, window_bounds = array<i64: 64, 576>}, {pipeline_mode = #tpu.pipeline_mode<synchronous>, transform_indices = @transform_2, window_bounds = array<i64: 64, 1>}, {pipeline_mode = #tpu.pipeline_mode<synchronous>, transform_indices = @transform_3, window_bounds = array<i64: 64, 1>}, {pipeline_mode = #tpu.pipeline_mode<synchronous>, transform_indices = @transform_4, window_bounds = array<i64: 64, 1>}, {pipeline_mode = #tpu.pipeline_mode<synchronous>, transform_indices = @transform_5, window_bounds = array<i64: 64, 64>}, {pipeline_mode = #tpu.pipeline_mode<synchronous>, transform_indices = @transform_6, window_bounds = array<i64: 64, 64>}]} {
    %c0 = arith.constant 0 : index
    %c0_0 = arith.constant 0 : index
    %0 = vector.load %arg2[%c0, %c0_0] : memref<64x576xbf16, #tpu.memory_space<vmem>>, vector<64x576xbf16>
    %c0_1 = arith.constant 0 : index
    %c0_2 = arith.constant 0 : index
    %1 = vector.load %arg1[%c0_1, %c0_2] : memref<576x64xbf16, #tpu.memory_space<vmem>>, vector<576x64xbf16>
    %cst = arith.constant dense<0.000000e+00> : vector<64x64xf32>
    %2 = tpu.matmul %0, %1, %cst {dimension_numbers = #tpu.dot_dimension_numbers<[1], [0], [0], [1], [0, 0, 1, 1], [], []>} : vector<64x576xbf16>, vector<576x64xbf16>, vector<64x64xf32> -> vector<64x64xf32>
    %c0_3 = arith.constant 0 : index
    %c0_4 = arith.constant 0 : index
    %3 = vector.load %arg3[%c0_3, %c0_4] : memref<64x1xf32, #tpu.memory_space<vmem>>, vector<64x1xf32>
    %4 = vector.broadcast %3 : vector<64x1xf32> to vector<64x64xf32>
    %5 = arith.addf %2, %4 : vector<64x64xf32>
    %cst_5 = arith.constant dense<0.000000e+00> : vector<64xf32>
    %6 = vector.multi_reduction <add>, %5, %cst_5 [1] : vector<64x64xf32> to vector<64xf32>
    %7 = vector.shape_cast %6 : vector<64xf32> to vector<64x1xf32>
    %cst_6 = arith.constant 1.562500e-02 : f32
    %8 = vector.broadcast %cst_6 : f32 to vector<64x1xf32>
    %9 = arith.mulf %7, %8 : vector<64x1xf32>
    %10 = vector.broadcast %9 : vector<64x1xf32> to vector<64x64xf32>
    %11 = arith.subf %5, %10 : vector<64x64xf32>
    %12 = arith.mulf %11, %11 : vector<64x64xf32>
    %cst_7 = arith.constant dense<0.000000e+00> : vector<64xf32>
    %13 = vector.multi_reduction <add>, %12, %cst_7 [1] : vector<64x64xf32> to vector<64xf32>
    %14 = vector.shape_cast %13 : vector<64xf32> to vector<64x1xf32>
    %cst_8 = arith.constant 1.562500e-02 : f32
    %15 = vector.broadcast %cst_8 : f32 to vector<64x1xf32>
    %16 = arith.mulf %14, %15 : vector<64x1xf32>
    %c0_9 = arith.constant 0 : index
    %c0_10 = arith.constant 0 : index
    %17 = vector.load %arg4[%c0_9, %c0_10] : memref<64x1xf32, #tpu.memory_space<vmem>>, vector<64x1xf32>
    %cst_11 = arith.constant 9.99999974E-6 : f32
    %18 = vector.broadcast %cst_11 : f32 to vector<64x1xf32>
    %19 = arith.addf %16, %18 : vector<64x1xf32>
    %20 = math.rsqrt %19 : vector<64x1xf32>
    %21 = arith.mulf %17, %20 : vector<64x1xf32>
    %22 = vector.broadcast %21 : vector<64x1xf32> to vector<64x64xf32>
    %23 = arith.mulf %11, %22 : vector<64x64xf32>
    %c0_12 = arith.constant 0 : index
    %c0_13 = arith.constant 0 : index
    %24 = vector.load %arg5[%c0_12, %c0_13] : memref<64x1xf32, #tpu.memory_space<vmem>>, vector<64x1xf32>
    %25 = vector.broadcast %24 : vector<64x1xf32> to vector<64x64xf32>
    %26 = arith.addf %23, %25 : vector<64x64xf32>
    %c0_14 = arith.constant 0 : index
    %c0_15 = arith.constant 0 : index
    %27 = vector.load %arg6[%c0_14, %c0_15] : memref<64x64xbf16, #tpu.memory_space<vmem>>, vector<64x64xbf16>
    %28 = arith.extf %27 : vector<64x64xbf16> to vector<64x64xf32>
    %29 = arith.addf %26, %28 : vector<64x64xf32>
    %cst_16 = arith.constant 0.000000e+00 : f32
    %30 = vector.broadcast %cst_16 : f32 to vector<64x64xf32>
    %31 = arith.maximumf %29, %30 : vector<64x64xf32>
    %32 = arith.truncf %31 : vector<64x64xf32> to vector<64x64xbf16>
    %c0_17 = arith.constant 0 : index
    %c0_18 = arith.constant 0 : index
    %33 = vector.load %arg7[%c0_17, %c0_18] : memref<64x64xbf16, #tpu.memory_space<vmem>>, vector<64x64xbf16>
    tpu.vector_store %arg7[%c0_17, %c0_18], %32 {strides = array<i32>} : memref<64x64xbf16, #tpu.memory_space<vmem>>, vector<64x64xbf16>,
    return
  }
  func.func @transform_0(%arg0: i32) -> (i32, i32) {
    %c0_i32 = arith.constant 0 : i32
    %c0_i32_0 = arith.constant 0 : i32
    %c0_i32_1 = arith.constant 0 : i32
    return %c0_i32, %c0_i32_0 : i32, i32
  }
  func.func @transform_1(%arg0: i32) -> (i32, i32) {
    %c0_i32 = arith.constant 0 : i32
    %c0_i32_0 = arith.constant 0 : i32
    %c0_i32_1 = arith.constant 0 : i32
    return %c0_i32, %c0_i32_0 : i32, i32
  }
  func.func @transform_2(%arg0: i32) -> (i32, i32) {
    %c0_i32 = arith.constant 0 : i32
    %c0_i32_0 = arith.constant 0 : i32
    %c0_i32_1 = arith.constant 0 : i32
    return %c0_i32, %c0_i32_0 : i32, i32
  }
  func.func @transform_3(%arg0: i32) -> (i32, i32) {
    %c0_i32 = arith.constant 0 : i32
    %c0_i32_0 = arith.constant 0 : i32
    %c0_i32_1 = arith.constant 0 : i32
    return %c0_i32, %c0_i32_0 : i32, i32
  }
  func.func @transform_4(%arg0: i32) -> (i32, i32) {
    %c0_i32 = arith.constant 0 : i32
    %c0_i32_0 = arith.constant 0 : i32
    %c0_i32_1 = arith.constant 0 : i32
    return %c0_i32, %c0_i32_0 : i32, i32
  }
  func.func @transform_5(%arg0: i32) -> (i32, i32) {
    %c0_i32 = arith.constant 0 : i32
    %c0_i32_0 = arith.constant 0 : i32
    %c0_i32_1 = arith.constant 0 : i32
    return %c0_i32, %c0_i32_0 : i32, i32
  }
  func.func @transform_6(%arg0: i32) -> (i32, i32) {
    %c0_i32 = arith.constant 0 : i32
    %c0_i32_0 = arith.constant 0 : i32
    %c0_i32_1 = arith.constant 0 : i32
    return %c0_i32, %c0_i32_0 : i32, i32
  }
}

module attributes {stable_mosaic.version = 11 : i64} {
  func.func @_gap_fc_kernel(%arg0: i32, %arg1: memref<64x2x32xbf16, #tpu.memory_space<vmem>>, %arg2: memref<8x64xf32, #tpu.memory_space<vmem>>, %arg3: memref<8x1xf32, #tpu.memory_space<vmem>>, %arg4: memref<8x2xf32, #tpu.memory_space<vmem>>) attributes {dimension_semantics = [#tpu.dimension_semantics<arbitrary>], iteration_bounds = array<i64: 1>, scalar_prefetch = 0 : i64, scratch_operands = 0 : i64, tpu.core_type = #tpu.core_type<tc>, window_params = [{pipeline_mode = #tpu.pipeline_mode<synchronous>, transform_indices = @transform_0, window_bounds = array<i64: 64, 2, 32>}, {pipeline_mode = #tpu.pipeline_mode<synchronous>, transform_indices = @transform_1, window_bounds = array<i64: 8, 64>}, {pipeline_mode = #tpu.pipeline_mode<synchronous>, transform_indices = @transform_2, window_bounds = array<i64: 8, 1>}, {pipeline_mode = #tpu.pipeline_mode<synchronous>, transform_indices = @transform_3, window_bounds = array<i64: 8, 2>}]} {
    %c0 = arith.constant 0 : index
    %c0_0 = arith.constant 0 : index
    %c0_1 = arith.constant 0 : index
    %0 = vector.load %arg1[%c0, %c0_0, %c0_1] : memref<64x2x32xbf16, #tpu.memory_space<vmem>>, vector<64x2x32xbf16>
    %1 = arith.extf %0 : vector<64x2x32xbf16> to vector<64x2x32xf32>
    %cst = arith.constant dense<0.000000e+00> : vector<64x2xf32>
    %2 = vector.multi_reduction <add>, %1, %cst [2] : vector<64x2x32xf32> to vector<64x2xf32>
    %cst_2 = arith.constant 3.200000e+01 : f32
    %3 = vector.broadcast %cst_2 : f32 to vector<64x2xf32>
    %4 = arith.divf %2, %3 : vector<64x2xf32>
    %c0_3 = arith.constant 0 : index
    %c0_4 = arith.constant 0 : index
    %5 = vector.load %arg2[%c0_3, %c0_4] : memref<8x64xf32, #tpu.memory_space<vmem>>, vector<8x64xf32>
    %cst_5 = arith.constant dense<0.000000e+00> : vector<8x2xf32>
    %6 = tpu.matmul %5, %4, %cst_5 {dimension_numbers = #tpu.dot_dimension_numbers<[1], [0], [0], [1], [0, 0, 1, 1], [], []>} : vector<8x64xf32>, vector<64x2xf32>, vector<8x2xf32> -> vector<8x2xf32>
    %c0_6 = arith.constant 0 : index
    %c0_7 = arith.constant 0 : index
    %7 = vector.load %arg3[%c0_6, %c0_7] : memref<8x1xf32, #tpu.memory_space<vmem>>, vector<8x1xf32>
    %8 = vector.broadcast %7 : vector<8x1xf32> to vector<8x2xf32>
    %9 = arith.addf %6, %8 : vector<8x2xf32>
    %c0_8 = arith.constant 0 : index
    %c0_9 = arith.constant 0 : index
    %10 = vector.load %arg4[%c0_8, %c0_9] : memref<8x2xf32, #tpu.memory_space<vmem>>, vector<8x2xf32>
    tpu.vector_store %arg4[%c0_8, %c0_9], %9 {strides = array<i32>} : memref<8x2xf32, #tpu.memory_space<vmem>>, vector<8x2xf32>,
    return
  }
  func.func @transform_0(%arg0: i32) -> (i32, i32, i32) {
    %c0_i32 = arith.constant 0 : i32
    %c0_i32_0 = arith.constant 0 : i32
    %c0_i32_1 = arith.constant 0 : i32
    %c0_i32_2 = arith.constant 0 : i32
    return %c0_i32, %c0_i32_0, %c0_i32_1 : i32, i32, i32
  }
  func.func @transform_1(%arg0: i32) -> (i32, i32) {
    %c0_i32 = arith.constant 0 : i32
    %c0_i32_0 = arith.constant 0 : i32
    %c0_i32_1 = arith.constant 0 : i32
    return %c0_i32, %c0_i32_0 : i32, i32
  }
  func.func @transform_2(%arg0: i32) -> (i32, i32) {
    %c0_i32 = arith.constant 0 : i32
    %c0_i32_0 = arith.constant 0 : i32
    %c0_i32_1 = arith.constant 0 : i32
    return %c0_i32, %c0_i32_0 : i32, i32
  }
  func.func @transform_3(%arg0: i32) -> (i32, i32) {
    %c0_i32 = arith.constant 0 : i32
    %c0_i32_0 = arith.constant 0 : i32
    %c0_i32_1 = arith.constant 0 : i32
    return %c0_i32, %c0_i32_0 : i32, i32
  }
}

</mosaic_0001>

<llo_original>
// kernel: resnet_iid_forward.19
$region0: #{resnet_iid_forward.19}
  #allocation0 [shape = 'u32[]', space=smem, size = 0x4, offset = 0x4, fixed_abs, tag = 'smem constant byte address 0x4 - core index']
  #allocation1 [shape = 'u32[144,128]{1,0:T(1,128)}', space=vmem, size = 0x12000, scoped, tag = 'internal scratch']
  %s0 = inlined_call_operand.vmem [shape: bf16[49,3072], index: 0, kind: input, shape index: {}]
  %s1 = inlined_call_operand.vmem [shape: bf16[8,49], index: 1, kind: input, shape index: {}]
  %s2 = inlined_call_operand.vmem [shape: f32[8,1], index: 2, kind: input, shape index: {}]
  %s3 = inlined_call_operand.vmem [shape: f32[8,1], index: 3, kind: input, shape index: {}]
  %s4 = inlined_call_operand.vmem [shape: f32[8,1], index: 4, kind: input, shape index: {}]
  %s5 = inlined_call_operand.vmem [shape: f32[8,3072], index: 5, kind: output, shape index: {}]
  %s6 = sld [smem:[#allocation0]]
  $region30: #{resnet_iid_forward.19} parent=0
    _
  %s8 = ssub.s32 1, %s6
  %s9 = scalar_select 0, %s8, %s6
  // Predicated region
  $region2: #{resnet_iid_forward.19} parent=0 // pred_check
    _
  $region3: #{resnet_iid_forward.19} parent=0 // pred_check_branch
    %11 = sbr.rel (0) target = $region5
  $region4: #{resnet_iid_forward.19} parent=0 // pred_region
    _
  $region5: #{resnet_iid_forward.19} parent=0 // pred_fallthru
    _
  // Predicated region
  $region6: #{resnet_iid_forward.19} parent=0 // pred_check
    _
  $region7: #{resnet_iid_forward.19} parent=0 // pred_check_branch
    %13 = sbr.rel (0) target = $region9
  $region8: #{resnet_iid_forward.19} parent=0 // pred_region
    _
  $region9: #{resnet_iid_forward.19} parent=0 // pred_fallthru
    _
  // Predicated region
  $region10: #{resnet_iid_forward.19} parent=0 // pred_check
    _
  $region11: #{resnet_iid_forward.19} parent=0 // pred_check_branch
    %15 = sbr.rel (0) target = $region13
  $region12: #{resnet_iid_forward.19} parent=0 // pred_region
    _
  $region13: #{resnet_iid_forward.19} parent=0 // pred_fallthru
    _
  // Predicated region
  $region14: #{resnet_iid_forward.19} parent=0 // pred_check
    _
  $region15: #{resnet_iid_forward.19} parent=0 // pred_check_branch
    %17 = sbr.rel (0) target = $region17
  $region16: #{resnet_iid_forward.19} parent=0 // pred_region
    _
  $region17: #{resnet_iid_forward.19} parent=0 // pred_fallthru
    _
  // Predicated region
  $region18: #{resnet_iid_forward.19} parent=0 // pred_check
    _
  $region19: #{resnet_iid_forward.19} parent=0 // pred_check_branch
    %19 = sbr.rel (0) target = $region21
  $region20: #{resnet_iid_forward.19} parent=0 // pred_region
    _
  $region21: #{resnet_iid_forward.19} parent=0 // pred_fallthru
    _
  %v21 = vld [vmem:[%s1] sm:$0xf]
  %v22 = vld [vmem:[%s0] sm:$0xff]
  %v23 = vld [vmem:[%s0 + $0x8] sm:$0xff]
  %v24 = vld [vmem:[%s0 + $0x10] sm:$0xff]
  %v25 = vld [vmem:[%s0 + $0x18] sm:$0xff]
  %v26 = vld [vmem:[%s0 + $0x20] sm:$0xff]
  %v27 = vld [vmem:[%s0 + $0x28] sm:$0xff]
  %v28 = vld [vmem:[%s0 + $0x30] sm:$0xff]
  %v29 = vld [vmem:[%s0 + $0x38] sm:$0xff]
  %v30 = vld [vmem:[%s0 + $0x40] sm:$0xff]
  %v31 = vld [vmem:[%s0 + $0x48] sm:$0xff]
  %v32 = vld [vmem:[%s0 + $0x50] sm:$0xff]
  %v33 = vld [vmem:[%s0 + $0x58] sm:$0xff]
  %v34 = vld [vmem:[%s0 + $0x60] sm:$0xff]
  %v35 = vld [vmem:[%s0 + $0x68] sm:$0xff]
  %v36 = vld [vmem:[%s0 + $0x70] sm:$0xff]
  %v37 = vld [vmem:[%s0 + $0x78] sm:$0xff]
  %v38 = vld [vmem:[%s0 + $0x80] sm:$0xff]
  %v39 = vld [vmem:[%s0 + $0x88] sm:$0xff]
  %v40 = vld [vmem:[%s0 + $0x90] sm:$0xff]
  %v41 = vld [vmem:[%s0 + $0x98] sm:$0xff]
  %v42 = vld [vmem:[%s0 + $0xa0] sm:$0xff]
  %v43 = vld [vmem:[%s0 + $0xa8] sm:$0xff]
  %v44 = vld [vmem:[%s0 + $0xb0] sm:$0xff]
  %v45 = vld [vmem:[%s0 + $0xb8] sm:$0xff]
  %v46 = vld [vmem:[%s0 + $0xc0] sm:$0xff]
  %v47 = vld [vmem:[%s0 + $0xc8] sm:$0xff]
  %v48 = vld [vmem:[%s0 + $0xd0] sm:$0xff]
  %v49 = vld [vmem:[%s0 + $0xd8] sm:$0xff]
  %v50 = vld [vmem:[%s0 + $0xe0] sm:$0xff]
  %v51 = vld [vmem:[%s0 + $0xe8] sm:$0xff]
  %v52 = vld [vmem:[%s0 + $0xf0] sm:$0xff]
  %v53 = vld [vmem:[%s0 + $0xf8] sm:$0xff]
  %v54 = vld [vmem:[%s0 + $0x100] sm:$0xff]
  %v55 = vld [vmem:[%s0 + $0x108] sm:$0xff]
  %v56 = vld [vmem:[%s0 + $0x110] sm:$0xff]
  %v57 = vld [vmem:[%s0 + $0x118] sm:$0xff]
  %v58 = vld [vmem:[%s0 + $0x120] sm:$0xff]
  %v59 = vld [vmem:[%s0 + $0x128] sm:$0xff]
  %v60 = vld [vmem:[%s0 + $0x130] sm:$0xff]
  %v61 = vld [vmem:[%s0 + $0x138] sm:$0xff]
  %v62 = vld [vmem:[%s0 + $0x140] sm:$0xff]
  %v63 = vld [vmem:[%s0 + $0x148] sm:$0xff]
  %v64 = vld [vmem:[%s0 + $0x150] sm:$0xff]
  %v65 = vld [vmem:[%s0 + $0x158] sm:$0xff]
  %v66 = vld [vmem:[%s0 + $0x160] sm:$0xff]
  %v67 = vld [vmem:[%s0 + $0x168] sm:$0xff]
  %v68 = vld [vmem:[%s0 + $0x170] sm:$0xff]
  %v69 = vld [vmem:[%s0 + $0x178] sm:$0xff]
  %v70 = vld [vmem:[%s0 + $0x180] sm:$0xff]
  %v71 = vld [vmem:[%s0 + $0x188] sm:$0xff]
  %v72 = vld [vmem:[%s0 + $0x190] sm:$0xff]
  %v73 = vld [vmem:[%s0 + $0x198] sm:$0xff]
  %v74 = vld [vmem:[%s0 + $0x1a0] sm:$0xff]
  %v75 = vld [vmem:[%s0 + $0x1a8] sm:$0xff]
  %v76 = vld [vmem:[%s0 + $0x1b0] sm:$0xff]
  %v77 = vld [vmem:[%s0 + $0x1b8] sm:$0xff]
  %v78 = vld [vmem:[%s0 + $0x1c0] sm:$0xff]
  %v79 = vld [vmem:[%s0 + $0x1c8] sm:$0xff]
  %v80 = vld [vmem:[%s0 + $0x1d0] sm:$0xff]
  %v81 = vld [vmem:[%s0 + $0x1d8] sm:$0xff]
  %v82 = vld [vmem:[%s0 + $0x1e0] sm:$0xff]
  %v83 = vld [vmem:[%s0 + $0x1e8] sm:$0xff]
  %v84 = vld [vmem:[%s0 + $0x1f0] sm:$0xff]
  %v85 = vld [vmem:[%s0 + $0x1f8] sm:$0xff]
  %v86 = vld [vmem:[%s0 + $0x200] sm:$0xff]
  %v87 = vld [vmem:[%s0 + $0x208] sm:$0xff]
  %v88 = vld [vmem:[%s0 + $0x210] sm:$0xff]
  %v89 = vld [vmem:[%s0 + $0x218] sm:$0xff]
  %v90 = vld [vmem:[%s0 + $0x220] sm:$0xff]
  %v91 = vld [vmem:[%s0 + $0x228] sm:$0xff]
  %v92 = vld [vmem:[%s0 + $0x230] sm:$0xff]
  %v93 = vld [vmem:[%s0 + $0x238] sm:$0xff]
  %v94 = vld [vmem:[%s0 + $0x240] sm:$0x11]
  %v95 = vld [vmem:[%s0 + $0x248] sm:$0x11]
  %v96 = vld [vmem:[%s0 + $0x250] sm:$0x11]
  %v97 = vld [vmem:[%s0 + $0x258] sm:$0x11]
  %v98 = vld [vmem:[%s0 + $0x260] sm:$0x11]
  %v99 = vld [vmem:[%s0 + $0x268] sm:$0x11]
  %v100 = vld [vmem:[%s0 + $0x270] sm:$0x11]
  %v101 = vld [vmem:[%s0 + $0x278] sm:$0x11]
  %v102 = vld [vmem:[%s0 + $0x280] sm:$0x11]
  %v103 = vld [vmem:[%s0 + $0x288] sm:$0x11]
  %v104 = vld [vmem:[%s0 + $0x290] sm:$0x11]
  %v105 = vld [vmem:[%s0 + $0x298] sm:$0x11]
  %v106 = vld [vmem:[%s2] sm:$0xff]
  %108 = vset.pattern.permute.xlu0 0
  %109 = vperm.xlu0 %108, %v106
  %v110 = vpop.permute.xlu0 %109
  %v196 = vunpack.c.l.b16 %v22
  %v197 = vunpack.c.h.b16 %v22
  %v198 = vunpack.c.l.b16 %v23
  %v199 = vunpack.c.h.b16 %v23
  %v200 = vunpack.c.l.b16 %v24
  %v201 = vunpack.c.h.b16 %v24
  %v202 = vunpack.c.l.b16 %v25
  %v203 = vunpack.c.h.b16 %v25
  %v204 = vunpack.c.l.b16 %v26
  %v205 = vunpack.c.h.b16 %v26
  %v206 = vunpack.c.l.b16 %v27
  %v207 = vunpack.c.h.b16 %v27
  %v208 = vunpack.c.l.b16 %v28
  %v209 = vunpack.c.h.b16 %v28
  %v210 = vunpack.c.l.b16 %v29
  %v211 = vunpack.c.h.b16 %v29
  %v212 = vunpack.c.l.b16 %v30
  %v213 = vunpack.c.h.b16 %v30
  %v214 = vunpack.c.l.b16 %v31
  %v215 = vunpack.c.h.b16 %v31
  %v216 = vunpack.c.l.b16 %v32
  %v217 = vunpack.c.h.b16 %v32
  %v218 = vunpack.c.l.b16 %v33
  %v219 = vunpack.c.h.b16 %v33
  %v220 = vunpack.c.l.b16 %v34
  %v221 = vunpack.c.h.b16 %v34
  %v222 = vunpack.c.l.b16 %v35
  %v223 = vunpack.c.h.b16 %v35
  %v224 = vunpack.c.l.b16 %v36
  %v225 = vunpack.c.h.b16 %v36
  %v226 = vunpack.c.l.b16 %v37
  %v227 = vunpack.c.h.b16 %v37
  %v228 = vunpack.c.l.b16 %v38
  %v229 = vunpack.c.h.b16 %v38
  %v230 = vunpack.c.l.b16 %v39
  %v231 = vunpack.c.h.b16 %v39
  %v232 = vunpack.c.l.b16 %v40
  %v233 = vunpack.c.h.b16 %v40
  %v234 = vunpack.c.l.b16 %v41
  %v235 = vunpack.c.h.b16 %v41
  %v236 = vunpack.c.l.b16 %v42
  %v237 = vunpack.c.h.b16 %v42
  %v238 = vunpack.c.l.b16 %v43
  %v239 = vunpack.c.h.b16 %v43
  %v240 = vunpack.c.l.b16 %v44
  %v241 = vunpack.c.h.b16 %v44
  %v242 = vunpack.c.l.b16 %v45
  %v243 = vunpack.c.h.b16 %v45
  %v244 = vunpack.c.l.b16 %v46
  %v245 = vunpack.c.h.b16 %v46
  %v246 = vunpack.c.l.b16 %v47
  %v247 = vunpack.c.h.b16 %v47
  %v248 = vunpack.c.l.b16 %v48
  %v249 = vunpack.c.h.b16 %v48
  %v250 = vunpack.c.l.b16 %v49
  %v251 = vunpack.c.h.b16 %v49
  %v252 = vunpack.c.l.b16 %v50
  %v253 = vunpack.c.h.b16 %v50
  %v254 = vunpack.c.l.b16 %v51
  %v255 = vunpack.c.h.b16 %v51
  %v256 = vunpack.c.l.b16 %v52
  %v257 = vunpack.c.h.b16 %v52
  %v258 = vunpack.c.l.b16 %v53
  %v259 = vunpack.c.h.b16 %v53
  %v260 = vunpack.c.l.b16 %v54
  %v261 = vunpack.c.h.b16 %v54
  %v262 = vunpack.c.l.b16 %v55
  %v263 = vunpack.c.h.b16 %v55
  %v264 = vunpack.c.l.b16 %v56
  %v265 = vunpack.c.h.b16 %v56
  %v266 = vunpack.c.l.b16 %v57
  %v267 = vunpack.c.h.b16 %v57
  %v268 = vunpack.c.l.b16 %v58
  %v269 = vunpack.c.h.b16 %v58
  %v270 = vunpack.c.l.b16 %v59
  %v271 = vunpack.c.h.b16 %v59
  %v272 = vunpack.c.l.b16 %v60
  %v273 = vunpack.c.h.b16 %v60
  %v274 = vunpack.c.l.b16 %v61
  %v275 = vunpack.c.h.b16 %v61
  %v276 = vunpack.c.l.b16 %v62
  %v277 = vunpack.c.h.b16 %v62
  %v278 = vunpack.c.l.b16 %v63
  %v279 = vunpack.c.h.b16 %v63
  %v280 = vunpack.c.l.b16 %v64
  %v281 = vunpack.c.h.b16 %v64
  %v282 = vunpack.c.l.b16 %v65
  %v283 = vunpack.c.h.b16 %v65
  %v284 = vunpack.c.l.b16 %v66
  %v285 = vunpack.c.h.b16 %v66
  %v286 = vunpack.c.l.b16 %v67
  %v287 = vunpack.c.h.b16 %v67
  %v288 = vunpack.c.l.b16 %v68
  %v289 = vunpack.c.h.b16 %v68
  %v290 = vunpack.c.l.b16 %v69
  %v291 = vunpack.c.h.b16 %v69
  %v292 = vunpack.c.l.b16 %v70
  %v293 = vunpack.c.h.b16 %v70
  %v294 = vunpack.c.l.b16 %v71
  %v295 = vunpack.c.h.b16 %v71
  %v296 = vunpack.c.l.b16 %v72
  %v297 = vunpack.c.h.b16 %v72
  %v298 = vunpack.c.l.b16 %v73
  %v299 = vunpack.c.h.b16 %v73
  %v300 = vunpack.c.l.b16 %v74
  %v301 = vunpack.c.h.b16 %v74
  %v302 = vunpack.c.l.b16 %v75
  %v303 = vunpack.c.h.b16 %v75
  %v304 = vunpack.c.l.b16 %v76
  %v305 = vunpack.c.h.b16 %v76
  %v306 = vunpack.c.l.b16 %v77
  %v307 = vunpack.c.h.b16 %v77
  %v308 = vunpack.c.l.b16 %v78
  %v309 = vunpack.c.h.b16 %v78
  %v310 = vunpack.c.l.b16 %v79
  %v311 = vunpack.c.h.b16 %v79
  %v312 = vunpack.c.l.b16 %v80
  %v313 = vunpack.c.h.b16 %v80
  %v314 = vunpack.c.l.b16 %v81
  %v315 = vunpack.c.h.b16 %v81
  %v316 = vunpack.c.l.b16 %v82
  %v317 = vunpack.c.h.b16 %v82
  %v318 = vunpack.c.l.b16 %v83
  %v319 = vunpack.c.h.b16 %v83
  %v320 = vunpack.c.l.b16 %v84
  %v321 = vunpack.c.h.b16 %v84
  %v322 = vunpack.c.l.b16 %v85
  %v323 = vunpack.c.h.b16 %v85
  %v324 = vunpack.c.l.b16 %v86
  %v325 = vunpack.c.h.b16 %v86
  %v326 = vunpack.c.l.b16 %v87
  %v327 = vunpack.c.h.b16 %v87
  %v328 = vunpack.c.l.b16 %v88
  %v329 = vunpack.c.h.b16 %v88
  %v330 = vunpack.c.l.b16 %v89
  %v331 = vunpack.c.h.b16 %v89
  %v332 = vunpack.c.l.b16 %v90
  %v333 = vunpack.c.h.b16 %v90
  %v334 = vunpack.c.l.b16 %v91
  %v335 = vunpack.c.h.b16 %v91
  %v336 = vunpack.c.l.b16 %v92
  %v337 = vunpack.c.h.b16 %v92
  %v338 = vunpack.c.l.b16 %v93
  %v339 = vunpack.c.h.b16 %v93
  %v340 = vunpack.c.l.b16 %v94
  %v341 = vunpack.c.h.b16 %v94
  %v342 = vunpack.c.l.b16 %v95
  %v343 = vunpack.c.h.b16 %v95
  %v344 = vunpack.c.l.b16 %v96
  %v345 = vunpack.c.h.b16 %v96
  %v346 = vunpack.c.l.b16 %v97
  %v347 = vunpack.c.h.b16 %v97
  %v348 = vunpack.c.l.b16 %v98
  %v349 = vunpack.c.h.b16 %v98
  %v350 = vunpack.c.l.b16 %v99
  %v351 = vunpack.c.h.b16 %v99
  %v352 = vunpack.c.l.b16 %v100
  %v353 = vunpack.c.h.b16 %v100
  %v354 = vunpack.c.l.b16 %v101
  %v355 = vunpack.c.h.b16 %v101
  %v356 = vunpack.c.l.b16 %v102
  %v357 = vunpack.c.h.b16 %v102
  %v358 = vunpack.c.l.b16 %v103
  %v359 = vunpack.c.h.b16 %v103
  %v360 = vunpack.c.l.b16 %v104
  %v361 = vunpack.c.h.b16 %v104
  %v362 = vunpack.c.l.b16 %v105
  %v363 = vunpack.c.h.b16 %v105
  %v364 = vpack.c.b16 %v220, %v196
  %v365 = vpack.c.b16 %v221, %v197
  %v366 = vpack.c.b16 %v222, %v198
  %v367 = vpack.c.b16 %v223, %v199
  %v368 = vpack.c.b16 %v224, %v200
  %v369 = vpack.c.b16 %v225, %v201
  %v370 = vpack.c.b16 %v226, %v202
  %v371 = vpack.c.b16 %v227, %v203
  %v372 = vpack.c.b16 %v228, %v204
  %v373 = vpack.c.b16 %v229, %v205
  %v374 = vpack.c.b16 %v230, %v206
  %v375 = vpack.c.b16 %v231, %v207
  %v376 = vpack.c.b16 %v232, %v208
  %v377 = vpack.c.b16 %v233, %v209
  %v378 = vpack.c.b16 %v234, %v210
  %v379 = vpack.c.b16 %v235, %v211
  %v380 = vpack.c.b16 %v236, %v212
  %v381 = vpack.c.b16 %v237, %v213
  %v382 = vpack.c.b16 %v238, %v214
  %v383 = vpack.c.b16 %v239, %v215
  %v384 = vpack.c.b16 %v240, %v216
  %v385 = vpack.c.b16 %v241, %v217
  %v386 = vpack.c.b16 %v242, %v218
  %v387 = vpack.c.b16 %v243, %v219
  %v388 = vpack.c.b16 %v268, %v244
  %v389 = vpack.c.b16 %v269, %v245
  %v390 = vpack.c.b16 %v270, %v246
  %v391 = vpack.c.b16 %v271, %v247
  %v392 = vpack.c.b16 %v272, %v248
  %v393 = vpack.c.b16 %v273, %v249
  %v394 = vpack.c.b16 %v274, %v250
  %v395 = vpack.c.b16 %v275, %v251
  %v396 = vpack.c.b16 %v276, %v252
  %v397 = vpack.c.b16 %v277, %v253
  %v398 = vpack.c.b16 %v278, %v254
  %v399 = vpack.c.b16 %v279, %v255
  %v400 = vpack.c.b16 %v280, %v256
  %v401 = vpack.c.b16 %v281, %v257
  %v402 = vpack.c.b16 %v282, %v258
  %v403 = vpack.c.b16 %v283, %v259
  %v404 = vpack.c.b16 %v284, %v260
  %v405 = vpack.c.b16 %v285, %v261
  %v406 = vpack.c.b16 %v286, %v262
  %v407 = vpack.c.b16 %v287, %v263
  %v408 = vpack.c.b16 %v288, %v264
  %v409 = vpack.c.b16 %v289, %v265
  %v410 = vpack.c.b16 %v290, %v266
  %v411 = vpack.c.b16 %v291, %v267
  %v412 = vpack.c.b16 %v316, %v292
  %v413 = vpack.c.b16 %v317, %v293
  %v414 = vpack.c.b16 %v318, %v294
  %v415 = vpack.c.b16 %v319, %v295
  %v416 = vpack.c.b16 %v320, %v296
  %v417 = vpack.c.b16 %v321, %v297
  %v418 = vpack.c.b16 %v322, %v298
  %v419 = vpack.c.b16 %v323, %v299
  %v420 = vpack.c.b16 %v324, %v300
  %v421 = vpack.c.b16 %v325, %v301
  %v422 = vpack.c.b16 %v326, %v302
  %v423 = vpack.c.b16 %v327, %v303
  %v424 = vpack.c.b16 %v328, %v304
  %v425 = vpack.c.b16 %v329, %v305
  %v426 = vpack.c.b16 %v330, %v306
  %v427 = vpack.c.b16 %v331, %v307
  %v428 = vpack.c.b16 %v332, %v308
  %v429 = vpack.c.b16 %v333, %v309
  %v430 = vpack.c.b16 %v334, %v310
  %v431 = vpack.c.b16 %v335, %v311
  %v432 = vpack.c.b16 %v336, %v312
  %v433 = vpack.c.b16 %v337, %v313
  %v434 = vpack.c.b16 %v338, %v314
  %v435 = vpack.c.b16 %v339, %v315
  %v436 = vpack.c.b16 %v340, %v340
  %v437 = vpack.c.b16 %v341, %v341
  %v438 = vpack.c.b16 %v342, %v342
  %v439 = vpack.c.b16 %v343, %v343
  %v440 = vpack.c.b16 %v344, %v344
  %v441 = vpack.c.b16 %v345, %v345
  %v442 = vpack.c.b16 %v346, %v346
  %v443 = vpack.c.b16 %v347, %v347
  %v444 = vpack.c.b16 %v348, %v348
  %v445 = vpack.c.b16 %v349, %v349
  %v446 = vpack.c.b16 %v350, %v350
  %v447 = vpack.c.b16 %v351, %v351
  %v448 = vpack.c.b16 %v352, %v352
  %v449 = vpack.c.b16 %v353, %v353
  %v450 = vpack.c.b16 %v354, %v354
  %v451 = vpack.c.b16 %v355, %v355
  %v452 = vpack.c.b16 %v356, %v356
  %v453 = vpack.c.b16 %v357, %v357
  %v454 = vpack.c.b16 %v358, %v358
  %v455 = vpack.c.b16 %v359, %v359
  %v456 = vpack.c.b16 %v360, %v360
  %v457 = vpack.c.b16 %v361, %v361
  %v458 = vpack.c.b16 %v362, %v362
  %v459 = vpack.c.b16 %v363, %v363
  %vm532 = vcmask 400384
  %v534 = vsel %vm532, %v21, 0
  %vm536 = vcmask 1040384
  %v537 = vsel 0, 4294967295, 65535
  %v538 = vsel %vm536, %v537, 0
  %v540 = vand.u32 %v436, %v538
  %v543 = vand.u32 %v437, %v538
  %v546 = vand.u32 %v438, %v538
  %v549 = vand.u32 %v439, %v538
  %v552 = vand.u32 %v440, %v538
  %v555 = vand.u32 %v441, %v538
  %v558 = vand.u32 %v442, %v538
  %v561 = vand.u32 %v443, %v538
  %v564 = vand.u32 %v444, %v538
  %v567 = vand.u32 %v445, %v538
  %v570 = vand.u32 %v446, %v538
  %v573 = vand.u32 %v447, %v538
  %v576 = vand.u32 %v448, %v538
  %v579 = vand.u32 %v449, %v538
  %v582 = vand.u32 %v450, %v538
  %v585 = vand.u32 %v451, %v538
  %v588 = vand.u32 %v452, %v538
  %v591 = vand.u32 %v453, %v538
  %v594 = vand.u32 %v454, %v538
  %v597 = vand.u32 %v455, %v538
  %v600 = vand.u32 %v456, %v538
  %v603 = vand.u32 %v457, %v538
  %v606 = vand.u32 %v458, %v538
  %v609 = vand.u32 %v459, %v538
  %611 = vmatprep.subr.bf16.mxu0 %v365
  %612 = vmatpush1.bf16.msra.mxu0 %v364
  %613 = vmatprep.subr.bf16.mxu0 %v389
  %614 = vmatpush1.bf16.msra.mxu0 %v388
  %615 = vmatprep.subr.bf16.mxu0 %v413
  %616 = vmatpush1.bf16.msra.mxu0 %v412
  %617 = vmatprep.subr.bf16.mxu0 %v543
  %618 = vmatpush1.bf16.msra.mxu0 %v540
  %619 = vmatprep.subr.bf16.mxu0 0
  %620 = vmatpush1.bf16.msra.mxu0 0
  %621 = vmatprep.subr.bf16.mxu0 0
  %622 = vmatpush1.bf16.msra.mxu0 0
  %623 = vmatprep.subr.bf16.mxu0 0
  %624 = vmatpush1.bf16.msra.mxu0 0
  %625 = vmatprep.subr.bf16.mxu0 0
  %626 = vmatpush1.bf16.msra.mxu0 0
  %627 = vmatprep.subr.bf16.mxu0 0
  %628 = vmatpush1.bf16.msra.mxu0 0
  %629 = vmatprep.subr.bf16.mxu0 0
  %630 = vmatpush1.bf16.msra.mxu0 0
  %631 = vmatprep.subr.bf16.mxu0 0
  %632 = vmatpush1.bf16.msra.mxu0 0
  %633 = vmatprep.subr.bf16.mxu0 0
  %634 = vmatpush1.bf16.msra.mxu0 0
  %635 = vmatprep.subr.bf16.mxu0 0
  %636 = vmatpush1.bf16.msra.mxu0 0
  %637 = vmatprep.subr.bf16.mxu0 0
  %638 = vmatpush1.bf16.msra.mxu0 0
  %639 = vmatprep.subr.bf16.mxu0 0
  %640 = vmatpush1.bf16.msra.mxu0 0
  %641 = vmatprep.subr.bf16.mxu0 0
  %642 = vmatpush1.bf16.msra.mxu0 0
  %643 = vmatprep.mubr.bf16.mxu0 0
  %644 = vmatmul.mubr.bf16.gmra.mrb[0].mxu0 %v534
  %v645 = vpop.f32.mrb[0].mxu0
  %v646 = vadd.f32 %v110, %v645
  %v647 = vpop.f32.mrb[0].mxu0
  %v648 = vadd.f32 %v110, %v647
  %v649 = vpop.f32.mrb[0].mxu0
  %v650 = vpop.f32.mrb[0].mxu0
  %651 = vdwg.mxu0
  %652 = vmatprep.subr.bf16.mxu0 %v367
  %653 = vmatpush1.bf16.msra.mxu0 %v366
  %654 = vmatprep.subr.bf16.mxu0 %v391
  %655 = vmatpush1.bf16.msra.mxu0 %v390
  %656 = vmatprep.subr.bf16.mxu0 %v415
  %657 = vmatpush1.bf16.msra.mxu0 %v414
  %658 = vmatprep.subr.bf16.mxu0 %v549
  %659 = vmatpush1.bf16.msra.mxu0 %v546
  %660 = vmatprep.subr.bf16.mxu0 0
  %661 = vmatpush1.bf16.msra.mxu0 0
  %662 = vmatprep.subr.bf16.mxu0 0
  %663 = vmatpush1.bf16.msra.mxu0 0
  %664 = vmatprep.subr.bf16.mxu0 0
  %665 = vmatpush1.bf16.msra.mxu0 0
  %666 = vmatprep.subr.bf16.mxu0 0
  %667 = vmatpush1.bf16.msra.mxu0 0
  %668 = vmatprep.subr.bf16.mxu0 0
  %669 = vmatpush1.bf16.msra.mxu0 0
  %670 = vmatprep.subr.bf16.mxu0 0
  %671 = vmatpush1.bf16.msra.mxu0 0
  %672 = vmatprep.subr.bf16.mxu0 0
  %673 = vmatpush1.bf16.msra.mxu0 0
  %674 = vmatprep.subr.bf16.mxu0 0
  %675 = vmatpush1.bf16.msra.mxu0 0
  %676 = vmatprep.subr.bf16.mxu0 0
  %677 = vmatpush1.bf16.msra.mxu0 0
  %678 = vmatprep.subr.bf16.mxu0 0
  %679 = vmatpush1.bf16.msra.mxu0 0
  %680 = vmatprep.subr.bf16.mxu0 0
  %681 = vmatpush1.bf16.msra.mxu0 0
  %682 = vmatprep.subr.bf16.mxu0 0
  %683 = vmatpush1.bf16.msra.mxu0 0
  %684 = vmatprep.mubr.bf16.mxu0 0
  %685 = vmatmul.mubr.bf16.gmra.mrb[0].mxu0 %v534
  %v686 = vpop.f32.mrb[0].mxu0
  %v687 = vadd.f32 %v110, %v686
  %v688 = vpop.f32.mrb[0].mxu0
  %v689 = vadd.f32 %v110, %v688
  %v690 = vpop.f32.mrb[0].mxu0
  %v691 = vpop.f32.mrb[0].mxu0
  %692 = vdwg.mxu0
  %693 = vmatprep.subr.bf16.mxu0 %v369
  %694 = vmatpush1.bf16.msra.mxu0 %v368
  %695 = vmatprep.subr.bf16.mxu0 %v393
  %696 = vmatpush1.bf16.msra.mxu0 %v392
  %697 = vmatprep.subr.bf16.mxu0 %v417
  %698 = vmatpush1.bf16.msra.mxu0 %v416
  %699 = vmatprep.subr.bf16.mxu0 %v555
  %700 = vmatpush1.bf16.msra.mxu0 %v552
  %701 = vmatprep.subr.bf16.mxu0 0
  %702 = vmatpush1.bf16.msra.mxu0 0
  %703 = vmatprep.subr.bf16.mxu0 0
  %704 = vmatpush1.bf16.msra.mxu0 0
  %705 = vmatprep.subr.bf16.mxu0 0
  %706 = vmatpush1.bf16.msra.mxu0 0
  %707 = vmatprep.subr.bf16.mxu0 0
  %708 = vmatpush1.bf16.msra.mxu0 0
  %709 = vmatprep.subr.bf16.mxu0 0
  %710 = vmatpush1.bf16.msra.mxu0 0
  %711 = vmatprep.subr.bf16.mxu0 0
  %712 = vmatpush1.bf16.msra.mxu0 0
  %713 = vmatprep.subr.bf16.mxu0 0
  %714 = vmatpush1.bf16.msra.mxu0 0
  %715 = vmatprep.subr.bf16.mxu0 0
  %716 = vmatpush1.bf16.msra.mxu0 0
  %717 = vmatprep.subr.bf16.mxu0 0
  %718 = vmatpush1.bf16.msra.mxu0 0
  %719 = vmatprep.subr.bf16.mxu0 0
  %720 = vmatpush1.bf16.msra.mxu0 0
  %721 = vmatprep.subr.bf16.mxu0 0
  %722 = vmatpush1.bf16.msra.mxu0 0
  %723 = vmatprep.subr.bf16.mxu0 0
  %724 = vmatpush1.bf16.msra.mxu0 0
  %725 = vmatprep.mubr.bf16.mxu0 0
  %726 = vmatmul.mubr.bf16.gmra.mrb[0].mxu0 %v534
  %v727 = vpop.f32.mrb[0].mxu0
  %v728 = vadd.f32 %v110, %v727
  %v729 = vpop.f32.mrb[0].mxu0
  %v730 = vadd.f32 %v110, %v729
  %v731 = vpop.f32.mrb[0].mxu0
  %v732 = vpop.f32.mrb[0].mxu0
  %733 = vdwg.mxu0
  %734 = vmatprep.subr.bf16.mxu0 %v371
  %735 = vmatpush1.bf16.msra.mxu0 %v370
  %736 = vmatprep.subr.bf16.mxu0 %v395
  %737 = vmatpush1.bf16.msra.mxu0 %v394
  %738 = vmatprep.subr.bf16.mxu0 %v419
  %739 = vmatpush1.bf16.msra.mxu0 %v418
  %740 = vmatprep.subr.bf16.mxu0 %v561
  %741 = vmatpush1.bf16.msra.mxu0 %v558
  %742 = vmatprep.subr.bf16.mxu0 0
  %743 = vmatpush1.bf16.msra.mxu0 0
  %744 = vmatprep.subr.bf16.mxu0 0
  %745 = vmatpush1.bf16.msra.mxu0 0
  %746 = vmatprep.subr.bf16.mxu0 0
  %747 = vmatpush1.bf16.msra.mxu0 0
  %748 = vmatprep.subr.bf16.mxu0 0
  %749 = vmatpush1.bf16.msra.mxu0 0
  %750 = vmatprep.subr.bf16.mxu0 0
  %751 = vmatpush1.bf16.msra.mxu0 0
  %752 = vmatprep.subr.bf16.mxu0 0
  %753 = vmatpush1.bf16.msra.mxu0 0
  %754 = vmatprep.subr.bf16.mxu0 0
  %755 = vmatpush1.bf16.msra.mxu0 0
  %756 = vmatprep.subr.bf16.mxu0 0
  %757 = vmatpush1.bf16.msra.mxu0 0
  %758 = vmatprep.subr.bf16.mxu0 0
  %759 = vmatpush1.bf16.msra.mxu0 0
  %760 = vmatprep.subr.bf16.mxu0 0
  %761 = vmatpush1.bf16.msra.mxu0 0
  %762 = vmatprep.subr.bf16.mxu0 0
  %763 = vmatpush1.bf16.msra.mxu0 0
  %764 = vmatprep.subr.bf16.mxu0 0
  %765 = vmatpush1.bf16.msra.mxu0 0
  %766 = vmatprep.mubr.bf16.mxu0 0
  %767 = vmatmul.mubr.bf16.gmra.mrb[0].mxu0 %v534
  %v768 = vpop.f32.mrb[0].mxu0
  %v769 = vadd.f32 %v110, %v768
  %v770 = vpop.f32.mrb[0].mxu0
  %v771 = vadd.f32 %v110, %v770
  %v772 = vpop.f32.mrb[0].mxu0
  %v773 = vpop.f32.mrb[0].mxu0
  %774 = vdwg.mxu0
  %775 = vmatprep.subr.bf16.mxu0 %v373
  %776 = vmatpush1.bf16.msra.mxu0 %v372
  %777 = vmatprep.subr.bf16.mxu0 %v397
  %778 = vmatpush1.bf16.msra.mxu0 %v396
  %779 = vmatprep.subr.bf16.mxu0 %v421
  %780 = vmatpush1.bf16.msra.mxu0 %v420
  %781 = vmatprep.subr.bf16.mxu0 %v567
  %782 = vmatpush1.bf16.msra.mxu0 %v564
  %783 = vmatprep.subr.bf16.mxu0 0
  %784 = vmatpush1.bf16.msra.mxu0 0
  %785 = vmatprep.subr.bf16.mxu0 0
  %786 = vmatpush1.bf16.msra.mxu0 0
  %787 = vmatprep.subr.bf16.mxu0 0
  %788 = vmatpush1.bf16.msra.mxu0 0
  %789 = vmatprep.subr.bf16.mxu0 0
  %790 = vmatpush1.bf16.msra.mxu0 0
  %791 = vmatprep.subr.bf16.mxu0 0
  %792 = vmatpush1.bf16.msra.mxu0 0
  %793 = vmatprep.subr.bf16.mxu0 0
  %794 = vmatpush1.bf16.msra.mxu0 0
  %795 = vmatprep.subr.bf16.mxu0 0
  %796 = vmatpush1.bf16.msra.mxu0 0
  %797 = vmatprep.subr.bf16.mxu0 0
  %798 = vmatpush1.bf16.msra.mxu0 0
  %799 = vmatprep.subr.bf16.mxu0 0
  %800 = vmatpush1.bf16.msra.mxu0 0
  %801 = vmatprep.subr.bf16.mxu0 0
  %802 = vmatpush1.bf16.msra.mxu0 0
  %803 = vmatprep.subr.bf16.mxu0 0
  %804 = vmatpush1.bf16.msra.mxu0 0
  %805 = vmatprep.subr.bf16.mxu0 0
  %806 = vmatpush1.bf16.msra.mxu0 0
  %807 = vmatprep.mubr.bf16.mxu0 0
  %808 = vmatmul.mubr.bf16.gmra.mrb[0].mxu0 %v534
  %v809 = vpop.f32.mrb[0].mxu0
  %v810 = vadd.f32 %v110, %v809
  %v811 = vpop.f32.mrb[0].mxu0
  %v812 = vadd.f32 %v110, %v811
  %v813 = vpop.f32.mrb[0].mxu0
  %v814 = vpop.f32.mrb[0].mxu0
  %815 = vdwg.mxu0
  %816 = vmatprep.subr.bf16.mxu0 %v375
  %817 = vmatpush1.bf16.msra.mxu0 %v374
  %818 = vmatprep.subr.bf16.mxu0 %v399
  %819 = vmatpush1.bf16.msra.mxu0 %v398
  %820 = vmatprep.subr.bf16.mxu0 %v423
  %821 = vmatpush1.bf16.msra.mxu0 %v422
  %822 = vmatprep.subr.bf16.mxu0 %v573
  %823 = vmatpush1.bf16.msra.mxu0 %v570
  %824 = vmatprep.subr.bf16.mxu0 0
  %825 = vmatpush1.bf16.msra.mxu0 0
  %826 = vmatprep.subr.bf16.mxu0 0
  %827 = vmatpush1.bf16.msra.mxu0 0
  %828 = vmatprep.subr.bf16.mxu0 0
  %829 = vmatpush1.bf16.msra.mxu0 0
  %830 = vmatprep.subr.bf16.mxu0 0
  %831 = vmatpush1.bf16.msra.mxu0 0
  %832 = vmatprep.subr.bf16.mxu0 0
  %833 = vmatpush1.bf16.msra.mxu0 0
  %834 = vmatprep.subr.bf16.mxu0 0
  %835 = vmatpush1.bf16.msra.mxu0 0
  %836 = vmatprep.subr.bf16.mxu0 0
  %837 = vmatpush1.bf16.msra.mxu0 0
  %838 = vmatprep.subr.bf16.mxu0 0
  %839 = vmatpush1.bf16.msra.mxu0 0
  %840 = vmatprep.subr.bf16.mxu0 0
  %841 = vmatpush1.bf16.msra.mxu0 0
  %842 = vmatprep.subr.bf16.mxu0 0
  %843 = vmatpush1.bf16.msra.mxu0 0
  %844 = vmatprep.subr.bf16.mxu0 0
  %845 = vmatpush1.bf16.msra.mxu0 0
  %846 = vmatprep.subr.bf16.mxu0 0
  %847 = vmatpush1.bf16.msra.mxu0 0
  %848 = vmatprep.mubr.bf16.mxu0 0
  %849 = vmatmul.mubr.bf16.gmra.mrb[0].mxu0 %v534
  %v850 = vpop.f32.mrb[0].mxu0
  %v851 = vadd.f32 %v110, %v850
  %v852 = vpop.f32.mrb[0].mxu0
  %v853 = vadd.f32 %v110, %v852
  %v854 = vpop.f32.mrb[0].mxu0
  %v855 = vpop.f32.mrb[0].mxu0
  %856 = vdwg.mxu0
  %857 = vmatprep.subr.bf16.mxu0 %v377
  %858 = vmatpush1.bf16.msra.mxu0 %v376
  %859 = vmatprep.subr.bf16.mxu0 %v401
  %860 = vmatpush1.bf16.msra.mxu0 %v400
  %861 = vmatprep.subr.bf16.mxu0 %v425
  %862 = vmatpush1.bf16.msra.mxu0 %v424
  %863 = vmatprep.subr.bf16.mxu0 %v579
  %864 = vmatpush1.bf16.msra.mxu0 %v576
  %865 = vmatprep.subr.bf16.mxu0 0
  %866 = vmatpush1.bf16.msra.mxu0 0
  %867 = vmatprep.subr.bf16.mxu0 0
  %868 = vmatpush1.bf16.msra.mxu0 0
  %869 = vmatprep.subr.bf16.mxu0 0
  %870 = vmatpush1.bf16.msra.mxu0 0
  %871 = vmatprep.subr.bf16.mxu0 0
  %872 = vmatpush1.bf16.msra.mxu0 0
  %873 = vmatprep.subr.bf16.mxu0 0
  %874 = vmatpush1.bf16.msra.mxu0 0
  %875 = vmatprep.subr.bf16.mxu0 0
  %876 = vmatpush1.bf16.msra.mxu0 0
  %877 = vmatprep.subr.bf16.mxu0 0
  %878 = vmatpush1.bf16.msra.mxu0 0
  %879 = vmatprep.subr.bf16.mxu0 0
  %880 = vmatpush1.bf16.msra.mxu0 0
  %881 = vmatprep.subr.bf16.mxu0 0
  %882 = vmatpush1.bf16.msra.mxu0 0
  %883 = vmatprep.subr.bf16.mxu0 0
  %884 = vmatpush1.bf16.msra.mxu0 0
  %885 = vmatprep.subr.bf16.mxu0 0
  %886 = vmatpush1.bf16.msra.mxu0 0
  %887 = vmatprep.subr.bf16.mxu0 0
  %888 = vmatpush1.bf16.msra.mxu0 0
  %889 = vmatprep.mubr.bf16.mxu0 0
  %890 = vmatmul.mubr.bf16.gmra.mrb[0].mxu0 %v534
  %v891 = vpop.f32.mrb[0].mxu0
  %v892 = vadd.f32 %v110, %v891
  %v893 = vpop.f32.mrb[0].mxu0
  %v894 = vadd.f32 %v110, %v893
  %v895 = vpop.f32.mrb[0].mxu0
  %v896 = vpop.f32.mrb[0].mxu0
  %897 = vdwg.mxu0
  %898 = vmatprep.subr.bf16.mxu0 %v379
  %899 = vmatpush1.bf16.msra.mxu0 %v378
  %900 = vmatprep.subr.bf16.mxu0 %v403
  %901 = vmatpush1.bf16.msra.mxu0 %v402
  %902 = vmatprep.subr.bf16.mxu0 %v427
  %903 = vmatpush1.bf16.msra.mxu0 %v426
  %904 = vmatprep.subr.bf16.mxu0 %v585
  %905 = vmatpush1.bf16.msra.mxu0 %v582
  %906 = vmatprep.subr.bf16.mxu0 0
  %907 = vmatpush1.bf16.msra.mxu0 0
  %908 = vmatprep.subr.bf16.mxu0 0
  %909 = vmatpush1.bf16.msra.mxu0 0
  %910 = vmatprep.subr.bf16.mxu0 0
  %911 = vmatpush1.bf16.msra.mxu0 0
  %912 = vmatprep.subr.bf16.mxu0 0
  %913 = vmatpush1.bf16.msra.mxu0 0
  %914 = vmatprep.subr.bf16.mxu0 0
  %915 = vmatpush1.bf16.msra.mxu0 0
  %916 = vmatprep.subr.bf16.mxu0 0
  %917 = vmatpush1.bf16.msra.mxu0 0
  %918 = vmatprep.subr.bf16.mxu0 0
  %919 = vmatpush1.bf16.msra.mxu0 0
  %920 = vmatprep.subr.bf16.mxu0 0
  %921 = vmatpush1.bf16.msra.mxu0 0
  %922 = vmatprep.subr.bf16.mxu0 0
  %923 = vmatpush1.bf16.msra.mxu0 0
  %924 = vmatprep.subr.bf16.mxu0 0
  %925 = vmatpush1.bf16.msra.mxu0 0
  %926 = vmatprep.subr.bf16.mxu0 0
  %927 = vmatpush1.bf16.msra.mxu0 0
  %928 = vmatprep.subr.bf16.mxu0 0
  %929 = vmatpush1.bf16.msra.mxu0 0
  %930 = vmatprep.mubr.bf16.mxu0 0
  %931 = vmatmul.mubr.bf16.gmra.mrb[0].mxu0 %v534
  %v932 = vpop.f32.mrb[0].mxu0
  %v933 = vadd.f32 %v110, %v932
  %v934 = vpop.f32.mrb[0].mxu0
  %v935 = vadd.f32 %v110, %v934
  %v936 = vpop.f32.mrb[0].mxu0
  %v937 = vpop.f32.mrb[0].mxu0
  %938 = vdwg.mxu0
  %939 = vmatprep.subr.bf16.mxu0 %v381
  %940 = vmatpush1.bf16.msra.mxu0 %v380
  %941 = vmatprep.subr.bf16.mxu0 %v405
  %942 = vmatpush1.bf16.msra.mxu0 %v404
  %943 = vmatprep.subr.bf16.mxu0 %v429
  %944 = vmatpush1.bf16.msra.mxu0 %v428
  %945 = vmatprep.subr.bf16.mxu0 %v591
  %946 = vmatpush1.bf16.msra.mxu0 %v588
  %947 = vmatprep.subr.bf16.mxu0 0
  %948 = vmatpush1.bf16.msra.mxu0 0
  %949 = vmatprep.subr.bf16.mxu0 0
  %950 = vmatpush1.bf16.msra.mxu0 0
  %951 = vmatprep.subr.bf16.mxu0 0
  %952 = vmatpush1.bf16.msra.mxu0 0
  %953 = vmatprep.subr.bf16.mxu0 0
  %954 = vmatpush1.bf16.msra.mxu0 0
  %955 = vmatprep.subr.bf16.mxu0 0
  %956 = vmatpush1.bf16.msra.mxu0 0
  %957 = vmatprep.subr.bf16.mxu0 0
  %958 = vmatpush1.bf16.msra.mxu0 0
  %959 = vmatprep.subr.bf16.mxu0 0
  %960 = vmatpush1.bf16.msra.mxu0 0
  %961 = vmatprep.subr.bf16.mxu0 0
  %962 = vmatpush1.bf16.msra.mxu0 0
  %963 = vmatprep.subr.bf16.mxu0 0
  %964 = vmatpush1.bf16.msra.mxu0 0
  %965 = vmatprep.subr.bf16.mxu0 0
  %966 = vmatpush1.bf16.msra.mxu0 0
  %967 = vmatprep.subr.bf16.mxu0 0
  %968 = vmatpush1.bf16.msra.mxu0 0
  %969 = vmatprep.subr.bf16.mxu0 0
  %970 = vmatpush1.bf16.msra.mxu0 0
  %971 = vmatprep.mubr.bf16.mxu0 0
  %972 = vmatmul.mubr.bf16.gmra.mrb[0].mxu0 %v534
  %v973 = vpop.f32.mrb[0].mxu0
  %v974 = vadd.f32 %v110, %v973
  %v975 = vpop.f32.mrb[0].mxu0
  %v976 = vadd.f32 %v110, %v975
  %v977 = vpop.f32.mrb[0].mxu0
  %v978 = vpop.f32.mrb[0].mxu0
  %979 = vdwg.mxu0
  %980 = vmatprep.subr.bf16.mxu0 %v383
  %981 = vmatpush1.bf16.msra.mxu0 %v382
  %982 = vmatprep.subr.bf16.mxu0 %v407
  %983 = vmatpush1.bf16.msra.mxu0 %v406
  %984 = vmatprep.subr.bf16.mxu0 %v431
  %985 = vmatpush1.bf16.msra.mxu0 %v430
  %986 = vmatprep.subr.bf16.mxu0 %v597
  %987 = vmatpush1.bf16.msra.mxu0 %v594
  %988 = vmatprep.subr.bf16.mxu0 0
  %989 = vmatpush1.bf16.msra.mxu0 0
  %990 = vmatprep.subr.bf16.mxu0 0
  %991 = vmatpush1.bf16.msra.mxu0 0
  %992 = vmatprep.subr.bf16.mxu0 0
  %993 = vmatpush1.bf16.msra.mxu0 0
  %994 = vmatprep.subr.bf16.mxu0 0
  %995 = vmatpush1.bf16.msra.mxu0 0
  %996 = vmatprep.subr.bf16.mxu0 0
  %997 = vmatpush1.bf16.msra.mxu0 0
  %998 = vmatprep.subr.bf16.mxu0 0
  %999 = vmatpush1.bf16.msra.mxu0 0
  %1000 = vmatprep.subr.bf16.mxu0 0
  %1001 = vmatpush1.bf16.msra.mxu0 0
  %1002 = vmatprep.subr.bf16.mxu0 0
  %1003 = vmatpush1.bf16.msra.mxu0 0
  %1004 = vmatprep.subr.bf16.mxu0 0
  %1005 = vmatpush1.bf16.msra.mxu0 0
  %1006 = vmatprep.subr.bf16.mxu0 0
  %1007 = vmatpush1.bf16.msra.mxu0 0
  %1008 = vmatprep.subr.bf16.mxu0 0
  %1009 = vmatpush1.bf16.msra.mxu0 0
  %1010 = vmatprep.subr.bf16.mxu0 0
  %1011 = vmatpush1.bf16.msra.mxu0 0
  %1012 = vmatprep.mubr.bf16.mxu0 0
  %1013 = vmatmul.mubr.bf16.gmra.mrb[0].mxu0 %v534
  %v1014 = vpop.f32.mrb[0].mxu0
  %v1015 = vadd.f32 %v110, %v1014
  %v1016 = vpop.f32.mrb[0].mxu0
  %v1017 = vadd.f32 %v110, %v1016
  %v1018 = vpop.f32.mrb[0].mxu0
  %v1019 = vpop.f32.mrb[0].mxu0
  %1020 = vdwg.mxu0
  %1021 = vmatprep.subr.bf16.mxu0 %v385
  %1022 = vmatpush1.bf16.msra.mxu0 %v384
  %1023 = vmatprep.subr.bf16.mxu0 %v409
  %1024 = vmatpush1.bf16.msra.mxu0 %v408
  %1025 = vmatprep.subr.bf16.mxu0 %v433
  %1026 = vmatpush1.bf16.msra.mxu0 %v432
  %1027 = vmatprep.subr.bf16.mxu0 %v603
  %1028 = vmatpush1.bf16.msra.mxu0 %v600
  %1029 = vmatprep.subr.bf16.mxu0 0
  %1030 = vmatpush1.bf16.msra.mxu0 0
  %1031 = vmatprep.subr.bf16.mxu0 0
  %1032 = vmatpush1.bf16.msra.mxu0 0
  %1033 = vmatprep.subr.bf16.mxu0 0
  %1034 = vmatpush1.bf16.msra.mxu0 0
  %1035 = vmatprep.subr.bf16.mxu0 0
  %1036 = vmatpush1.bf16.msra.mxu0 0
  %1037 = vmatprep.subr.bf16.mxu0 0
  %1038 = vmatpush1.bf16.msra.mxu0 0
  %1039 = vmatprep.subr.bf16.mxu0 0
  %1040 = vmatpush1.bf16.msra.mxu0 0
  %1041 = vmatprep.subr.bf16.mxu0 0
  %1042 = vmatpush1.bf16.msra.mxu0 0
  %1043 = vmatprep.subr.bf16.mxu0 0
  %1044 = vmatpush1.bf16.msra.mxu0 0
  %1045 = vmatprep.subr.bf16.mxu0 0
  %1046 = vmatpush1.bf16.msra.mxu0 0
  %1047 = vmatprep.subr.bf16.mxu0 0
  %1048 = vmatpush1.bf16.msra.mxu0 0
  %1049 = vmatprep.subr.bf16.mxu0 0
  %1050 = vmatpush1.bf16.msra.mxu0 0
  %1051 = vmatprep.subr.bf16.mxu0 0
  %1052 = vmatpush1.bf16.msra.mxu0 0
  %1053 = vmatprep.mubr.bf16.mxu0 0
  %1054 = vmatmul.mubr.bf16.gmra.mrb[0].mxu0 %v534
  %v1055 = vpop.f32.mrb[0].mxu0
  %v1056 = vadd.f32 %v110, %v1055
  %v1057 = vpop.f32.mrb[0].mxu0
  %v1058 = vadd.f32 %v110, %v1057
  %v1059 = vpop.f32.mrb[0].mxu0
  %v1060 = vpop.f32.mrb[0].mxu0
  %1061 = vdwg.mxu0
  %1062 = vmatprep.subr.bf16.mxu0 %v387
  %1063 = vmatpush1.bf16.msra.mxu0 %v386
  %1064 = vmatprep.subr.bf16.mxu0 %v411
  %1065 = vmatpush1.bf16.msra.mxu0 %v410
  %1066 = vmatprep.subr.bf16.mxu0 %v435
  %1067 = vmatpush1.bf16.msra.mxu0 %v434
  %1068 = vmatprep.subr.bf16.mxu0 %v609
  %1069 = vmatpush1.bf16.msra.mxu0 %v606
  %1070 = vmatprep.subr.bf16.mxu0 0
  %1071 = vmatpush1.bf16.msra.mxu0 0
  %1072 = vmatprep.subr.bf16.mxu0 0
  %1073 = vmatpush1.bf16.msra.mxu0 0
  %1074 = vmatprep.subr.bf16.mxu0 0
  %1075 = vmatpush1.bf16.msra.mxu0 0
  %1076 = vmatprep.subr.bf16.mxu0 0
  %1077 = vmatpush1.bf16.msra.mxu0 0
  %1078 = vmatprep.subr.bf16.mxu0 0
  %1079 = vmatpush1.bf16.msra.mxu0 0
  %1080 = vmatprep.subr.bf16.mxu0 0
  %1081 = vmatpush1.bf16.msra.mxu0 0
  %1082 = vmatprep.subr.bf16.mxu0 0
  %1083 = vmatpush1.bf16.msra.mxu0 0
  %1084 = vmatprep.subr.bf16.mxu0 0
  %1085 = vmatpush1.bf16.msra.mxu0 0
  %1086 = vmatprep.subr.bf16.mxu0 0
  %1087 = vmatpush1.bf16.msra.mxu0 0
  %1088 = vmatprep.subr.bf16.mxu0 0
  %1089 = vmatpush1.bf16.msra.mxu0 0
  %1090 = vmatprep.subr.bf16.mxu0 0
  %1091 = vmatpush1.bf16.msra.mxu0 0
  %1092 = vmatprep.subr.bf16.mxu0 0
  %1093 = vmatpush1.bf16.msra.mxu0 0
  %1094 = vmatprep.mubr.bf16.mxu0 0
  %1095 = vmatmul.mubr.bf16.gmra.mrb[0].mxu0 %v534
  %v1096 = vpop.f32.mrb[0].mxu0
  %v1097 = vadd.f32 %v110, %v1096
  %v1098 = vpop.f32.mrb[0].mxu0
  %v1099 = vadd.f32 %v110, %v1098
  %v1100 = vpop.f32.mrb[0].mxu0
  %v1101 = vpop.f32.mrb[0].mxu0
  %1102 = vdwg.mxu0
  %v1103 = vadd.f32 %v646, %v648
  %v1104 = vadd.f32 %v1103, %v687
  %v1105 = vadd.f32 %v1104, %v689
  %v1106 = vadd.f32 %v1105, %v728
  %v1107 = vadd.f32 %v1106, %v730
  %v1108 = vadd.f32 %v1107, %v769
  %v1109 = vadd.f32 %v1108, %v771
  %v1110 = vadd.f32 %v1109, %v810
  %v1111 = vadd.f32 %v1110, %v812
  %v1112 = vadd.f32 %v1111, %v851
  %v1113 = vadd.f32 %v1112, %v853
  %v1114 = vadd.f32 %v1113, %v892
  %v1115 = vadd.f32 %v1114, %v894
  %v1116 = vadd.f32 %v1115, %v933
  %v1117 = vadd.f32 %v1116, %v935
  %v1118 = vadd.f32 %v1117, %v974
  %v1119 = vadd.f32 %v1118, %v976
  %v1120 = vadd.f32 %v1119, %v1015
  %v1121 = vadd.f32 %v1120, %v1017
  %v1122 = vadd.f32 %v1121, %v1056
  %v1123 = vadd.f32 %v1122, %v1058
  %v1124 = vadd.f32 %v1123, %v1097
  %v1125 = vadd.f32 %v1124, %v1099
  %1126 = vadd.xlane.f32.xlu0 %v1125
  %v1127 = vpop.xlane.xlu0 %1126
  %v1128 = vmul.f32 %v1127, 0.00032552084
  %v1129 = vsub.f32 %v646, %v1128
  %v1130 = vsub.f32 %v648, %v1128
  %v1131 = vsub.f32 %v687, %v1128
  %v1132 = vsub.f32 %v689, %v1128
  %v1133 = vsub.f32 %v728, %v1128
  %v1134 = vsub.f32 %v730, %v1128
  %v1135 = vsub.f32 %v769, %v1128
  %v1136 = vsub.f32 %v771, %v1128
  %v1137 = vsub.f32 %v810, %v1128
  %v1138 = vsub.f32 %v812, %v1128
  %v1139 = vsub.f32 %v851, %v1128
  %v1140 = vsub.f32 %v853, %v1128
  %v1141 = vsub.f32 %v892, %v1128
  %v1142 = vsub.f32 %v894, %v1128
  %v1143 = vsub.f32 %v933, %v1128
  %v1144 = vsub.f32 %v935, %v1128
  %v1145 = vsub.f32 %v974, %v1128
  %v1146 = vsub.f32 %v976, %v1128
  %v1147 = vsub.f32 %v1015, %v1128
  %v1148 = vsub.f32 %v1017, %v1128
  %v1149 = vsub.f32 %v1056, %v1128
  %v1150 = vsub.f32 %v1058, %v1128
  %v1151 = vsub.f32 %v1097, %v1128
  %v1152 = vsub.f32 %v1099, %v1128
  %v1153 = vmul.f32 %v1129, %v1129
  %v1154 = vmul.f32 %v1130, %v1130
  %v1155 = vmul.f32 %v1131, %v1131
  %v1156 = vmul.f32 %v1132, %v1132
  %v1157 = vmul.f32 %v1133, %v1133
  %v1158 = vmul.f32 %v1134, %v1134
  %v1159 = vmul.f32 %v1135, %v1135
  %v1160 = vmul.f32 %v1136, %v1136
  %v1161 = vmul.f32 %v1137, %v1137
  %v1162 = vmul.f32 %v1138, %v1138
  %v1163 = vmul.f32 %v1139, %v1139
  %v1164 = vmul.f32 %v1140, %v1140
  %v1165 = vmul.f32 %v1141, %v1141
  %v1166 = vmul.f32 %v1142, %v1142
  %v1167 = vmul.f32 %v1143, %v1143
  %v1168 = vmul.f32 %v1144, %v1144
  %v1169 = vmul.f32 %v1145, %v1145
  %v1170 = vmul.f32 %v1146, %v1146
  %v1171 = vmul.f32 %v1147, %v1147
  %v1172 = vmul.f32 %v1148, %v1148
  %v1173 = vmul.f32 %v1149, %v1149
  %v1174 = vmul.f32 %v1150, %v1150
  %v1175 = vmul.f32 %v1151, %v1151
  %v1176 = vmul.f32 %v1152, %v1152
  %v1177 = vadd.f32 %v1153, %v1154
  %v1178 = vadd.f32 %v1177, %v1155
  %v1179 = vadd.f32 %v1178, %v1156
  %v1180 = vadd.f32 %v1179, %v1157
  %v1181 = vadd.f32 %v1180, %v1158
  %v1182 = vadd.f32 %v1181, %v1159
  %v1183 = vadd.f32 %v1182, %v1160
  %v1184 = vadd.f32 %v1183, %v1161
  %v1185 = vadd.f32 %v1184, %v1162
  %v1186 = vadd.f32 %v1185, %v1163
  %v1187 = vadd.f32 %v1186, %v1164
  %v1188 = vadd.f32 %v1187, %v1165
  %v1189 = vadd.f32 %v1188, %v1166
  %v1190 = vadd.f32 %v1189, %v1167
  %v1191 = vadd.f32 %v1190, %v1168
  %v1192 = vadd.f32 %v1191, %v1169
  %v1193 = vadd.f32 %v1192, %v1170
  %v1194 = vadd.f32 %v1193, %v1171
  %v1195 = vadd.f32 %v1194, %v1172
  %v1196 = vadd.f32 %v1195, %v1173
  %v1197 = vadd.f32 %v1196, %v1174
  %v1198 = vadd.f32 %v1197, %v1175
  %v1199 = vadd.f32 %v1198, %v1176
  %1200 = vadd.xlane.f32.xlu0 %v1199
  %v1201 = vpop.xlane.xlu0 %1200
  %v1202 = vmul.f32 %v1201, 0.00032552084
  %v1203 = vld [vmem:[%s3] sm:$0xff]
  %v1204 = vadd.f32 %v1202, 1e-05
  %v1205 = vrsqrt.pop %v1204
  %v1206 = vmul.f32 %v1203, %v1205
  %1208 = vset.pattern.permute.xlu0 0
  %1209 = vperm.xlu0 %1208, %v1206
  %v1210 = vpop.permute.xlu0 %1209
  %v1212 = vmul.f32 %v1129, %v1210
  %v1213 = vmul.f32 %v1130, %v1210
  %v1214 = vmul.f32 %v1131, %v1210
  %v1215 = vmul.f32 %v1132, %v1210
  %v1216 = vmul.f32 %v1133, %v1210
  %v1217 = vmul.f32 %v1134, %v1210
  %v1218 = vmul.f32 %v1135, %v1210
  %v1219 = vmul.f32 %v1136, %v1210
  %v1220 = vmul.f32 %v1137, %v1210
  %v1221 = vmul.f32 %v1138, %v1210
  %v1222 = vmul.f32 %v1139, %v1210
  %v1223 = vmul.f32 %v1140, %v1210
  %v1224 = vmul.f32 %v1141, %v1210
  %v1225 = vmul.f32 %v1142, %v1210
  %v1226 = vmul.f32 %v1143, %v1210
  %v1227 = vmul.f32 %v1144, %v1210
  %v1228 = vmul.f32 %v1145, %v1210
  %v1229 = vmul.f32 %v1146, %v1210
  %v1230 = vmul.f32 %v1147, %v1210
  %v1231 = vmul.f32 %v1148, %v1210
  %v1232 = vmul.f32 %v1149, %v1210
  %v1233 = vmul.f32 %v1150, %v1210
  %v1234 = vmul.f32 %v1151, %v1210
  %v1235 = vmul.f32 %v1152, %v1210
  %v1236 = vld [vmem:[%s4] sm:$0xff]
  %1238 = vset.pattern.permute.xlu0 0
  %1239 = vperm.xlu0 %1238, %v1236
  %v1240 = vpop.permute.xlu0 %1239
  %v1242 = vadd.f32 %v1212, %v1240
  %v1243 = vadd.f32 %v1213, %v1240
  %v1244 = vadd.f32 %v1214, %v1240
  %v1245 = vadd.f32 %v1215, %v1240
  %v1246 = vadd.f32 %v1216, %v1240
  %v1247 = vadd.f32 %v1217, %v1240
  %v1248 = vadd.f32 %v1218, %v1240
  %v1249 = vadd.f32 %v1219, %v1240
  %v1250 = vadd.f32 %v1220, %v1240
  %v1251 = vadd.f32 %v1221, %v1240
  %v1252 = vadd.f32 %v1222, %v1240
  %v1253 = vadd.f32 %v1223, %v1240
  %v1254 = vadd.f32 %v1224, %v1240
  %v1255 = vadd.f32 %v1225, %v1240
  %v1256 = vadd.f32 %v1226, %v1240
  %v1257 = vadd.f32 %v1227, %v1240
  %v1258 = vadd.f32 %v1228, %v1240
  %v1259 = vadd.f32 %v1229, %v1240
  %v1260 = vadd.f32 %v1230, %v1240
  %v1261 = vadd.f32 %v1231, %v1240
  %v1262 = vadd.f32 %v1232, %v1240
  %v1263 = vadd.f32 %v1233, %v1240
  %v1264 = vadd.f32 %v1234, %v1240
  %v1265 = vadd.f32 %v1235, %v1240
  %v1266 = vmax.f32 %v1242, 0.0
  %v1267 = vmax.f32 %v1243, 0.0
  %v1268 = vmax.f32 %v1244, 0.0
  %v1269 = vmax.f32 %v1245, 0.0
  %v1270 = vmax.f32 %v1246, 0.0
  %v1271 = vmax.f32 %v1247, 0.0
  %v1272 = vmax.f32 %v1248, 0.0
  %v1273 = vmax.f32 %v1249, 0.0
  %v1274 = vmax.f32 %v1250, 0.0
  %v1275 = vmax.f32 %v1251, 0.0
  %v1276 = vmax.f32 %v1252, 0.0
  %v1277 = vmax.f32 %v1253, 0.0
  %v1278 = vmax.f32 %v1254, 0.0
  %v1279 = vmax.f32 %v1255, 0.0
  %v1280 = vmax.f32 %v1256, 0.0
  %v1281 = vmax.f32 %v1257, 0.0
  %v1282 = vmax.f32 %v1258, 0.0
  %v1283 = vmax.f32 %v1259, 0.0
  %v1284 = vmax.f32 %v1260, 0.0
  %v1285 = vmax.f32 %v1261, 0.0
  %v1286 = vmax.f32 %v1262, 0.0
  %v1287 = vmax.f32 %v1263, 0.0
  %v1288 = vmax.f32 %v1264, 0.0
  %v1289 = vmax.f32 %v1265, 0.0
  %1290 = vst [vmem:[%s5] sm:$0xff] %v1266
  %1291 = vst [vmem:[%s5 + $0x8] sm:$0xff] %v1267
  %1292 = vst [vmem:[%s5 + $0x10] sm:$0xff] %v1268
  %1293 = vst [vmem:[%s5 + $0x18] sm:$0xff] %v1269
  %1294 = vst [vmem:[%s5 + $0x20] sm:$0xff] %v1270
  %1295 = vst [vmem:[%s5 + $0x28] sm:$0xff] %v1271
  %1296 = vst [vmem:[%s5 + $0x30] sm:$0xff] %v1272
  %1297 = vst [vmem:[%s5 + $0x38] sm:$0xff] %v1273
  %1298 = vst [vmem:[%s5 + $0x40] sm:$0xff] %v1274
  %1299 = vst [vmem:[%s5 + $0x48] sm:$0xff] %v1275
  %1300 = vst [vmem:[%s5 + $0x50] sm:$0xff] %v1276
  %1301 = vst [vmem:[%s5 + $0x58] sm:$0xff] %v1277
  %1302 = vst [vmem:[%s5 + $0x60] sm:$0xff] %v1278
  %1303 = vst [vmem:[%s5 + $0x68] sm:$0xff] %v1279
  %1304 = vst [vmem:[%s5 + $0x70] sm:$0xff] %v1280
  %1305 = vst [vmem:[%s5 + $0x78] sm:$0xff] %v1281
  %1306 = vst [vmem:[%s5 + $0x80] sm:$0xff] %v1282
  %1307 = vst [vmem:[%s5 + $0x88] sm:$0xff] %v1283
  %1308 = vst [vmem:[%s5 + $0x90] sm:$0xff] %v1284
  %1309 = vst [vmem:[%s5 + $0x98] sm:$0xff] %v1285
  %1310 = vst [vmem:[%s5 + $0xa0] sm:$0xff] %v1286
  %1311 = vst [vmem:[%s5 + $0xa8] sm:$0xff] %v1287
  %1312 = vst [vmem:[%s5 + $0xb0] sm:$0xff] %v1288
  %1313 = vst [vmem:[%s5 + $0xb8] sm:$0xff] %v1289
  // Predicated region
  $region22: #{resnet_iid_forward.19} parent=0 // pred_check
    _
  $region23: #{resnet_iid_forward.19} parent=0 // pred_check_branch
    %1315 = sbr.rel (0) target = $region25
  $region24: #{resnet_iid_forward.19} parent=0 // pred_region
    _
  $region25: #{resnet_iid_forward.19} parent=0 // pred_fallthru
    _
  // Predicated region
  $region26: #{resnet_iid_forward.19} parent=0 // pred_check
    _
  $region27: #{resnet_iid_forward.19} parent=0 // pred_check_branch
    %1317 = sbr.rel (0) target = $region29
  $region28: #{resnet_iid_forward.19} parent=0 // pred_region
    _
  $region29: #{resnet_iid_forward.19} parent=0 // pred_fallthru
    _

// kernel: resnet_iid_forward.20
$region0: #{resnet_iid_forward.20}
  #allocation0 [shape = 'u32[]', space=smem, size = 0x4, offset = 0x4, fixed_abs, tag = 'smem constant byte address 0x4 - core index']
  #allocation1 [shape = 'u32[144,128]{1,0:T(1,128)}', space=vmem, size = 0x12000, scoped, tag = 'internal scratch']
  %s0 = inlined_call_operand.vmem [shape: f32[9,8,1024], index: 0, kind: input, shape index: {}]
  %s1 = inlined_call_operand.vmem [shape: f32[8,1024], index: 1, kind: output, shape index: {}]
  %s2 = sld [smem:[#allocation0]]
  $region14: #{resnet_iid_forward.20} parent=0
    _
  %s4 = ssub.s32 1, %s2
  %s5 = scalar_select 0, %s4, %s2
  // Predicated region
  $region2: #{resnet_iid_forward.20} parent=0 // pred_check
    _
  $region3: #{resnet_iid_forward.20} parent=0 // pred_check_branch
    %7 = sbr.rel (0) target = $region5
  $region4: #{resnet_iid_forward.20} parent=0 // pred_region
    _
  $region5: #{resnet_iid_forward.20} parent=0 // pred_fallthru
    _
  %v8 = vld [vmem:[%s0] sm:$0xff]
  %v9 = vld [vmem:[%s0 + $0x8] sm:$0xff]
  %v10 = vld [vmem:[%s0 + $0x10] sm:$0xff]
  %v11 = vld [vmem:[%s0 + $0x18] sm:$0xff]
  %v12 = vld [vmem:[%s0 + $0x20] sm:$0xff]
  %v13 = vld [vmem:[%s0 + $0x28] sm:$0xff]
  %v14 = vld [vmem:[%s0 + $0x30] sm:$0xff]
  %v15 = vld [vmem:[%s0 + $0x38] sm:$0xff]
  %v16 = vld [vmem:[%s0 + $0x40] sm:$0xff]
  %v17 = vld [vmem:[%s0 + $0x48] sm:$0xff]
  %v18 = vld [vmem:[%s0 + $0x50] sm:$0xff]
  %v19 = vld [vmem:[%s0 + $0x58] sm:$0xff]
  %v20 = vld [vmem:[%s0 + $0x60] sm:$0xff]
  %v21 = vld [vmem:[%s0 + $0x68] sm:$0xff]
  %v22 = vld [vmem:[%s0 + $0x70] sm:$0xff]
  %v23 = vld [vmem:[%s0 + $0x78] sm:$0xff]
  %v24 = vld [vmem:[%s0 + $0x80] sm:$0xff]
  %v25 = vld [vmem:[%s0 + $0x88] sm:$0xff]
  %v26 = vld [vmem:[%s0 + $0x90] sm:$0xff]
  %v27 = vld [vmem:[%s0 + $0x98] sm:$0xff]
  %v28 = vld [vmem:[%s0 + $0xa0] sm:$0xff]
  %v29 = vld [vmem:[%s0 + $0xa8] sm:$0xff]
  %v30 = vld [vmem:[%s0 + $0xb0] sm:$0xff]
  %v31 = vld [vmem:[%s0 + $0xb8] sm:$0xff]
  %v32 = vld [vmem:[%s0 + $0xc0] sm:$0xff]
  %v33 = vld [vmem:[%s0 + $0xc8] sm:$0xff]
  %v34 = vld [vmem:[%s0 + $0xd0] sm:$0xff]
  %v35 = vld [vmem:[%s0 + $0xd8] sm:$0xff]
  %v36 = vld [vmem:[%s0 + $0xe0] sm:$0xff]
  %v37 = vld [vmem:[%s0 + $0xe8] sm:$0xff]
  %v38 = vld [vmem:[%s0 + $0xf0] sm:$0xff]
  %v39 = vld [vmem:[%s0 + $0xf8] sm:$0xff]
  %v40 = vld [vmem:[%s0 + $0x100] sm:$0xff]
  %v41 = vld [vmem:[%s0 + $0x108] sm:$0xff]
  %v42 = vld [vmem:[%s0 + $0x110] sm:$0xff]
  %v43 = vld [vmem:[%s0 + $0x118] sm:$0xff]
  %v44 = vld [vmem:[%s0 + $0x120] sm:$0xff]
  %v45 = vld [vmem:[%s0 + $0x128] sm:$0xff]
  %v46 = vld [vmem:[%s0 + $0x130] sm:$0xff]
  %v47 = vld [vmem:[%s0 + $0x138] sm:$0xff]
  %v48 = vld [vmem:[%s0 + $0x140] sm:$0xff]
  %v49 = vld [vmem:[%s0 + $0x148] sm:$0xff]
  %v50 = vld [vmem:[%s0 + $0x150] sm:$0xff]
  %v51 = vld [vmem:[%s0 + $0x158] sm:$0xff]
  %v52 = vld [vmem:[%s0 + $0x160] sm:$0xff]
  %v53 = vld [vmem:[%s0 + $0x168] sm:$0xff]
  %v54 = vld [vmem:[%s0 + $0x170] sm:$0xff]
  %v55 = vld [vmem:[%s0 + $0x178] sm:$0xff]
  %v56 = vld [vmem:[%s0 + $0x180] sm:$0xff]
  %v57 = vld [vmem:[%s0 + $0x188] sm:$0xff]
  %v58 = vld [vmem:[%s0 + $0x190] sm:$0xff]
  %v59 = vld [vmem:[%s0 + $0x198] sm:$0xff]
  %v60 = vld [vmem:[%s0 + $0x1a0] sm:$0xff]
  %v61 = vld [vmem:[%s0 + $0x1a8] sm:$0xff]
  %v62 = vld [vmem:[%s0 + $0x1b0] sm:$0xff]
  %v63 = vld [vmem:[%s0 + $0x1b8] sm:$0xff]
  %v64 = vld [vmem:[%s0 + $0x1c0] sm:$0xff]
  %v65 = vld [vmem:[%s0 + $0x1c8] sm:$0xff]
  %v66 = vld [vmem:[%s0 + $0x1d0] sm:$0xff]
  %v67 = vld [vmem:[%s0 + $0x1d8] sm:$0xff]
  %v68 = vld [vmem:[%s0 + $0x1e0] sm:$0xff]
  %v69 = vld [vmem:[%s0 + $0x1e8] sm:$0xff]
  %v70 = vld [vmem:[%s0 + $0x1f0] sm:$0xff]
  %v71 = vld [vmem:[%s0 + $0x1f8] sm:$0xff]
  %v72 = vld [vmem:[%s0 + $0x200] sm:$0xff]
  %v73 = vld [vmem:[%s0 + $0x208] sm:$0xff]
  %v74 = vld [vmem:[%s0 + $0x210] sm:$0xff]
  %v75 = vld [vmem:[%s0 + $0x218] sm:$0xff]
  %v76 = vld [vmem:[%s0 + $0x220] sm:$0xff]
  %v77 = vld [vmem:[%s0 + $0x228] sm:$0xff]
  %v78 = vld [vmem:[%s0 + $0x230] sm:$0xff]
  %v79 = vld [vmem:[%s0 + $0x238] sm:$0xff]
  %v80 = vmax.f32 %v8, %v16
  %v81 = vmax.f32 %v80, %v24
  %v82 = vmax.f32 %v81, %v32
  %v83 = vmax.f32 %v82, %v40
  %v84 = vmax.f32 %v83, %v48
  %v85 = vmax.f32 %v84, %v56
  %v86 = vmax.f32 %v85, %v64
  %v87 = vmax.f32 %v86, %v72
  %v88 = vmax.f32 %v9, %v17
  %v89 = vmax.f32 %v88, %v25
  %v90 = vmax.f32 %v89, %v33
  %v91 = vmax.f32 %v90, %v41
  %v92 = vmax.f32 %v91, %v49
  %v93 = vmax.f32 %v92, %v57
  %v94 = vmax.f32 %v93, %v65
  %v95 = vmax.f32 %v94, %v73
  %v96 = vmax.f32 %v10, %v18
  %v97 = vmax.f32 %v96, %v26
  %v98 = vmax.f32 %v97, %v34
  %v99 = vmax.f32 %v98, %v42
  %v100 = vmax.f32 %v99, %v50
  %v101 = vmax.f32 %v100, %v58
  %v102 = vmax.f32 %v101, %v66
  %v103 = vmax.f32 %v102, %v74
  %v104 = vmax.f32 %v11, %v19
  %v105 = vmax.f32 %v104, %v27
  %v106 = vmax.f32 %v105, %v35
  %v107 = vmax.f32 %v106, %v43
  %v108 = vmax.f32 %v107, %v51
  %v109 = vmax.f32 %v108, %v59
  %v110 = vmax.f32 %v109, %v67
  %v111 = vmax.f32 %v110, %v75
  %v112 = vmax.f32 %v12, %v20
  %v113 = vmax.f32 %v112, %v28
  %v114 = vmax.f32 %v113, %v36
  %v115 = vmax.f32 %v114, %v44
  %v116 = vmax.f32 %v115, %v52
  %v117 = vmax.f32 %v116, %v60
  %v118 = vmax.f32 %v117, %v68
  %v119 = vmax.f32 %v118, %v76
  %v120 = vmax.f32 %v13, %v21
  %v121 = vmax.f32 %v120, %v29
  %v122 = vmax.f32 %v121, %v37
  %v123 = vmax.f32 %v122, %v45
  %v124 = vmax.f32 %v123, %v53
  %v125 = vmax.f32 %v124, %v61
  %v126 = vmax.f32 %v125, %v69
  %v127 = vmax.f32 %v126, %v77
  %v128 = vmax.f32 %v14, %v22
  %v129 = vmax.f32 %v128, %v30
  %v130 = vmax.f32 %v129, %v38
  %v131 = vmax.f32 %v130, %v46
  %v132 = vmax.f32 %v131, %v54
  %v133 = vmax.f32 %v132, %v62
  %v134 = vmax.f32 %v133, %v70
  %v135 = vmax.f32 %v134, %v78
  %v136 = vmax.f32 %v15, %v23
  %v137 = vmax.f32 %v136, %v31
  %v138 = vmax.f32 %v137, %v39
  %v139 = vmax.f32 %v138, %v47
  %v140 = vmax.f32 %v139, %v55
  %v141 = vmax.f32 %v140, %v63
  %v142 = vmax.f32 %v141, %v71
  %v143 = vmax.f32 %v142, %v79
  %144 = vst [vmem:[%s1] sm:$0xff] %v87
  %145 = vst [vmem:[%s1 + $0x8] sm:$0xff] %v95
  %146 = vst [vmem:[%s1 + $0x10] sm:$0xff] %v103
  %147 = vst [vmem:[%s1 + $0x18] sm:$0xff] %v111
  %148 = vst [vmem:[%s1 + $0x20] sm:$0xff] %v119
  %149 = vst [vmem:[%s1 + $0x28] sm:$0xff] %v127
  %150 = vst [vmem:[%s1 + $0x30] sm:$0xff] %v135
  %151 = vst [vmem:[%s1 + $0x38] sm:$0xff] %v143
  // Predicated region
  $region6: #{resnet_iid_forward.20} parent=0 // pred_check
    _
  $region7: #{resnet_iid_forward.20} parent=0 // pred_check_branch
    %153 = sbr.rel (0) target = $region9
  $region8: #{resnet_iid_forward.20} parent=0 // pred_region
    _
  $region9: #{resnet_iid_forward.20} parent=0 // pred_fallthru
    _
  // Predicated region
  $region10: #{resnet_iid_forward.20} parent=0 // pred_check
    _
  $region11: #{resnet_iid_forward.20} parent=0 // pred_check_branch
    %155 = sbr.rel (0) target = $region13
  $region12: #{resnet_iid_forward.20} parent=0 // pred_region
    _
  $region13: #{resnet_iid_forward.20} parent=0 // pred_fallthru
    _

// kernel: resnet_iid_forward.21
$region0: #{resnet_iid_forward.21}
  #allocation0 [shape = 'u32[]', space=smem, size = 0x4, offset = 0x4, fixed_abs, tag = 'smem constant byte address 0x4 - core index']
  #allocation1 [shape = 'u32[144,128]{1,0:T(1,128)}', space=vmem, size = 0x12000, scoped, tag = 'internal scratch']
  %s0 = inlined_call_operand.vmem [shape: bf16[72,1024], index: 0, kind: input, shape index: {}]
  %s1 = inlined_call_operand.vmem [shape: bf16[8,72], index: 1, kind: input, shape index: {}]
  %s2 = inlined_call_operand.vmem [shape: f32[8,1], index: 2, kind: input, shape index: {}]
  %s3 = inlined_call_operand.vmem [shape: f32[8,1], index: 3, kind: input, shape index: {}]
  %s4 = inlined_call_operand.vmem [shape: f32[8,1], index: 4, kind: input, shape index: {}]
  %s5 = inlined_call_operand.vmem [shape: f32[8,1024], index: 5, kind: output, shape index: {}]
  %s6 = sld [smem:[#allocation0]]
  $region30: #{resnet_iid_forward.21} parent=0
    _
  %s8 = ssub.s32 1, %s6
  %s9 = scalar_select 0, %s8, %s6
  // Predicated region
  $region2: #{resnet_iid_forward.21} parent=0 // pred_check
    _
  $region3: #{resnet_iid_forward.21} parent=0 // pred_check_branch
    %11 = sbr.rel (0) target = $region5
  $region4: #{resnet_iid_forward.21} parent=0 // pred_region
    _
  $region5: #{resnet_iid_forward.21} parent=0 // pred_fallthru
    _
  // Predicated region
  $region6: #{resnet_iid_forward.21} parent=0 // pred_check
    _
  $region7: #{resnet_iid_forward.21} parent=0 // pred_check_branch
    %13 = sbr.rel (0) target = $region9
  $region8: #{resnet_iid_forward.21} parent=0 // pred_region
    _
  $region9: #{resnet_iid_forward.21} parent=0 // pred_fallthru
    _
  // Predicated region
  $region10: #{resnet_iid_forward.21} parent=0 // pred_check
    _
  $region11: #{resnet_iid_forward.21} parent=0 // pred_check_branch
    %15 = sbr.rel (0) target = $region13
  $region12: #{resnet_iid_forward.21} parent=0 // pred_region
    _
  $region13: #{resnet_iid_forward.21} parent=0 // pred_fallthru
    _
  // Predicated region
  $region14: #{resnet_iid_forward.21} parent=0 // pred_check
    _
  $region15: #{resnet_iid_forward.21} parent=0 // pred_check_branch
    %17 = sbr.rel (0) target = $region17
  $region16: #{resnet_iid_forward.21} parent=0 // pred_region
    _
  $region17: #{resnet_iid_forward.21} parent=0 // pred_fallthru
    _
  // Predicated region
  $region18: #{resnet_iid_forward.21} parent=0 // pred_check
    _
  $region19: #{resnet_iid_forward.21} parent=0 // pred_check_branch
    %19 = sbr.rel (0) target = $region21
  $region20: #{resnet_iid_forward.21} parent=0 // pred_region
    _
  $region21: #{resnet_iid_forward.21} parent=0 // pred_fallthru
    _
  %v21 = vld [vmem:[%s1] sm:$0xf]
  %v22 = vld [vmem:[%s0] sm:$0xff]
  %v23 = vld [vmem:[%s0 + $0x8] sm:$0xff]
  %v24 = vld [vmem:[%s0 + $0x10] sm:$0xff]
  %v25 = vld [vmem:[%s0 + $0x18] sm:$0xff]
  %v26 = vld [vmem:[%s0 + $0x20] sm:$0xff]
  %v27 = vld [vmem:[%s0 + $0x28] sm:$0xff]
  %v28 = vld [vmem:[%s0 + $0x30] sm:$0xff]
  %v29 = vld [vmem:[%s0 + $0x38] sm:$0xff]
  %v30 = vld [vmem:[%s0 + $0x40] sm:$0xff]
  %v31 = vld [vmem:[%s0 + $0x48] sm:$0xff]
  %v32 = vld [vmem:[%s0 + $0x50] sm:$0xff]
  %v33 = vld [vmem:[%s0 + $0x58] sm:$0xff]
  %v34 = vld [vmem:[%s0 + $0x60] sm:$0xff]
  %v35 = vld [vmem:[%s0 + $0x68] sm:$0xff]
  %v36 = vld [vmem:[%s0 + $0x70] sm:$0xff]
  %v37 = vld [vmem:[%s0 + $0x78] sm:$0xff]
  %v38 = vld [vmem:[%s0 + $0x80] sm:$0xff]
  %v39 = vld [vmem:[%s0 + $0x88] sm:$0xff]
  %v40 = vld [vmem:[%s0 + $0x90] sm:$0xff]
  %v41 = vld [vmem:[%s0 + $0x98] sm:$0xff]
  %v42 = vld [vmem:[%s0 + $0xa0] sm:$0xff]
  %v43 = vld [vmem:[%s0 + $0xa8] sm:$0xff]
  %v44 = vld [vmem:[%s0 + $0xb0] sm:$0xff]
  %v45 = vld [vmem:[%s0 + $0xb8] sm:$0xff]
  %v46 = vld [vmem:[%s0 + $0xc0] sm:$0xff]
  %v47 = vld [vmem:[%s0 + $0xc8] sm:$0xff]
  %v48 = vld [vmem:[%s0 + $0xd0] sm:$0xff]
  %v49 = vld [vmem:[%s0 + $0xd8] sm:$0xff]
  %v50 = vld [vmem:[%s0 + $0xe0] sm:$0xff]
  %v51 = vld [vmem:[%s0 + $0xe8] sm:$0xff]
  %v52 = vld [vmem:[%s0 + $0xf0] sm:$0xff]
  %v53 = vld [vmem:[%s0 + $0xf8] sm:$0xff]
  %v54 = vld [vmem:[%s0 + $0x100] sm:$0xff]
  %v55 = vld [vmem:[%s0 + $0x108] sm:$0xff]
  %v56 = vld [vmem:[%s0 + $0x110] sm:$0xff]
  %v57 = vld [vmem:[%s0 + $0x118] sm:$0xff]
  %v58 = vld [vmem:[%s2] sm:$0xff]
  %60 = vset.pattern.permute.xlu0 0
  %61 = vperm.xlu0 %60, %v58
  %v62 = vpop.permute.xlu0 %61
  %v100 = vunpack.c.l.b16 %v22
  %v101 = vunpack.c.h.b16 %v22
  %v102 = vunpack.c.l.b16 %v23
  %v103 = vunpack.c.h.b16 %v23
  %v104 = vunpack.c.l.b16 %v24
  %v105 = vunpack.c.h.b16 %v24
  %v106 = vunpack.c.l.b16 %v25
  %v107 = vunpack.c.h.b16 %v25
  %v108 = vunpack.c.l.b16 %v26
  %v109 = vunpack.c.h.b16 %v26
  %v110 = vunpack.c.l.b16 %v27
  %v111 = vunpack.c.h.b16 %v27
  %v112 = vunpack.c.l.b16 %v28
  %v113 = vunpack.c.h.b16 %v28
  %v114 = vunpack.c.l.b16 %v29
  %v115 = vunpack.c.h.b16 %v29
  %v116 = vunpack.c.l.b16 %v30
  %v117 = vunpack.c.h.b16 %v30
  %v118 = vunpack.c.l.b16 %v31
  %v119 = vunpack.c.h.b16 %v31
  %v120 = vunpack.c.l.b16 %v32
  %v121 = vunpack.c.h.b16 %v32
  %v122 = vunpack.c.l.b16 %v33
  %v123 = vunpack.c.h.b16 %v33
  %v124 = vunpack.c.l.b16 %v34
  %v125 = vunpack.c.h.b16 %v34
  %v126 = vunpack.c.l.b16 %v35
  %v127 = vunpack.c.h.b16 %v35
  %v128 = vunpack.c.l.b16 %v36
  %v129 = vunpack.c.h.b16 %v36
  %v130 = vunpack.c.l.b16 %v37
  %v131 = vunpack.c.h.b16 %v37
  %v132 = vunpack.c.l.b16 %v38
  %v133 = vunpack.c.h.b16 %v38
  %v134 = vunpack.c.l.b16 %v39
  %v135 = vunpack.c.h.b16 %v39
  %v136 = vunpack.c.l.b16 %v40
  %v137 = vunpack.c.h.b16 %v40
  %v138 = vunpack.c.l.b16 %v41
  %v139 = vunpack.c.h.b16 %v41
  %v140 = vunpack.c.l.b16 %v42
  %v141 = vunpack.c.h.b16 %v42
  %v142 = vunpack.c.l.b16 %v43
  %v143 = vunpack.c.h.b16 %v43
  %v144 = vunpack.c.l.b16 %v44
  %v145 = vunpack.c.h.b16 %v44
  %v146 = vunpack.c.l.b16 %v45
  %v147 = vunpack.c.h.b16 %v45
  %v148 = vunpack.c.l.b16 %v46
  %v149 = vunpack.c.h.b16 %v46
  %v150 = vunpack.c.l.b16 %v47
  %v151 = vunpack.c.h.b16 %v47
  %v152 = vunpack.c.l.b16 %v48
  %v153 = vunpack.c.h.b16 %v48
  %v154 = vunpack.c.l.b16 %v49
  %v155 = vunpack.c.h.b16 %v49
  %v156 = vunpack.c.l.b16 %v50
  %v157 = vunpack.c.h.b16 %v50
  %v158 = vunpack.c.l.b16 %v51
  %v159 = vunpack.c.h.b16 %v51
  %v160 = vunpack.c.l.b16 %v52
  %v161 = vunpack.c.h.b16 %v52
  %v162 = vunpack.c.l.b16 %v53
  %v163 = vunpack.c.h.b16 %v53
  %v164 = vunpack.c.l.b16 %v54
  %v165 = vunpack.c.h.b16 %v54
  %v166 = vunpack.c.l.b16 %v55
  %v167 = vunpack.c.h.b16 %v55
  %v168 = vunpack.c.l.b16 %v56
  %v169 = vunpack.c.h.b16 %v56
  %v170 = vunpack.c.l.b16 %v57
  %v171 = vunpack.c.h.b16 %v57
  %v172 = vpack.c.b16 %v108, %v100
  %v173 = vpack.c.b16 %v109, %v101
  %v174 = vpack.c.b16 %v110, %v102
  %v175 = vpack.c.b16 %v111, %v103
  %v176 = vpack.c.b16 %v112, %v104
  %v177 = vpack.c.b16 %v113, %v105
  %v178 = vpack.c.b16 %v114, %v106
  %v179 = vpack.c.b16 %v115, %v107
  %v180 = vpack.c.b16 %v124, %v116
  %v181 = vpack.c.b16 %v125, %v117
  %v182 = vpack.c.b16 %v126, %v118
  %v183 = vpack.c.b16 %v127, %v119
  %v184 = vpack.c.b16 %v128, %v120
  %v185 = vpack.c.b16 %v129, %v121
  %v186 = vpack.c.b16 %v130, %v122
  %v187 = vpack.c.b16 %v131, %v123
  %v188 = vpack.c.b16 %v140, %v132
  %v189 = vpack.c.b16 %v141, %v133
  %v190 = vpack.c.b16 %v142, %v134
  %v191 = vpack.c.b16 %v143, %v135
  %v192 = vpack.c.b16 %v144, %v136
  %v193 = vpack.c.b16 %v145, %v137
  %v194 = vpack.c.b16 %v146, %v138
  %v195 = vpack.c.b16 %v147, %v139
  %v196 = vpack.c.b16 %v156, %v148
  %v197 = vpack.c.b16 %v157, %v149
  %v198 = vpack.c.b16 %v158, %v150
  %v199 = vpack.c.b16 %v159, %v151
  %v200 = vpack.c.b16 %v160, %v152
  %v201 = vpack.c.b16 %v161, %v153
  %v202 = vpack.c.b16 %v162, %v154
  %v203 = vpack.c.b16 %v163, %v155
  %v204 = vpack.c.b16 %v164, %v164
  %v205 = vpack.c.b16 %v165, %v165
  %v206 = vpack.c.b16 %v166, %v166
  %v207 = vpack.c.b16 %v167, %v167
  %v208 = vpack.c.b16 %v168, %v168
  %v209 = vpack.c.b16 %v169, %v169
  %v210 = vpack.c.b16 %v170, %v170
  %v211 = vpack.c.b16 %v171, %v171
  %vm244 = vcmask 588800
  %v246 = vsel %vm244, %v21, 0
  %vm248 = vcmask 1043456
  %v250 = vsel %vm248, %v204, 0
  %v253 = vsel %vm248, %v205, 0
  %v256 = vsel %vm248, %v206, 0
  %v259 = vsel %vm248, %v207, 0
  %v262 = vsel %vm248, %v208, 0
  %v265 = vsel %vm248, %v209, 0
  %v268 = vsel %vm248, %v210, 0
  %v271 = vsel %vm248, %v211, 0
  %273 = vmatprep.subr.bf16.mxu0 %v173
  %274 = vmatpush1.bf16.msra.mxu0 %v172
  %275 = vmatprep.subr.bf16.mxu0 %v181
  %276 = vmatpush1.bf16.msra.mxu0 %v180
  %277 = vmatprep.subr.bf16.mxu0 %v189
  %278 = vmatpush1.bf16.msra.mxu0 %v188
  %279 = vmatprep.subr.bf16.mxu0 %v197
  %280 = vmatpush1.bf16.msra.mxu0 %v196
  %281 = vmatprep.subr.bf16.mxu0 %v253
  %282 = vmatpush1.bf16.msra.mxu0 %v250
  %283 = vmatprep.subr.bf16.mxu0 0
  %284 = vmatpush1.bf16.msra.mxu0 0
  %285 = vmatprep.subr.bf16.mxu0 0
  %286 = vmatpush1.bf16.msra.mxu0 0
  %287 = vmatprep.subr.bf16.mxu0 0
  %288 = vmatpush1.bf16.msra.mxu0 0
  %289 = vmatprep.subr.bf16.mxu0 0
  %290 = vmatpush1.bf16.msra.mxu0 0
  %291 = vmatprep.subr.bf16.mxu0 0
  %292 = vmatpush1.bf16.msra.mxu0 0
  %293 = vmatprep.subr.bf16.mxu0 0
  %294 = vmatpush1.bf16.msra.mxu0 0
  %295 = vmatprep.subr.bf16.mxu0 0
  %296 = vmatpush1.bf16.msra.mxu0 0
  %297 = vmatprep.subr.bf16.mxu0 0
  %298 = vmatpush1.bf16.msra.mxu0 0
  %299 = vmatprep.subr.bf16.mxu0 0
  %300 = vmatpush1.bf16.msra.mxu0 0
  %301 = vmatprep.subr.bf16.mxu0 0
  %302 = vmatpush1.bf16.msra.mxu0 0
  %303 = vmatprep.subr.bf16.mxu0 0
  %304 = vmatpush1.bf16.msra.mxu0 0
  %305 = vmatprep.mubr.bf16.mxu0 0
  %306 = vmatmul.mubr.bf16.gmra.mrb[0].mxu0 %v246
  %v307 = vpop.f32.mrb[0].mxu0
  %v308 = vadd.f32 %v62, %v307
  %v309 = vpop.f32.mrb[0].mxu0
  %v310 = vadd.f32 %v62, %v309
  %v311 = vpop.f32.mrb[0].mxu0
  %v312 = vpop.f32.mrb[0].mxu0
  %313 = vdwg.mxu0
  %314 = vmatprep.subr.bf16.mxu0 %v175
  %315 = vmatpush1.bf16.msra.mxu0 %v174
  %316 = vmatprep.subr.bf16.mxu0 %v183
  %317 = vmatpush1.bf16.msra.mxu0 %v182
  %318 = vmatprep.subr.bf16.mxu0 %v191
  %319 = vmatpush1.bf16.msra.mxu0 %v190
  %320 = vmatprep.subr.bf16.mxu0 %v199
  %321 = vmatpush1.bf16.msra.mxu0 %v198
  %322 = vmatprep.subr.bf16.mxu0 %v259
  %323 = vmatpush1.bf16.msra.mxu0 %v256
  %324 = vmatprep.subr.bf16.mxu0 0
  %325 = vmatpush1.bf16.msra.mxu0 0
  %326 = vmatprep.subr.bf16.mxu0 0
  %327 = vmatpush1.bf16.msra.mxu0 0
  %328 = vmatprep.subr.bf16.mxu0 0
  %329 = vmatpush1.bf16.msra.mxu0 0
  %330 = vmatprep.subr.bf16.mxu0 0
  %331 = vmatpush1.bf16.msra.mxu0 0
  %332 = vmatprep.subr.bf16.mxu0 0
  %333 = vmatpush1.bf16.msra.mxu0 0
  %334 = vmatprep.subr.bf16.mxu0 0
  %335 = vmatpush1.bf16.msra.mxu0 0
  %336 = vmatprep.subr.bf16.mxu0 0
  %337 = vmatpush1.bf16.msra.mxu0 0
  %338 = vmatprep.subr.bf16.mxu0 0
  %339 = vmatpush1.bf16.msra.mxu0 0
  %340 = vmatprep.subr.bf16.mxu0 0
  %341 = vmatpush1.bf16.msra.mxu0 0
  %342 = vmatprep.subr.bf16.mxu0 0
  %343 = vmatpush1.bf16.msra.mxu0 0
  %344 = vmatprep.subr.bf16.mxu0 0
  %345 = vmatpush1.bf16.msra.mxu0 0
  %346 = vmatprep.mubr.bf16.mxu0 0
  %347 = vmatmul.mubr.bf16.gmra.mrb[0].mxu0 %v246
  %v348 = vpop.f32.mrb[0].mxu0
  %v349 = vadd.f32 %v62, %v348
  %v350 = vpop.f32.mrb[0].mxu0
  %v351 = vadd.f32 %v62, %v350
  %v352 = vpop.f32.mrb[0].mxu0
  %v353 = vpop.f32.mrb[0].mxu0
  %354 = vdwg.mxu0
  %355 = vmatprep.subr.bf16.mxu0 %v177
  %356 = vmatpush1.bf16.msra.mxu0 %v176
  %357 = vmatprep.subr.bf16.mxu0 %v185
  %358 = vmatpush1.bf16.msra.mxu0 %v184
  %359 = vmatprep.subr.bf16.mxu0 %v193
  %360 = vmatpush1.bf16.msra.mxu0 %v192
  %361 = vmatprep.subr.bf16.mxu0 %v201
  %362 = vmatpush1.bf16.msra.mxu0 %v200
  %363 = vmatprep.subr.bf16.mxu0 %v265
  %364 = vmatpush1.bf16.msra.mxu0 %v262
  %365 = vmatprep.subr.bf16.mxu0 0
  %366 = vmatpush1.bf16.msra.mxu0 0
  %367 = vmatprep.subr.bf16.mxu0 0
  %368 = vmatpush1.bf16.msra.mxu0 0
  %369 = vmatprep.subr.bf16.mxu0 0
  %370 = vmatpush1.bf16.msra.mxu0 0
  %371 = vmatprep.subr.bf16.mxu0 0
  %372 = vmatpush1.bf16.msra.mxu0 0
  %373 = vmatprep.subr.bf16.mxu0 0
  %374 = vmatpush1.bf16.msra.mxu0 0
  %375 = vmatprep.subr.bf16.mxu0 0
  %376 = vmatpush1.bf16.msra.mxu0 0
  %377 = vmatprep.subr.bf16.mxu0 0
  %378 = vmatpush1.bf16.msra.mxu0 0
  %379 = vmatprep.subr.bf16.mxu0 0
  %380 = vmatpush1.bf16.msra.mxu0 0
  %381 = vmatprep.subr.bf16.mxu0 0
  %382 = vmatpush1.bf16.msra.mxu0 0
  %383 = vmatprep.subr.bf16.mxu0 0
  %384 = vmatpush1.bf16.msra.mxu0 0
  %385 = vmatprep.subr.bf16.mxu0 0
  %386 = vmatpush1.bf16.msra.mxu0 0
  %387 = vmatprep.mubr.bf16.mxu0 0
  %388 = vmatmul.mubr.bf16.gmra.mrb[0].mxu0 %v246
  %v389 = vpop.f32.mrb[0].mxu0
  %v390 = vadd.f32 %v62, %v389
  %v391 = vpop.f32.mrb[0].mxu0
  %v392 = vadd.f32 %v62, %v391
  %v393 = vpop.f32.mrb[0].mxu0
  %v394 = vpop.f32.mrb[0].mxu0
  %395 = vdwg.mxu0
  %396 = vmatprep.subr.bf16.mxu0 %v179
  %397 = vmatpush1.bf16.msra.mxu0 %v178
  %398 = vmatprep.subr.bf16.mxu0 %v187
  %399 = vmatpush1.bf16.msra.mxu0 %v186
  %400 = vmatprep.subr.bf16.mxu0 %v195
  %401 = vmatpush1.bf16.msra.mxu0 %v194
  %402 = vmatprep.subr.bf16.mxu0 %v203
  %403 = vmatpush1.bf16.msra.mxu0 %v202
  %404 = vmatprep.subr.bf16.mxu0 %v271
  %405 = vmatpush1.bf16.msra.mxu0 %v268
  %406 = vmatprep.subr.bf16.mxu0 0
  %407 = vmatpush1.bf16.msra.mxu0 0
  %408 = vmatprep.subr.bf16.mxu0 0
  %409 = vmatpush1.bf16.msra.mxu0 0
  %410 = vmatprep.subr.bf16.mxu0 0
  %411 = vmatpush1.bf16.msra.mxu0 0
  %412 = vmatprep.subr.bf16.mxu0 0
  %413 = vmatpush1.bf16.msra.mxu0 0
  %414 = vmatprep.subr.bf16.mxu0 0
  %415 = vmatpush1.bf16.msra.mxu0 0
  %416 = vmatprep.subr.bf16.mxu0 0
  %417 = vmatpush1.bf16.msra.mxu0 0
  %418 = vmatprep.subr.bf16.mxu0 0
  %419 = vmatpush1.bf16.msra.mxu0 0
  %420 = vmatprep.subr.bf16.mxu0 0
  %421 = vmatpush1.bf16.msra.mxu0 0
  %422 = vmatprep.subr.bf16.mxu0 0
  %423 = vmatpush1.bf16.msra.mxu0 0
  %424 = vmatprep.subr.bf16.mxu0 0
  %425 = vmatpush1.bf16.msra.mxu0 0
  %426 = vmatprep.subr.bf16.mxu0 0
  %427 = vmatpush1.bf16.msra.mxu0 0
  %428 = vmatprep.mubr.bf16.mxu0 0
  %429 = vmatmul.mubr.bf16.gmra.mrb[0].mxu0 %v246
  %v430 = vpop.f32.mrb[0].mxu0
  %v431 = vadd.f32 %v62, %v430
  %v432 = vpop.f32.mrb[0].mxu0
  %v433 = vadd.f32 %v62, %v432
  %v434 = vpop.f32.mrb[0].mxu0
  %v435 = vpop.f32.mrb[0].mxu0
  %436 = vdwg.mxu0
  %v437 = vadd.f32 %v308, %v310
  %v438 = vadd.f32 %v437, %v349
  %v439 = vadd.f32 %v438, %v351
  %v440 = vadd.f32 %v439, %v390
  %v441 = vadd.f32 %v440, %v392
  %v442 = vadd.f32 %v441, %v431
  %v443 = vadd.f32 %v442, %v433
  %444 = vadd.xlane.f32.xlu0 %v443
  %v445 = vpop.xlane.xlu0 %444
  %v446 = vmul.f32 %v445, 0.0009765625
  %v447 = vsub.f32 %v308, %v446
  %v448 = vsub.f32 %v310, %v446
  %v449 = vsub.f32 %v349, %v446
  %v450 = vsub.f32 %v351, %v446
  %v451 = vsub.f32 %v390, %v446
  %v452 = vsub.f32 %v392, %v446
  %v453 = vsub.f32 %v431, %v446
  %v454 = vsub.f32 %v433, %v446
  %v455 = vmul.f32 %v447, %v447
  %v456 = vmul.f32 %v448, %v448
  %v457 = vmul.f32 %v449, %v449
  %v458 = vmul.f32 %v450, %v450
  %v459 = vmul.f32 %v451, %v451
  %v460 = vmul.f32 %v452, %v452
  %v461 = vmul.f32 %v453, %v453
  %v462 = vmul.f32 %v454, %v454
  %v463 = vadd.f32 %v455, %v456
  %v464 = vadd.f32 %v463, %v457
  %v465 = vadd.f32 %v464, %v458
  %v466 = vadd.f32 %v465, %v459
  %v467 = vadd.f32 %v466, %v460
  %v468 = vadd.f32 %v467, %v461
  %v469 = vadd.f32 %v468, %v462
  %470 = vadd.xlane.f32.xlu0 %v469
  %v471 = vpop.xlane.xlu0 %470
  %v472 = vmul.f32 %v471, 0.0009765625
  %v473 = vld [vmem:[%s3] sm:$0xff]
  %v474 = vadd.f32 %v472, 1e-05
  %v475 = vrsqrt.pop %v474
  %v476 = vmul.f32 %v473, %v475
  %478 = vset.pattern.permute.xlu0 0
  %479 = vperm.xlu0 %478, %v476
  %v480 = vpop.permute.xlu0 %479
  %v482 = vmul.f32 %v447, %v480
  %v483 = vmul.f32 %v448, %v480
  %v484 = vmul.f32 %v449, %v480
  %v485 = vmul.f32 %v450, %v480
  %v486 = vmul.f32 %v451, %v480
  %v487 = vmul.f32 %v452, %v480
  %v488 = vmul.f32 %v453, %v480
  %v489 = vmul.f32 %v454, %v480
  %v490 = vld [vmem:[%s4] sm:$0xff]
  %492 = vset.pattern.permute.xlu0 0
  %493 = vperm.xlu0 %492, %v490
  %v494 = vpop.permute.xlu0 %493
  %v496 = vadd.f32 %v482, %v494
  %v497 = vadd.f32 %v483, %v494
  %v498 = vadd.f32 %v484, %v494
  %v499 = vadd.f32 %v485, %v494
  %v500 = vadd.f32 %v486, %v494
  %v501 = vadd.f32 %v487, %v494
  %v502 = vadd.f32 %v488, %v494
  %v503 = vadd.f32 %v489, %v494
  %v504 = vmax.f32 %v496, 0.0
  %v505 = vmax.f32 %v497, 0.0
  %v506 = vmax.f32 %v498, 0.0
  %v507 = vmax.f32 %v499, 0.0
  %v508 = vmax.f32 %v500, 0.0
  %v509 = vmax.f32 %v501, 0.0
  %v510 = vmax.f32 %v502, 0.0
  %v511 = vmax.f32 %v503, 0.0
  %512 = vst [vmem:[%s5] sm:$0xff] %v504
  %513 = vst [vmem:[%s5 + $0x8] sm:$0xff] %v505
  %514 = vst [vmem:[%s5 + $0x10] sm:$0xff] %v506
  %515 = vst [vmem:[%s5 + $0x18] sm:$0xff] %v507
  %516 = vst [vmem:[%s5 + $0x20] sm:$0xff] %v508
  %517 = vst [vmem:[%s5 + $0x28] sm:$0xff] %v509
  %518 = vst [vmem:[%s5 + $0x30] sm:$0xff] %v510
  %519 = vst [vmem:[%s5 + $0x38] sm:$0xff] %v511
  // Predicated region
  $region22: #{resnet_iid_forward.21} parent=0 // pred_check
    _
  $region23: #{resnet_iid_forward.21} parent=0 // pred_check_branch
    %521 = sbr.rel (0) target = $region25
  $region24: #{resnet_iid_forward.21} parent=0 // pred_region
    _
  $region25: #{resnet_iid_forward.21} parent=0 // pred_fallthru
    _
  // Predicated region
  $region26: #{resnet_iid_forward.21} parent=0 // pred_check
    _
  $region27: #{resnet_iid_forward.21} parent=0 // pred_check_branch
    %523 = sbr.rel (0) target = $region29
  $region28: #{resnet_iid_forward.21} parent=0 // pred_region
    _
  $region29: #{resnet_iid_forward.21} parent=0 // pred_fallthru
    _

// kernel: resnet_iid_forward.22
$region0: #{resnet_iid_forward.22}
  #allocation0 [shape = 'u32[]', space=smem, size = 0x4, offset = 0x4, fixed_abs, tag = 'smem constant byte address 0x4 - core index']
  #allocation1 [shape = 'u32[144,128]{1,0:T(1,128)}', space=vmem, size = 0x12000, scoped, tag = 'internal scratch']
  %s0 = inlined_call_operand.vmem [shape: bf16[72,1024], index: 0, kind: input, shape index: {}]
  %s1 = inlined_call_operand.vmem [shape: bf16[8,72], index: 1, kind: input, shape index: {}]
  %s2 = inlined_call_operand.vmem [shape: f32[8,1], index: 2, kind: input, shape index: {}]
  %s3 = inlined_call_operand.vmem [shape: f32[8,1], index: 3, kind: input, shape index: {}]
  %s4 = inlined_call_operand.vmem [shape: f32[8,1], index: 4, kind: input, shape index: {}]
  %s5 = inlined_call_operand.vmem [shape: f32[8,1024], index: 5, kind: input, shape index: {}]
  %s6 = inlined_call_operand.vmem [shape: f32[8,1024], index: 6, kind: output, shape index: {}]
  %s7 = sld [smem:[#allocation0]]
  $region34: #{resnet_iid_forward.22} parent=0
    _
  %s9 = ssub.s32 1, %s7
  %s10 = scalar_select 0, %s9, %s7
  // Predicated region
  $region2: #{resnet_iid_forward.22} parent=0 // pred_check
    _
  $region3: #{resnet_iid_forward.22} parent=0 // pred_check_branch
    %12 = sbr.rel (0) target = $region5
  $region4: #{resnet_iid_forward.22} parent=0 // pred_region
    _
  $region5: #{resnet_iid_forward.22} parent=0 // pred_fallthru
    _
  // Predicated region
  $region6: #{resnet_iid_forward.22} parent=0 // pred_check
    _
  $region7: #{resnet_iid_forward.22} parent=0 // pred_check_branch
    %14 = sbr.rel (0) target = $region9
  $region8: #{resnet_iid_forward.22} parent=0 // pred_region
    _
  $region9: #{resnet_iid_forward.22} parent=0 // pred_fallthru
    _
  // Predicated region
  $region10: #{resnet_iid_forward.22} parent=0 // pred_check
    _
  $region11: #{resnet_iid_forward.22} parent=0 // pred_check_branch
    %16 = sbr.rel (0) target = $region13
  $region12: #{resnet_iid_forward.22} parent=0 // pred_region
    _
  $region13: #{resnet_iid_forward.22} parent=0 // pred_fallthru
    _
  // Predicated region
  $region14: #{resnet_iid_forward.22} parent=0 // pred_check
    _
  $region15: #{resnet_iid_forward.22} parent=0 // pred_check_branch
    %18 = sbr.rel (0) target = $region17
  $region16: #{resnet_iid_forward.22} parent=0 // pred_region
    _
  $region17: #{resnet_iid_forward.22} parent=0 // pred_fallthru
    _
  // Predicated region
  $region18: #{resnet_iid_forward.22} parent=0 // pred_check
    _
  $region19: #{resnet_iid_forward.22} parent=0 // pred_check_branch
    %20 = sbr.rel (0) target = $region21
  $region20: #{resnet_iid_forward.22} parent=0 // pred_region
    _
  $region21: #{resnet_iid_forward.22} parent=0 // pred_fallthru
    _
  // Predicated region
  $region22: #{resnet_iid_forward.22} parent=0 // pred_check
    _
  $region23: #{resnet_iid_forward.22} parent=0 // pred_check_branch
    %22 = sbr.rel (0) target = $region25
  $region24: #{resnet_iid_forward.22} parent=0 // pred_region
    _
  $region25: #{resnet_iid_forward.22} parent=0 // pred_fallthru
    _
  %v24 = vld [vmem:[%s1] sm:$0xf]
  %v25 = vld [vmem:[%s0] sm:$0xff]
  %v26 = vld [vmem:[%s0 + $0x8] sm:$0xff]
  %v27 = vld [vmem:[%s0 + $0x10] sm:$0xff]
  %v28 = vld [vmem:[%s0 + $0x18] sm:$0xff]
  %v29 = vld [vmem:[%s0 + $0x20] sm:$0xff]
  %v30 = vld [vmem:[%s0 + $0x28] sm:$0xff]
  %v31 = vld [vmem:[%s0 + $0x30] sm:$0xff]
  %v32 = vld [vmem:[%s0 + $0x38] sm:$0xff]
  %v33 = vld [vmem:[%s0 + $0x40] sm:$0xff]
  %v34 = vld [vmem:[%s0 + $0x48] sm:$0xff]
  %v35 = vld [vmem:[%s0 + $0x50] sm:$0xff]
  %v36 = vld [vmem:[%s0 + $0x58] sm:$0xff]
  %v37 = vld [vmem:[%s0 + $0x60] sm:$0xff]
  %v38 = vld [vmem:[%s0 + $0x68] sm:$0xff]
  %v39 = vld [vmem:[%s0 + $0x70] sm:$0xff]
  %v40 = vld [vmem:[%s0 + $0x78] sm:$0xff]
  %v41 = vld [vmem:[%s0 + $0x80] sm:$0xff]
  %v42 = vld [vmem:[%s0 + $0x88] sm:$0xff]
  %v43 = vld [vmem:[%s0 + $0x90] sm:$0xff]
  %v44 = vld [vmem:[%s0 + $0x98] sm:$0xff]
  %v45 = vld [vmem:[%s0 + $0xa0] sm:$0xff]
  %v46 = vld [vmem:[%s0 + $0xa8] sm:$0xff]
  %v47 = vld [vmem:[%s0 + $0xb0] sm:$0xff]
  %v48 = vld [vmem:[%s0 + $0xb8] sm:$0xff]
  %v49 = vld [vmem:[%s0 + $0xc0] sm:$0xff]
  %v50 = vld [vmem:[%s0 + $0xc8] sm:$0xff]
  %v51 = vld [vmem:[%s0 + $0xd0] sm:$0xff]
  %v52 = vld [vmem:[%s0 + $0xd8] sm:$0xff]
  %v53 = vld [vmem:[%s0 + $0xe0] sm:$0xff]
  %v54 = vld [vmem:[%s0 + $0xe8] sm:$0xff]
  %v55 = vld [vmem:[%s0 + $0xf0] sm:$0xff]
  %v56 = vld [vmem:[%s0 + $0xf8] sm:$0xff]
  %v57 = vld [vmem:[%s0 + $0x100] sm:$0xff]
  %v58 = vld [vmem:[%s0 + $0x108] sm:$0xff]
  %v59 = vld [vmem:[%s0 + $0x110] sm:$0xff]
  %v60 = vld [vmem:[%s0 + $0x118] sm:$0xff]
  %v61 = vld [vmem:[%s2] sm:$0xff]
  %63 = vset.pattern.permute.xlu0 0
  %64 = vperm.xlu0 %63, %v61
  %v65 = vpop.permute.xlu0 %64
  %v103 = vunpack.c.l.b16 %v25
  %v104 = vunpack.c.h.b16 %v25
  %v105 = vunpack.c.l.b16 %v26
  %v106 = vunpack.c.h.b16 %v26
  %v107 = vunpack.c.l.b16 %v27
  %v108 = vunpack.c.h.b16 %v27
  %v109 = vunpack.c.l.b16 %v28
  %v110 = vunpack.c.h.b16 %v28
  %v111 = vunpack.c.l.b16 %v29
  %v112 = vunpack.c.h.b16 %v29
  %v113 = vunpack.c.l.b16 %v30
  %v114 = vunpack.c.h.b16 %v30
  %v115 = vunpack.c.l.b16 %v31
  %v116 = vunpack.c.h.b16 %v31
  %v117 = vunpack.c.l.b16 %v32
  %v118 = vunpack.c.h.b16 %v32
  %v119 = vunpack.c.l.b16 %v33
  %v120 = vunpack.c.h.b16 %v33
  %v121 = vunpack.c.l.b16 %v34
  %v122 = vunpack.c.h.b16 %v34
  %v123 = vunpack.c.l.b16 %v35
  %v124 = vunpack.c.h.b16 %v35
  %v125 = vunpack.c.l.b16 %v36
  %v126 = vunpack.c.h.b16 %v36
  %v127 = vunpack.c.l.b16 %v37
  %v128 = vunpack.c.h.b16 %v37
  %v129 = vunpack.c.l.b16 %v38
  %v130 = vunpack.c.h.b16 %v38
  %v131 = vunpack.c.l.b16 %v39
  %v132 = vunpack.c.h.b16 %v39
  %v133 = vunpack.c.l.b16 %v40
  %v134 = vunpack.c.h.b16 %v40
  %v135 = vunpack.c.l.b16 %v41
  %v136 = vunpack.c.h.b16 %v41
  %v137 = vunpack.c.l.b16 %v42
  %v138 = vunpack.c.h.b16 %v42
  %v139 = vunpack.c.l.b16 %v43
  %v140 = vunpack.c.h.b16 %v43
  %v141 = vunpack.c.l.b16 %v44
  %v142 = vunpack.c.h.b16 %v44
  %v143 = vunpack.c.l.b16 %v45
  %v144 = vunpack.c.h.b16 %v45
  %v145 = vunpack.c.l.b16 %v46
  %v146 = vunpack.c.h.b16 %v46
  %v147 = vunpack.c.l.b16 %v47
  %v148 = vunpack.c.h.b16 %v47
  %v149 = vunpack.c.l.b16 %v48
  %v150 = vunpack.c.h.b16 %v48
  %v151 = vunpack.c.l.b16 %v49
  %v152 = vunpack.c.h.b16 %v49
  %v153 = vunpack.c.l.b16 %v50
  %v154 = vunpack.c.h.b16 %v50
  %v155 = vunpack.c.l.b16 %v51
  %v156 = vunpack.c.h.b16 %v51
  %v157 = vunpack.c.l.b16 %v52
  %v158 = vunpack.c.h.b16 %v52
  %v159 = vunpack.c.l.b16 %v53
  %v160 = vunpack.c.h.b16 %v53
  %v161 = vunpack.c.l.b16 %v54
  %v162 = vunpack.c.h.b16 %v54
  %v163 = vunpack.c.l.b16 %v55
  %v164 = vunpack.c.h.b16 %v55
  %v165 = vunpack.c.l.b16 %v56
  %v166 = vunpack.c.h.b16 %v56
  %v167 = vunpack.c.l.b16 %v57
  %v168 = vunpack.c.h.b16 %v57
  %v169 = vunpack.c.l.b16 %v58
  %v170 = vunpack.c.h.b16 %v58
  %v171 = vunpack.c.l.b16 %v59
  %v172 = vunpack.c.h.b16 %v59
  %v173 = vunpack.c.l.b16 %v60
  %v174 = vunpack.c.h.b16 %v60
  %v175 = vpack.c.b16 %v111, %v103
  %v176 = vpack.c.b16 %v112, %v104
  %v177 = vpack.c.b16 %v113, %v105
  %v178 = vpack.c.b16 %v114, %v106
  %v179 = vpack.c.b16 %v115, %v107
  %v180 = vpack.c.b16 %v116, %v108
  %v181 = vpack.c.b16 %v117, %v109
  %v182 = vpack.c.b16 %v118, %v110
  %v183 = vpack.c.b16 %v127, %v119
  %v184 = vpack.c.b16 %v128, %v120
  %v185 = vpack.c.b16 %v129, %v121
  %v186 = vpack.c.b16 %v130, %v122
  %v187 = vpack.c.b16 %v131, %v123
  %v188 = vpack.c.b16 %v132, %v124
  %v189 = vpack.c.b16 %v133, %v125
  %v190 = vpack.c.b16 %v134, %v126
  %v191 = vpack.c.b16 %v143, %v135
  %v192 = vpack.c.b16 %v144, %v136
  %v193 = vpack.c.b16 %v145, %v137
  %v194 = vpack.c.b16 %v146, %v138
  %v195 = vpack.c.b16 %v147, %v139
  %v196 = vpack.c.b16 %v148, %v140
  %v197 = vpack.c.b16 %v149, %v141
  %v198 = vpack.c.b16 %v150, %v142
  %v199 = vpack.c.b16 %v159, %v151
  %v200 = vpack.c.b16 %v160, %v152
  %v201 = vpack.c.b16 %v161, %v153
  %v202 = vpack.c.b16 %v162, %v154
  %v203 = vpack.c.b16 %v163, %v155
  %v204 = vpack.c.b16 %v164, %v156
  %v205 = vpack.c.b16 %v165, %v157
  %v206 = vpack.c.b16 %v166, %v158
  %v207 = vpack.c.b16 %v167, %v167
  %v208 = vpack.c.b16 %v168, %v168
  %v209 = vpack.c.b16 %v169, %v169
  %v210 = vpack.c.b16 %v170, %v170
  %v211 = vpack.c.b16 %v171, %v171
  %v212 = vpack.c.b16 %v172, %v172
  %v213 = vpack.c.b16 %v173, %v173
  %v214 = vpack.c.b16 %v174, %v174
  %vm247 = vcmask 588800
  %v249 = vsel %vm247, %v24, 0
  %vm251 = vcmask 1043456
  %v253 = vsel %vm251, %v207, 0
  %v256 = vsel %vm251, %v208, 0
  %v259 = vsel %vm251, %v209, 0
  %v262 = vsel %vm251, %v210, 0
  %v265 = vsel %vm251, %v211, 0
  %v268 = vsel %vm251, %v212, 0
  %v271 = vsel %vm251, %v213, 0
  %v274 = vsel %vm251, %v214, 0
  %276 = vmatprep.subr.bf16.mxu0 %v176
  %277 = vmatpush1.bf16.msra.mxu0 %v175
  %278 = vmatprep.subr.bf16.mxu0 %v184
  %279 = vmatpush1.bf16.msra.mxu0 %v183
  %280 = vmatprep.subr.bf16.mxu0 %v192
  %281 = vmatpush1.bf16.msra.mxu0 %v191
  %282 = vmatprep.subr.bf16.mxu0 %v200
  %283 = vmatpush1.bf16.msra.mxu0 %v199
  %284 = vmatprep.subr.bf16.mxu0 %v256
  %285 = vmatpush1.bf16.msra.mxu0 %v253
  %286 = vmatprep.subr.bf16.mxu0 0
  %287 = vmatpush1.bf16.msra.mxu0 0
  %288 = vmatprep.subr.bf16.mxu0 0
  %289 = vmatpush1.bf16.msra.mxu0 0
  %290 = vmatprep.subr.bf16.mxu0 0
  %291 = vmatpush1.bf16.msra.mxu0 0
  %292 = vmatprep.subr.bf16.mxu0 0
  %293 = vmatpush1.bf16.msra.mxu0 0
  %294 = vmatprep.subr.bf16.mxu0 0
  %295 = vmatpush1.bf16.msra.mxu0 0
  %296 = vmatprep.subr.bf16.mxu0 0
  %297 = vmatpush1.bf16.msra.mxu0 0
  %298 = vmatprep.subr.bf16.mxu0 0
  %299 = vmatpush1.bf16.msra.mxu0 0
  %300 = vmatprep.subr.bf16.mxu0 0
  %301 = vmatpush1.bf16.msra.mxu0 0
  %302 = vmatprep.subr.bf16.mxu0 0
  %303 = vmatpush1.bf16.msra.mxu0 0
  %304 = vmatprep.subr.bf16.mxu0 0
  %305 = vmatpush1.bf16.msra.mxu0 0
  %306 = vmatprep.subr.bf16.mxu0 0
  %307 = vmatpush1.bf16.msra.mxu0 0
  %308 = vmatprep.mubr.bf16.mxu0 0
  %309 = vmatmul.mubr.bf16.gmra.mrb[0].mxu0 %v249
  %v310 = vpop.f32.mrb[0].mxu0
  %v311 = vadd.f32 %v65, %v310
  %v312 = vpop.f32.mrb[0].mxu0
  %v313 = vadd.f32 %v65, %v312
  %v314 = vpop.f32.mrb[0].mxu0
  %v315 = vpop.f32.mrb[0].mxu0
  %316 = vdwg.mxu0
  %317 = vmatprep.subr.bf16.mxu0 %v178
  %318 = vmatpush1.bf16.msra.mxu0 %v177
  %319 = vmatprep.subr.bf16.mxu0 %v186
  %320 = vmatpush1.bf16.msra.mxu0 %v185
  %321 = vmatprep.subr.bf16.mxu0 %v194
  %322 = vmatpush1.bf16.msra.mxu0 %v193
  %323 = vmatprep.subr.bf16.mxu0 %v202
  %324 = vmatpush1.bf16.msra.mxu0 %v201
  %325 = vmatprep.subr.bf16.mxu0 %v262
  %326 = vmatpush1.bf16.msra.mxu0 %v259
  %327 = vmatprep.subr.bf16.mxu0 0
  %328 = vmatpush1.bf16.msra.mxu0 0
  %329 = vmatprep.subr.bf16.mxu0 0
  %330 = vmatpush1.bf16.msra.mxu0 0
  %331 = vmatprep.subr.bf16.mxu0 0
  %332 = vmatpush1.bf16.msra.mxu0 0
  %333 = vmatprep.subr.bf16.mxu0 0
  %334 = vmatpush1.bf16.msra.mxu0 0
  %335 = vmatprep.subr.bf16.mxu0 0
  %336 = vmatpush1.bf16.msra.mxu0 0
  %337 = vmatprep.subr.bf16.mxu0 0
  %338 = vmatpush1.bf16.msra.mxu0 0
  %339 = vmatprep.subr.bf16.mxu0 0
  %340 = vmatpush1.bf16.msra.mxu0 0
  %341 = vmatprep.subr.bf16.mxu0 0
  %342 = vmatpush1.bf16.msra.mxu0 0
  %343 = vmatprep.subr.bf16.mxu0 0
  %344 = vmatpush1.bf16.msra.mxu0 0
  %345 = vmatprep.subr.bf16.mxu0 0
  %346 = vmatpush1.bf16.msra.mxu0 0
  %347 = vmatprep.subr.bf16.mxu0 0
  %348 = vmatpush1.bf16.msra.mxu0 0
  %349 = vmatprep.mubr.bf16.mxu0 0
  %350 = vmatmul.mubr.bf16.gmra.mrb[0].mxu0 %v249
  %v351 = vpop.f32.mrb[0].mxu0
  %v352 = vadd.f32 %v65, %v351
  %v353 = vpop.f32.mrb[0].mxu0
  %v354 = vadd.f32 %v65, %v353
  %v355 = vpop.f32.mrb[0].mxu0
  %v356 = vpop.f32.mrb[0].mxu0
  %357 = vdwg.mxu0
  %358 = vmatprep.subr.bf16.mxu0 %v180
  %359 = vmatpush1.bf16.msra.mxu0 %v179
  %360 = vmatprep.subr.bf16.mxu0 %v188
  %361 = vmatpush1.bf16.msra.mxu0 %v187
  %362 = vmatprep.subr.bf16.mxu0 %v196
  %363 = vmatpush1.bf16.msra.mxu0 %v195
  %364 = vmatprep.subr.bf16.mxu0 %v204
  %365 = vmatpush1.bf16.msra.mxu0 %v203
  %366 = vmatprep.subr.bf16.mxu0 %v268
  %367 = vmatpush1.bf16.msra.mxu0 %v265
  %368 = vmatprep.subr.bf16.mxu0 0
  %369 = vmatpush1.bf16.msra.mxu0 0
  %370 = vmatprep.subr.bf16.mxu0 0
  %371 = vmatpush1.bf16.msra.mxu0 0
  %372 = vmatprep.subr.bf16.mxu0 0
  %373 = vmatpush1.bf16.msra.mxu0 0
  %374 = vmatprep.subr.bf16.mxu0 0
  %375 = vmatpush1.bf16.msra.mxu0 0
  %376 = vmatprep.subr.bf16.mxu0 0
  %377 = vmatpush1.bf16.msra.mxu0 0
  %378 = vmatprep.subr.bf16.mxu0 0
  %379 = vmatpush1.bf16.msra.mxu0 0
  %380 = vmatprep.subr.bf16.mxu0 0
  %381 = vmatpush1.bf16.msra.mxu0 0
  %382 = vmatprep.subr.bf16.mxu0 0
  %383 = vmatpush1.bf16.msra.mxu0 0
  %384 = vmatprep.subr.bf16.mxu0 0
  %385 = vmatpush1.bf16.msra.mxu0 0
  %386 = vmatprep.subr.bf16.mxu0 0
  %387 = vmatpush1.bf16.msra.mxu0 0
  %388 = vmatprep.subr.bf16.mxu0 0
  %389 = vmatpush1.bf16.msra.mxu0 0
  %390 = vmatprep.mubr.bf16.mxu0 0
  %391 = vmatmul.mubr.bf16.gmra.mrb[0].mxu0 %v249
  %v392 = vpop.f32.mrb[0].mxu0
  %v393 = vadd.f32 %v65, %v392
  %v394 = vpop.f32.mrb[0].mxu0
  %v395 = vadd.f32 %v65, %v394
  %v396 = vpop.f32.mrb[0].mxu0
  %v397 = vpop.f32.mrb[0].mxu0
  %398 = vdwg.mxu0
  %399 = vmatprep.subr.bf16.mxu0 %v182
  %400 = vmatpush1.bf16.msra.mxu0 %v181
  %401 = vmatprep.subr.bf16.mxu0 %v190
  %402 = vmatpush1.bf16.msra.mxu0 %v189
  %403 = vmatprep.subr.bf16.mxu0 %v198
  %404 = vmatpush1.bf16.msra.mxu0 %v197
  %405 = vmatprep.subr.bf16.mxu0 %v206
  %406 = vmatpush1.bf16.msra.mxu0 %v205
  %407 = vmatprep.subr.bf16.mxu0 %v274
  %408 = vmatpush1.bf16.msra.mxu0 %v271
  %409 = vmatprep.subr.bf16.mxu0 0
  %410 = vmatpush1.bf16.msra.mxu0 0
  %411 = vmatprep.subr.bf16.mxu0 0
  %412 = vmatpush1.bf16.msra.mxu0 0
  %413 = vmatprep.subr.bf16.mxu0 0
  %414 = vmatpush1.bf16.msra.mxu0 0
  %415 = vmatprep.subr.bf16.mxu0 0
  %416 = vmatpush1.bf16.msra.mxu0 0
  %417 = vmatprep.subr.bf16.mxu0 0
  %418 = vmatpush1.bf16.msra.mxu0 0
  %419 = vmatprep.subr.bf16.mxu0 0
  %420 = vmatpush1.bf16.msra.mxu0 0
  %421 = vmatprep.subr.bf16.mxu0 0
  %422 = vmatpush1.bf16.msra.mxu0 0
  %423 = vmatprep.subr.bf16.mxu0 0
  %424 = vmatpush1.bf16.msra.mxu0 0
  %425 = vmatprep.subr.bf16.mxu0 0
  %426 = vmatpush1.bf16.msra.mxu0 0
  %427 = vmatprep.subr.bf16.mxu0 0
  %428 = vmatpush1.bf16.msra.mxu0 0
  %429 = vmatprep.subr.bf16.mxu0 0
  %430 = vmatpush1.bf16.msra.mxu0 0
  %431 = vmatprep.mubr.bf16.mxu0 0
  %432 = vmatmul.mubr.bf16.gmra.mrb[0].mxu0 %v249
  %v433 = vpop.f32.mrb[0].mxu0
  %v434 = vadd.f32 %v65, %v433
  %v435 = vpop.f32.mrb[0].mxu0
  %v436 = vadd.f32 %v65, %v435
  %v437 = vpop.f32.mrb[0].mxu0
  %v438 = vpop.f32.mrb[0].mxu0
  %439 = vdwg.mxu0
  %v440 = vadd.f32 %v311, %v313
  %v441 = vadd.f32 %v440, %v352
  %v442 = vadd.f32 %v441, %v354
  %v443 = vadd.f32 %v442, %v393
  %v444 = vadd.f32 %v443, %v395
  %v445 = vadd.f32 %v444, %v434
  %v446 = vadd.f32 %v445, %v436
  %447 = vadd.xlane.f32.xlu0 %v446
  %v448 = vpop.xlane.xlu0 %447
  %v449 = vmul.f32 %v448, 0.0009765625
  %v450 = vsub.f32 %v311, %v449
  %v451 = vsub.f32 %v313, %v449
  %v452 = vsub.f32 %v352, %v449
  %v453 = vsub.f32 %v354, %v449
  %v454 = vsub.f32 %v393, %v449
  %v455 = vsub.f32 %v395, %v449
  %v456 = vsub.f32 %v434, %v449
  %v457 = vsub.f32 %v436, %v449
  %v458 = vmul.f32 %v450, %v450
  %v459 = vmul.f32 %v451, %v451
  %v460 = vmul.f32 %v452, %v452
  %v461 = vmul.f32 %v453, %v453
  %v462 = vmul.f32 %v454, %v454
  %v463 = vmul.f32 %v455, %v455
  %v464 = vmul.f32 %v456, %v456
  %v465 = vmul.f32 %v457, %v457
  %v466 = vadd.f32 %v458, %v459
  %v467 = vadd.f32 %v466, %v460
  %v468 = vadd.f32 %v467, %v461
  %v469 = vadd.f32 %v468, %v462
  %v470 = vadd.f32 %v469, %v463
  %v471 = vadd.f32 %v470, %v464
  %v472 = vadd.f32 %v471, %v465
  %473 = vadd.xlane.f32.xlu0 %v472
  %v474 = vpop.xlane.xlu0 %473
  %v475 = vmul.f32 %v474, 0.0009765625
  %v476 = vld [vmem:[%s3] sm:$0xff]
  %v477 = vadd.f32 %v475, 1e-05
  %v478 = vrsqrt.pop %v477
  %v479 = vmul.f32 %v476, %v478
  %481 = vset.pattern.permute.xlu0 0
  %482 = vperm.xlu0 %481, %v479
  %v483 = vpop.permute.xlu0 %482
  %v485 = vmul.f32 %v450, %v483
  %v486 = vmul.f32 %v451, %v483
  %v487 = vmul.f32 %v452, %v483
  %v488 = vmul.f32 %v453, %v483
  %v489 = vmul.f32 %v454, %v483
  %v490 = vmul.f32 %v455, %v483
  %v491 = vmul.f32 %v456, %v483
  %v492 = vmul.f32 %v457, %v483
  %v493 = vld [vmem:[%s4] sm:$0xff]
  %495 = vset.pattern.permute.xlu0 0
  %496 = vperm.xlu0 %495, %v493
  %v497 = vpop.permute.xlu0 %496
  %v499 = vadd.f32 %v485, %v497
  %v500 = vadd.f32 %v486, %v497
  %v501 = vadd.f32 %v487, %v497
  %v502 = vadd.f32 %v488, %v497
  %v503 = vadd.f32 %v489, %v497
  %v504 = vadd.f32 %v490, %v497
  %v505 = vadd.f32 %v491, %v497
  %v506 = vadd.f32 %v492, %v497
  %v507 = vld [vmem:[%s5] sm:$0xff]
  %v508 = vld [vmem:[%s5 + $0x8] sm:$0xff]
  %v509 = vld [vmem:[%s5 + $0x10] sm:$0xff]
  %v510 = vld [vmem:[%s5 + $0x18] sm:$0xff]
  %v511 = vld [vmem:[%s5 + $0x20] sm:$0xff]
  %v512 = vld [vmem:[%s5 + $0x28] sm:$0xff]
  %v513 = vld [vmem:[%s5 + $0x30] sm:$0xff]
  %v514 = vld [vmem:[%s5 + $0x38] sm:$0xff]
  %v515 = vadd.f32 %v499, %v507
  %v516 = vadd.f32 %v500, %v508
  %v517 = vadd.f32 %v501, %v509
  %v518 = vadd.f32 %v502, %v510
  %v519 = vadd.f32 %v503, %v511
  %v520 = vadd.f32 %v504, %v512
  %v521 = vadd.f32 %v505, %v513
  %v522 = vadd.f32 %v506, %v514
  %v523 = vmax.f32 %v515, 0.0
  %v524 = vmax.f32 %v516, 0.0
  %v525 = vmax.f32 %v517, 0.0
  %v526 = vmax.f32 %v518, 0.0
  %v527 = vmax.f32 %v519, 0.0
  %v528 = vmax.f32 %v520, 0.0
  %v529 = vmax.f32 %v521, 0.0
  %v530 = vmax.f32 %v522, 0.0
  %531 = vst [vmem:[%s6] sm:$0xff] %v523
  %532 = vst [vmem:[%s6 + $0x8] sm:$0xff] %v524
  %533 = vst [vmem:[%s6 + $0x10] sm:$0xff] %v525
  %534 = vst [vmem:[%s6 + $0x18] sm:$0xff] %v526
  %535 = vst [vmem:[%s6 + $0x20] sm:$0xff] %v527
  %536 = vst [vmem:[%s6 + $0x28] sm:$0xff] %v528
  %537 = vst [vmem:[%s6 + $0x30] sm:$0xff] %v529
  %538 = vst [vmem:[%s6 + $0x38] sm:$0xff] %v530
  // Predicated region
  $region26: #{resnet_iid_forward.22} parent=0 // pred_check
    _
  $region27: #{resnet_iid_forward.22} parent=0 // pred_check_branch
    %540 = sbr.rel (0) target = $region29
  $region28: #{resnet_iid_forward.22} parent=0 // pred_region
    _
  $region29: #{resnet_iid_forward.22} parent=0 // pred_fallthru
    _
  // Predicated region
  $region30: #{resnet_iid_forward.22} parent=0 // pred_check
    _
  $region31: #{resnet_iid_forward.22} parent=0 // pred_check_branch
    %542 = sbr.rel (0) target = $region33
  $region32: #{resnet_iid_forward.22} parent=0 // pred_region
    _
  $region33: #{resnet_iid_forward.22} parent=0 // pred_fallthru
    _

// kernel: resnet_iid_forward.25
$region0: #{resnet_iid_forward.25}
  #allocation0 [shape = 'u32[]', space=smem, size = 0x4, offset = 0x4, fixed_abs, tag = 'smem constant byte address 0x4 - core index']
  #allocation1 [shape = 'u32[144,128]{1,0:T(1,128)}', space=vmem, size = 0x12000, scoped, tag = 'internal scratch']
  %s0 = inlined_call_operand.vmem [shape: bf16[72,256], index: 0, kind: input, shape index: {}]
  %s1 = inlined_call_operand.vmem [shape: bf16[32,72], index: 1, kind: input, shape index: {}]
  %s2 = inlined_call_operand.vmem [shape: f32[32,1], index: 2, kind: input, shape index: {}]
  %s3 = inlined_call_operand.vmem [shape: f32[16,1], index: 3, kind: input, shape index: {}]
  %s4 = inlined_call_operand.vmem [shape: f32[16,1], index: 4, kind: input, shape index: {}]
  %s5 = inlined_call_operand.vmem [shape: bf16[16,256], index: 5, kind: output, shape index: {0}]
  %s6 = inlined_call_operand.vmem [shape: f32[16,256], index: 6, kind: output, shape index: {1}]
  %7 = xla_tuple %s5, %s6
  %s8 = sld [smem:[#allocation0]]
  $region38: #{resnet_iid_forward.25} parent=0
    _
  %s10 = ssub.s32 1, %s8
  %s11 = scalar_select 0, %s10, %s8
  // Predicated region
  $region2: #{resnet_iid_forward.25} parent=0 // pred_check
    _
  $region3: #{resnet_iid_forward.25} parent=0 // pred_check_branch
    %13 = sbr.rel (0) target = $region5
  $region4: #{resnet_iid_forward.25} parent=0 // pred_region
    _
  $region5: #{resnet_iid_forward.25} parent=0 // pred_fallthru
    _
  // Predicated region
  $region6: #{resnet_iid_forward.25} parent=0 // pred_check
    _
  $region7: #{resnet_iid_forward.25} parent=0 // pred_check_branch
    %15 = sbr.rel (0) target = $region9
  $region8: #{resnet_iid_forward.25} parent=0 // pred_region
    _
  $region9: #{resnet_iid_forward.25} parent=0 // pred_fallthru
    _
  // Predicated region
  $region10: #{resnet_iid_forward.25} parent=0 // pred_check
    _
  $region11: #{resnet_iid_forward.25} parent=0 // pred_check_branch
    %17 = sbr.rel (0) target = $region13
  $region12: #{resnet_iid_forward.25} parent=0 // pred_region
    _
  $region13: #{resnet_iid_forward.25} parent=0 // pred_fallthru
    _
  // Predicated region
  $region14: #{resnet_iid_forward.25} parent=0 // pred_check
    _
  $region15: #{resnet_iid_forward.25} parent=0 // pred_check_branch
    %19 = sbr.rel (0) target = $region17
  $region16: #{resnet_iid_forward.25} parent=0 // pred_region
    _
  $region17: #{resnet_iid_forward.25} parent=0 // pred_fallthru
    _
  // Predicated region
  $region18: #{resnet_iid_forward.25} parent=0 // pred_check
    _
  $region19: #{resnet_iid_forward.25} parent=0 // pred_check_branch
    %21 = sbr.rel (0) target = $region21
  $region20: #{resnet_iid_forward.25} parent=0 // pred_region
    _
  $region21: #{resnet_iid_forward.25} parent=0 // pred_fallthru
    _
  %v23 = vld [vmem:[%s1] sm:$0xf]
  %v24 = vld [vmem:[%s1 + $0x4] sm:$0xf]
  %v25 = vld [vmem:[%s1 + $0x8] sm:$0xf]
  %v26 = vld [vmem:[%s1 + $0xc] sm:$0xf]
  %v27 = vld [vmem:[%s0] sm:$0xff]
  %v28 = vld [vmem:[%s0 + $0x8] sm:$0xff]
  %v29 = vld [vmem:[%s0 + $0x10] sm:$0xff]
  %v30 = vld [vmem:[%s0 + $0x18] sm:$0xff]
  %v31 = vld [vmem:[%s0 + $0x20] sm:$0xff]
  %v32 = vld [vmem:[%s0 + $0x28] sm:$0xff]
  %v33 = vld [vmem:[%s0 + $0x30] sm:$0xff]
  %v34 = vld [vmem:[%s0 + $0x38] sm:$0xff]
  %v35 = vld [vmem:[%s0 + $0x40] sm:$0xff]
  %v36 = vld [vmem:[%s2] sm:$0xff]
  %v37 = vld [vmem:[%s2 + $0x8] sm:$0xff]
  %v38 = vld [vmem:[%s2 + $0x10] sm:$0xff]
  %v39 = vld [vmem:[%s2 + $0x18] sm:$0xff]
  %41 = vset.pattern.permute.xlu0 0
  %42 = vperm.xlu0 %41, %v36
  %v43 = vpop.permute.xlu0 %42
  %46 = vset.pattern.permute.xlu0 0
  %47 = vperm.xlu0 %46, %v37
  %v48 = vpop.permute.xlu0 %47
  %51 = vset.pattern.permute.xlu0 0
  %52 = vperm.xlu0 %51, %v38
  %v53 = vpop.permute.xlu0 %52
  %56 = vset.pattern.permute.xlu0 0
  %57 = vperm.xlu0 %56, %v39
  %v58 = vpop.permute.xlu0 %57
  %v64 = vunpack.c.l.b16 %v23
  %v65 = vunpack.c.l.b16 %v24
  %v66 = vunpack.c.l.b16 %v25
  %v67 = vunpack.c.l.b16 %v26
  %v68 = vpack.c.b16 %v65, %v64
  %v69 = vpack.c.b16 %v67, %v66
  %v79 = vunpack.c.l.b16 %v27
  %v80 = vunpack.c.h.b16 %v27
  %v81 = vunpack.c.l.b16 %v28
  %v82 = vunpack.c.h.b16 %v28
  %v83 = vunpack.c.l.b16 %v29
  %v84 = vunpack.c.h.b16 %v29
  %v85 = vunpack.c.l.b16 %v30
  %v86 = vunpack.c.h.b16 %v30
  %v87 = vunpack.c.l.b16 %v31
  %v88 = vunpack.c.h.b16 %v31
  %v89 = vunpack.c.l.b16 %v32
  %v90 = vunpack.c.h.b16 %v32
  %v91 = vunpack.c.l.b16 %v33
  %v92 = vunpack.c.h.b16 %v33
  %v93 = vunpack.c.l.b16 %v34
  %v94 = vunpack.c.h.b16 %v34
  %v95 = vunpack.c.l.b16 %v35
  %v96 = vunpack.c.h.b16 %v35
  %v97 = vpack.c.b16 %v81, %v79
  %v98 = vpack.c.b16 %v82, %v80
  %v99 = vpack.c.b16 %v85, %v83
  %v100 = vpack.c.b16 %v86, %v84
  %v101 = vpack.c.b16 %v89, %v87
  %v102 = vpack.c.b16 %v90, %v88
  %v103 = vpack.c.b16 %v93, %v91
  %v104 = vpack.c.b16 %v94, %v92
  %v105 = vpack.c.b16 %v95, %v95
  %v106 = vpack.c.b16 %v96, %v96
  %vm115 = vcmask 588800
  %v117 = vsel %vm115, %v68, 0
  %v120 = vsel %vm115, %v69, 0
  %vm122 = vcmask 1043456
  %v124 = vsel %vm122, %v105, 0
  %v127 = vsel %vm122, %v106, 0
  %129 = vmatprep.subr.bf16.mxu0 %v98
  %130 = vmatpush1.bf16.msra.mxu0 %v97
  %131 = vmatprep.subr.bf16.mxu0 %v100
  %132 = vmatpush1.bf16.msra.mxu0 %v99
  %133 = vmatprep.subr.bf16.mxu0 %v102
  %134 = vmatpush1.bf16.msra.mxu0 %v101
  %135 = vmatprep.subr.bf16.mxu0 %v104
  %136 = vmatpush1.bf16.msra.mxu0 %v103
  %137 = vmatprep.subr.bf16.mxu0 %v127
  %138 = vmatpush1.bf16.msra.mxu0 %v124
  %139 = vmatprep.subr.bf16.mxu0 0
  %140 = vmatpush1.bf16.msra.mxu0 0
  %141 = vmatprep.subr.bf16.mxu0 0
  %142 = vmatpush1.bf16.msra.mxu0 0
  %143 = vmatprep.subr.bf16.mxu0 0
  %144 = vmatpush1.bf16.msra.mxu0 0
  %145 = vmatprep.subr.bf16.mxu0 0
  %146 = vmatpush1.bf16.msra.mxu0 0
  %147 = vmatprep.subr.bf16.mxu0 0
  %148 = vmatpush1.bf16.msra.mxu0 0
  %149 = vmatprep.subr.bf16.mxu0 0
  %150 = vmatpush1.bf16.msra.mxu0 0
  %151 = vmatprep.subr.bf16.mxu0 0
  %152 = vmatpush1.bf16.msra.mxu0 0
  %153 = vmatprep.subr.bf16.mxu0 0
  %154 = vmatpush1.bf16.msra.mxu0 0
  %155 = vmatprep.subr.bf16.mxu0 0
  %156 = vmatpush1.bf16.msra.mxu0 0
  %157 = vmatprep.subr.bf16.mxu0 0
  %158 = vmatpush1.bf16.msra.mxu0 0
  %159 = vmatprep.subr.bf16.mxu0 0
  %160 = vmatpush1.bf16.msra.mxu0 0
  %161 = vmatprep.mubr.bf16.mxu0 0
  %162 = vmatmul.mubr.bf16.gmra.mrb[0].mxu0 %v117
  %v163 = vpop.f32.mrb[0].mxu0
  %v164 = vadd.f32 %v43, %v163
  %v165 = vpop.f32.mrb[0].mxu0
  %v166 = vadd.f32 %v43, %v165
  %v167 = vpop.f32.mrb[0].mxu0
  %v168 = vadd.f32 %v48, %v167
  %v169 = vpop.f32.mrb[0].mxu0
  %v170 = vadd.f32 %v48, %v169
  %171 = vmatprep.mubr.bf16.mxu0 0
  %172 = vmatmul.mubr.bf16.gmra.mrb[0].mxu0 %v120
  %v173 = vpop.f32.mrb[0].mxu0
  %v174 = vadd.f32 %v53, %v173
  %v175 = vpop.f32.mrb[0].mxu0
  %v176 = vadd.f32 %v53, %v175
  %v177 = vpop.f32.mrb[0].mxu0
  %v178 = vadd.f32 %v58, %v177
  %v179 = vpop.f32.mrb[0].mxu0
  %v180 = vadd.f32 %v58, %v179
  %181 = vdwg.mxu0
  %182 = vst [vmem:[%s6] sm:$0xff] %v174
  %183 = vst [vmem:[%s6 + $0x8] sm:$0xff] %v176
  %184 = vst [vmem:[%s6 + $0x10] sm:$0xff] %v178
  %185 = vst [vmem:[%s6 + $0x18] sm:$0xff] %v180
  %v186 = vadd.f32 %v164, %v166
  %187 = vadd.xlane.f32.xlu0 %v186
  %v188 = vpop.xlane.xlu0 %187
  %v189 = vadd.f32 %v168, %v170
  %190 = vadd.xlane.f32.xlu0 %v189
  %v191 = vpop.xlane.xlu0 %190
  %v192 = vmul.f32 %v188, 0.00390625
  %v193 = vmul.f32 %v191, 0.00390625
  %v194 = vsub.f32 %v164, %v192
  %v195 = vsub.f32 %v166, %v192
  %v196 = vsub.f32 %v168, %v193
  %v197 = vsub.f32 %v170, %v193
  %v198 = vmul.f32 %v194, %v194
  %v199 = vmul.f32 %v195, %v195
  %v200 = vmul.f32 %v196, %v196
  %v201 = vmul.f32 %v197, %v197
  %v202 = vadd.f32 %v198, %v199
  %203 = vadd.xlane.f32.xlu0 %v202
  %v204 = vpop.xlane.xlu0 %203
  %v205 = vadd.f32 %v200, %v201
  %206 = vadd.xlane.f32.xlu0 %v205
  %v207 = vpop.xlane.xlu0 %206
  %v208 = vmul.f32 %v204, 0.00390625
  %v209 = vmul.f32 %v207, 0.00390625
  %v210 = vld [vmem:[%s3] sm:$0xff]
  %v211 = vld [vmem:[%s3 + $0x8] sm:$0xff]
  %v212 = vadd.f32 %v208, 1e-05
  %v213 = vadd.f32 %v209, 1e-05
  %v214 = vrsqrt.pop %v212
  %v215 = vrsqrt.pop %v213
  %v216 = vmul.f32 %v210, %v214
  %v217 = vmul.f32 %v211, %v215
  %219 = vset.pattern.permute.xlu0 0
  %220 = vperm.xlu0 %219, %v216
  %v221 = vpop.permute.xlu0 %220
  %224 = vset.pattern.permute.xlu0 0
  %225 = vperm.xlu0 %224, %v217
  %v226 = vpop.permute.xlu0 %225
  %v228 = vmul.f32 %v194, %v221
  %v229 = vmul.f32 %v195, %v221
  %v230 = vmul.f32 %v196, %v226
  %v231 = vmul.f32 %v197, %v226
  %v232 = vld [vmem:[%s4] sm:$0xff]
  %v233 = vld [vmem:[%s4 + $0x8] sm:$0xff]
  %235 = vset.pattern.permute.xlu0 0
  %236 = vperm.xlu0 %235, %v232
  %v237 = vpop.permute.xlu0 %236
  %240 = vset.pattern.permute.xlu0 0
  %241 = vperm.xlu0 %240, %v233
  %v242 = vpop.permute.xlu0 %241
  %v244 = vadd.f32 %v228, %v237
  %v245 = vadd.f32 %v229, %v237
  %v246 = vadd.f32 %v230, %v242
  %v247 = vadd.f32 %v231, %v242
  %v248 = vmax.f32 %v244, 0.0
  %v249 = vmax.f32 %v245, 0.0
  %v250 = vmax.f32 %v246, 0.0
  %v251 = vmax.f32 %v247, 0.0
  %v252 = vpack.c.bf16 %v250, %v248
  %v253 = vpack.c.bf16 %v251, %v249
  %v256 = vunpack.c.l.b16 %v252
  %v257 = vunpack.c.l.b16 %v253
  %v258 = vunpack.c.h.b16 %v252
  %v259 = vunpack.c.h.b16 %v253
  %v260 = vpack.c.b16 %v257, %v256
  %v261 = vpack.c.b16 %v259, %v258
  %264 = vst [vmem:[%s5] sm:$0xff] %v260
  %265 = vst [vmem:[%s5 + $0x8] sm:$0xff] %v261
  // Predicated region
  $region22: #{resnet_iid_forward.25} parent=0 // pred_check
    _
  $region23: #{resnet_iid_forward.25} parent=0 // pred_check_branch
    %267 = sbr.rel (0) target = $region25
  $region24: #{resnet_iid_forward.25} parent=0 // pred_region
    _
  $region25: #{resnet_iid_forward.25} parent=0 // pred_fallthru
    _
  // Predicated region
  $region26: #{resnet_iid_forward.25} parent=0 // pred_check
    _
  $region27: #{resnet_iid_forward.25} parent=0 // pred_check_branch
    %269 = sbr.rel (0) target = $region29
  $region28: #{resnet_iid_forward.25} parent=0 // pred_region
    _
  $region29: #{resnet_iid_forward.25} parent=0 // pred_fallthru
    _
  // Predicated region
  $region30: #{resnet_iid_forward.25} parent=0 // pred_check
    _
  $region31: #{resnet_iid_forward.25} parent=0 // pred_check_branch
    %271 = sbr.rel (0) target = $region33
  $region32: #{resnet_iid_forward.25} parent=0 // pred_region
    _
  $region33: #{resnet_iid_forward.25} parent=0 // pred_fallthru
    _
  // Predicated region
  $region34: #{resnet_iid_forward.25} parent=0 // pred_check
    _
  $region35: #{resnet_iid_forward.25} parent=0 // pred_check_branch
    %273 = sbr.rel (0) target = $region37
  $region36: #{resnet_iid_forward.25} parent=0 // pred_region
    _
  $region37: #{resnet_iid_forward.25} parent=0 // pred_fallthru
    _

// kernel: resnet_iid_forward.26
$region0: #{resnet_iid_forward.26}
  #allocation0 [shape = 'u32[]', space=smem, size = 0x4, offset = 0x4, fixed_abs, tag = 'smem constant byte address 0x4 - core index']
  #allocation1 [shape = 'u32[144,128]{1,0:T(1,128)}', space=vmem, size = 0x12000, scoped, tag = 'internal scratch']
  %s0 = inlined_call_operand.vmem [shape: bf16[144,256], index: 0, kind: input, shape index: {}]
  %s1 = inlined_call_operand.vmem [shape: bf16[16,144], index: 1, kind: input, shape index: {}]
  %s2 = inlined_call_operand.vmem [shape: f32[16,1], index: 2, kind: input, shape index: {}]
  %s3 = inlined_call_operand.vmem [shape: f32[16,1], index: 3, kind: input, shape index: {}]
  %s4 = inlined_call_operand.vmem [shape: f32[16,1], index: 4, kind: input, shape index: {}]
  %s5 = inlined_call_operand.vmem [shape: f32[16,256], index: 5, kind: input, shape index: {}]
  %s6 = inlined_call_operand.vmem [shape: bf16[16,256], index: 6, kind: output, shape index: {}]
  %s7 = sld [smem:[#allocation0]]
  $region34: #{resnet_iid_forward.26} parent=0
    _
  %s9 = ssub.s32 1, %s7
  %s10 = scalar_select 0, %s9, %s7
  // Predicated region
  $region2: #{resnet_iid_forward.26} parent=0 // pred_check
    _
  $region3: #{resnet_iid_forward.26} parent=0 // pred_check_branch
    %12 = sbr.rel (0) target = $region5
  $region4: #{resnet_iid_forward.26} parent=0 // pred_region
    _
  $region5: #{resnet_iid_forward.26} parent=0 // pred_fallthru
    _
  // Predicated region
  $region6: #{resnet_iid_forward.26} parent=0 // pred_check
    _
  $region7: #{resnet_iid_forward.26} parent=0 // pred_check_branch
    %14 = sbr.rel (0) target = $region9
  $region8: #{resnet_iid_forward.26} parent=0 // pred_region
    _
  $region9: #{resnet_iid_forward.26} parent=0 // pred_fallthru
    _
  // Predicated region
  $region10: #{resnet_iid_forward.26} parent=0 // pred_check
    _
  $region11: #{resnet_iid_forward.26} parent=0 // pred_check_branch
    %16 = sbr.rel (0) target = $region13
  $region12: #{resnet_iid_forward.26} parent=0 // pred_region
    _
  $region13: #{resnet_iid_forward.26} parent=0 // pred_fallthru
    _
  // Predicated region
  $region14: #{resnet_iid_forward.26} parent=0 // pred_check
    _
  $region15: #{resnet_iid_forward.26} parent=0 // pred_check_branch
    %18 = sbr.rel (0) target = $region17
  $region16: #{resnet_iid_forward.26} parent=0 // pred_region
    _
  $region17: #{resnet_iid_forward.26} parent=0 // pred_fallthru
    _
  // Predicated region
  $region18: #{resnet_iid_forward.26} parent=0 // pred_check
    _
  $region19: #{resnet_iid_forward.26} parent=0 // pred_check_branch
    %20 = sbr.rel (0) target = $region21
  $region20: #{resnet_iid_forward.26} parent=0 // pred_region
    _
  $region21: #{resnet_iid_forward.26} parent=0 // pred_fallthru
    _
  // Predicated region
  $region22: #{resnet_iid_forward.26} parent=0 // pred_check
    _
  $region23: #{resnet_iid_forward.26} parent=0 // pred_check_branch
    %22 = sbr.rel (0) target = $region25
  $region24: #{resnet_iid_forward.26} parent=0 // pred_region
    _
  $region25: #{resnet_iid_forward.26} parent=0 // pred_fallthru
    _
  %v24 = vld [vmem:[%s1] sm:$0xff]
  %v25 = vld [vmem:[%s1 + $0x8] sm:$0xff]
  %v26 = vld [vmem:[%s0] sm:$0xff]
  %v27 = vld [vmem:[%s0 + $0x8] sm:$0xff]
  %v28 = vld [vmem:[%s0 + $0x10] sm:$0xff]
  %v29 = vld [vmem:[%s0 + $0x18] sm:$0xff]
  %v30 = vld [vmem:[%s0 + $0x20] sm:$0xff]
  %v31 = vld [vmem:[%s0 + $0x28] sm:$0xff]
  %v32 = vld [vmem:[%s0 + $0x30] sm:$0xff]
  %v33 = vld [vmem:[%s0 + $0x38] sm:$0xff]
  %v34 = vld [vmem:[%s0 + $0x40] sm:$0xff]
  %v35 = vld [vmem:[%s0 + $0x48] sm:$0xff]
  %v36 = vld [vmem:[%s0 + $0x50] sm:$0xff]
  %v37 = vld [vmem:[%s0 + $0x58] sm:$0xff]
  %v38 = vld [vmem:[%s0 + $0x60] sm:$0xff]
  %v39 = vld [vmem:[%s0 + $0x68] sm:$0xff]
  %v40 = vld [vmem:[%s0 + $0x70] sm:$0xff]
  %v41 = vld [vmem:[%s0 + $0x78] sm:$0xff]
  %v42 = vld [vmem:[%s0 + $0x80] sm:$0xff]
  %v43 = vld [vmem:[%s0 + $0x88] sm:$0xff]
  %v44 = vld [vmem:[%s2] sm:$0xff]
  %v45 = vld [vmem:[%s2 + $0x8] sm:$0xff]
  %47 = vset.pattern.permute.xlu0 0
  %48 = vperm.xlu0 %47, %v44
  %v49 = vpop.permute.xlu0 %48
  %52 = vset.pattern.permute.xlu0 0
  %53 = vperm.xlu0 %52, %v45
  %v54 = vpop.permute.xlu0 %53
  %v58 = vunpack.c.l.b16 %v24
  %v59 = vunpack.c.h.b16 %v24
  %v60 = vunpack.c.l.b16 %v25
  %v61 = vunpack.c.h.b16 %v25
  %v62 = vpack.c.b16 %v60, %v58
  %v63 = vpack.c.b16 %v61, %v59
  %v83 = vunpack.c.l.b16 %v26
  %v84 = vunpack.c.h.b16 %v26
  %v85 = vunpack.c.l.b16 %v27
  %v86 = vunpack.c.h.b16 %v27
  %v87 = vunpack.c.l.b16 %v28
  %v88 = vunpack.c.h.b16 %v28
  %v89 = vunpack.c.l.b16 %v29
  %v90 = vunpack.c.h.b16 %v29
  %v91 = vunpack.c.l.b16 %v30
  %v92 = vunpack.c.h.b16 %v30
  %v93 = vunpack.c.l.b16 %v31
  %v94 = vunpack.c.h.b16 %v31
  %v95 = vunpack.c.l.b16 %v32
  %v96 = vunpack.c.h.b16 %v32
  %v97 = vunpack.c.l.b16 %v33
  %v98 = vunpack.c.h.b16 %v33
  %v99 = vunpack.c.l.b16 %v34
  %v100 = vunpack.c.h.b16 %v34
  %v101 = vunpack.c.l.b16 %v35
  %v102 = vunpack.c.h.b16 %v35
  %v103 = vunpack.c.l.b16 %v36
  %v104 = vunpack.c.h.b16 %v36
  %v105 = vunpack.c.l.b16 %v37
  %v106 = vunpack.c.h.b16 %v37
  %v107 = vunpack.c.l.b16 %v38
  %v108 = vunpack.c.h.b16 %v38
  %v109 = vunpack.c.l.b16 %v39
  %v110 = vunpack.c.h.b16 %v39
  %v111 = vunpack.c.l.b16 %v40
  %v112 = vunpack.c.h.b16 %v40
  %v113 = vunpack.c.l.b16 %v41
  %v114 = vunpack.c.h.b16 %v41
  %v115 = vunpack.c.l.b16 %v42
  %v116 = vunpack.c.h.b16 %v42
  %v117 = vunpack.c.l.b16 %v43
  %v118 = vunpack.c.h.b16 %v43
  %v119 = vpack.c.b16 %v85, %v83
  %v120 = vpack.c.b16 %v86, %v84
  %v121 = vpack.c.b16 %v89, %v87
  %v122 = vpack.c.b16 %v90, %v88
  %v123 = vpack.c.b16 %v93, %v91
  %v124 = vpack.c.b16 %v94, %v92
  %v125 = vpack.c.b16 %v97, %v95
  %v126 = vpack.c.b16 %v98, %v96
  %v127 = vpack.c.b16 %v101, %v99
  %v128 = vpack.c.b16 %v102, %v100
  %v129 = vpack.c.b16 %v105, %v103
  %v130 = vpack.c.b16 %v106, %v104
  %v131 = vpack.c.b16 %v109, %v107
  %v132 = vpack.c.b16 %v110, %v108
  %v133 = vpack.c.b16 %v113, %v111
  %v134 = vpack.c.b16 %v114, %v112
  %v135 = vpack.c.b16 %v117, %v115
  %v136 = vpack.c.b16 %v118, %v116
  %vm155 = vcmask 130048
  %v157 = vsel %vm155, %v63, 0
  %159 = vmatprep.subr.bf16.mxu0 %v120
  %160 = vmatpush1.bf16.msra.mxu0 %v119
  %161 = vmatprep.subr.bf16.mxu0 %v122
  %162 = vmatpush1.bf16.msra.mxu0 %v121
  %163 = vmatprep.subr.bf16.mxu0 %v124
  %164 = vmatpush1.bf16.msra.mxu0 %v123
  %165 = vmatprep.subr.bf16.mxu0 %v126
  %166 = vmatpush1.bf16.msra.mxu0 %v125
  %167 = vmatprep.subr.bf16.mxu0 %v128
  %168 = vmatpush1.bf16.msra.mxu0 %v127
  %169 = vmatprep.subr.bf16.mxu0 %v130
  %170 = vmatpush1.bf16.msra.mxu0 %v129
  %171 = vmatprep.subr.bf16.mxu0 %v132
  %172 = vmatpush1.bf16.msra.mxu0 %v131
  %173 = vmatprep.subr.bf16.mxu0 %v134
  %174 = vmatpush1.bf16.msra.mxu0 %v133
  %175 = vmatprep.subr.bf16.mxu0 %v136
  %176 = vmatpush1.bf16.msra.mxu0 %v135
  %177 = vmatprep.subr.bf16.mxu0 0
  %178 = vmatpush1.bf16.msra.mxu0 0
  %179 = vmatprep.subr.bf16.mxu0 0
  %180 = vmatpush1.bf16.msra.mxu0 0
  %181 = vmatprep.subr.bf16.mxu0 0
  %182 = vmatpush1.bf16.msra.mxu0 0
  %183 = vmatprep.subr.bf16.mxu0 0
  %184 = vmatpush1.bf16.msra.mxu0 0
  %185 = vmatprep.subr.bf16.mxu0 0
  %186 = vmatpush1.bf16.msra.mxu0 0
  %187 = vmatprep.subr.bf16.mxu0 0
  %188 = vmatpush1.bf16.msra.mxu0 0
  %189 = vmatprep.subr.bf16.mxu0 0
  %190 = vmatpush1.bf16.msra.mxu0 0
  %191 = vmatprep.mubr.bf16.mxu0 %v157
  %192 = vmatmul.mubr.bf16.gmra.mrb[0].mxu0 %v62
  %v193 = vpop.f32.mrb[0].mxu0
  %v194 = vadd.f32 %v49, %v193
  %v195 = vpop.f32.mrb[0].mxu0
  %v196 = vadd.f32 %v49, %v195
  %v197 = vpop.f32.mrb[0].mxu0
  %v198 = vadd.f32 %v54, %v197
  %v199 = vpop.f32.mrb[0].mxu0
  %v200 = vadd.f32 %v54, %v199
  %201 = vdwg.mxu0
  %v202 = vadd.f32 %v194, %v196
  %203 = vadd.xlane.f32.xlu0 %v202
  %v204 = vpop.xlane.xlu0 %203
  %v205 = vadd.f32 %v198, %v200
  %206 = vadd.xlane.f32.xlu0 %v205
  %v207 = vpop.xlane.xlu0 %206
  %v208 = vmul.f32 %v204, 0.00390625
  %v209 = vmul.f32 %v207, 0.00390625
  %v210 = vsub.f32 %v194, %v208
  %v211 = vsub.f32 %v196, %v208
  %v212 = vsub.f32 %v198, %v209
  %v213 = vsub.f32 %v200, %v209
  %v214 = vmul.f32 %v210, %v210
  %v215 = vmul.f32 %v211, %v211
  %v216 = vmul.f32 %v212, %v212
  %v217 = vmul.f32 %v213, %v213
  %v218 = vadd.f32 %v214, %v215
  %219 = vadd.xlane.f32.xlu0 %v218
  %v220 = vpop.xlane.xlu0 %219
  %v221 = vadd.f32 %v216, %v217
  %222 = vadd.xlane.f32.xlu0 %v221
  %v223 = vpop.xlane.xlu0 %222
  %v224 = vmul.f32 %v220, 0.00390625
  %v225 = vmul.f32 %v223, 0.00390625
  %v226 = vld [vmem:[%s3] sm:$0xff]
  %v227 = vld [vmem:[%s3 + $0x8] sm:$0xff]
  %v228 = vadd.f32 %v224, 1e-05
  %v229 = vadd.f32 %v225, 1e-05
  %v230 = vrsqrt.pop %v228
  %v231 = vrsqrt.pop %v229
  %v232 = vmul.f32 %v226, %v230
  %v233 = vmul.f32 %v227, %v231
  %235 = vset.pattern.permute.xlu0 0
  %236 = vperm.xlu0 %235, %v232
  %v237 = vpop.permute.xlu0 %236
  %240 = vset.pattern.permute.xlu0 0
  %241 = vperm.xlu0 %240, %v233
  %v242 = vpop.permute.xlu0 %241
  %v244 = vmul.f32 %v210, %v237
  %v245 = vmul.f32 %v211, %v237
  %v246 = vmul.f32 %v212, %v242
  %v247 = vmul.f32 %v213, %v242
  %v248 = vld [vmem:[%s4] sm:$0xff]
  %v249 = vld [vmem:[%s4 + $0x8] sm:$0xff]
  %251 = vset.pattern.permute.xlu0 0
  %252 = vperm.xlu0 %251, %v248
  %v253 = vpop.permute.xlu0 %252
  %256 = vset.pattern.permute.xlu0 0
  %257 = vperm.xlu0 %256, %v249
  %v258 = vpop.permute.xlu0 %257
  %v260 = vadd.f32 %v244, %v253
  %v261 = vadd.f32 %v245, %v253
  %v262 = vadd.f32 %v246, %v258
  %v263 = vadd.f32 %v247, %v258
  %v264 = vld [vmem:[%s5] sm:$0xff]
  %v265 = vld [vmem:[%s5 + $0x8] sm:$0xff]
  %v266 = vld [vmem:[%s5 + $0x10] sm:$0xff]
  %v267 = vld [vmem:[%s5 + $0x18] sm:$0xff]
  %v268 = vadd.f32 %v260, %v264
  %v269 = vadd.f32 %v261, %v265
  %v270 = vadd.f32 %v262, %v266
  %v271 = vadd.f32 %v263, %v267
  %v272 = vmax.f32 %v268, 0.0
  %v273 = vmax.f32 %v269, 0.0
  %v274 = vmax.f32 %v270, 0.0
  %v275 = vmax.f32 %v271, 0.0
  %v276 = vpack.c.bf16 %v274, %v272
  %v277 = vpack.c.bf16 %v275, %v273
  %v280 = vunpack.c.l.b16 %v276
  %v281 = vunpack.c.l.b16 %v277
  %v282 = vunpack.c.h.b16 %v276
  %v283 = vunpack.c.h.b16 %v277
  %v284 = vpack.c.b16 %v281, %v280
  %v285 = vpack.c.b16 %v283, %v282
  %288 = vst [vmem:[%s6] sm:$0xff] %v284
  %289 = vst [vmem:[%s6 + $0x8] sm:$0xff] %v285
  // Predicated region
  $region26: #{resnet_iid_forward.26} parent=0 // pred_check
    _
  $region27: #{resnet_iid_forward.26} parent=0 // pred_check_branch
    %291 = sbr.rel (0) target = $region29
  $region28: #{resnet_iid_forward.26} parent=0 // pred_region
    _
  $region29: #{resnet_iid_forward.26} parent=0 // pred_fallthru
    _
  // Predicated region
  $region30: #{resnet_iid_forward.26} parent=0 // pred_check
    _
  $region31: #{resnet_iid_forward.26} parent=0 // pred_check_branch
    %293 = sbr.rel (0) target = $region33
  $region32: #{resnet_iid_forward.26} parent=0 // pred_region
    _
  $region33: #{resnet_iid_forward.26} parent=0 // pred_fallthru
    _

// kernel: resnet_iid_forward.27
$region0: #{resnet_iid_forward.27}
  #allocation0 [shape = 'u32[]', space=smem, size = 0x4, offset = 0x4, fixed_abs, tag = 'smem constant byte address 0x4 - core index']
  #allocation1 [shape = 'u32[144,128]{1,0:T(1,128)}', space=vmem, size = 0x12000, scoped, tag = 'internal scratch']
  %s0 = inlined_call_operand.vmem [shape: bf16[144,256], index: 0, kind: input, shape index: {}]
  %s1 = inlined_call_operand.vmem [shape: bf16[16,144], index: 1, kind: input, shape index: {}]
  %s2 = inlined_call_operand.vmem [shape: f32[16,1], index: 2, kind: input, shape index: {}]
  %s3 = inlined_call_operand.vmem [shape: f32[16,1], index: 3, kind: input, shape index: {}]
  %s4 = inlined_call_operand.vmem [shape: f32[16,1], index: 4, kind: input, shape index: {}]
  %s5 = inlined_call_operand.vmem [shape: bf16[16,256], index: 5, kind: output, shape index: {}]
  %s6 = sld [smem:[#allocation0]]
  $region30: #{resnet_iid_forward.27} parent=0
    _
  %s8 = ssub.s32 1, %s6
  %s9 = scalar_select 0, %s8, %s6
  // Predicated region
  $region2: #{resnet_iid_forward.27} parent=0 // pred_check
    _
  $region3: #{resnet_iid_forward.27} parent=0 // pred_check_branch
    %11 = sbr.rel (0) target = $region5
  $region4: #{resnet_iid_forward.27} parent=0 // pred_region
    _
  $region5: #{resnet_iid_forward.27} parent=0 // pred_fallthru
    _
  // Predicated region
  $region6: #{resnet_iid_forward.27} parent=0 // pred_check
    _
  $region7: #{resnet_iid_forward.27} parent=0 // pred_check_branch
    %13 = sbr.rel (0) target = $region9
  $region8: #{resnet_iid_forward.27} parent=0 // pred_region
    _
  $region9: #{resnet_iid_forward.27} parent=0 // pred_fallthru
    _
  // Predicated region
  $region10: #{resnet_iid_forward.27} parent=0 // pred_check
    _
  $region11: #{resnet_iid_forward.27} parent=0 // pred_check_branch
    %15 = sbr.rel (0) target = $region13
  $region12: #{resnet_iid_forward.27} parent=0 // pred_region
    _
  $region13: #{resnet_iid_forward.27} parent=0 // pred_fallthru
    _
  // Predicated region
  $region14: #{resnet_iid_forward.27} parent=0 // pred_check
    _
  $region15: #{resnet_iid_forward.27} parent=0 // pred_check_branch
    %17 = sbr.rel (0) target = $region17
  $region16: #{resnet_iid_forward.27} parent=0 // pred_region
    _
  $region17: #{resnet_iid_forward.27} parent=0 // pred_fallthru
    _
  // Predicated region
  $region18: #{resnet_iid_forward.27} parent=0 // pred_check
    _
  $region19: #{resnet_iid_forward.27} parent=0 // pred_check_branch
    %19 = sbr.rel (0) target = $region21
  $region20: #{resnet_iid_forward.27} parent=0 // pred_region
    _
  $region21: #{resnet_iid_forward.27} parent=0 // pred_fallthru
    _
  %v21 = vld [vmem:[%s1] sm:$0xff]
  %v22 = vld [vmem:[%s1 + $0x8] sm:$0xff]
  %v23 = vld [vmem:[%s0] sm:$0xff]
  %v24 = vld [vmem:[%s0 + $0x8] sm:$0xff]
  %v25 = vld [vmem:[%s0 + $0x10] sm:$0xff]
  %v26 = vld [vmem:[%s0 + $0x18] sm:$0xff]
  %v27 = vld [vmem:[%s0 + $0x20] sm:$0xff]
  %v28 = vld [vmem:[%s0 + $0x28] sm:$0xff]
  %v29 = vld [vmem:[%s0 + $0x30] sm:$0xff]
  %v30 = vld [vmem:[%s0 + $0x38] sm:$0xff]
  %v31 = vld [vmem:[%s0 + $0x40] sm:$0xff]
  %v32 = vld [vmem:[%s0 + $0x48] sm:$0xff]
  %v33 = vld [vmem:[%s0 + $0x50] sm:$0xff]
  %v34 = vld [vmem:[%s0 + $0x58] sm:$0xff]
  %v35 = vld [vmem:[%s0 + $0x60] sm:$0xff]
  %v36 = vld [vmem:[%s0 + $0x68] sm:$0xff]
  %v37 = vld [vmem:[%s0 + $0x70] sm:$0xff]
  %v38 = vld [vmem:[%s0 + $0x78] sm:$0xff]
  %v39 = vld [vmem:[%s0 + $0x80] sm:$0xff]
  %v40 = vld [vmem:[%s0 + $0x88] sm:$0xff]
  %v41 = vld [vmem:[%s2] sm:$0xff]
  %v42 = vld [vmem:[%s2 + $0x8] sm:$0xff]
  %44 = vset.pattern.permute.xlu0 0
  %45 = vperm.xlu0 %44, %v41
  %v46 = vpop.permute.xlu0 %45
  %49 = vset.pattern.permute.xlu0 0
  %50 = vperm.xlu0 %49, %v42
  %v51 = vpop.permute.xlu0 %50
  %v55 = vunpack.c.l.b16 %v21
  %v56 = vunpack.c.h.b16 %v21
  %v57 = vunpack.c.l.b16 %v22
  %v58 = vunpack.c.h.b16 %v22
  %v59 = vpack.c.b16 %v57, %v55
  %v60 = vpack.c.b16 %v58, %v56
  %v80 = vunpack.c.l.b16 %v23
  %v81 = vunpack.c.h.b16 %v23
  %v82 = vunpack.c.l.b16 %v24
  %v83 = vunpack.c.h.b16 %v24
  %v84 = vunpack.c.l.b16 %v25
  %v85 = vunpack.c.h.b16 %v25
  %v86 = vunpack.c.l.b16 %v26
  %v87 = vunpack.c.h.b16 %v26
  %v88 = vunpack.c.l.b16 %v27
  %v89 = vunpack.c.h.b16 %v27
  %v90 = vunpack.c.l.b16 %v28
  %v91 = vunpack.c.h.b16 %v28
  %v92 = vunpack.c.l.b16 %v29
  %v93 = vunpack.c.h.b16 %v29
  %v94 = vunpack.c.l.b16 %v30
  %v95 = vunpack.c.h.b16 %v30
  %v96 = vunpack.c.l.b16 %v31
  %v97 = vunpack.c.h.b16 %v31
  %v98 = vunpack.c.l.b16 %v32
  %v99 = vunpack.c.h.b16 %v32
  %v100 = vunpack.c.l.b16 %v33
  %v101 = vunpack.c.h.b16 %v33
  %v102 = vunpack.c.l.b16 %v34
  %v103 = vunpack.c.h.b16 %v34
  %v104 = vunpack.c.l.b16 %v35
  %v105 = vunpack.c.h.b16 %v35
  %v106 = vunpack.c.l.b16 %v36
  %v107 = vunpack.c.h.b16 %v36
  %v108 = vunpack.c.l.b16 %v37
  %v109 = vunpack.c.h.b16 %v37
  %v110 = vunpack.c.l.b16 %v38
  %v111 = vunpack.c.h.b16 %v38
  %v112 = vunpack.c.l.b16 %v39
  %v113 = vunpack.c.h.b16 %v39
  %v114 = vunpack.c.l.b16 %v40
  %v115 = vunpack.c.h.b16 %v40
  %v116 = vpack.c.b16 %v82, %v80
  %v117 = vpack.c.b16 %v83, %v81
  %v118 = vpack.c.b16 %v86, %v84
  %v119 = vpack.c.b16 %v87, %v85
  %v120 = vpack.c.b16 %v90, %v88
  %v121 = vpack.c.b16 %v91, %v89
  %v122 = vpack.c.b16 %v94, %v92
  %v123 = vpack.c.b16 %v95, %v93
  %v124 = vpack.c.b16 %v98, %v96
  %v125 = vpack.c.b16 %v99, %v97
  %v126 = vpack.c.b16 %v102, %v100
  %v127 = vpack.c.b16 %v103, %v101
  %v128 = vpack.c.b16 %v106, %v104
  %v129 = vpack.c.b16 %v107, %v105
  %v130 = vpack.c.b16 %v110, %v108
  %v131 = vpack.c.b16 %v111, %v109
  %v132 = vpack.c.b16 %v114, %v112
  %v133 = vpack.c.b16 %v115, %v113
  %vm152 = vcmask 130048
  %v154 = vsel %vm152, %v60, 0
  %156 = vmatprep.subr.bf16.mxu0 %v117
  %157 = vmatpush1.bf16.msra.mxu0 %v116
  %158 = vmatprep.subr.bf16.mxu0 %v119
  %159 = vmatpush1.bf16.msra.mxu0 %v118
  %160 = vmatprep.subr.bf16.mxu0 %v121
  %161 = vmatpush1.bf16.msra.mxu0 %v120
  %162 = vmatprep.subr.bf16.mxu0 %v123
  %163 = vmatpush1.bf16.msra.mxu0 %v122
  %164 = vmatprep.subr.bf16.mxu0 %v125
  %165 = vmatpush1.bf16.msra.mxu0 %v124
  %166 = vmatprep.subr.bf16.mxu0 %v127
  %167 = vmatpush1.bf16.msra.mxu0 %v126
  %168 = vmatprep.subr.bf16.mxu0 %v129
  %169 = vmatpush1.bf16.msra.mxu0 %v128
  %170 = vmatprep.subr.bf16.mxu0 %v131
  %171 = vmatpush1.bf16.msra.mxu0 %v130
  %172 = vmatprep.subr.bf16.mxu0 %v133
  %173 = vmatpush1.bf16.msra.mxu0 %v132
  %174 = vmatprep.subr.bf16.mxu0 0
  %175 = vmatpush1.bf16.msra.mxu0 0
  %176 = vmatprep.subr.bf16.mxu0 0
  %177 = vmatpush1.bf16.msra.mxu0 0
  %178 = vmatprep.subr.bf16.mxu0 0
  %179 = vmatpush1.bf16.msra.mxu0 0
  %180 = vmatprep.subr.bf16.mxu0 0
  %181 = vmatpush1.bf16.msra.mxu0 0
  %182 = vmatprep.subr.bf16.mxu0 0
  %183 = vmatpush1.bf16.msra.mxu0 0
  %184 = vmatprep.subr.bf16.mxu0 0
  %185 = vmatpush1.bf16.msra.mxu0 0
  %186 = vmatprep.subr.bf16.mxu0 0
  %187 = vmatpush1.bf16.msra.mxu0 0
  %188 = vmatprep.mubr.bf16.mxu0 %v154
  %189 = vmatmul.mubr.bf16.gmra.mrb[0].mxu0 %v59
  %v190 = vpop.f32.mrb[0].mxu0
  %v191 = vadd.f32 %v46, %v190
  %v192 = vpop.f32.mrb[0].mxu0
  %v193 = vadd.f32 %v46, %v192
  %v194 = vpop.f32.mrb[0].mxu0
  %v195 = vadd.f32 %v51, %v194
  %v196 = vpop.f32.mrb[0].mxu0
  %v197 = vadd.f32 %v51, %v196
  %198 = vdwg.mxu0
  %v199 = vadd.f32 %v191, %v193
  %200 = vadd.xlane.f32.xlu0 %v199
  %v201 = vpop.xlane.xlu0 %200
  %v202 = vadd.f32 %v195, %v197
  %203 = vadd.xlane.f32.xlu0 %v202
  %v204 = vpop.xlane.xlu0 %203
  %v205 = vmul.f32 %v201, 0.00390625
  %v206 = vmul.f32 %v204, 0.00390625
  %v207 = vsub.f32 %v191, %v205
  %v208 = vsub.f32 %v193, %v205
  %v209 = vsub.f32 %v195, %v206
  %v210 = vsub.f32 %v197, %v206
  %v211 = vmul.f32 %v207, %v207
  %v212 = vmul.f32 %v208, %v208
  %v213 = vmul.f32 %v209, %v209
  %v214 = vmul.f32 %v210, %v210
  %v215 = vadd.f32 %v211, %v212
  %216 = vadd.xlane.f32.xlu0 %v215
  %v217 = vpop.xlane.xlu0 %216
  %v218 = vadd.f32 %v213, %v214
  %219 = vadd.xlane.f32.xlu0 %v218
  %v220 = vpop.xlane.xlu0 %219
  %v221 = vmul.f32 %v217, 0.00390625
  %v222 = vmul.f32 %v220, 0.00390625
  %v223 = vld [vmem:[%s3] sm:$0xff]
  %v224 = vld [vmem:[%s3 + $0x8] sm:$0xff]
  %v225 = vadd.f32 %v221, 1e-05
  %v226 = vadd.f32 %v222, 1e-05
  %v227 = vrsqrt.pop %v225
  %v228 = vrsqrt.pop %v226
  %v229 = vmul.f32 %v223, %v227
  %v230 = vmul.f32 %v224, %v228
  %232 = vset.pattern.permute.xlu0 0
  %233 = vperm.xlu0 %232, %v229
  %v234 = vpop.permute.xlu0 %233
  %237 = vset.pattern.permute.xlu0 0
  %238 = vperm.xlu0 %237, %v230
  %v239 = vpop.permute.xlu0 %238
  %v241 = vmul.f32 %v207, %v234
  %v242 = vmul.f32 %v208, %v234
  %v243 = vmul.f32 %v209, %v239
  %v244 = vmul.f32 %v210, %v239
  %v245 = vld [vmem:[%s4] sm:$0xff]
  %v246 = vld [vmem:[%s4 + $0x8] sm:$0xff]
  %248 = vset.pattern.permute.xlu0 0
  %249 = vperm.xlu0 %248, %v245
  %v250 = vpop.permute.xlu0 %249
  %253 = vset.pattern.permute.xlu0 0
  %254 = vperm.xlu0 %253, %v246
  %v255 = vpop.permute.xlu0 %254
  %v257 = vadd.f32 %v241, %v250
  %v258 = vadd.f32 %v242, %v250
  %v259 = vadd.f32 %v243, %v255
  %v260 = vadd.f32 %v244, %v255
  %v261 = vmax.f32 %v257, 0.0
  %v262 = vmax.f32 %v258, 0.0
  %v263 = vmax.f32 %v259, 0.0
  %v264 = vmax.f32 %v260, 0.0
  %v265 = vpack.c.bf16 %v263, %v261
  %v266 = vpack.c.bf16 %v264, %v262
  %v269 = vunpack.c.l.b16 %v265
  %v270 = vunpack.c.l.b16 %v266
  %v271 = vunpack.c.h.b16 %v265
  %v272 = vunpack.c.h.b16 %v266
  %v273 = vpack.c.b16 %v270, %v269
  %v274 = vpack.c.b16 %v272, %v271
  %277 = vst [vmem:[%s5] sm:$0xff] %v273
  %278 = vst [vmem:[%s5 + $0x8] sm:$0xff] %v274
  // Predicated region
  $region22: #{resnet_iid_forward.27} parent=0 // pred_check
    _
  $region23: #{resnet_iid_forward.27} parent=0 // pred_check_branch
    %280 = sbr.rel (0) target = $region25
  $region24: #{resnet_iid_forward.27} parent=0 // pred_region
    _
  $region25: #{resnet_iid_forward.27} parent=0 // pred_fallthru
    _
  // Predicated region
  $region26: #{resnet_iid_forward.27} parent=0 // pred_check
    _
  $region27: #{resnet_iid_forward.27} parent=0 // pred_check_branch
    %282 = sbr.rel (0) target = $region29
  $region28: #{resnet_iid_forward.27} parent=0 // pred_region
    _
  $region29: #{resnet_iid_forward.27} parent=0 // pred_fallthru
    _

// kernel: resnet_iid_forward.28
$region0: #{resnet_iid_forward.28}
  #allocation0 [shape = 'u32[]', space=smem, size = 0x4, offset = 0x4, fixed_abs, tag = 'smem constant byte address 0x4 - core index']
  #allocation1 [shape = 'u32[144,128]{1,0:T(1,128)}', space=vmem, size = 0x12000, scoped, tag = 'internal scratch']
  %s0 = inlined_call_operand.vmem [shape: bf16[144,256], index: 0, kind: input, shape index: {}]
  %s1 = inlined_call_operand.vmem [shape: bf16[16,144], index: 1, kind: input, shape index: {}]
  %s2 = inlined_call_operand.vmem [shape: f32[16,1], index: 2, kind: input, shape index: {}]
  %s3 = inlined_call_operand.vmem [shape: f32[16,1], index: 3, kind: input, shape index: {}]
  %s4 = inlined_call_operand.vmem [shape: f32[16,1], index: 4, kind: input, shape index: {}]
  %s5 = inlined_call_operand.vmem [shape: bf16[16,256], index: 5, kind: input, shape index: {}]
  %s6 = inlined_call_operand.vmem [shape: bf16[16,256], index: 6, kind: output, shape index: {}]
  %s7 = sld [smem:[#allocation0]]
  $region34: #{resnet_iid_forward.28} parent=0
    _
  %s9 = ssub.s32 1, %s7
  %s10 = scalar_select 0, %s9, %s7
  // Predicated region
  $region2: #{resnet_iid_forward.28} parent=0 // pred_check
    _
  $region3: #{resnet_iid_forward.28} parent=0 // pred_check_branch
    %12 = sbr.rel (0) target = $region5
  $region4: #{resnet_iid_forward.28} parent=0 // pred_region
    _
  $region5: #{resnet_iid_forward.28} parent=0 // pred_fallthru
    _
  // Predicated region
  $region6: #{resnet_iid_forward.28} parent=0 // pred_check
    _
  $region7: #{resnet_iid_forward.28} parent=0 // pred_check_branch
    %14 = sbr.rel (0) target = $region9
  $region8: #{resnet_iid_forward.28} parent=0 // pred_region
    _
  $region9: #{resnet_iid_forward.28} parent=0 // pred_fallthru
    _
  // Predicated region
  $region10: #{resnet_iid_forward.28} parent=0 // pred_check
    _
  $region11: #{resnet_iid_forward.28} parent=0 // pred_check_branch
    %16 = sbr.rel (0) target = $region13
  $region12: #{resnet_iid_forward.28} parent=0 // pred_region
    _
  $region13: #{resnet_iid_forward.28} parent=0 // pred_fallthru
    _
  // Predicated region
  $region14: #{resnet_iid_forward.28} parent=0 // pred_check
    _
  $region15: #{resnet_iid_forward.28} parent=0 // pred_check_branch
    %18 = sbr.rel (0) target = $region17
  $region16: #{resnet_iid_forward.28} parent=0 // pred_region
    _
  $region17: #{resnet_iid_forward.28} parent=0 // pred_fallthru
    _
  // Predicated region
  $region18: #{resnet_iid_forward.28} parent=0 // pred_check
    _
  $region19: #{resnet_iid_forward.28} parent=0 // pred_check_branch
    %20 = sbr.rel (0) target = $region21
  $region20: #{resnet_iid_forward.28} parent=0 // pred_region
    _
  $region21: #{resnet_iid_forward.28} parent=0 // pred_fallthru
    _
  // Predicated region
  $region22: #{resnet_iid_forward.28} parent=0 // pred_check
    _
  $region23: #{resnet_iid_forward.28} parent=0 // pred_check_branch
    %22 = sbr.rel (0) target = $region25
  $region24: #{resnet_iid_forward.28} parent=0 // pred_region
    _
  $region25: #{resnet_iid_forward.28} parent=0 // pred_fallthru
    _
  %v24 = vld [vmem:[%s1] sm:$0xff]
  %v25 = vld [vmem:[%s1 + $0x8] sm:$0xff]
  %v26 = vld [vmem:[%s0] sm:$0xff]
  %v27 = vld [vmem:[%s0 + $0x8] sm:$0xff]
  %v28 = vld [vmem:[%s0 + $0x10] sm:$0xff]
  %v29 = vld [vmem:[%s0 + $0x18] sm:$0xff]
  %v30 = vld [vmem:[%s0 + $0x20] sm:$0xff]
  %v31 = vld [vmem:[%s0 + $0x28] sm:$0xff]
  %v32 = vld [vmem:[%s0 + $0x30] sm:$0xff]
  %v33 = vld [vmem:[%s0 + $0x38] sm:$0xff]
  %v34 = vld [vmem:[%s0 + $0x40] sm:$0xff]
  %v35 = vld [vmem:[%s0 + $0x48] sm:$0xff]
  %v36 = vld [vmem:[%s0 + $0x50] sm:$0xff]
  %v37 = vld [vmem:[%s0 + $0x58] sm:$0xff]
  %v38 = vld [vmem:[%s0 + $0x60] sm:$0xff]
  %v39 = vld [vmem:[%s0 + $0x68] sm:$0xff]
  %v40 = vld [vmem:[%s0 + $0x70] sm:$0xff]
  %v41 = vld [vmem:[%s0 + $0x78] sm:$0xff]
  %v42 = vld [vmem:[%s0 + $0x80] sm:$0xff]
  %v43 = vld [vmem:[%s0 + $0x88] sm:$0xff]
  %v44 = vld [vmem:[%s2] sm:$0xff]
  %v45 = vld [vmem:[%s2 + $0x8] sm:$0xff]
  %47 = vset.pattern.permute.xlu0 0
  %48 = vperm.xlu0 %47, %v44
  %v49 = vpop.permute.xlu0 %48
  %52 = vset.pattern.permute.xlu0 0
  %53 = vperm.xlu0 %52, %v45
  %v54 = vpop.permute.xlu0 %53
  %v58 = vunpack.c.l.b16 %v24
  %v59 = vunpack.c.h.b16 %v24
  %v60 = vunpack.c.l.b16 %v25
  %v61 = vunpack.c.h.b16 %v25
  %v62 = vpack.c.b16 %v60, %v58
  %v63 = vpack.c.b16 %v61, %v59
  %v83 = vunpack.c.l.b16 %v26
  %v84 = vunpack.c.h.b16 %v26
  %v85 = vunpack.c.l.b16 %v27
  %v86 = vunpack.c.h.b16 %v27
  %v87 = vunpack.c.l.b16 %v28
  %v88 = vunpack.c.h.b16 %v28
  %v89 = vunpack.c.l.b16 %v29
  %v90 = vunpack.c.h.b16 %v29
  %v91 = vunpack.c.l.b16 %v30
  %v92 = vunpack.c.h.b16 %v30
  %v93 = vunpack.c.l.b16 %v31
  %v94 = vunpack.c.h.b16 %v31
  %v95 = vunpack.c.l.b16 %v32
  %v96 = vunpack.c.h.b16 %v32
  %v97 = vunpack.c.l.b16 %v33
  %v98 = vunpack.c.h.b16 %v33
  %v99 = vunpack.c.l.b16 %v34
  %v100 = vunpack.c.h.b16 %v34
  %v101 = vunpack.c.l.b16 %v35
  %v102 = vunpack.c.h.b16 %v35
  %v103 = vunpack.c.l.b16 %v36
  %v104 = vunpack.c.h.b16 %v36
  %v105 = vunpack.c.l.b16 %v37
  %v106 = vunpack.c.h.b16 %v37
  %v107 = vunpack.c.l.b16 %v38
  %v108 = vunpack.c.h.b16 %v38
  %v109 = vunpack.c.l.b16 %v39
  %v110 = vunpack.c.h.b16 %v39
  %v111 = vunpack.c.l.b16 %v40
  %v112 = vunpack.c.h.b16 %v40
  %v113 = vunpack.c.l.b16 %v41
  %v114 = vunpack.c.h.b16 %v41
  %v115 = vunpack.c.l.b16 %v42
  %v116 = vunpack.c.h.b16 %v42
  %v117 = vunpack.c.l.b16 %v43
  %v118 = vunpack.c.h.b16 %v43
  %v119 = vpack.c.b16 %v85, %v83
  %v120 = vpack.c.b16 %v86, %v84
  %v121 = vpack.c.b16 %v89, %v87
  %v122 = vpack.c.b16 %v90, %v88
  %v123 = vpack.c.b16 %v93, %v91
  %v124 = vpack.c.b16 %v94, %v92
  %v125 = vpack.c.b16 %v97, %v95
  %v126 = vpack.c.b16 %v98, %v96
  %v127 = vpack.c.b16 %v101, %v99
  %v128 = vpack.c.b16 %v102, %v100
  %v129 = vpack.c.b16 %v105, %v103
  %v130 = vpack.c.b16 %v106, %v104
  %v131 = vpack.c.b16 %v109, %v107
  %v132 = vpack.c.b16 %v110, %v108
  %v133 = vpack.c.b16 %v113, %v111
  %v134 = vpack.c.b16 %v114, %v112
  %v135 = vpack.c.b16 %v117, %v115
  %v136 = vpack.c.b16 %v118, %v116
  %vm155 = vcmask 130048
  %v157 = vsel %vm155, %v63, 0
  %159 = vmatprep.subr.bf16.mxu0 %v120
  %160 = vmatpush1.bf16.msra.mxu0 %v119
  %161 = vmatprep.subr.bf16.mxu0 %v122
  %162 = vmatpush1.bf16.msra.mxu0 %v121
  %163 = vmatprep.subr.bf16.mxu0 %v124
  %164 = vmatpush1.bf16.msra.mxu0 %v123
  %165 = vmatprep.subr.bf16.mxu0 %v126
  %166 = vmatpush1.bf16.msra.mxu0 %v125
  %167 = vmatprep.subr.bf16.mxu0 %v128
  %168 = vmatpush1.bf16.msra.mxu0 %v127
  %169 = vmatprep.subr.bf16.mxu0 %v130
  %170 = vmatpush1.bf16.msra.mxu0 %v129
  %171 = vmatprep.subr.bf16.mxu0 %v132
  %172 = vmatpush1.bf16.msra.mxu0 %v131
  %173 = vmatprep.subr.bf16.mxu0 %v134
  %174 = vmatpush1.bf16.msra.mxu0 %v133
  %175 = vmatprep.subr.bf16.mxu0 %v136
  %176 = vmatpush1.bf16.msra.mxu0 %v135
  %177 = vmatprep.subr.bf16.mxu0 0
  %178 = vmatpush1.bf16.msra.mxu0 0
  %179 = vmatprep.subr.bf16.mxu0 0
  %180 = vmatpush1.bf16.msra.mxu0 0
  %181 = vmatprep.subr.bf16.mxu0 0
  %182 = vmatpush1.bf16.msra.mxu0 0
  %183 = vmatprep.subr.bf16.mxu0 0
  %184 = vmatpush1.bf16.msra.mxu0 0
  %185 = vmatprep.subr.bf16.mxu0 0
  %186 = vmatpush1.bf16.msra.mxu0 0
  %187 = vmatprep.subr.bf16.mxu0 0
  %188 = vmatpush1.bf16.msra.mxu0 0
  %189 = vmatprep.subr.bf16.mxu0 0
  %190 = vmatpush1.bf16.msra.mxu0 0
  %191 = vmatprep.mubr.bf16.mxu0 %v157
  %192 = vmatmul.mubr.bf16.gmra.mrb[0].mxu0 %v62
  %v193 = vpop.f32.mrb[0].mxu0
  %v194 = vadd.f32 %v49, %v193
  %v195 = vpop.f32.mrb[0].mxu0
  %v196 = vadd.f32 %v49, %v195
  %v197 = vpop.f32.mrb[0].mxu0
  %v198 = vadd.f32 %v54, %v197
  %v199 = vpop.f32.mrb[0].mxu0
  %v200 = vadd.f32 %v54, %v199
  %201 = vdwg.mxu0
  %v202 = vadd.f32 %v194, %v196
  %203 = vadd.xlane.f32.xlu0 %v202
  %v204 = vpop.xlane.xlu0 %203
  %v205 = vadd.f32 %v198, %v200
  %206 = vadd.xlane.f32.xlu0 %v205
  %v207 = vpop.xlane.xlu0 %206
  %v208 = vmul.f32 %v204, 0.00390625
  %v209 = vmul.f32 %v207, 0.00390625
  %v210 = vsub.f32 %v194, %v208
  %v211 = vsub.f32 %v196, %v208
  %v212 = vsub.f32 %v198, %v209
  %v213 = vsub.f32 %v200, %v209
  %v214 = vmul.f32 %v210, %v210
  %v215 = vmul.f32 %v211, %v211
  %v216 = vmul.f32 %v212, %v212
  %v217 = vmul.f32 %v213, %v213
  %v218 = vadd.f32 %v214, %v215
  %219 = vadd.xlane.f32.xlu0 %v218
  %v220 = vpop.xlane.xlu0 %219
  %v221 = vadd.f32 %v216, %v217
  %222 = vadd.xlane.f32.xlu0 %v221
  %v223 = vpop.xlane.xlu0 %222
  %v224 = vmul.f32 %v220, 0.00390625
  %v225 = vmul.f32 %v223, 0.00390625
  %v226 = vld [vmem:[%s3] sm:$0xff]
  %v227 = vld [vmem:[%s3 + $0x8] sm:$0xff]
  %v228 = vadd.f32 %v224, 1e-05
  %v229 = vadd.f32 %v225, 1e-05
  %v230 = vrsqrt.pop %v228
  %v231 = vrsqrt.pop %v229
  %v232 = vmul.f32 %v226, %v230
  %v233 = vmul.f32 %v227, %v231
  %235 = vset.pattern.permute.xlu0 0
  %236 = vperm.xlu0 %235, %v232
  %v237 = vpop.permute.xlu0 %236
  %240 = vset.pattern.permute.xlu0 0
  %241 = vperm.xlu0 %240, %v233
  %v242 = vpop.permute.xlu0 %241
  %v244 = vmul.f32 %v210, %v237
  %v245 = vmul.f32 %v211, %v237
  %v246 = vmul.f32 %v212, %v242
  %v247 = vmul.f32 %v213, %v242
  %v248 = vld [vmem:[%s4] sm:$0xff]
  %v249 = vld [vmem:[%s4 + $0x8] sm:$0xff]
  %251 = vset.pattern.permute.xlu0 0
  %252 = vperm.xlu0 %251, %v248
  %v253 = vpop.permute.xlu0 %252
  %256 = vset.pattern.permute.xlu0 0
  %257 = vperm.xlu0 %256, %v249
  %v258 = vpop.permute.xlu0 %257
  %v260 = vadd.f32 %v244, %v253
  %v261 = vadd.f32 %v245, %v253
  %v262 = vadd.f32 %v246, %v258
  %v263 = vadd.f32 %v247, %v258
  %v264 = vld [vmem:[%s5] sm:$0xff]
  %v265 = vld [vmem:[%s5 + $0x8] sm:$0xff]
  %v266 = vunpack.c.l.bf16 %v264
  %v267 = vunpack.c.h.bf16 %v264
  %v268 = vunpack.c.l.bf16 %v265
  %v269 = vunpack.c.h.bf16 %v265
  %v270 = vadd.f32 %v260, %v266
  %v271 = vadd.f32 %v261, %v267
  %v272 = vadd.f32 %v262, %v268
  %v273 = vadd.f32 %v263, %v269
  %v274 = vmax.f32 %v270, 0.0
  %v275 = vmax.f32 %v271, 0.0
  %v276 = vmax.f32 %v272, 0.0
  %v277 = vmax.f32 %v273, 0.0
  %v278 = vpack.c.bf16 %v276, %v274
  %v279 = vpack.c.bf16 %v277, %v275
  %v282 = vunpack.c.l.b16 %v278
  %v283 = vunpack.c.l.b16 %v279
  %v284 = vunpack.c.h.b16 %v278
  %v285 = vunpack.c.h.b16 %v279
  %v286 = vpack.c.b16 %v283, %v282
  %v287 = vpack.c.b16 %v285, %v284
  %290 = vst [vmem:[%s6] sm:$0xff] %v286
  %291 = vst [vmem:[%s6 + $0x8] sm:$0xff] %v287
  // Predicated region
  $region26: #{resnet_iid_forward.28} parent=0 // pred_check
    _
  $region27: #{resnet_iid_forward.28} parent=0 // pred_check_branch
    %293 = sbr.rel (0) target = $region29
  $region28: #{resnet_iid_forward.28} parent=0 // pred_region
    _
  $region29: #{resnet_iid_forward.28} parent=0 // pred_fallthru
    _
  // Predicated region
  $region30: #{resnet_iid_forward.28} parent=0 // pred_check
    _
  $region31: #{resnet_iid_forward.28} parent=0 // pred_check_branch
    %295 = sbr.rel (0) target = $region33
  $region32: #{resnet_iid_forward.28} parent=0 // pred_region
    _
  $region33: #{resnet_iid_forward.28} parent=0 // pred_fallthru
    _

// kernel: resnet_iid_forward.29
$region0: #{resnet_iid_forward.29}
  #allocation0 [shape = 'u32[]', space=smem, size = 0x4, offset = 0x4, fixed_abs, tag = 'smem constant byte address 0x4 - core index']
  #allocation1 [shape = 'u32[144,128]{1,0:T(1,128)}', space=vmem, size = 0x12000, scoped, tag = 'internal scratch']
  %s0 = inlined_call_operand.vmem [shape: bf16[144,128], index: 0, kind: input, shape index: {}]
  %s1 = inlined_call_operand.vmem [shape: bf16[64,144], index: 1, kind: input, shape index: {}]
  %s2 = inlined_call_operand.vmem [shape: f32[64,1], index: 2, kind: input, shape index: {}]
  %s3 = inlined_call_operand.vmem [shape: f32[32,1], index: 3, kind: input, shape index: {}]
  %s4 = inlined_call_operand.vmem [shape: f32[32,1], index: 4, kind: input, shape index: {}]
  %s5 = inlined_call_operand.vmem [shape: bf16[32,128], index: 5, kind: output, shape index: {0}]
  %s6 = inlined_call_operand.vmem [shape: f32[32,128], index: 6, kind: output, shape index: {1}]
  %7 = xla_tuple %s5, %s6
  %s8 = sld [smem:[#allocation0]]
  $region38: #{resnet_iid_forward.29} parent=0
    _
  %s10 = ssub.s32 1, %s8
  %s11 = scalar_select 0, %s10, %s8
  // Predicated region
  $region2: #{resnet_iid_forward.29} parent=0 // pred_check
    _
  $region3: #{resnet_iid_forward.29} parent=0 // pred_check_branch
    %13 = sbr.rel (0) target = $region5
  $region4: #{resnet_iid_forward.29} parent=0 // pred_region
    _
  $region5: #{resnet_iid_forward.29} parent=0 // pred_fallthru
    _
  // Predicated region
  $region6: #{resnet_iid_forward.29} parent=0 // pred_check
    _
  $region7: #{resnet_iid_forward.29} parent=0 // pred_check_branch
    %15 = sbr.rel (0) target = $region9
  $region8: #{resnet_iid_forward.29} parent=0 // pred_region
    _
  $region9: #{resnet_iid_forward.29} parent=0 // pred_fallthru
    _
  // Predicated region
  $region10: #{resnet_iid_forward.29} parent=0 // pred_check
    _
  $region11: #{resnet_iid_forward.29} parent=0 // pred_check_branch
    %17 = sbr.rel (0) target = $region13
  $region12: #{resnet_iid_forward.29} parent=0 // pred_region
    _
  $region13: #{resnet_iid_forward.29} parent=0 // pred_fallthru
    _
  // Predicated region
  $region14: #{resnet_iid_forward.29} parent=0 // pred_check
    _
  $region15: #{resnet_iid_forward.29} parent=0 // pred_check_branch
    %19 = sbr.rel (0) target = $region17
  $region16: #{resnet_iid_forward.29} parent=0 // pred_region
    _
  $region17: #{resnet_iid_forward.29} parent=0 // pred_fallthru
    _
  // Predicated region
  $region18: #{resnet_iid_forward.29} parent=0 // pred_check
    _
  $region19: #{resnet_iid_forward.29} parent=0 // pred_check_branch
    %21 = sbr.rel (0) target = $region21
  $region20: #{resnet_iid_forward.29} parent=0 // pred_region
    _
  $region21: #{resnet_iid_forward.29} parent=0 // pred_fallthru
    _
  %v23 = vld [vmem:[%s1] sm:$0xff]
  %v24 = vld [vmem:[%s1 + $0x8] sm:$0xff]
  %v25 = vld [vmem:[%s1 + $0x10] sm:$0xff]
  %v26 = vld [vmem:[%s1 + $0x18] sm:$0xff]
  %v27 = vld [vmem:[%s1 + $0x20] sm:$0xff]
  %v28 = vld [vmem:[%s1 + $0x28] sm:$0xff]
  %v29 = vld [vmem:[%s1 + $0x30] sm:$0xff]
  %v30 = vld [vmem:[%s1 + $0x38] sm:$0xff]
  %v31 = vld [vmem:[%s0] sm:$0xf]
  %v32 = vld [vmem:[%s0 + $0x4] sm:$0xf]
  %v33 = vld [vmem:[%s0 + $0x8] sm:$0xf]
  %v34 = vld [vmem:[%s0 + $0xc] sm:$0xf]
  %v35 = vld [vmem:[%s0 + $0x10] sm:$0xf]
  %v36 = vld [vmem:[%s0 + $0x14] sm:$0xf]
  %v37 = vld [vmem:[%s0 + $0x18] sm:$0xf]
  %v38 = vld [vmem:[%s0 + $0x1c] sm:$0xf]
  %v39 = vld [vmem:[%s0 + $0x20] sm:$0xf]
  %v40 = vld [vmem:[%s0 + $0x24] sm:$0xf]
  %v41 = vld [vmem:[%s0 + $0x28] sm:$0xf]
  %v42 = vld [vmem:[%s0 + $0x2c] sm:$0xf]
  %v43 = vld [vmem:[%s0 + $0x30] sm:$0xf]
  %v44 = vld [vmem:[%s0 + $0x34] sm:$0xf]
  %v45 = vld [vmem:[%s0 + $0x38] sm:$0xf]
  %v46 = vld [vmem:[%s0 + $0x3c] sm:$0xf]
  %v47 = vld [vmem:[%s0 + $0x40] sm:$0xf]
  %v48 = vld [vmem:[%s0 + $0x44] sm:$0xf]
  %v49 = vld [vmem:[%s2] sm:$0xff]
  %v50 = vld [vmem:[%s2 + $0x8] sm:$0xff]
  %v51 = vld [vmem:[%s2 + $0x10] sm:$0xff]
  %v52 = vld [vmem:[%s2 + $0x18] sm:$0xff]
  %v53 = vld [vmem:[%s2 + $0x20] sm:$0xff]
  %v54 = vld [vmem:[%s2 + $0x28] sm:$0xff]
  %v55 = vld [vmem:[%s2 + $0x30] sm:$0xff]
  %v56 = vld [vmem:[%s2 + $0x38] sm:$0xff]
  %58 = vset.pattern.permute.xlu0 0
  %59 = vperm.xlu0 %58, %v49
  %v60 = vpop.permute.xlu0 %59
  %63 = vset.pattern.permute.xlu0 0
  %64 = vperm.xlu0 %63, %v50
  %v65 = vpop.permute.xlu0 %64
  %68 = vset.pattern.permute.xlu0 0
  %69 = vperm.xlu0 %68, %v51
  %v70 = vpop.permute.xlu0 %69
  %73 = vset.pattern.permute.xlu0 0
  %74 = vperm.xlu0 %73, %v52
  %v75 = vpop.permute.xlu0 %74
  %78 = vset.pattern.permute.xlu0 0
  %79 = vperm.xlu0 %78, %v53
  %v80 = vpop.permute.xlu0 %79
  %83 = vset.pattern.permute.xlu0 0
  %84 = vperm.xlu0 %83, %v54
  %v85 = vpop.permute.xlu0 %84
  %88 = vset.pattern.permute.xlu0 0
  %89 = vperm.xlu0 %88, %v55
  %v90 = vpop.permute.xlu0 %89
  %93 = vset.pattern.permute.xlu0 0
  %94 = vperm.xlu0 %93, %v56
  %v95 = vpop.permute.xlu0 %94
  %v105 = vunpack.c.l.b16 %v23
  %v106 = vunpack.c.h.b16 %v23
  %v107 = vunpack.c.l.b16 %v24
  %v108 = vunpack.c.h.b16 %v24
  %v109 = vunpack.c.l.b16 %v25
  %v110 = vunpack.c.h.b16 %v25
  %v111 = vunpack.c.l.b16 %v26
  %v112 = vunpack.c.h.b16 %v26
  %v113 = vunpack.c.l.b16 %v27
  %v114 = vunpack.c.h.b16 %v27
  %v115 = vunpack.c.l.b16 %v28
  %v116 = vunpack.c.h.b16 %v28
  %v117 = vunpack.c.l.b16 %v29
  %v118 = vunpack.c.h.b16 %v29
  %v119 = vunpack.c.l.b16 %v30
  %v120 = vunpack.c.h.b16 %v30
  %v121 = vpack.c.b16 %v107, %v105
  %v122 = vpack.c.b16 %v108, %v106
  %v123 = vpack.c.b16 %v111, %v109
  %v124 = vpack.c.b16 %v112, %v110
  %v125 = vpack.c.b16 %v115, %v113
  %v126 = vpack.c.b16 %v116, %v114
  %v127 = vpack.c.b16 %v119, %v117
  %v128 = vpack.c.b16 %v120, %v118
  %v151 = vunpack.c.l.b16 %v31
  %v152 = vunpack.c.l.b16 %v32
  %v153 = vunpack.c.l.b16 %v33
  %v154 = vunpack.c.l.b16 %v34
  %v155 = vunpack.c.l.b16 %v35
  %v156 = vunpack.c.l.b16 %v36
  %v157 = vunpack.c.l.b16 %v37
  %v158 = vunpack.c.l.b16 %v38
  %v159 = vunpack.c.l.b16 %v39
  %v160 = vunpack.c.l.b16 %v40
  %v161 = vunpack.c.l.b16 %v41
  %v162 = vunpack.c.l.b16 %v42
  %v163 = vunpack.c.l.b16 %v43
  %v164 = vunpack.c.l.b16 %v44
  %v165 = vunpack.c.l.b16 %v45
  %v166 = vunpack.c.l.b16 %v46
  %v167 = vunpack.c.l.b16 %v47
  %v168 = vunpack.c.l.b16 %v48
  %v169 = vpack.c.b16 %v152, %v151
  %v170 = vpack.c.b16 %v154, %v153
  %v171 = vpack.c.b16 %v156, %v155
  %v172 = vpack.c.b16 %v158, %v157
  %v173 = vpack.c.b16 %v160, %v159
  %v174 = vpack.c.b16 %v162, %v161
  %v175 = vpack.c.b16 %v164, %v163
  %v176 = vpack.c.b16 %v166, %v165
  %v177 = vpack.c.b16 %v168, %v167
  %vm187 = vcmask 130048
  %v189 = vsel %vm187, %v122, 0
  %v192 = vsel %vm187, %v124, 0
  %v195 = vsel %vm187, %v126, 0
  %v198 = vsel %vm187, %v128, 0
  %200 = vmatprep.subr.bf16.mxu0 0
  %201 = vmatpush1.bf16.msra.mxu0 %v169
  %202 = vmatprep.subr.bf16.mxu0 0
  %203 = vmatpush1.bf16.msra.mxu0 %v170
  %204 = vmatprep.subr.bf16.mxu0 0
  %205 = vmatpush1.bf16.msra.mxu0 %v171
  %206 = vmatprep.subr.bf16.mxu0 0
  %207 = vmatpush1.bf16.msra.mxu0 %v172
  %208 = vmatprep.subr.bf16.mxu0 0
  %209 = vmatpush1.bf16.msra.mxu0 %v173
  %210 = vmatprep.subr.bf16.mxu0 0
  %211 = vmatpush1.bf16.msra.mxu0 %v174
  %212 = vmatprep.subr.bf16.mxu0 0
  %213 = vmatpush1.bf16.msra.mxu0 %v175
  %214 = vmatprep.subr.bf16.mxu0 0
  %215 = vmatpush1.bf16.msra.mxu0 %v176
  %216 = vmatprep.subr.bf16.mxu0 0
  %217 = vmatpush1.bf16.msra.mxu0 %v177
  %218 = vmatprep.subr.bf16.mxu0 0
  %219 = vmatpush1.bf16.msra.mxu0 0
  %220 = vmatprep.subr.bf16.mxu0 0
  %221 = vmatpush1.bf16.msra.mxu0 0
  %222 = vmatprep.subr.bf16.mxu0 0
  %223 = vmatpush1.bf16.msra.mxu0 0
  %224 = vmatprep.subr.bf16.mxu0 0
  %225 = vmatpush1.bf16.msra.mxu0 0
  %226 = vmatprep.subr.bf16.mxu0 0
  %227 = vmatpush1.bf16.msra.mxu0 0
  %228 = vmatprep.subr.bf16.mxu0 0
  %229 = vmatpush1.bf16.msra.mxu0 0
  %230 = vmatprep.subr.bf16.mxu0 0
  %231 = vmatpush1.bf16.msra.mxu0 0
  %232 = vmatprep.mubr.bf16.mxu0 %v189
  %233 = vmatmul.mubr.bf16.gmra.mrb[0].mxu0 %v121
  %v234 = vpop.f32.mrb[0].mxu0
  %v235 = vadd.f32 %v60, %v234
  %v236 = vpop.f32.mrb[0].mxu0
  %v237 = vpop.f32.mrb[0].mxu0
  %v238 = vadd.f32 %v65, %v237
  %v239 = vpop.f32.mrb[0].mxu0
  %240 = vmatprep.mubr.bf16.mxu0 %v192
  %241 = vmatmul.mubr.bf16.gmra.mrb[0].mxu0 %v123
  %v242 = vpop.f32.mrb[0].mxu0
  %v243 = vadd.f32 %v70, %v242
  %v244 = vpop.f32.mrb[0].mxu0
  %v245 = vpop.f32.mrb[0].mxu0
  %v246 = vadd.f32 %v75, %v245
  %v247 = vpop.f32.mrb[0].mxu0
  %248 = vmatprep.mubr.bf16.mxu0 %v195
  %249 = vmatmul.mubr.bf16.gmra.mrb[0].mxu0 %v125
  %v250 = vpop.f32.mrb[0].mxu0
  %v251 = vadd.f32 %v80, %v250
  %v252 = vpop.f32.mrb[0].mxu0
  %v253 = vpop.f32.mrb[0].mxu0
  %v254 = vadd.f32 %v85, %v253
  %v255 = vpop.f32.mrb[0].mxu0
  %256 = vmatprep.mubr.bf16.mxu0 %v198
  %257 = vmatmul.mubr.bf16.gmra.mrb[0].mxu0 %v127
  %v258 = vpop.f32.mrb[0].mxu0
  %v259 = vadd.f32 %v90, %v258
  %v260 = vpop.f32.mrb[0].mxu0
  %v261 = vpop.f32.mrb[0].mxu0
  %v262 = vadd.f32 %v95, %v261
  %v263 = vpop.f32.mrb[0].mxu0
  %264 = vdwg.mxu0
  %265 = vst [vmem:[%s6] sm:$0xff] %v251
  %266 = vst [vmem:[%s6 + $0x8] sm:$0xff] %v254
  %267 = vst [vmem:[%s6 + $0x10] sm:$0xff] %v259
  %268 = vst [vmem:[%s6 + $0x18] sm:$0xff] %v262
  %269 = vadd.xlane.f32.xlu0 %v235
  %v270 = vpop.xlane.xlu0 %269
  %271 = vadd.xlane.f32.xlu0 %v238
  %v272 = vpop.xlane.xlu0 %271
  %273 = vadd.xlane.f32.xlu0 %v243
  %v274 = vpop.xlane.xlu0 %273
  %275 = vadd.xlane.f32.xlu0 %v246
  %v276 = vpop.xlane.xlu0 %275
  %v277 = vmul.f32 %v270, 0.0078125
  %v278 = vmul.f32 %v272, 0.0078125
  %v279 = vmul.f32 %v274, 0.0078125
  %v280 = vmul.f32 %v276, 0.0078125
  %v281 = vsub.f32 %v235, %v277
  %v282 = vsub.f32 %v238, %v278
  %v283 = vsub.f32 %v243, %v279
  %v284 = vsub.f32 %v246, %v280
  %v285 = vmul.f32 %v281, %v281
  %v286 = vmul.f32 %v282, %v282
  %v287 = vmul.f32 %v283, %v283
  %v288 = vmul.f32 %v284, %v284
  %289 = vadd.xlane.f32.xlu0 %v285
  %v290 = vpop.xlane.xlu0 %289
  %291 = vadd.xlane.f32.xlu0 %v286
  %v292 = vpop.xlane.xlu0 %291
  %293 = vadd.xlane.f32.xlu0 %v287
  %v294 = vpop.xlane.xlu0 %293
  %295 = vadd.xlane.f32.xlu0 %v288
  %v296 = vpop.xlane.xlu0 %295
  %v297 = vmul.f32 %v290, 0.0078125
  %v298 = vmul.f32 %v292, 0.0078125
  %v299 = vmul.f32 %v294, 0.0078125
  %v300 = vmul.f32 %v296, 0.0078125
  %v301 = vld [vmem:[%s3] sm:$0xff]
  %v302 = vld [vmem:[%s3 + $0x8] sm:$0xff]
  %v303 = vld [vmem:[%s3 + $0x10] sm:$0xff]
  %v304 = vld [vmem:[%s3 + $0x18] sm:$0xff]
  %v305 = vadd.f32 %v297, 1e-05
  %v306 = vadd.f32 %v298, 1e-05
  %v307 = vadd.f32 %v299, 1e-05
  %v308 = vadd.f32 %v300, 1e-05
  %v309 = vrsqrt.pop %v305
  %v310 = vrsqrt.pop %v306
  %v311 = vrsqrt.pop %v307
  %v312 = vrsqrt.pop %v308
  %v313 = vmul.f32 %v301, %v309
  %v314 = vmul.f32 %v302, %v310
  %v315 = vmul.f32 %v303, %v311
  %v316 = vmul.f32 %v304, %v312
  %318 = vset.pattern.permute.xlu0 0
  %319 = vperm.xlu0 %318, %v313
  %v320 = vpop.permute.xlu0 %319
  %323 = vset.pattern.permute.xlu0 0
  %324 = vperm.xlu0 %323, %v314
  %v325 = vpop.permute.xlu0 %324
  %328 = vset.pattern.permute.xlu0 0
  %329 = vperm.xlu0 %328, %v315
  %v330 = vpop.permute.xlu0 %329
  %333 = vset.pattern.permute.xlu0 0
  %334 = vperm.xlu0 %333, %v316
  %v335 = vpop.permute.xlu0 %334
  %v337 = vmul.f32 %v281, %v320
  %v338 = vmul.f32 %v282, %v325
  %v339 = vmul.f32 %v283, %v330
  %v340 = vmul.f32 %v284, %v335
  %v341 = vld [vmem:[%s4] sm:$0xff]
  %v342 = vld [vmem:[%s4 + $0x8] sm:$0xff]
  %v343 = vld [vmem:[%s4 + $0x10] sm:$0xff]
  %v344 = vld [vmem:[%s4 + $0x18] sm:$0xff]
  %346 = vset.pattern.permute.xlu0 0
  %347 = vperm.xlu0 %346, %v341
  %v348 = vpop.permute.xlu0 %347
  %351 = vset.pattern.permute.xlu0 0
  %352 = vperm.xlu0 %351, %v342
  %v353 = vpop.permute.xlu0 %352
  %356 = vset.pattern.permute.xlu0 0
  %357 = vperm.xlu0 %356, %v343
  %v358 = vpop.permute.xlu0 %357
  %361 = vset.pattern.permute.xlu0 0
  %362 = vperm.xlu0 %361, %v344
  %v363 = vpop.permute.xlu0 %362
  %v365 = vadd.f32 %v337, %v348
  %v366 = vadd.f32 %v338, %v353
  %v367 = vadd.f32 %v339, %v358
  %v368 = vadd.f32 %v340, %v363
  %v369 = vmax.f32 %v365, 0.0
  %v370 = vmax.f32 %v366, 0.0
  %v371 = vmax.f32 %v367, 0.0
  %v372 = vmax.f32 %v368, 0.0
  %v373 = vpack.c.bf16 %v370, %v369
  %v374 = vpack.c.bf16 %v372, %v371
  %v377 = vunpack.c.l.b16 %v373
  %v378 = vunpack.c.h.b16 %v373
  %v379 = vunpack.c.l.b16 %v374
  %v380 = vunpack.c.h.b16 %v374
  %v381 = vpack.c.b16 %v377, %v377
  %v382 = vpack.c.b16 %v378, %v378
  %v383 = vpack.c.b16 %v379, %v379
  %v384 = vpack.c.b16 %v380, %v380
  %389 = vst [vmem:[%s5] sm:$0xf] %v381
  %390 = vst [vmem:[%s5 + $0x4] sm:$0xf] %v382
  %391 = vst [vmem:[%s5 + $0x8] sm:$0xf] %v383
  %392 = vst [vmem:[%s5 + $0xc] sm:$0xf] %v384
  // Predicated region
  $region22: #{resnet_iid_forward.29} parent=0 // pred_check
    _
  $region23: #{resnet_iid_forward.29} parent=0 // pred_check_branch
    %394 = sbr.rel (0) target = $region25
  $region24: #{resnet_iid_forward.29} parent=0 // pred_region
    _
  $region25: #{resnet_iid_forward.29} parent=0 // pred_fallthru
    _
  // Predicated region
  $region26: #{resnet_iid_forward.29} parent=0 // pred_check
    _
  $region27: #{resnet_iid_forward.29} parent=0 // pred_check_branch
    %396 = sbr.rel (0) target = $region29
  $region28: #{resnet_iid_forward.29} parent=0 // pred_region
    _
  $region29: #{resnet_iid_forward.29} parent=0 // pred_fallthru
    _
  // Predicated region
  $region30: #{resnet_iid_forward.29} parent=0 // pred_check
    _
  $region31: #{resnet_iid_forward.29} parent=0 // pred_check_branch
    %398 = sbr.rel (0) target = $region33
  $region32: #{resnet_iid_forward.29} parent=0 // pred_region
    _
  $region33: #{resnet_iid_forward.29} parent=0 // pred_fallthru
    _
  // Predicated region
  $region34: #{resnet_iid_forward.29} parent=0 // pred_check
    _
  $region35: #{resnet_iid_forward.29} parent=0 // pred_check_branch
    %400 = sbr.rel (0) target = $region37
  $region36: #{resnet_iid_forward.29} parent=0 // pred_region
    _
  $region37: #{resnet_iid_forward.29} parent=0 // pred_fallthru
    _

// kernel: resnet_iid_forward.30
$region0: #{resnet_iid_forward.30}
  #allocation0 [shape = 'u32[]', space=smem, size = 0x4, offset = 0x4, fixed_abs, tag = 'smem constant byte address 0x4 - core index']
  #allocation1 [shape = 'u32[144,128]{1,0:T(1,128)}', space=vmem, size = 0x12000, scoped, tag = 'internal scratch']
  %s0 = inlined_call_operand.vmem [shape: bf16[288,128], index: 0, kind: input, shape index: {}]
  %s1 = inlined_call_operand.vmem [shape: bf16[32,288], index: 1, kind: input, shape index: {}]
  %s2 = inlined_call_operand.vmem [shape: f32[32,1], index: 2, kind: input, shape index: {}]
  %s3 = inlined_call_operand.vmem [shape: f32[32,1], index: 3, kind: input, shape index: {}]
  %s4 = inlined_call_operand.vmem [shape: f32[32,1], index: 4, kind: input, shape index: {}]
  %s5 = inlined_call_operand.vmem [shape: f32[32,128], index: 5, kind: input, shape index: {}]
  %s6 = inlined_call_operand.vmem [shape: bf16[32,128], index: 6, kind: output, shape index: {}]
  %s7 = sld [smem:[#allocation0]]
  $region34: #{resnet_iid_forward.30} parent=0
    _
  %s9 = ssub.s32 1, %s7
  %s10 = scalar_select 0, %s9, %s7
  // Predicated region
  $region2: #{resnet_iid_forward.30} parent=0 // pred_check
    _
  $region3: #{resnet_iid_forward.30} parent=0 // pred_check_branch
    %12 = sbr.rel (0) target = $region5
  $region4: #{resnet_iid_forward.30} parent=0 // pred_region
    _
  $region5: #{resnet_iid_forward.30} parent=0 // pred_fallthru
    _
  // Predicated region
  $region6: #{resnet_iid_forward.30} parent=0 // pred_check
    _
  $region7: #{resnet_iid_forward.30} parent=0 // pred_check_branch
    %14 = sbr.rel (0) target = $region9
  $region8: #{resnet_iid_forward.30} parent=0 // pred_region
    _
  $region9: #{resnet_iid_forward.30} parent=0 // pred_fallthru
    _
  // Predicated region
  $region10: #{resnet_iid_forward.30} parent=0 // pred_check
    _
  $region11: #{resnet_iid_forward.30} parent=0 // pred_check_branch
    %16 = sbr.rel (0) target = $region13
  $region12: #{resnet_iid_forward.30} parent=0 // pred_region
    _
  $region13: #{resnet_iid_forward.30} parent=0 // pred_fallthru
    _
  // Predicated region
  $region14: #{resnet_iid_forward.30} parent=0 // pred_check
    _
  $region15: #{resnet_iid_forward.30} parent=0 // pred_check_branch
    %18 = sbr.rel (0) target = $region17
  $region16: #{resnet_iid_forward.30} parent=0 // pred_region
    _
  $region17: #{resnet_iid_forward.30} parent=0 // pred_fallthru
    _
  // Predicated region
  $region18: #{resnet_iid_forward.30} parent=0 // pred_check
    _
  $region19: #{resnet_iid_forward.30} parent=0 // pred_check_branch
    %20 = sbr.rel (0) target = $region21
  $region20: #{resnet_iid_forward.30} parent=0 // pred_region
    _
  $region21: #{resnet_iid_forward.30} parent=0 // pred_fallthru
    _
  // Predicated region
  $region22: #{resnet_iid_forward.30} parent=0 // pred_check
    _
  $region23: #{resnet_iid_forward.30} parent=0 // pred_check_branch
    %22 = sbr.rel (0) target = $region25
  $region24: #{resnet_iid_forward.30} parent=0 // pred_region
    _
  $region25: #{resnet_iid_forward.30} parent=0 // pred_fallthru
    _
  %v24 = vld [vmem:[%s1] sm:$0xff]
  %v25 = vld [vmem:[%s1 + $0x8] sm:$0xf]
  %v26 = vld [vmem:[%s1 + $0xc] sm:$0xff]
  %v27 = vld [vmem:[%s1 + $0x14] sm:$0xf]
  %v28 = vld [vmem:[%s1 + $0x18] sm:$0xff]
  %v29 = vld [vmem:[%s1 + $0x20] sm:$0xf]
  %v30 = vld [vmem:[%s1 + $0x24] sm:$0xff]
  %v31 = vld [vmem:[%s1 + $0x2c] sm:$0xf]
  %v32 = vld [vmem:[%s0] sm:$0xf]
  %v33 = vld [vmem:[%s0 + $0x4] sm:$0xf]
  %v34 = vld [vmem:[%s0 + $0x8] sm:$0xf]
  %v35 = vld [vmem:[%s0 + $0xc] sm:$0xf]
  %v36 = vld [vmem:[%s0 + $0x10] sm:$0xf]
  %v37 = vld [vmem:[%s0 + $0x14] sm:$0xf]
  %v38 = vld [vmem:[%s0 + $0x18] sm:$0xf]
  %v39 = vld [vmem:[%s0 + $0x1c] sm:$0xf]
  %v40 = vld [vmem:[%s0 + $0x20] sm:$0xf]
  %v41 = vld [vmem:[%s0 + $0x24] sm:$0xf]
  %v42 = vld [vmem:[%s0 + $0x28] sm:$0xf]
  %v43 = vld [vmem:[%s0 + $0x2c] sm:$0xf]
  %v44 = vld [vmem:[%s0 + $0x30] sm:$0xf]
  %v45 = vld [vmem:[%s0 + $0x34] sm:$0xf]
  %v46 = vld [vmem:[%s0 + $0x38] sm:$0xf]
  %v47 = vld [vmem:[%s0 + $0x3c] sm:$0xf]
  %v48 = vld [vmem:[%s0 + $0x40] sm:$0xf]
  %v49 = vld [vmem:[%s0 + $0x44] sm:$0xf]
  %v50 = vld [vmem:[%s0 + $0x48] sm:$0xf]
  %v51 = vld [vmem:[%s0 + $0x4c] sm:$0xf]
  %v52 = vld [vmem:[%s0 + $0x50] sm:$0xf]
  %v53 = vld [vmem:[%s0 + $0x54] sm:$0xf]
  %v54 = vld [vmem:[%s0 + $0x58] sm:$0xf]
  %v55 = vld [vmem:[%s0 + $0x5c] sm:$0xf]
  %v56 = vld [vmem:[%s0 + $0x60] sm:$0xf]
  %v57 = vld [vmem:[%s0 + $0x64] sm:$0xf]
  %v58 = vld [vmem:[%s0 + $0x68] sm:$0xf]
  %v59 = vld [vmem:[%s0 + $0x6c] sm:$0xf]
  %v60 = vld [vmem:[%s0 + $0x70] sm:$0xf]
  %v61 = vld [vmem:[%s0 + $0x74] sm:$0xf]
  %v62 = vld [vmem:[%s0 + $0x78] sm:$0xf]
  %v63 = vld [vmem:[%s0 + $0x7c] sm:$0xf]
  %v64 = vld [vmem:[%s0 + $0x80] sm:$0xf]
  %v65 = vld [vmem:[%s0 + $0x84] sm:$0xf]
  %v66 = vld [vmem:[%s0 + $0x88] sm:$0xf]
  %v67 = vld [vmem:[%s0 + $0x8c] sm:$0xf]
  %v68 = vld [vmem:[%s2] sm:$0xff]
  %v69 = vld [vmem:[%s2 + $0x8] sm:$0xff]
  %v70 = vld [vmem:[%s2 + $0x10] sm:$0xff]
  %v71 = vld [vmem:[%s2 + $0x18] sm:$0xff]
  %73 = vset.pattern.permute.xlu0 0
  %74 = vperm.xlu0 %73, %v68
  %v75 = vpop.permute.xlu0 %74
  %78 = vset.pattern.permute.xlu0 0
  %79 = vperm.xlu0 %78, %v69
  %v80 = vpop.permute.xlu0 %79
  %83 = vset.pattern.permute.xlu0 0
  %84 = vperm.xlu0 %83, %v70
  %v85 = vpop.permute.xlu0 %84
  %88 = vset.pattern.permute.xlu0 0
  %89 = vperm.xlu0 %88, %v71
  %v90 = vpop.permute.xlu0 %89
  %v100 = vunpack.c.l.b16 %v24
  %v101 = vunpack.c.h.b16 %v24
  %v102 = vunpack.c.l.b16 %v25
  %v103 = vunpack.c.l.b16 %v26
  %v104 = vunpack.c.h.b16 %v26
  %v105 = vunpack.c.l.b16 %v27
  %v106 = vunpack.c.l.b16 %v28
  %v107 = vunpack.c.h.b16 %v28
  %v108 = vunpack.c.l.b16 %v29
  %v109 = vunpack.c.l.b16 %v30
  %v110 = vunpack.c.h.b16 %v30
  %v111 = vunpack.c.l.b16 %v31
  %v112 = vpack.c.b16 %v103, %v100
  %v113 = vpack.c.b16 %v104, %v101
  %v114 = vpack.c.b16 %v105, %v102
  %v115 = vpack.c.b16 %v109, %v106
  %v116 = vpack.c.b16 %v110, %v107
  %v117 = vpack.c.b16 %v111, %v108
  %v158 = vunpack.c.l.b16 %v32
  %v159 = vunpack.c.l.b16 %v33
  %v160 = vunpack.c.l.b16 %v34
  %v161 = vunpack.c.l.b16 %v35
  %v162 = vunpack.c.l.b16 %v36
  %v163 = vunpack.c.l.b16 %v37
  %v164 = vunpack.c.l.b16 %v38
  %v165 = vunpack.c.l.b16 %v39
  %v166 = vunpack.c.l.b16 %v40
  %v167 = vunpack.c.l.b16 %v41
  %v168 = vunpack.c.l.b16 %v42
  %v169 = vunpack.c.l.b16 %v43
  %v170 = vunpack.c.l.b16 %v44
  %v171 = vunpack.c.l.b16 %v45
  %v172 = vunpack.c.l.b16 %v46
  %v173 = vunpack.c.l.b16 %v47
  %v174 = vunpack.c.l.b16 %v48
  %v175 = vunpack.c.l.b16 %v49
  %v176 = vunpack.c.l.b16 %v50
  %v177 = vunpack.c.l.b16 %v51
  %v178 = vunpack.c.l.b16 %v52
  %v179 = vunpack.c.l.b16 %v53
  %v180 = vunpack.c.l.b16 %v54
  %v181 = vunpack.c.l.b16 %v55
  %v182 = vunpack.c.l.b16 %v56
  %v183 = vunpack.c.l.b16 %v57
  %v184 = vunpack.c.l.b16 %v58
  %v185 = vunpack.c.l.b16 %v59
  %v186 = vunpack.c.l.b16 %v60
  %v187 = vunpack.c.l.b16 %v61
  %v188 = vunpack.c.l.b16 %v62
  %v189 = vunpack.c.l.b16 %v63
  %v190 = vunpack.c.l.b16 %v64
  %v191 = vunpack.c.l.b16 %v65
  %v192 = vunpack.c.l.b16 %v66
  %v193 = vunpack.c.l.b16 %v67
  %v194 = vpack.c.b16 %v159, %v158
  %v195 = vpack.c.b16 %v161, %v160
  %v196 = vpack.c.b16 %v163, %v162
  %v197 = vpack.c.b16 %v165, %v164
  %v198 = vpack.c.b16 %v167, %v166
  %v199 = vpack.c.b16 %v169, %v168
  %v200 = vpack.c.b16 %v171, %v170
  %v201 = vpack.c.b16 %v173, %v172
  %v202 = vpack.c.b16 %v175, %v174
  %v203 = vpack.c.b16 %v177, %v176
  %v204 = vpack.c.b16 %v179, %v178
  %v205 = vpack.c.b16 %v181, %v180
  %v206 = vpack.c.b16 %v183, %v182
  %v207 = vpack.c.b16 %v185, %v184
  %v208 = vpack.c.b16 %v187, %v186
  %v209 = vpack.c.b16 %v189, %v188
  %v210 = vpack.c.b16 %v191, %v190
  %v211 = vpack.c.b16 %v193, %v192
  %vm230 = vcmask 261120
  %v232 = vsel %vm230, %v114, 0
  %v235 = vsel %vm230, %v117, 0
  %237 = vmatprep.subr.bf16.mxu0 0
  %238 = vmatpush1.bf16.msra.mxu0 %v194
  %239 = vmatprep.subr.bf16.mxu0 0
  %240 = vmatpush1.bf16.msra.mxu0 %v195
  %241 = vmatprep.subr.bf16.mxu0 0
  %242 = vmatpush1.bf16.msra.mxu0 %v196
  %243 = vmatprep.subr.bf16.mxu0 0
  %244 = vmatpush1.bf16.msra.mxu0 %v197
  %245 = vmatprep.subr.bf16.mxu0 0
  %246 = vmatpush1.bf16.msra.mxu0 %v198
  %247 = vmatprep.subr.bf16.mxu0 0
  %248 = vmatpush1.bf16.msra.mxu0 %v199
  %249 = vmatprep.subr.bf16.mxu0 0
  %250 = vmatpush1.bf16.msra.mxu0 %v200
  %251 = vmatprep.subr.bf16.mxu0 0
  %252 = vmatpush1.bf16.msra.mxu0 %v201
  %253 = vmatprep.subr.bf16.mxu0 0
  %254 = vmatpush1.bf16.msra.mxu0 %v202
  %255 = vmatprep.subr.bf16.mxu0 0
  %256 = vmatpush1.bf16.msra.mxu0 %v203
  %257 = vmatprep.subr.bf16.mxu0 0
  %258 = vmatpush1.bf16.msra.mxu0 %v204
  %259 = vmatprep.subr.bf16.mxu0 0
  %260 = vmatpush1.bf16.msra.mxu0 %v205
  %261 = vmatprep.subr.bf16.mxu0 0
  %262 = vmatpush1.bf16.msra.mxu0 %v206
  %263 = vmatprep.subr.bf16.mxu0 0
  %264 = vmatpush1.bf16.msra.mxu0 %v207
  %265 = vmatprep.subr.bf16.mxu0 0
  %266 = vmatpush1.bf16.msra.mxu0 %v208
  %267 = vmatprep.subr.bf16.mxu0 0
  %268 = vmatpush1.bf16.msra.mxu0 %v209
  %269 = vmatprep.mubr.bf16.mxu0 %v113
  %270 = vmatmul.mubr.bf16.gmra.mrb[0].mxu0 %v112
  %v271 = vpop.f32.mrb[0].mxu0
  %v272 = vadd.f32 %v75, %v271
  %v273 = vpop.f32.mrb[0].mxu0
  %v274 = vpop.f32.mrb[0].mxu0
  %v275 = vadd.f32 %v80, %v274
  %v276 = vpop.f32.mrb[0].mxu0
  %277 = vmatprep.mubr.bf16.mxu0 %v116
  %278 = vmatmul.mubr.bf16.gmra.mrb[0].mxu0 %v115
  %v279 = vpop.f32.mrb[0].mxu0
  %v280 = vadd.f32 %v85, %v279
  %v281 = vpop.f32.mrb[0].mxu0
  %v282 = vpop.f32.mrb[0].mxu0
  %v283 = vadd.f32 %v90, %v282
  %v284 = vpop.f32.mrb[0].mxu0
  %285 = vdwg.mxu0
  %286 = vmatprep.subr.bf16.mxu0 0
  %287 = vmatpush1.bf16.msra.mxu0 %v210
  %288 = vmatprep.subr.bf16.mxu0 0
  %289 = vmatpush1.bf16.msra.mxu0 %v211
  %290 = vmatprep.subr.bf16.mxu0 0
  %291 = vmatpush1.bf16.msra.mxu0 0
  %292 = vmatprep.subr.bf16.mxu0 0
  %293 = vmatpush1.bf16.msra.mxu0 0
  %294 = vmatprep.subr.bf16.mxu0 0
  %295 = vmatpush1.bf16.msra.mxu0 0
  %296 = vmatprep.subr.bf16.mxu0 0
  %297 = vmatpush1.bf16.msra.mxu0 0
  %298 = vmatprep.subr.bf16.mxu0 0
  %299 = vmatpush1.bf16.msra.mxu0 0
  %300 = vmatprep.subr.bf16.mxu0 0
  %301 = vmatpush1.bf16.msra.mxu0 0
  %302 = vmatprep.subr.bf16.mxu0 0
  %303 = vmatpush1.bf16.msra.mxu0 0
  %304 = vmatprep.subr.bf16.mxu0 0
  %305 = vmatpush1.bf16.msra.mxu0 0
  %306 = vmatprep.subr.bf16.mxu0 0
  %307 = vmatpush1.bf16.msra.mxu0 0
  %308 = vmatprep.subr.bf16.mxu0 0
  %309 = vmatpush1.bf16.msra.mxu0 0
  %310 = vmatprep.subr.bf16.mxu0 0
  %311 = vmatpush1.bf16.msra.mxu0 0
  %312 = vmatprep.subr.bf16.mxu0 0
  %313 = vmatpush1.bf16.msra.mxu0 0
  %314 = vmatprep.subr.bf16.mxu0 0
  %315 = vmatpush1.bf16.msra.mxu0 0
  %316 = vmatprep.subr.bf16.mxu0 0
  %317 = vmatpush1.bf16.msra.mxu0 0
  %318 = vmatprep.mubr.bf16.mxu0 0
  %319 = vmatmul.mubr.bf16.gmra.mrb[0].mxu0 %v232
  %v320 = vpop.f32.mrb[0].mxu0
  %v321 = vadd.f32 %v272, %v320
  %v322 = vpop.f32.mrb[0].mxu0
  %v323 = vpop.f32.mrb[0].mxu0
  %v324 = vadd.f32 %v275, %v323
  %v325 = vpop.f32.mrb[0].mxu0
  %326 = vmatprep.mubr.bf16.mxu0 0
  %327 = vmatmul.mubr.bf16.gmra.mrb[0].mxu0 %v235
  %v328 = vpop.f32.mrb[0].mxu0
  %v329 = vadd.f32 %v280, %v328
  %v330 = vpop.f32.mrb[0].mxu0
  %v331 = vpop.f32.mrb[0].mxu0
  %v332 = vadd.f32 %v283, %v331
  %v333 = vpop.f32.mrb[0].mxu0
  %334 = vdwg.mxu0
  %335 = vadd.xlane.f32.xlu0 %v321
  %v336 = vpop.xlane.xlu0 %335
  %337 = vadd.xlane.f32.xlu0 %v324
  %v338 = vpop.xlane.xlu0 %337
  %339 = vadd.xlane.f32.xlu0 %v329
  %v340 = vpop.xlane.xlu0 %339
  %341 = vadd.xlane.f32.xlu0 %v332
  %v342 = vpop.xlane.xlu0 %341
  %v343 = vmul.f32 %v336, 0.0078125
  %v344 = vmul.f32 %v338, 0.0078125
  %v345 = vmul.f32 %v340, 0.0078125
  %v346 = vmul.f32 %v342, 0.0078125
  %v347 = vsub.f32 %v321, %v343
  %v348 = vsub.f32 %v324, %v344
  %v349 = vsub.f32 %v329, %v345
  %v350 = vsub.f32 %v332, %v346
  %v351 = vmul.f32 %v347, %v347
  %v352 = vmul.f32 %v348, %v348
  %v353 = vmul.f32 %v349, %v349
  %v354 = vmul.f32 %v350, %v350
  %355 = vadd.xlane.f32.xlu0 %v351
  %v356 = vpop.xlane.xlu0 %355
  %357 = vadd.xlane.f32.xlu0 %v352
  %v358 = vpop.xlane.xlu0 %357
  %359 = vadd.xlane.f32.xlu0 %v353
  %v360 = vpop.xlane.xlu0 %359
  %361 = vadd.xlane.f32.xlu0 %v354
  %v362 = vpop.xlane.xlu0 %361
  %v363 = vmul.f32 %v356, 0.0078125
  %v364 = vmul.f32 %v358, 0.0078125
  %v365 = vmul.f32 %v360, 0.0078125
  %v366 = vmul.f32 %v362, 0.0078125
  %v367 = vld [vmem:[%s3] sm:$0xff]
  %v368 = vld [vmem:[%s3 + $0x8] sm:$0xff]
  %v369 = vld [vmem:[%s3 + $0x10] sm:$0xff]
  %v370 = vld [vmem:[%s3 + $0x18] sm:$0xff]
  %v371 = vadd.f32 %v363, 1e-05
  %v372 = vadd.f32 %v364, 1e-05
  %v373 = vadd.f32 %v365, 1e-05
  %v374 = vadd.f32 %v366, 1e-05
  %v375 = vrsqrt.pop %v371
  %v376 = vrsqrt.pop %v372
  %v377 = vrsqrt.pop %v373
  %v378 = vrsqrt.pop %v374
  %v379 = vmul.f32 %v367, %v375
  %v380 = vmul.f32 %v368, %v376
  %v381 = vmul.f32 %v369, %v377
  %v382 = vmul.f32 %v370, %v378
  %384 = vset.pattern.permute.xlu0 0
  %385 = vperm.xlu0 %384, %v379
  %v386 = vpop.permute.xlu0 %385
  %389 = vset.pattern.permute.xlu0 0
  %390 = vperm.xlu0 %389, %v380
  %v391 = vpop.permute.xlu0 %390
  %394 = vset.pattern.permute.xlu0 0
  %395 = vperm.xlu0 %394, %v381
  %v396 = vpop.permute.xlu0 %395
  %399 = vset.pattern.permute.xlu0 0
  %400 = vperm.xlu0 %399, %v382
  %v401 = vpop.permute.xlu0 %400
  %v403 = vmul.f32 %v347, %v386
  %v404 = vmul.f32 %v348, %v391
  %v405 = vmul.f32 %v349, %v396
  %v406 = vmul.f32 %v350, %v401
  %v407 = vld [vmem:[%s4] sm:$0xff]
  %v408 = vld [vmem:[%s4 + $0x8] sm:$0xff]
  %v409 = vld [vmem:[%s4 + $0x10] sm:$0xff]
  %v410 = vld [vmem:[%s4 + $0x18] sm:$0xff]
  %412 = vset.pattern.permute.xlu0 0
  %413 = vperm.xlu0 %412, %v407
  %v414 = vpop.permute.xlu0 %413
  %417 = vset.pattern.permute.xlu0 0
  %418 = vperm.xlu0 %417, %v408
  %v419 = vpop.permute.xlu0 %418
  %422 = vset.pattern.permute.xlu0 0
  %423 = vperm.xlu0 %422, %v409
  %v424 = vpop.permute.xlu0 %423
  %427 = vset.pattern.permute.xlu0 0
  %428 = vperm.xlu0 %427, %v410
  %v429 = vpop.permute.xlu0 %428
  %v431 = vadd.f32 %v403, %v414
  %v432 = vadd.f32 %v404, %v419
  %v433 = vadd.f32 %v405, %v424
  %v434 = vadd.f32 %v406, %v429
  %v435 = vld [vmem:[%s5] sm:$0xff]
  %v436 = vld [vmem:[%s5 + $0x8] sm:$0xff]
  %v437 = vld [vmem:[%s5 + $0x10] sm:$0xff]
  %v438 = vld [vmem:[%s5 + $0x18] sm:$0xff]
  %v439 = vadd.f32 %v431, %v435
  %v440 = vadd.f32 %v432, %v436
  %v441 = vadd.f32 %v433, %v437
  %v442 = vadd.f32 %v434, %v438
  %v443 = vmax.f32 %v439, 0.0
  %v444 = vmax.f32 %v440, 0.0
  %v445 = vmax.f32 %v441, 0.0
  %v446 = vmax.f32 %v442, 0.0
  %v447 = vpack.c.bf16 %v444, %v443
  %v448 = vpack.c.bf16 %v446, %v445
  %v451 = vunpack.c.l.b16 %v447
  %v452 = vunpack.c.h.b16 %v447
  %v453 = vunpack.c.l.b16 %v448
  %v454 = vunpack.c.h.b16 %v448
  %v455 = vpack.c.b16 %v451, %v451
  %v456 = vpack.c.b16 %v452, %v452
  %v457 = vpack.c.b16 %v453, %v453
  %v458 = vpack.c.b16 %v454, %v454
  %463 = vst [vmem:[%s6] sm:$0xf] %v455
  %464 = vst [vmem:[%s6 + $0x4] sm:$0xf] %v456
  %465 = vst [vmem:[%s6 + $0x8] sm:$0xf] %v457
  %466 = vst [vmem:[%s6 + $0xc] sm:$0xf] %v458
  // Predicated region
  $region26: #{resnet_iid_forward.30} parent=0 // pred_check
    _
  $region27: #{resnet_iid_forward.30} parent=0 // pred_check_branch
    %468 = sbr.rel (0) target = $region29
  $region28: #{resnet_iid_forward.30} parent=0 // pred_region
    _
  $region29: #{resnet_iid_forward.30} parent=0 // pred_fallthru
    _
  // Predicated region
  $region30: #{resnet_iid_forward.30} parent=0 // pred_check
    _
  $region31: #{resnet_iid_forward.30} parent=0 // pred_check_branch
    %470 = sbr.rel (0) target = $region33
  $region32: #{resnet_iid_forward.30} parent=0 // pred_region
    _
  $region33: #{resnet_iid_forward.30} parent=0 // pred_fallthru
    _

// kernel: resnet_iid_forward.32
$region0: #{resnet_iid_forward.32}
  #allocation0 [shape = 'u32[]', space=smem, size = 0x4, offset = 0x4, fixed_abs, tag = 'smem constant byte address 0x4 - core index']
  #allocation1 [shape = 'u32[144,128]{1,0:T(1,128)}', space=vmem, size = 0x12000, scoped, tag = 'internal scratch']
  %s0 = inlined_call_operand.vmem [shape: bf16[288,128], index: 0, kind: input, shape index: {}]
  %s1 = inlined_call_operand.vmem [shape: bf16[32,288], index: 1, kind: input, shape index: {}]
  %s2 = inlined_call_operand.vmem [shape: f32[32,1], index: 2, kind: input, shape index: {}]
  %s3 = inlined_call_operand.vmem [shape: f32[32,1], index: 3, kind: input, shape index: {}]
  %s4 = inlined_call_operand.vmem [shape: f32[32,1], index: 4, kind: input, shape index: {}]
  %s5 = inlined_call_operand.vmem [shape: bf16[32,128], index: 5, kind: input, shape index: {}]
  %s6 = inlined_call_operand.vmem [shape: bf16[32,128], index: 6, kind: output, shape index: {}]
  %s7 = sld [smem:[#allocation0]]
  $region34: #{resnet_iid_forward.32} parent=0
    _
  %s9 = ssub.s32 1, %s7
  %s10 = scalar_select 0, %s9, %s7
  // Predicated region
  $region2: #{resnet_iid_forward.32} parent=0 // pred_check
    _
  $region3: #{resnet_iid_forward.32} parent=0 // pred_check_branch
    %12 = sbr.rel (0) target = $region5
  $region4: #{resnet_iid_forward.32} parent=0 // pred_region
    _
  $region5: #{resnet_iid_forward.32} parent=0 // pred_fallthru
    _
  // Predicated region
  $region6: #{resnet_iid_forward.32} parent=0 // pred_check
    _
  $region7: #{resnet_iid_forward.32} parent=0 // pred_check_branch
    %14 = sbr.rel (0) target = $region9
  $region8: #{resnet_iid_forward.32} parent=0 // pred_region
    _
  $region9: #{resnet_iid_forward.32} parent=0 // pred_fallthru
    _
  // Predicated region
  $region10: #{resnet_iid_forward.32} parent=0 // pred_check
    _
  $region11: #{resnet_iid_forward.32} parent=0 // pred_check_branch
    %16 = sbr.rel (0) target = $region13
  $region12: #{resnet_iid_forward.32} parent=0 // pred_region
    _
  $region13: #{resnet_iid_forward.32} parent=0 // pred_fallthru
    _
  // Predicated region
  $region14: #{resnet_iid_forward.32} parent=0 // pred_check
    _
  $region15: #{resnet_iid_forward.32} parent=0 // pred_check_branch
    %18 = sbr.rel (0) target = $region17
  $region16: #{resnet_iid_forward.32} parent=0 // pred_region
    _
  $region17: #{resnet_iid_forward.32} parent=0 // pred_fallthru
    _
  // Predicated region
  $region18: #{resnet_iid_forward.32} parent=0 // pred_check
    _
  $region19: #{resnet_iid_forward.32} parent=0 // pred_check_branch
    %20 = sbr.rel (0) target = $region21
  $region20: #{resnet_iid_forward.32} parent=0 // pred_region
    _
  $region21: #{resnet_iid_forward.32} parent=0 // pred_fallthru
    _
  // Predicated region
  $region22: #{resnet_iid_forward.32} parent=0 // pred_check
    _
  $region23: #{resnet_iid_forward.32} parent=0 // pred_check_branch
    %22 = sbr.rel (0) target = $region25
  $region24: #{resnet_iid_forward.32} parent=0 // pred_region
    _
  $region25: #{resnet_iid_forward.32} parent=0 // pred_fallthru
    _
  %v24 = vld [vmem:[%s1] sm:$0xff]
  %v25 = vld [vmem:[%s1 + $0x8] sm:$0xf]
  %v26 = vld [vmem:[%s1 + $0xc] sm:$0xff]
  %v27 = vld [vmem:[%s1 + $0x14] sm:$0xf]
  %v28 = vld [vmem:[%s1 + $0x18] sm:$0xff]
  %v29 = vld [vmem:[%s1 + $0x20] sm:$0xf]
  %v30 = vld [vmem:[%s1 + $0x24] sm:$0xff]
  %v31 = vld [vmem:[%s1 + $0x2c] sm:$0xf]
  %v32 = vld [vmem:[%s0] sm:$0xf]
  %v33 = vld [vmem:[%s0 + $0x4] sm:$0xf]
  %v34 = vld [vmem:[%s0 + $0x8] sm:$0xf]
  %v35 = vld [vmem:[%s0 + $0xc] sm:$0xf]
  %v36 = vld [vmem:[%s0 + $0x10] sm:$0xf]
  %v37 = vld [vmem:[%s0 + $0x14] sm:$0xf]
  %v38 = vld [vmem:[%s0 + $0x18] sm:$0xf]
  %v39 = vld [vmem:[%s0 + $0x1c] sm:$0xf]
  %v40 = vld [vmem:[%s0 + $0x20] sm:$0xf]
  %v41 = vld [vmem:[%s0 + $0x24] sm:$0xf]
  %v42 = vld [vmem:[%s0 + $0x28] sm:$0xf]
  %v43 = vld [vmem:[%s0 + $0x2c] sm:$0xf]
  %v44 = vld [vmem:[%s0 + $0x30] sm:$0xf]
  %v45 = vld [vmem:[%s0 + $0x34] sm:$0xf]
  %v46 = vld [vmem:[%s0 + $0x38] sm:$0xf]
  %v47 = vld [vmem:[%s0 + $0x3c] sm:$0xf]
  %v48 = vld [vmem:[%s0 + $0x40] sm:$0xf]
  %v49 = vld [vmem:[%s0 + $0x44] sm:$0xf]
  %v50 = vld [vmem:[%s0 + $0x48] sm:$0xf]
  %v51 = vld [vmem:[%s0 + $0x4c] sm:$0xf]
  %v52 = vld [vmem:[%s0 + $0x50] sm:$0xf]
  %v53 = vld [vmem:[%s0 + $0x54] sm:$0xf]
  %v54 = vld [vmem:[%s0 + $0x58] sm:$0xf]
  %v55 = vld [vmem:[%s0 + $0x5c] sm:$0xf]
  %v56 = vld [vmem:[%s0 + $0x60] sm:$0xf]
  %v57 = vld [vmem:[%s0 + $0x64] sm:$0xf]
  %v58 = vld [vmem:[%s0 + $0x68] sm:$0xf]
  %v59 = vld [vmem:[%s0 + $0x6c] sm:$0xf]
  %v60 = vld [vmem:[%s0 + $0x70] sm:$0xf]
  %v61 = vld [vmem:[%s0 + $0x74] sm:$0xf]
  %v62 = vld [vmem:[%s0 + $0x78] sm:$0xf]
  %v63 = vld [vmem:[%s0 + $0x7c] sm:$0xf]
  %v64 = vld [vmem:[%s0 + $0x80] sm:$0xf]
  %v65 = vld [vmem:[%s0 + $0x84] sm:$0xf]
  %v66 = vld [vmem:[%s0 + $0x88] sm:$0xf]
  %v67 = vld [vmem:[%s0 + $0x8c] sm:$0xf]
  %v68 = vld [vmem:[%s2] sm:$0xff]
  %v69 = vld [vmem:[%s2 + $0x8] sm:$0xff]
  %v70 = vld [vmem:[%s2 + $0x10] sm:$0xff]
  %v71 = vld [vmem:[%s2 + $0x18] sm:$0xff]
  %73 = vset.pattern.permute.xlu0 0
  %74 = vperm.xlu0 %73, %v68
  %v75 = vpop.permute.xlu0 %74
  %78 = vset.pattern.permute.xlu0 0
  %79 = vperm.xlu0 %78, %v69
  %v80 = vpop.permute.xlu0 %79
  %83 = vset.pattern.permute.xlu0 0
  %84 = vperm.xlu0 %83, %v70
  %v85 = vpop.permute.xlu0 %84
  %88 = vset.pattern.permute.xlu0 0
  %89 = vperm.xlu0 %88, %v71
  %v90 = vpop.permute.xlu0 %89
  %v100 = vunpack.c.l.b16 %v24
  %v101 = vunpack.c.h.b16 %v24
  %v102 = vunpack.c.l.b16 %v25
  %v103 = vunpack.c.l.b16 %v26
  %v104 = vunpack.c.h.b16 %v26
  %v105 = vunpack.c.l.b16 %v27
  %v106 = vunpack.c.l.b16 %v28
  %v107 = vunpack.c.h.b16 %v28
  %v108 = vunpack.c.l.b16 %v29
  %v109 = vunpack.c.l.b16 %v30
  %v110 = vunpack.c.h.b16 %v30
  %v111 = vunpack.c.l.b16 %v31
  %v112 = vpack.c.b16 %v103, %v100
  %v113 = vpack.c.b16 %v104, %v101
  %v114 = vpack.c.b16 %v105, %v102
  %v115 = vpack.c.b16 %v109, %v106
  %v116 = vpack.c.b16 %v110, %v107
  %v117 = vpack.c.b16 %v111, %v108
  %v158 = vunpack.c.l.b16 %v32
  %v159 = vunpack.c.l.b16 %v33
  %v160 = vunpack.c.l.b16 %v34
  %v161 = vunpack.c.l.b16 %v35
  %v162 = vunpack.c.l.b16 %v36
  %v163 = vunpack.c.l.b16 %v37
  %v164 = vunpack.c.l.b16 %v38
  %v165 = vunpack.c.l.b16 %v39
  %v166 = vunpack.c.l.b16 %v40
  %v167 = vunpack.c.l.b16 %v41
  %v168 = vunpack.c.l.b16 %v42
  %v169 = vunpack.c.l.b16 %v43
  %v170 = vunpack.c.l.b16 %v44
  %v171 = vunpack.c.l.b16 %v45
  %v172 = vunpack.c.l.b16 %v46
  %v173 = vunpack.c.l.b16 %v47
  %v174 = vunpack.c.l.b16 %v48
  %v175 = vunpack.c.l.b16 %v49
  %v176 = vunpack.c.l.b16 %v50
  %v177 = vunpack.c.l.b16 %v51
  %v178 = vunpack.c.l.b16 %v52
  %v179 = vunpack.c.l.b16 %v53
  %v180 = vunpack.c.l.b16 %v54
  %v181 = vunpack.c.l.b16 %v55
  %v182 = vunpack.c.l.b16 %v56
  %v183 = vunpack.c.l.b16 %v57
  %v184 = vunpack.c.l.b16 %v58
  %v185 = vunpack.c.l.b16 %v59
  %v186 = vunpack.c.l.b16 %v60
  %v187 = vunpack.c.l.b16 %v61
  %v188 = vunpack.c.l.b16 %v62
  %v189 = vunpack.c.l.b16 %v63
  %v190 = vunpack.c.l.b16 %v64
  %v191 = vunpack.c.l.b16 %v65
  %v192 = vunpack.c.l.b16 %v66
  %v193 = vunpack.c.l.b16 %v67
  %v194 = vpack.c.b16 %v159, %v158
  %v195 = vpack.c.b16 %v161, %v160
  %v196 = vpack.c.b16 %v163, %v162
  %v197 = vpack.c.b16 %v165, %v164
  %v198 = vpack.c.b16 %v167, %v166
  %v199 = vpack.c.b16 %v169, %v168
  %v200 = vpack.c.b16 %v171, %v170
  %v201 = vpack.c.b16 %v173, %v172
  %v202 = vpack.c.b16 %v175, %v174
  %v203 = vpack.c.b16 %v177, %v176
  %v204 = vpack.c.b16 %v179, %v178
  %v205 = vpack.c.b16 %v181, %v180
  %v206 = vpack.c.b16 %v183, %v182
  %v207 = vpack.c.b16 %v185, %v184
  %v208 = vpack.c.b16 %v187, %v186
  %v209 = vpack.c.b16 %v189, %v188
  %v210 = vpack.c.b16 %v191, %v190
  %v211 = vpack.c.b16 %v193, %v192
  %vm230 = vcmask 261120
  %v232 = vsel %vm230, %v114, 0
  %v235 = vsel %vm230, %v117, 0
  %237 = vmatprep.subr.bf16.mxu0 0
  %238 = vmatpush1.bf16.msra.mxu0 %v194
  %239 = vmatprep.subr.bf16.mxu0 0
  %240 = vmatpush1.bf16.msra.mxu0 %v195
  %241 = vmatprep.subr.bf16.mxu0 0
  %242 = vmatpush1.bf16.msra.mxu0 %v196
  %243 = vmatprep.subr.bf16.mxu0 0
  %244 = vmatpush1.bf16.msra.mxu0 %v197
  %245 = vmatprep.subr.bf16.mxu0 0
  %246 = vmatpush1.bf16.msra.mxu0 %v198
  %247 = vmatprep.subr.bf16.mxu0 0
  %248 = vmatpush1.bf16.msra.mxu0 %v199
  %249 = vmatprep.subr.bf16.mxu0 0
  %250 = vmatpush1.bf16.msra.mxu0 %v200
  %251 = vmatprep.subr.bf16.mxu0 0
  %252 = vmatpush1.bf16.msra.mxu0 %v201
  %253 = vmatprep.subr.bf16.mxu0 0
  %254 = vmatpush1.bf16.msra.mxu0 %v202
  %255 = vmatprep.subr.bf16.mxu0 0
  %256 = vmatpush1.bf16.msra.mxu0 %v203
  %257 = vmatprep.subr.bf16.mxu0 0
  %258 = vmatpush1.bf16.msra.mxu0 %v204
  %259 = vmatprep.subr.bf16.mxu0 0
  %260 = vmatpush1.bf16.msra.mxu0 %v205
  %261 = vmatprep.subr.bf16.mxu0 0
  %262 = vmatpush1.bf16.msra.mxu0 %v206
  %263 = vmatprep.subr.bf16.mxu0 0
  %264 = vmatpush1.bf16.msra.mxu0 %v207
  %265 = vmatprep.subr.bf16.mxu0 0
  %266 = vmatpush1.bf16.msra.mxu0 %v208
  %267 = vmatprep.subr.bf16.mxu0 0
  %268 = vmatpush1.bf16.msra.mxu0 %v209
  %269 = vmatprep.mubr.bf16.mxu0 %v113
  %270 = vmatmul.mubr.bf16.gmra.mrb[0].mxu0 %v112
  %v271 = vpop.f32.mrb[0].mxu0
  %v272 = vadd.f32 %v75, %v271
  %v273 = vpop.f32.mrb[0].mxu0
  %v274 = vpop.f32.mrb[0].mxu0
  %v275 = vadd.f32 %v80, %v274
  %v276 = vpop.f32.mrb[0].mxu0
  %277 = vmatprep.mubr.bf16.mxu0 %v116
  %278 = vmatmul.mubr.bf16.gmra.mrb[0].mxu0 %v115
  %v279 = vpop.f32.mrb[0].mxu0
  %v280 = vadd.f32 %v85, %v279
  %v281 = vpop.f32.mrb[0].mxu0
  %v282 = vpop.f32.mrb[0].mxu0
  %v283 = vadd.f32 %v90, %v282
  %v284 = vpop.f32.mrb[0].mxu0
  %285 = vdwg.mxu0
  %286 = vmatprep.subr.bf16.mxu0 0
  %287 = vmatpush1.bf16.msra.mxu0 %v210
  %288 = vmatprep.subr.bf16.mxu0 0
  %289 = vmatpush1.bf16.msra.mxu0 %v211
  %290 = vmatprep.subr.bf16.mxu0 0
  %291 = vmatpush1.bf16.msra.mxu0 0
  %292 = vmatprep.subr.bf16.mxu0 0
  %293 = vmatpush1.bf16.msra.mxu0 0
  %294 = vmatprep.subr.bf16.mxu0 0
  %295 = vmatpush1.bf16.msra.mxu0 0
  %296 = vmatprep.subr.bf16.mxu0 0
  %297 = vmatpush1.bf16.msra.mxu0 0
  %298 = vmatprep.subr.bf16.mxu0 0
  %299 = vmatpush1.bf16.msra.mxu0 0
  %300 = vmatprep.subr.bf16.mxu0 0
  %301 = vmatpush1.bf16.msra.mxu0 0
  %302 = vmatprep.subr.bf16.mxu0 0
  %303 = vmatpush1.bf16.msra.mxu0 0
  %304 = vmatprep.subr.bf16.mxu0 0
  %305 = vmatpush1.bf16.msra.mxu0 0
  %306 = vmatprep.subr.bf16.mxu0 0
  %307 = vmatpush1.bf16.msra.mxu0 0
  %308 = vmatprep.subr.bf16.mxu0 0
  %309 = vmatpush1.bf16.msra.mxu0 0
  %310 = vmatprep.subr.bf16.mxu0 0
  %311 = vmatpush1.bf16.msra.mxu0 0
  %312 = vmatprep.subr.bf16.mxu0 0
  %313 = vmatpush1.bf16.msra.mxu0 0
  %314 = vmatprep.subr.bf16.mxu0 0
  %315 = vmatpush1.bf16.msra.mxu0 0
  %316 = vmatprep.subr.bf16.mxu0 0
  %317 = vmatpush1.bf16.msra.mxu0 0
  %318 = vmatprep.mubr.bf16.mxu0 0
  %319 = vmatmul.mubr.bf16.gmra.mrb[0].mxu0 %v232
  %v320 = vpop.f32.mrb[0].mxu0
  %v321 = vadd.f32 %v272, %v320
  %v322 = vpop.f32.mrb[0].mxu0
  %v323 = vpop.f32.mrb[0].mxu0
  %v324 = vadd.f32 %v275, %v323
  %v325 = vpop.f32.mrb[0].mxu0
  %326 = vmatprep.mubr.bf16.mxu0 0
  %327 = vmatmul.mubr.bf16.gmra.mrb[0].mxu0 %v235
  %v328 = vpop.f32.mrb[0].mxu0
  %v329 = vadd.f32 %v280, %v328
  %v330 = vpop.f32.mrb[0].mxu0
  %v331 = vpop.f32.mrb[0].mxu0
  %v332 = vadd.f32 %v283, %v331
  %v333 = vpop.f32.mrb[0].mxu0
  %334 = vdwg.mxu0
  %335 = vadd.xlane.f32.xlu0 %v321
  %v336 = vpop.xlane.xlu0 %335
  %337 = vadd.xlane.f32.xlu0 %v324
  %v338 = vpop.xlane.xlu0 %337
  %339 = vadd.xlane.f32.xlu0 %v329
  %v340 = vpop.xlane.xlu0 %339
  %341 = vadd.xlane.f32.xlu0 %v332
  %v342 = vpop.xlane.xlu0 %341
  %v343 = vmul.f32 %v336, 0.0078125
  %v344 = vmul.f32 %v338, 0.0078125
  %v345 = vmul.f32 %v340, 0.0078125
  %v346 = vmul.f32 %v342, 0.0078125
  %v347 = vsub.f32 %v321, %v343
  %v348 = vsub.f32 %v324, %v344
  %v349 = vsub.f32 %v329, %v345
  %v350 = vsub.f32 %v332, %v346
  %v351 = vmul.f32 %v347, %v347
  %v352 = vmul.f32 %v348, %v348
  %v353 = vmul.f32 %v349, %v349
  %v354 = vmul.f32 %v350, %v350
  %355 = vadd.xlane.f32.xlu0 %v351
  %v356 = vpop.xlane.xlu0 %355
  %357 = vadd.xlane.f32.xlu0 %v352
  %v358 = vpop.xlane.xlu0 %357
  %359 = vadd.xlane.f32.xlu0 %v353
  %v360 = vpop.xlane.xlu0 %359
  %361 = vadd.xlane.f32.xlu0 %v354
  %v362 = vpop.xlane.xlu0 %361
  %v363 = vmul.f32 %v356, 0.0078125
  %v364 = vmul.f32 %v358, 0.0078125
  %v365 = vmul.f32 %v360, 0.0078125
  %v366 = vmul.f32 %v362, 0.0078125
  %v367 = vld [vmem:[%s3] sm:$0xff]
  %v368 = vld [vmem:[%s3 + $0x8] sm:$0xff]
  %v369 = vld [vmem:[%s3 + $0x10] sm:$0xff]
  %v370 = vld [vmem:[%s3 + $0x18] sm:$0xff]
  %v371 = vadd.f32 %v363, 1e-05
  %v372 = vadd.f32 %v364, 1e-05
  %v373 = vadd.f32 %v365, 1e-05
  %v374 = vadd.f32 %v366, 1e-05
  %v375 = vrsqrt.pop %v371
  %v376 = vrsqrt.pop %v372
  %v377 = vrsqrt.pop %v373
  %v378 = vrsqrt.pop %v374
  %v379 = vmul.f32 %v367, %v375
  %v380 = vmul.f32 %v368, %v376
  %v381 = vmul.f32 %v369, %v377
  %v382 = vmul.f32 %v370, %v378
  %384 = vset.pattern.permute.xlu0 0
  %385 = vperm.xlu0 %384, %v379
  %v386 = vpop.permute.xlu0 %385
  %389 = vset.pattern.permute.xlu0 0
  %390 = vperm.xlu0 %389, %v380
  %v391 = vpop.permute.xlu0 %390
  %394 = vset.pattern.permute.xlu0 0
  %395 = vperm.xlu0 %394, %v381
  %v396 = vpop.permute.xlu0 %395
  %399 = vset.pattern.permute.xlu0 0
  %400 = vperm.xlu0 %399, %v382
  %v401 = vpop.permute.xlu0 %400
  %v403 = vmul.f32 %v347, %v386
  %v404 = vmul.f32 %v348, %v391
  %v405 = vmul.f32 %v349, %v396
  %v406 = vmul.f32 %v350, %v401
  %v407 = vld [vmem:[%s4] sm:$0xff]
  %v408 = vld [vmem:[%s4 + $0x8] sm:$0xff]
  %v409 = vld [vmem:[%s4 + $0x10] sm:$0xff]
  %v410 = vld [vmem:[%s4 + $0x18] sm:$0xff]
  %412 = vset.pattern.permute.xlu0 0
  %413 = vperm.xlu0 %412, %v407
  %v414 = vpop.permute.xlu0 %413
  %417 = vset.pattern.permute.xlu0 0
  %418 = vperm.xlu0 %417, %v408
  %v419 = vpop.permute.xlu0 %418
  %422 = vset.pattern.permute.xlu0 0
  %423 = vperm.xlu0 %422, %v409
  %v424 = vpop.permute.xlu0 %423
  %427 = vset.pattern.permute.xlu0 0
  %428 = vperm.xlu0 %427, %v410
  %v429 = vpop.permute.xlu0 %428
  %v431 = vadd.f32 %v403, %v414
  %v432 = vadd.f32 %v404, %v419
  %v433 = vadd.f32 %v405, %v424
  %v434 = vadd.f32 %v406, %v429
  %v435 = vld [vmem:[%s5] sm:$0xf]
  %v436 = vld [vmem:[%s5 + $0x4] sm:$0xf]
  %v437 = vld [vmem:[%s5 + $0x8] sm:$0xf]
  %v438 = vld [vmem:[%s5 + $0xc] sm:$0xf]
  %v439 = vunpack.c.l.bf16 %v435
  %v440 = vunpack.c.l.bf16 %v436
  %v441 = vunpack.c.l.bf16 %v437
  %v442 = vunpack.c.l.bf16 %v438
  %v443 = vadd.f32 %v431, %v439
  %v444 = vadd.f32 %v432, %v440
  %v445 = vadd.f32 %v433, %v441
  %v446 = vadd.f32 %v434, %v442
  %v447 = vmax.f32 %v443, 0.0
  %v448 = vmax.f32 %v444, 0.0
  %v449 = vmax.f32 %v445, 0.0
  %v450 = vmax.f32 %v446, 0.0
  %v451 = vpack.c.bf16 %v448, %v447
  %v452 = vpack.c.bf16 %v450, %v449
  %v455 = vunpack.c.l.b16 %v451
  %v456 = vunpack.c.h.b16 %v451
  %v457 = vunpack.c.l.b16 %v452
  %v458 = vunpack.c.h.b16 %v452
  %v459 = vpack.c.b16 %v455, %v455
  %v460 = vpack.c.b16 %v456, %v456
  %v461 = vpack.c.b16 %v457, %v457
  %v462 = vpack.c.b16 %v458, %v458
  %467 = vst [vmem:[%s6] sm:$0xf] %v459
  %468 = vst [vmem:[%s6 + $0x4] sm:$0xf] %v460
  %469 = vst [vmem:[%s6 + $0x8] sm:$0xf] %v461
  %470 = vst [vmem:[%s6 + $0xc] sm:$0xf] %v462
  // Predicated region
  $region26: #{resnet_iid_forward.32} parent=0 // pred_check
    _
  $region27: #{resnet_iid_forward.32} parent=0 // pred_check_branch
    %472 = sbr.rel (0) target = $region29
  $region28: #{resnet_iid_forward.32} parent=0 // pred_region
    _
  $region29: #{resnet_iid_forward.32} parent=0 // pred_fallthru
    _
  // Predicated region
  $region30: #{resnet_iid_forward.32} parent=0 // pred_check
    _
  $region31: #{resnet_iid_forward.32} parent=0 // pred_check_branch
    %474 = sbr.rel (0) target = $region33
  $region32: #{resnet_iid_forward.32} parent=0 // pred_region
    _
  $region33: #{resnet_iid_forward.32} parent=0 // pred_fallthru
    _

// kernel: resnet_iid_forward.31
$region0: #{resnet_iid_forward.31}
  #allocation0 [shape = 'u32[]', space=smem, size = 0x4, offset = 0x4, fixed_abs, tag = 'smem constant byte address 0x4 - core index']
  #allocation1 [shape = 'u32[144,128]{1,0:T(1,128)}', space=vmem, size = 0x12000, scoped, tag = 'internal scratch']
  %s0 = inlined_call_operand.vmem [shape: bf16[288,128], index: 0, kind: input, shape index: {}]
  %s1 = inlined_call_operand.vmem [shape: bf16[32,288], index: 1, kind: input, shape index: {}]
  %s2 = inlined_call_operand.vmem [shape: f32[32,1], index: 2, kind: input, shape index: {}]
  %s3 = inlined_call_operand.vmem [shape: f32[32,1], index: 3, kind: input, shape index: {}]
  %s4 = inlined_call_operand.vmem [shape: f32[32,1], index: 4, kind: input, shape index: {}]
  %s5 = inlined_call_operand.vmem [shape: bf16[32,128], index: 5, kind: output, shape index: {}]
  %s6 = sld [smem:[#allocation0]]
  $region30: #{resnet_iid_forward.31} parent=0
    _
  %s8 = ssub.s32 1, %s6
  %s9 = scalar_select 0, %s8, %s6
  // Predicated region
  $region2: #{resnet_iid_forward.31} parent=0 // pred_check
    _
  $region3: #{resnet_iid_forward.31} parent=0 // pred_check_branch
    %11 = sbr.rel (0) target = $region5
  $region4: #{resnet_iid_forward.31} parent=0 // pred_region
    _
  $region5: #{resnet_iid_forward.31} parent=0 // pred_fallthru
    _
  // Predicated region
  $region6: #{resnet_iid_forward.31} parent=0 // pred_check
    _
  $region7: #{resnet_iid_forward.31} parent=0 // pred_check_branch
    %13 = sbr.rel (0) target = $region9
  $region8: #{resnet_iid_forward.31} parent=0 // pred_region
    _
  $region9: #{resnet_iid_forward.31} parent=0 // pred_fallthru
    _
  // Predicated region
  $region10: #{resnet_iid_forward.31} parent=0 // pred_check
    _
  $region11: #{resnet_iid_forward.31} parent=0 // pred_check_branch
    %15 = sbr.rel (0) target = $region13
  $region12: #{resnet_iid_forward.31} parent=0 // pred_region
    _
  $region13: #{resnet_iid_forward.31} parent=0 // pred_fallthru
    _
  // Predicated region
  $region14: #{resnet_iid_forward.31} parent=0 // pred_check
    _
  $region15: #{resnet_iid_forward.31} parent=0 // pred_check_branch
    %17 = sbr.rel (0) target = $region17
  $region16: #{resnet_iid_forward.31} parent=0 // pred_region
    _
  $region17: #{resnet_iid_forward.31} parent=0 // pred_fallthru
    _
  // Predicated region
  $region18: #{resnet_iid_forward.31} parent=0 // pred_check
    _
  $region19: #{resnet_iid_forward.31} parent=0 // pred_check_branch
    %19 = sbr.rel (0) target = $region21
  $region20: #{resnet_iid_forward.31} parent=0 // pred_region
    _
  $region21: #{resnet_iid_forward.31} parent=0 // pred_fallthru
    _
  %v21 = vld [vmem:[%s1] sm:$0xff]
  %v22 = vld [vmem:[%s1 + $0x8] sm:$0xf]
  %v23 = vld [vmem:[%s1 + $0xc] sm:$0xff]
  %v24 = vld [vmem:[%s1 + $0x14] sm:$0xf]
  %v25 = vld [vmem:[%s1 + $0x18] sm:$0xff]
  %v26 = vld [vmem:[%s1 + $0x20] sm:$0xf]
  %v27 = vld [vmem:[%s1 + $0x24] sm:$0xff]
  %v28 = vld [vmem:[%s1 + $0x2c] sm:$0xf]
  %v29 = vld [vmem:[%s0] sm:$0xf]
  %v30 = vld [vmem:[%s0 + $0x4] sm:$0xf]
  %v31 = vld [vmem:[%s0 + $0x8] sm:$0xf]
  %v32 = vld [vmem:[%s0 + $0xc] sm:$0xf]
  %v33 = vld [vmem:[%s0 + $0x10] sm:$0xf]
  %v34 = vld [vmem:[%s0 + $0x14] sm:$0xf]
  %v35 = vld [vmem:[%s0 + $0x18] sm:$0xf]
  %v36 = vld [vmem:[%s0 + $0x1c] sm:$0xf]
  %v37 = vld [vmem:[%s0 + $0x20] sm:$0xf]
  %v38 = vld [vmem:[%s0 + $0x24] sm:$0xf]
  %v39 = vld [vmem:[%s0 + $0x28] sm:$0xf]
  %v40 = vld [vmem:[%s0 + $0x2c] sm:$0xf]
  %v41 = vld [vmem:[%s0 + $0x30] sm:$0xf]
  %v42 = vld [vmem:[%s0 + $0x34] sm:$0xf]
  %v43 = vld [vmem:[%s0 + $0x38] sm:$0xf]
  %v44 = vld [vmem:[%s0 + $0x3c] sm:$0xf]
  %v45 = vld [vmem:[%s0 + $0x40] sm:$0xf]
  %v46 = vld [vmem:[%s0 + $0x44] sm:$0xf]
  %v47 = vld [vmem:[%s0 + $0x48] sm:$0xf]
  %v48 = vld [vmem:[%s0 + $0x4c] sm:$0xf]
  %v49 = vld [vmem:[%s0 + $0x50] sm:$0xf]
  %v50 = vld [vmem:[%s0 + $0x54] sm:$0xf]
  %v51 = vld [vmem:[%s0 + $0x58] sm:$0xf]
  %v52 = vld [vmem:[%s0 + $0x5c] sm:$0xf]
  %v53 = vld [vmem:[%s0 + $0x60] sm:$0xf]
  %v54 = vld [vmem:[%s0 + $0x64] sm:$0xf]
  %v55 = vld [vmem:[%s0 + $0x68] sm:$0xf]
  %v56 = vld [vmem:[%s0 + $0x6c] sm:$0xf]
  %v57 = vld [vmem:[%s0 + $0x70] sm:$0xf]
  %v58 = vld [vmem:[%s0 + $0x74] sm:$0xf]
  %v59 = vld [vmem:[%s0 + $0x78] sm:$0xf]
  %v60 = vld [vmem:[%s0 + $0x7c] sm:$0xf]
  %v61 = vld [vmem:[%s0 + $0x80] sm:$0xf]
  %v62 = vld [vmem:[%s0 + $0x84] sm:$0xf]
  %v63 = vld [vmem:[%s0 + $0x88] sm:$0xf]
  %v64 = vld [vmem:[%s0 + $0x8c] sm:$0xf]
  %v65 = vld [vmem:[%s2] sm:$0xff]
  %v66 = vld [vmem:[%s2 + $0x8] sm:$0xff]
  %v67 = vld [vmem:[%s2 + $0x10] sm:$0xff]
  %v68 = vld [vmem:[%s2 + $0x18] sm:$0xff]
  %70 = vset.pattern.permute.xlu0 0
  %71 = vperm.xlu0 %70, %v65
  %v72 = vpop.permute.xlu0 %71
  %75 = vset.pattern.permute.xlu0 0
  %76 = vperm.xlu0 %75, %v66
  %v77 = vpop.permute.xlu0 %76
  %80 = vset.pattern.permute.xlu0 0
  %81 = vperm.xlu0 %80, %v67
  %v82 = vpop.permute.xlu0 %81
  %85 = vset.pattern.permute.xlu0 0
  %86 = vperm.xlu0 %85, %v68
  %v87 = vpop.permute.xlu0 %86
  %v97 = vunpack.c.l.b16 %v21
  %v98 = vunpack.c.h.b16 %v21
  %v99 = vunpack.c.l.b16 %v22
  %v100 = vunpack.c.l.b16 %v23
  %v101 = vunpack.c.h.b16 %v23
  %v102 = vunpack.c.l.b16 %v24
  %v103 = vunpack.c.l.b16 %v25
  %v104 = vunpack.c.h.b16 %v25
  %v105 = vunpack.c.l.b16 %v26
  %v106 = vunpack.c.l.b16 %v27
  %v107 = vunpack.c.h.b16 %v27
  %v108 = vunpack.c.l.b16 %v28
  %v109 = vpack.c.b16 %v100, %v97
  %v110 = vpack.c.b16 %v101, %v98
  %v111 = vpack.c.b16 %v102, %v99
  %v112 = vpack.c.b16 %v106, %v103
  %v113 = vpack.c.b16 %v107, %v104
  %v114 = vpack.c.b16 %v108, %v105
  %v155 = vunpack.c.l.b16 %v29
  %v156 = vunpack.c.l.b16 %v30
  %v157 = vunpack.c.l.b16 %v31
  %v158 = vunpack.c.l.b16 %v32
  %v159 = vunpack.c.l.b16 %v33
  %v160 = vunpack.c.l.b16 %v34
  %v161 = vunpack.c.l.b16 %v35
  %v162 = vunpack.c.l.b16 %v36
  %v163 = vunpack.c.l.b16 %v37
  %v164 = vunpack.c.l.b16 %v38
  %v165 = vunpack.c.l.b16 %v39
  %v166 = vunpack.c.l.b16 %v40
  %v167 = vunpack.c.l.b16 %v41
  %v168 = vunpack.c.l.b16 %v42
  %v169 = vunpack.c.l.b16 %v43
  %v170 = vunpack.c.l.b16 %v44
  %v171 = vunpack.c.l.b16 %v45
  %v172 = vunpack.c.l.b16 %v46
  %v173 = vunpack.c.l.b16 %v47
  %v174 = vunpack.c.l.b16 %v48
  %v175 = vunpack.c.l.b16 %v49
  %v176 = vunpack.c.l.b16 %v50
  %v177 = vunpack.c.l.b16 %v51
  %v178 = vunpack.c.l.b16 %v52
  %v179 = vunpack.c.l.b16 %v53
  %v180 = vunpack.c.l.b16 %v54
  %v181 = vunpack.c.l.b16 %v55
  %v182 = vunpack.c.l.b16 %v56
  %v183 = vunpack.c.l.b16 %v57
  %v184 = vunpack.c.l.b16 %v58
  %v185 = vunpack.c.l.b16 %v59
  %v186 = vunpack.c.l.b16 %v60
  %v187 = vunpack.c.l.b16 %v61
  %v188 = vunpack.c.l.b16 %v62
  %v189 = vunpack.c.l.b16 %v63
  %v190 = vunpack.c.l.b16 %v64
  %v191 = vpack.c.b16 %v156, %v155
  %v192 = vpack.c.b16 %v158, %v157
  %v193 = vpack.c.b16 %v160, %v159
  %v194 = vpack.c.b16 %v162, %v161
  %v195 = vpack.c.b16 %v164, %v163
  %v196 = vpack.c.b16 %v166, %v165
  %v197 = vpack.c.b16 %v168, %v167
  %v198 = vpack.c.b16 %v170, %v169
  %v199 = vpack.c.b16 %v172, %v171
  %v200 = vpack.c.b16 %v174, %v173
  %v201 = vpack.c.b16 %v176, %v175
  %v202 = vpack.c.b16 %v178, %v177
  %v203 = vpack.c.b16 %v180, %v179
  %v204 = vpack.c.b16 %v182, %v181
  %v205 = vpack.c.b16 %v184, %v183
  %v206 = vpack.c.b16 %v186, %v185
  %v207 = vpack.c.b16 %v188, %v187
  %v208 = vpack.c.b16 %v190, %v189
  %vm227 = vcmask 261120
  %v229 = vsel %vm227, %v111, 0
  %v232 = vsel %vm227, %v114, 0
  %234 = vmatprep.subr.bf16.mxu0 0
  %235 = vmatpush1.bf16.msra.mxu0 %v191
  %236 = vmatprep.subr.bf16.mxu0 0
  %237 = vmatpush1.bf16.msra.mxu0 %v192
  %238 = vmatprep.subr.bf16.mxu0 0
  %239 = vmatpush1.bf16.msra.mxu0 %v193
  %240 = vmatprep.subr.bf16.mxu0 0
  %241 = vmatpush1.bf16.msra.mxu0 %v194
  %242 = vmatprep.subr.bf16.mxu0 0
  %243 = vmatpush1.bf16.msra.mxu0 %v195
  %244 = vmatprep.subr.bf16.mxu0 0
  %245 = vmatpush1.bf16.msra.mxu0 %v196
  %246 = vmatprep.subr.bf16.mxu0 0
  %247 = vmatpush1.bf16.msra.mxu0 %v197
  %248 = vmatprep.subr.bf16.mxu0 0
  %249 = vmatpush1.bf16.msra.mxu0 %v198
  %250 = vmatprep.subr.bf16.mxu0 0
  %251 = vmatpush1.bf16.msra.mxu0 %v199
  %252 = vmatprep.subr.bf16.mxu0 0
  %253 = vmatpush1.bf16.msra.mxu0 %v200
  %254 = vmatprep.subr.bf16.mxu0 0
  %255 = vmatpush1.bf16.msra.mxu0 %v201
  %256 = vmatprep.subr.bf16.mxu0 0
  %257 = vmatpush1.bf16.msra.mxu0 %v202
  %258 = vmatprep.subr.bf16.mxu0 0
  %259 = vmatpush1.bf16.msra.mxu0 %v203
  %260 = vmatprep.subr.bf16.mxu0 0
  %261 = vmatpush1.bf16.msra.mxu0 %v204
  %262 = vmatprep.subr.bf16.mxu0 0
  %263 = vmatpush1.bf16.msra.mxu0 %v205
  %264 = vmatprep.subr.bf16.mxu0 0
  %265 = vmatpush1.bf16.msra.mxu0 %v206
  %266 = vmatprep.mubr.bf16.mxu0 %v110
  %267 = vmatmul.mubr.bf16.gmra.mrb[0].mxu0 %v109
  %v268 = vpop.f32.mrb[0].mxu0
  %v269 = vadd.f32 %v72, %v268
  %v270 = vpop.f32.mrb[0].mxu0
  %v271 = vpop.f32.mrb[0].mxu0
  %v272 = vadd.f32 %v77, %v271
  %v273 = vpop.f32.mrb[0].mxu0
  %274 = vmatprep.mubr.bf16.mxu0 %v113
  %275 = vmatmul.mubr.bf16.gmra.mrb[0].mxu0 %v112
  %v276 = vpop.f32.mrb[0].mxu0
  %v277 = vadd.f32 %v82, %v276
  %v278 = vpop.f32.mrb[0].mxu0
  %v279 = vpop.f32.mrb[0].mxu0
  %v280 = vadd.f32 %v87, %v279
  %v281 = vpop.f32.mrb[0].mxu0
  %282 = vdwg.mxu0
  %283 = vmatprep.subr.bf16.mxu0 0
  %284 = vmatpush1.bf16.msra.mxu0 %v207
  %285 = vmatprep.subr.bf16.mxu0 0
  %286 = vmatpush1.bf16.msra.mxu0 %v208
  %287 = vmatprep.subr.bf16.mxu0 0
  %288 = vmatpush1.bf16.msra.mxu0 0
  %289 = vmatprep.subr.bf16.mxu0 0
  %290 = vmatpush1.bf16.msra.mxu0 0
  %291 = vmatprep.subr.bf16.mxu0 0
  %292 = vmatpush1.bf16.msra.mxu0 0
  %293 = vmatprep.subr.bf16.mxu0 0
  %294 = vmatpush1.bf16.msra.mxu0 0
  %295 = vmatprep.subr.bf16.mxu0 0
  %296 = vmatpush1.bf16.msra.mxu0 0
  %297 = vmatprep.subr.bf16.mxu0 0
  %298 = vmatpush1.bf16.msra.mxu0 0
  %299 = vmatprep.subr.bf16.mxu0 0
  %300 = vmatpush1.bf16.msra.mxu0 0
  %301 = vmatprep.subr.bf16.mxu0 0
  %302 = vmatpush1.bf16.msra.mxu0 0
  %303 = vmatprep.subr.bf16.mxu0 0
  %304 = vmatpush1.bf16.msra.mxu0 0
  %305 = vmatprep.subr.bf16.mxu0 0
  %306 = vmatpush1.bf16.msra.mxu0 0
  %307 = vmatprep.subr.bf16.mxu0 0
  %308 = vmatpush1.bf16.msra.mxu0 0
  %309 = vmatprep.subr.bf16.mxu0 0
  %310 = vmatpush1.bf16.msra.mxu0 0
  %311 = vmatprep.subr.bf16.mxu0 0
  %312 = vmatpush1.bf16.msra.mxu0 0
  %313 = vmatprep.subr.bf16.mxu0 0
  %314 = vmatpush1.bf16.msra.mxu0 0
  %315 = vmatprep.mubr.bf16.mxu0 0
  %316 = vmatmul.mubr.bf16.gmra.mrb[0].mxu0 %v229
  %v317 = vpop.f32.mrb[0].mxu0
  %v318 = vadd.f32 %v269, %v317
  %v319 = vpop.f32.mrb[0].mxu0
  %v320 = vpop.f32.mrb[0].mxu0
  %v321 = vadd.f32 %v272, %v320
  %v322 = vpop.f32.mrb[0].mxu0
  %323 = vmatprep.mubr.bf16.mxu0 0
  %324 = vmatmul.mubr.bf16.gmra.mrb[0].mxu0 %v232
  %v325 = vpop.f32.mrb[0].mxu0
  %v326 = vadd.f32 %v277, %v325
  %v327 = vpop.f32.mrb[0].mxu0
  %v328 = vpop.f32.mrb[0].mxu0
  %v329 = vadd.f32 %v280, %v328
  %v330 = vpop.f32.mrb[0].mxu0
  %331 = vdwg.mxu0
  %332 = vadd.xlane.f32.xlu0 %v318
  %v333 = vpop.xlane.xlu0 %332
  %334 = vadd.xlane.f32.xlu0 %v321
  %v335 = vpop.xlane.xlu0 %334
  %336 = vadd.xlane.f32.xlu0 %v326
  %v337 = vpop.xlane.xlu0 %336
  %338 = vadd.xlane.f32.xlu0 %v329
  %v339 = vpop.xlane.xlu0 %338
  %v340 = vmul.f32 %v333, 0.0078125
  %v341 = vmul.f32 %v335, 0.0078125
  %v342 = vmul.f32 %v337, 0.0078125
  %v343 = vmul.f32 %v339, 0.0078125
  %v344 = vsub.f32 %v318, %v340
  %v345 = vsub.f32 %v321, %v341
  %v346 = vsub.f32 %v326, %v342
  %v347 = vsub.f32 %v329, %v343
  %v348 = vmul.f32 %v344, %v344
  %v349 = vmul.f32 %v345, %v345
  %v350 = vmul.f32 %v346, %v346
  %v351 = vmul.f32 %v347, %v347
  %352 = vadd.xlane.f32.xlu0 %v348
  %v353 = vpop.xlane.xlu0 %352
  %354 = vadd.xlane.f32.xlu0 %v349
  %v355 = vpop.xlane.xlu0 %354
  %356 = vadd.xlane.f32.xlu0 %v350
  %v357 = vpop.xlane.xlu0 %356
  %358 = vadd.xlane.f32.xlu0 %v351
  %v359 = vpop.xlane.xlu0 %358
  %v360 = vmul.f32 %v353, 0.0078125
  %v361 = vmul.f32 %v355, 0.0078125
  %v362 = vmul.f32 %v357, 0.0078125
  %v363 = vmul.f32 %v359, 0.0078125
  %v364 = vld [vmem:[%s3] sm:$0xff]
  %v365 = vld [vmem:[%s3 + $0x8] sm:$0xff]
  %v366 = vld [vmem:[%s3 + $0x10] sm:$0xff]
  %v367 = vld [vmem:[%s3 + $0x18] sm:$0xff]
  %v368 = vadd.f32 %v360, 1e-05
  %v369 = vadd.f32 %v361, 1e-05
  %v370 = vadd.f32 %v362, 1e-05
  %v371 = vadd.f32 %v363, 1e-05
  %v372 = vrsqrt.pop %v368
  %v373 = vrsqrt.pop %v369
  %v374 = vrsqrt.pop %v370
  %v375 = vrsqrt.pop %v371
  %v376 = vmul.f32 %v364, %v372
  %v377 = vmul.f32 %v365, %v373
  %v378 = vmul.f32 %v366, %v374
  %v379 = vmul.f32 %v367, %v375
  %381 = vset.pattern.permute.xlu0 0
  %382 = vperm.xlu0 %381, %v376
  %v383 = vpop.permute.xlu0 %382
  %386 = vset.pattern.permute.xlu0 0
  %387 = vperm.xlu0 %386, %v377
  %v388 = vpop.permute.xlu0 %387
  %391 = vset.pattern.permute.xlu0 0
  %392 = vperm.xlu0 %391, %v378
  %v393 = vpop.permute.xlu0 %392
  %396 = vset.pattern.permute.xlu0 0
  %397 = vperm.xlu0 %396, %v379
  %v398 = vpop.permute.xlu0 %397
  %v400 = vmul.f32 %v344, %v383
  %v401 = vmul.f32 %v345, %v388
  %v402 = vmul.f32 %v346, %v393
  %v403 = vmul.f32 %v347, %v398
  %v404 = vld [vmem:[%s4] sm:$0xff]
  %v405 = vld [vmem:[%s4 + $0x8] sm:$0xff]
  %v406 = vld [vmem:[%s4 + $0x10] sm:$0xff]
  %v407 = vld [vmem:[%s4 + $0x18] sm:$0xff]
  %409 = vset.pattern.permute.xlu0 0
  %410 = vperm.xlu0 %409, %v404
  %v411 = vpop.permute.xlu0 %410
  %414 = vset.pattern.permute.xlu0 0
  %415 = vperm.xlu0 %414, %v405
  %v416 = vpop.permute.xlu0 %415
  %419 = vset.pattern.permute.xlu0 0
  %420 = vperm.xlu0 %419, %v406
  %v421 = vpop.permute.xlu0 %420
  %424 = vset.pattern.permute.xlu0 0
  %425 = vperm.xlu0 %424, %v407
  %v426 = vpop.permute.xlu0 %425
  %v428 = vadd.f32 %v400, %v411
  %v429 = vadd.f32 %v401, %v416
  %v430 = vadd.f32 %v402, %v421
  %v431 = vadd.f32 %v403, %v426
  %v432 = vmax.f32 %v428, 0.0
  %v433 = vmax.f32 %v429, 0.0
  %v434 = vmax.f32 %v430, 0.0
  %v435 = vmax.f32 %v431, 0.0
  %v436 = vpack.c.bf16 %v433, %v432
  %v437 = vpack.c.bf16 %v435, %v434
  %v440 = vunpack.c.l.b16 %v436
  %v441 = vunpack.c.h.b16 %v436
  %v442 = vunpack.c.l.b16 %v437
  %v443 = vunpack.c.h.b16 %v437
  %v444 = vpack.c.b16 %v440, %v440
  %v445 = vpack.c.b16 %v441, %v441
  %v446 = vpack.c.b16 %v442, %v442
  %v447 = vpack.c.b16 %v443, %v443
  %452 = vst [vmem:[%s5] sm:$0xf] %v444
  %453 = vst [vmem:[%s5 + $0x4] sm:$0xf] %v445
  %454 = vst [vmem:[%s5 + $0x8] sm:$0xf] %v446
  %455 = vst [vmem:[%s5 + $0xc] sm:$0xf] %v447
  // Predicated region
  $region22: #{resnet_iid_forward.31} parent=0 // pred_check
    _
  $region23: #{resnet_iid_forward.31} parent=0 // pred_check_branch
    %457 = sbr.rel (0) target = $region25
  $region24: #{resnet_iid_forward.31} parent=0 // pred_region
    _
  $region25: #{resnet_iid_forward.31} parent=0 // pred_fallthru
    _
  // Predicated region
  $region26: #{resnet_iid_forward.31} parent=0 // pred_check
    _
  $region27: #{resnet_iid_forward.31} parent=0 // pred_check_branch
    %459 = sbr.rel (0) target = $region29
  $region28: #{resnet_iid_forward.31} parent=0 // pred_region
    _
  $region29: #{resnet_iid_forward.31} parent=0 // pred_fallthru
    _

// kernel: resnet_iid_forward.33
$region0: #{resnet_iid_forward.33}
  #allocation0 [shape = 'u32[]', space=smem, size = 0x4, offset = 0x4, fixed_abs, tag = 'smem constant byte address 0x4 - core index']
  #allocation1 [shape = 'u32[144,128]{1,0:T(1,128)}', space=vmem, size = 0x12000, scoped, tag = 'internal scratch']
  %s0 = inlined_call_operand.vmem [shape: bf16[288,64], index: 0, kind: input, shape index: {}]
  %s1 = inlined_call_operand.vmem [shape: bf16[128,288], index: 1, kind: input, shape index: {}]
  %s2 = inlined_call_operand.vmem [shape: f32[128,1], index: 2, kind: input, shape index: {}]
  %s3 = inlined_call_operand.vmem [shape: f32[64,1], index: 3, kind: input, shape index: {}]
  %s4 = inlined_call_operand.vmem [shape: f32[64,1], index: 4, kind: input, shape index: {}]
  %s5 = inlined_call_operand.vmem [shape: bf16[64,64], index: 5, kind: output, shape index: {0}]
  %s6 = inlined_call_operand.vmem [shape: f32[64,64], index: 6, kind: output, shape index: {1}]
  %7 = xla_tuple %s5, %s6
  %s8 = sld [smem:[#allocation0]]
  $region38: #{resnet_iid_forward.33} parent=0
    _
  %s10 = ssub.s32 1, %s8
  %s11 = scalar_select 0, %s10, %s8
  // Predicated region
  $region2: #{resnet_iid_forward.33} parent=0 // pred_check
    _
  $region3: #{resnet_iid_forward.33} parent=0 // pred_check_branch
    %13 = sbr.rel (0) target = $region5
  $region4: #{resnet_iid_forward.33} parent=0 // pred_region
    _
  $region5: #{resnet_iid_forward.33} parent=0 // pred_fallthru
    _
  // Predicated region
  $region6: #{resnet_iid_forward.33} parent=0 // pred_check
    _
  $region7: #{resnet_iid_forward.33} parent=0 // pred_check_branch
    %15 = sbr.rel (0) target = $region9
  $region8: #{resnet_iid_forward.33} parent=0 // pred_region
    _
  $region9: #{resnet_iid_forward.33} parent=0 // pred_fallthru
    _
  // Predicated region
  $region10: #{resnet_iid_forward.33} parent=0 // pred_check
    _
  $region11: #{resnet_iid_forward.33} parent=0 // pred_check_branch
    %17 = sbr.rel (0) target = $region13
  $region12: #{resnet_iid_forward.33} parent=0 // pred_region
    _
  $region13: #{resnet_iid_forward.33} parent=0 // pred_fallthru
    _
  // Predicated region
  $region14: #{resnet_iid_forward.33} parent=0 // pred_check
    _
  $region15: #{resnet_iid_forward.33} parent=0 // pred_check_branch
    %19 = sbr.rel (0) target = $region17
  $region16: #{resnet_iid_forward.33} parent=0 // pred_region
    _
  $region17: #{resnet_iid_forward.33} parent=0 // pred_fallthru
    _
  // Predicated region
  $region18: #{resnet_iid_forward.33} parent=0 // pred_check
    _
  $region19: #{resnet_iid_forward.33} parent=0 // pred_check_branch
    %21 = sbr.rel (0) target = $region21
  $region20: #{resnet_iid_forward.33} parent=0 // pred_region
    _
  $region21: #{resnet_iid_forward.33} parent=0 // pred_fallthru
    _
  %v23 = vld [vmem:[%s1] sm:$0xff]
  %v24 = vld [vmem:[%s1 + $0x8] sm:$0xf]
  %v25 = vld [vmem:[%s1 + $0xc] sm:$0xff]
  %v26 = vld [vmem:[%s1 + $0x14] sm:$0xf]
  %v27 = vld [vmem:[%s1 + $0x18] sm:$0xff]
  %v28 = vld [vmem:[%s1 + $0x20] sm:$0xf]
  %v29 = vld [vmem:[%s1 + $0x24] sm:$0xff]
  %v30 = vld [vmem:[%s1 + $0x2c] sm:$0xf]
  %v31 = vld [vmem:[%s1 + $0x30] sm:$0xff]
  %v32 = vld [vmem:[%s1 + $0x38] sm:$0xf]
  %v33 = vld [vmem:[%s1 + $0x3c] sm:$0xff]
  %v34 = vld [vmem:[%s1 + $0x44] sm:$0xf]
  %v35 = vld [vmem:[%s1 + $0x48] sm:$0xff]
  %v36 = vld [vmem:[%s1 + $0x50] sm:$0xf]
  %v37 = vld [vmem:[%s1 + $0x54] sm:$0xff]
  %v38 = vld [vmem:[%s1 + $0x5c] sm:$0xf]
  %v39 = vld [vmem:[%s1 + $0x60] sm:$0xff]
  %v40 = vld [vmem:[%s1 + $0x68] sm:$0xf]
  %v41 = vld [vmem:[%s1 + $0x6c] sm:$0xff]
  %v42 = vld [vmem:[%s1 + $0x74] sm:$0xf]
  %v43 = vld [vmem:[%s1 + $0x78] sm:$0xff]
  %v44 = vld [vmem:[%s1 + $0x80] sm:$0xf]
  %v45 = vld [vmem:[%s1 + $0x84] sm:$0xff]
  %v46 = vld [vmem:[%s1 + $0x8c] sm:$0xf]
  %v47 = vld [vmem:[%s1 + $0x90] sm:$0xff]
  %v48 = vld [vmem:[%s1 + $0x98] sm:$0xf]
  %v49 = vld [vmem:[%s1 + $0x9c] sm:$0xff]
  %v50 = vld [vmem:[%s1 + $0xa4] sm:$0xf]
  %v51 = vld [vmem:[%s1 + $0xa8] sm:$0xff]
  %v52 = vld [vmem:[%s1 + $0xb0] sm:$0xf]
  %v53 = vld [vmem:[%s1 + $0xb4] sm:$0xff]
  %v54 = vld [vmem:[%s1 + $0xbc] sm:$0xf]
  %v55 = vld [vmem:[%s0] sm:$0xf]
  %v56 = vld [vmem:[%s0 + $0x4] sm:$0xf]
  %v57 = vld [vmem:[%s0 + $0x8] sm:$0xf]
  %v58 = vld [vmem:[%s0 + $0xc] sm:$0xf]
  %v59 = vld [vmem:[%s0 + $0x10] sm:$0xf]
  %v60 = vld [vmem:[%s0 + $0x14] sm:$0xf]
  %v61 = vld [vmem:[%s0 + $0x18] sm:$0xf]
  %v62 = vld [vmem:[%s0 + $0x1c] sm:$0xf]
  %v63 = vld [vmem:[%s0 + $0x20] sm:$0xf]
  %v64 = vld [vmem:[%s0 + $0x24] sm:$0xf]
  %v65 = vld [vmem:[%s0 + $0x28] sm:$0xf]
  %v66 = vld [vmem:[%s0 + $0x2c] sm:$0xf]
  %v67 = vld [vmem:[%s0 + $0x30] sm:$0xf]
  %v68 = vld [vmem:[%s0 + $0x34] sm:$0xf]
  %v69 = vld [vmem:[%s0 + $0x38] sm:$0xf]
  %v70 = vld [vmem:[%s0 + $0x3c] sm:$0xf]
  %v71 = vld [vmem:[%s0 + $0x40] sm:$0xf]
  %v72 = vld [vmem:[%s0 + $0x44] sm:$0xf]
  %v73 = vld [vmem:[%s0 + $0x48] sm:$0xf]
  %v74 = vld [vmem:[%s0 + $0x4c] sm:$0xf]
  %v75 = vld [vmem:[%s0 + $0x50] sm:$0xf]
  %v76 = vld [vmem:[%s0 + $0x54] sm:$0xf]
  %v77 = vld [vmem:[%s0 + $0x58] sm:$0xf]
  %v78 = vld [vmem:[%s0 + $0x5c] sm:$0xf]
  %v79 = vld [vmem:[%s0 + $0x60] sm:$0xf]
  %v80 = vld [vmem:[%s0 + $0x64] sm:$0xf]
  %v81 = vld [vmem:[%s0 + $0x68] sm:$0xf]
  %v82 = vld [vmem:[%s0 + $0x6c] sm:$0xf]
  %v83 = vld [vmem:[%s0 + $0x70] sm:$0xf]
  %v84 = vld [vmem:[%s0 + $0x74] sm:$0xf]
  %v85 = vld [vmem:[%s0 + $0x78] sm:$0xf]
  %v86 = vld [vmem:[%s0 + $0x7c] sm:$0xf]
  %v87 = vld [vmem:[%s0 + $0x80] sm:$0xf]
  %v88 = vld [vmem:[%s0 + $0x84] sm:$0xf]
  %v89 = vld [vmem:[%s0 + $0x88] sm:$0xf]
  %v90 = vld [vmem:[%s0 + $0x8c] sm:$0xf]
  %v91 = vld [vmem:[%s2] sm:$0xff]
  %v92 = vld [vmem:[%s2 + $0x8] sm:$0xff]
  %v93 = vld [vmem:[%s2 + $0x10] sm:$0xff]
  %v94 = vld [vmem:[%s2 + $0x18] sm:$0xff]
  %v95 = vld [vmem:[%s2 + $0x20] sm:$0xff]
  %v96 = vld [vmem:[%s2 + $0x28] sm:$0xff]
  %v97 = vld [vmem:[%s2 + $0x30] sm:$0xff]
  %v98 = vld [vmem:[%s2 + $0x38] sm:$0xff]
  %v99 = vld [vmem:[%s2 + $0x40] sm:$0xff]
  %v100 = vld [vmem:[%s2 + $0x48] sm:$0xff]
  %v101 = vld [vmem:[%s2 + $0x50] sm:$0xff]
  %v102 = vld [vmem:[%s2 + $0x58] sm:$0xff]
  %v103 = vld [vmem:[%s2 + $0x60] sm:$0xff]
  %v104 = vld [vmem:[%s2 + $0x68] sm:$0xff]
  %v105 = vld [vmem:[%s2 + $0x70] sm:$0xff]
  %v106 = vld [vmem:[%s2 + $0x78] sm:$0xff]
  %108 = vset.pattern.permute.xlu0 0
  %109 = vperm.xlu0 %108, %v91
  %v110 = vpop.permute.xlu0 %109
  %113 = vset.pattern.permute.xlu0 0
  %114 = vperm.xlu0 %113, %v92
  %v115 = vpop.permute.xlu0 %114
  %118 = vset.pattern.permute.xlu0 0
  %119 = vperm.xlu0 %118, %v93
  %v120 = vpop.permute.xlu0 %119
  %123 = vset.pattern.permute.xlu0 0
  %124 = vperm.xlu0 %123, %v94
  %v125 = vpop.permute.xlu0 %124
  %128 = vset.pattern.permute.xlu0 0
  %129 = vperm.xlu0 %128, %v95
  %v130 = vpop.permute.xlu0 %129
  %133 = vset.pattern.permute.xlu0 0
  %134 = vperm.xlu0 %133, %v96
  %v135 = vpop.permute.xlu0 %134
  %138 = vset.pattern.permute.xlu0 0
  %139 = vperm.xlu0 %138, %v97
  %v140 = vpop.permute.xlu0 %139
  %143 = vset.pattern.permute.xlu0 0
  %144 = vperm.xlu0 %143, %v98
  %v145 = vpop.permute.xlu0 %144
  %148 = vset.pattern.permute.xlu0 0
  %149 = vperm.xlu0 %148, %v99
  %v150 = vpop.permute.xlu0 %149
  %153 = vset.pattern.permute.xlu0 0
  %154 = vperm.xlu0 %153, %v100
  %v155 = vpop.permute.xlu0 %154
  %158 = vset.pattern.permute.xlu0 0
  %159 = vperm.xlu0 %158, %v101
  %v160 = vpop.permute.xlu0 %159
  %163 = vset.pattern.permute.xlu0 0
  %164 = vperm.xlu0 %163, %v102
  %v165 = vpop.permute.xlu0 %164
  %168 = vset.pattern.permute.xlu0 0
  %169 = vperm.xlu0 %168, %v103
  %v170 = vpop.permute.xlu0 %169
  %173 = vset.pattern.permute.xlu0 0
  %174 = vperm.xlu0 %173, %v104
  %v175 = vpop.permute.xlu0 %174
  %178 = vset.pattern.permute.xlu0 0
  %179 = vperm.xlu0 %178, %v105
  %v180 = vpop.permute.xlu0 %179
  %183 = vset.pattern.permute.xlu0 0
  %184 = vperm.xlu0 %183, %v106
  %v185 = vpop.permute.xlu0 %184
  %v219 = vunpack.c.l.b16 %v23
  %v220 = vunpack.c.h.b16 %v23
  %v221 = vunpack.c.l.b16 %v24
  %v222 = vunpack.c.l.b16 %v25
  %v223 = vunpack.c.h.b16 %v25
  %v224 = vunpack.c.l.b16 %v26
  %v225 = vunpack.c.l.b16 %v27
  %v226 = vunpack.c.h.b16 %v27
  %v227 = vunpack.c.l.b16 %v28
  %v228 = vunpack.c.l.b16 %v29
  %v229 = vunpack.c.h.b16 %v29
  %v230 = vunpack.c.l.b16 %v30
  %v231 = vunpack.c.l.b16 %v31
  %v232 = vunpack.c.h.b16 %v31
  %v233 = vunpack.c.l.b16 %v32
  %v234 = vunpack.c.l.b16 %v33
  %v235 = vunpack.c.h.b16 %v33
  %v236 = vunpack.c.l.b16 %v34
  %v237 = vunpack.c.l.b16 %v35
  %v238 = vunpack.c.h.b16 %v35
  %v239 = vunpack.c.l.b16 %v36
  %v240 = vunpack.c.l.b16 %v37
  %v241 = vunpack.c.h.b16 %v37
  %v242 = vunpack.c.l.b16 %v38
  %v243 = vunpack.c.l.b16 %v39
  %v244 = vunpack.c.h.b16 %v39
  %v245 = vunpack.c.l.b16 %v40
  %v246 = vunpack.c.l.b16 %v41
  %v247 = vunpack.c.h.b16 %v41
  %v248 = vunpack.c.l.b16 %v42
  %v249 = vunpack.c.l.b16 %v43
  %v250 = vunpack.c.h.b16 %v43
  %v251 = vunpack.c.l.b16 %v44
  %v252 = vunpack.c.l.b16 %v45
  %v253 = vunpack.c.h.b16 %v45
  %v254 = vunpack.c.l.b16 %v46
  %v255 = vunpack.c.l.b16 %v47
  %v256 = vunpack.c.h.b16 %v47
  %v257 = vunpack.c.l.b16 %v48
  %v258 = vunpack.c.l.b16 %v49
  %v259 = vunpack.c.h.b16 %v49
  %v260 = vunpack.c.l.b16 %v50
  %v261 = vunpack.c.l.b16 %v51
  %v262 = vunpack.c.h.b16 %v51
  %v263 = vunpack.c.l.b16 %v52
  %v264 = vunpack.c.l.b16 %v53
  %v265 = vunpack.c.h.b16 %v53
  %v266 = vunpack.c.l.b16 %v54
  %v267 = vpack.c.b16 %v222, %v219
  %v268 = vpack.c.b16 %v223, %v220
  %v269 = vpack.c.b16 %v224, %v221
  %v270 = vpack.c.b16 %v228, %v225
  %v271 = vpack.c.b16 %v229, %v226
  %v272 = vpack.c.b16 %v230, %v227
  %v273 = vpack.c.b16 %v234, %v231
  %v274 = vpack.c.b16 %v235, %v232
  %v275 = vpack.c.b16 %v236, %v233
  %v276 = vpack.c.b16 %v240, %v237
  %v277 = vpack.c.b16 %v241, %v238
  %v278 = vpack.c.b16 %v242, %v239
  %v279 = vpack.c.b16 %v246, %v243
  %v280 = vpack.c.b16 %v247, %v244
  %v281 = vpack.c.b16 %v248, %v245
  %v282 = vpack.c.b16 %v252, %v249
  %v283 = vpack.c.b16 %v253, %v250
  %v284 = vpack.c.b16 %v254, %v251
  %v285 = vpack.c.b16 %v258, %v255
  %v286 = vpack.c.b16 %v259, %v256
  %v287 = vpack.c.b16 %v260, %v257
  %v288 = vpack.c.b16 %v264, %v261
  %v289 = vpack.c.b16 %v265, %v262
  %v290 = vpack.c.b16 %v266, %v263
  %v343 = vunpack.c.l.b16 %v55
  %v344 = vunpack.c.l.b16 %v56
  %v345 = vunpack.c.l.b16 %v57
  %v346 = vunpack.c.l.b16 %v58
  %v347 = vunpack.c.l.b16 %v59
  %v348 = vunpack.c.l.b16 %v60
  %v349 = vunpack.c.l.b16 %v61
  %v350 = vunpack.c.l.b16 %v62
  %v351 = vunpack.c.l.b16 %v63
  %v352 = vunpack.c.l.b16 %v64
  %v353 = vunpack.c.l.b16 %v65
  %v354 = vunpack.c.l.b16 %v66
  %v355 = vunpack.c.l.b16 %v67
  %v356 = vunpack.c.l.b16 %v68
  %v357 = vunpack.c.l.b16 %v69
  %v358 = vunpack.c.l.b16 %v70
  %v359 = vunpack.c.l.b16 %v71
  %v360 = vunpack.c.l.b16 %v72
  %v361 = vunpack.c.l.b16 %v73
  %v362 = vunpack.c.l.b16 %v74
  %v363 = vunpack.c.l.b16 %v75
  %v364 = vunpack.c.l.b16 %v76
  %v365 = vunpack.c.l.b16 %v77
  %v366 = vunpack.c.l.b16 %v78
  %v367 = vunpack.c.l.b16 %v79
  %v368 = vunpack.c.l.b16 %v80
  %v369 = vunpack.c.l.b16 %v81
  %v370 = vunpack.c.l.b16 %v82
  %v371 = vunpack.c.l.b16 %v83
  %v372 = vunpack.c.l.b16 %v84
  %v373 = vunpack.c.l.b16 %v85
  %v374 = vunpack.c.l.b16 %v86
  %v375 = vunpack.c.l.b16 %v87
  %v376 = vunpack.c.l.b16 %v88
  %v377 = vunpack.c.l.b16 %v89
  %v378 = vunpack.c.l.b16 %v90
  %v379 = vpack.c.b16 %v344, %v343
  %v380 = vpack.c.b16 %v346, %v345
  %v381 = vpack.c.b16 %v348, %v347
  %v382 = vpack.c.b16 %v350, %v349
  %v383 = vpack.c.b16 %v352, %v351
  %v384 = vpack.c.b16 %v354, %v353
  %v385 = vpack.c.b16 %v356, %v355
  %v386 = vpack.c.b16 %v358, %v357
  %v387 = vpack.c.b16 %v360, %v359
  %v388 = vpack.c.b16 %v362, %v361
  %v389 = vpack.c.b16 %v364, %v363
  %v390 = vpack.c.b16 %v366, %v365
  %v391 = vpack.c.b16 %v368, %v367
  %v392 = vpack.c.b16 %v370, %v369
  %v393 = vpack.c.b16 %v372, %v371
  %v394 = vpack.c.b16 %v374, %v373
  %v395 = vpack.c.b16 %v376, %v375
  %v396 = vpack.c.b16 %v378, %v377
  %vm415 = vcmask 261120
  %v417 = vsel %vm415, %v269, 0
  %v420 = vsel %vm415, %v272, 0
  %v423 = vsel %vm415, %v275, 0
  %v426 = vsel %vm415, %v278, 0
  %v429 = vsel %vm415, %v281, 0
  %v432 = vsel %vm415, %v284, 0
  %v435 = vsel %vm415, %v287, 0
  %v438 = vsel %vm415, %v290, 0
  %440 = vmatprep.subr.bf16.mxu0 0
  %441 = vmatpush1.bf16.msra.mxu0 %v379
  %442 = vmatprep.subr.bf16.mxu0 0
  %443 = vmatpush1.bf16.msra.mxu0 %v380
  %444 = vmatprep.subr.bf16.mxu0 0
  %445 = vmatpush1.bf16.msra.mxu0 %v381
  %446 = vmatprep.subr.bf16.mxu0 0
  %447 = vmatpush1.bf16.msra.mxu0 %v382
  %448 = vmatprep.subr.bf16.mxu0 0
  %449 = vmatpush1.bf16.msra.mxu0 %v383
  %450 = vmatprep.subr.bf16.mxu0 0
  %451 = vmatpush1.bf16.msra.mxu0 %v384
  %452 = vmatprep.subr.bf16.mxu0 0
  %453 = vmatpush1.bf16.msra.mxu0 %v385
  %454 = vmatprep.subr.bf16.mxu0 0
  %455 = vmatpush1.bf16.msra.mxu0 %v386
  %456 = vmatprep.subr.bf16.mxu0 0
  %457 = vmatpush1.bf16.msra.mxu0 %v387
  %458 = vmatprep.subr.bf16.mxu0 0
  %459 = vmatpush1.bf16.msra.mxu0 %v388
  %460 = vmatprep.subr.bf16.mxu0 0
  %461 = vmatpush1.bf16.msra.mxu0 %v389
  %462 = vmatprep.subr.bf16.mxu0 0
  %463 = vmatpush1.bf16.msra.mxu0 %v390
  %464 = vmatprep.subr.bf16.mxu0 0
  %465 = vmatpush1.bf16.msra.mxu0 %v391
  %466 = vmatprep.subr.bf16.mxu0 0
  %467 = vmatpush1.bf16.msra.mxu0 %v392
  %468 = vmatprep.subr.bf16.mxu0 0
  %469 = vmatpush1.bf16.msra.mxu0 %v393
  %470 = vmatprep.subr.bf16.mxu0 0
  %471 = vmatpush1.bf16.msra.mxu0 %v394
  %472 = vmatprep.mubr.bf16.mxu0 %v268
  %473 = vmatmul.mubr.bf16.gmra.mrb[0].mxu0 %v267
  %v474 = vpop.f32.mrb[0].mxu0
  %v475 = vadd.f32 %v110, %v474
  %v476 = vpop.f32.mrb[0].mxu0
  %v477 = vpop.f32.mrb[0].mxu0
  %v478 = vadd.f32 %v115, %v477
  %v479 = vpop.f32.mrb[0].mxu0
  %480 = vmatprep.mubr.bf16.mxu0 %v271
  %481 = vmatmul.mubr.bf16.gmra.mrb[0].mxu0 %v270
  %v482 = vpop.f32.mrb[0].mxu0
  %v483 = vadd.f32 %v120, %v482
  %v484 = vpop.f32.mrb[0].mxu0
  %v485 = vpop.f32.mrb[0].mxu0
  %v486 = vadd.f32 %v125, %v485
  %v487 = vpop.f32.mrb[0].mxu0
  %488 = vmatprep.mubr.bf16.mxu0 %v274
  %489 = vmatmul.mubr.bf16.gmra.mrb[0].mxu0 %v273
  %v490 = vpop.f32.mrb[0].mxu0
  %v491 = vadd.f32 %v130, %v490
  %v492 = vpop.f32.mrb[0].mxu0
  %v493 = vpop.f32.mrb[0].mxu0
  %v494 = vadd.f32 %v135, %v493
  %v495 = vpop.f32.mrb[0].mxu0
  %496 = vmatprep.mubr.bf16.mxu0 %v277
  %497 = vmatmul.mubr.bf16.gmra.mrb[0].mxu0 %v276
  %v498 = vpop.f32.mrb[0].mxu0
  %v499 = vadd.f32 %v140, %v498
  %v500 = vpop.f32.mrb[0].mxu0
  %v501 = vpop.f32.mrb[0].mxu0
  %v502 = vadd.f32 %v145, %v501
  %v503 = vpop.f32.mrb[0].mxu0
  %504 = vmatprep.mubr.bf16.mxu0 %v280
  %505 = vmatmul.mubr.bf16.gmra.mrb[0].mxu0 %v279
  %v506 = vpop.f32.mrb[0].mxu0
  %v507 = vadd.f32 %v150, %v506
  %v508 = vpop.f32.mrb[0].mxu0
  %v509 = vpop.f32.mrb[0].mxu0
  %v510 = vadd.f32 %v155, %v509
  %v511 = vpop.f32.mrb[0].mxu0
  %512 = vmatprep.mubr.bf16.mxu0 %v283
  %513 = vmatmul.mubr.bf16.gmra.mrb[0].mxu0 %v282
  %v514 = vpop.f32.mrb[0].mxu0
  %v515 = vadd.f32 %v160, %v514
  %v516 = vpop.f32.mrb[0].mxu0
  %v517 = vpop.f32.mrb[0].mxu0
  %v518 = vadd.f32 %v165, %v517
  %v519 = vpop.f32.mrb[0].mxu0
  %520 = vmatprep.mubr.bf16.mxu0 %v286
  %521 = vmatmul.mubr.bf16.gmra.mrb[0].mxu0 %v285
  %v522 = vpop.f32.mrb[0].mxu0
  %v523 = vadd.f32 %v170, %v522
  %v524 = vpop.f32.mrb[0].mxu0
  %v525 = vpop.f32.mrb[0].mxu0
  %v526 = vadd.f32 %v175, %v525
  %v527 = vpop.f32.mrb[0].mxu0
  %528 = vmatprep.mubr.bf16.mxu0 %v289
  %529 = vmatmul.mubr.bf16.gmra.mrb[0].mxu0 %v288
  %v530 = vpop.f32.mrb[0].mxu0
  %v531 = vadd.f32 %v180, %v530
  %v532 = vpop.f32.mrb[0].mxu0
  %v533 = vpop.f32.mrb[0].mxu0
  %v534 = vadd.f32 %v185, %v533
  %v535 = vpop.f32.mrb[0].mxu0
  %536 = vdwg.mxu0
  %537 = vmatprep.subr.bf16.mxu0 0
  %538 = vmatpush1.bf16.msra.mxu0 %v395
  %539 = vmatprep.subr.bf16.mxu0 0
  %540 = vmatpush1.bf16.msra.mxu0 %v396
  %541 = vmatprep.subr.bf16.mxu0 0
  %542 = vmatpush1.bf16.msra.mxu0 0
  %543 = vmatprep.subr.bf16.mxu0 0
  %544 = vmatpush1.bf16.msra.mxu0 0
  %545 = vmatprep.subr.bf16.mxu0 0
  %546 = vmatpush1.bf16.msra.mxu0 0
  %547 = vmatprep.subr.bf16.mxu0 0
  %548 = vmatpush1.bf16.msra.mxu0 0
  %549 = vmatprep.subr.bf16.mxu0 0
  %550 = vmatpush1.bf16.msra.mxu0 0
  %551 = vmatprep.subr.bf16.mxu0 0
  %552 = vmatpush1.bf16.msra.mxu0 0
  %553 = vmatprep.subr.bf16.mxu0 0
  %554 = vmatpush1.bf16.msra.mxu0 0
  %555 = vmatprep.subr.bf16.mxu0 0
  %556 = vmatpush1.bf16.msra.mxu0 0
  %557 = vmatprep.subr.bf16.mxu0 0
  %558 = vmatpush1.bf16.msra.mxu0 0
  %559 = vmatprep.subr.bf16.mxu0 0
  %560 = vmatpush1.bf16.msra.mxu0 0
  %561 = vmatprep.subr.bf16.mxu0 0
  %562 = vmatpush1.bf16.msra.mxu0 0
  %563 = vmatprep.subr.bf16.mxu0 0
  %564 = vmatpush1.bf16.msra.mxu0 0
  %565 = vmatprep.subr.bf16.mxu0 0
  %566 = vmatpush1.bf16.msra.mxu0 0
  %567 = vmatprep.subr.bf16.mxu0 0
  %568 = vmatpush1.bf16.msra.mxu0 0
  %569 = vmatprep.mubr.bf16.mxu0 0
  %570 = vmatmul.mubr.bf16.gmra.mrb[0].mxu0 %v417
  %v571 = vpop.f32.mrb[0].mxu0
  %v572 = vadd.f32 %v475, %v571
  %v573 = vpop.f32.mrb[0].mxu0
  %v574 = vpop.f32.mrb[0].mxu0
  %v575 = vadd.f32 %v478, %v574
  %v576 = vpop.f32.mrb[0].mxu0
  %577 = vmatprep.mubr.bf16.mxu0 0
  %578 = vmatmul.mubr.bf16.gmra.mrb[0].mxu0 %v420
  %v579 = vpop.f32.mrb[0].mxu0
  %v580 = vadd.f32 %v483, %v579
  %v581 = vpop.f32.mrb[0].mxu0
  %v582 = vpop.f32.mrb[0].mxu0
  %v583 = vadd.f32 %v486, %v582
  %v584 = vpop.f32.mrb[0].mxu0
  %585 = vmatprep.mubr.bf16.mxu0 0
  %586 = vmatmul.mubr.bf16.gmra.mrb[0].mxu0 %v423
  %v587 = vpop.f32.mrb[0].mxu0
  %v588 = vadd.f32 %v491, %v587
  %v589 = vpop.f32.mrb[0].mxu0
  %v590 = vpop.f32.mrb[0].mxu0
  %v591 = vadd.f32 %v494, %v590
  %v592 = vpop.f32.mrb[0].mxu0
  %593 = vmatprep.mubr.bf16.mxu0 0
  %594 = vmatmul.mubr.bf16.gmra.mrb[0].mxu0 %v426
  %v595 = vpop.f32.mrb[0].mxu0
  %v596 = vadd.f32 %v499, %v595
  %v597 = vpop.f32.mrb[0].mxu0
  %v598 = vpop.f32.mrb[0].mxu0
  %v599 = vadd.f32 %v502, %v598
  %v600 = vpop.f32.mrb[0].mxu0
  %601 = vmatprep.mubr.bf16.mxu0 0
  %602 = vmatmul.mubr.bf16.gmra.mrb[0].mxu0 %v429
  %v603 = vpop.f32.mrb[0].mxu0
  %v604 = vadd.f32 %v507, %v603
  %v605 = vpop.f32.mrb[0].mxu0
  %v606 = vpop.f32.mrb[0].mxu0
  %v607 = vadd.f32 %v510, %v606
  %v608 = vpop.f32.mrb[0].mxu0
  %609 = vmatprep.mubr.bf16.mxu0 0
  %610 = vmatmul.mubr.bf16.gmra.mrb[0].mxu0 %v432
  %v611 = vpop.f32.mrb[0].mxu0
  %v612 = vadd.f32 %v515, %v611
  %v613 = vpop.f32.mrb[0].mxu0
  %v614 = vpop.f32.mrb[0].mxu0
  %v615 = vadd.f32 %v518, %v614
  %v616 = vpop.f32.mrb[0].mxu0
  %617 = vmatprep.mubr.bf16.mxu0 0
  %618 = vmatmul.mubr.bf16.gmra.mrb[0].mxu0 %v435
  %v619 = vpop.f32.mrb[0].mxu0
  %v620 = vadd.f32 %v523, %v619
  %v621 = vpop.f32.mrb[0].mxu0
  %v622 = vpop.f32.mrb[0].mxu0
  %v623 = vadd.f32 %v526, %v622
  %v624 = vpop.f32.mrb[0].mxu0
  %625 = vmatprep.mubr.bf16.mxu0 0
  %626 = vmatmul.mubr.bf16.gmra.mrb[0].mxu0 %v438
  %v627 = vpop.f32.mrb[0].mxu0
  %v628 = vadd.f32 %v531, %v627
  %v629 = vpop.f32.mrb[0].mxu0
  %v630 = vpop.f32.mrb[0].mxu0
  %v631 = vadd.f32 %v534, %v630
  %v632 = vpop.f32.mrb[0].mxu0
  %633 = vdwg.mxu0
  %vm634 = vcmask 523264
  %635 = vst.msk [vmem:[%s6] sm:$0xff] %vm634, %v604
  %636 = vst.msk [vmem:[%s6 + $0x8] sm:$0xff] %vm634, %v607
  %637 = vst.msk [vmem:[%s6 + $0x10] sm:$0xff] %vm634, %v612
  %638 = vst.msk [vmem:[%s6 + $0x18] sm:$0xff] %vm634, %v615
  %639 = vst.msk [vmem:[%s6 + $0x20] sm:$0xff] %vm634, %v620
  %640 = vst.msk [vmem:[%s6 + $0x28] sm:$0xff] %vm634, %v623
  %641 = vst.msk [vmem:[%s6 + $0x30] sm:$0xff] %vm634, %v628
  %642 = vst.msk [vmem:[%s6 + $0x38] sm:$0xff] %vm634, %v631
  %v643 = vsel %vm634, %v572, 0.0
  %644 = vadd.xlane.f32.xlu0 %v643
  %v645 = vpop.xlane.xlu0 %644
  %v646 = vsel %vm634, %v575, 0.0
  %647 = vadd.xlane.f32.xlu0 %v646
  %v648 = vpop.xlane.xlu0 %647
  %v649 = vsel %vm634, %v580, 0.0
  %650 = vadd.xlane.f32.xlu0 %v649
  %v651 = vpop.xlane.xlu0 %650
  %v652 = vsel %vm634, %v583, 0.0
  %653 = vadd.xlane.f32.xlu0 %v652
  %v654 = vpop.xlane.xlu0 %653
  %v655 = vsel %vm634, %v588, 0.0
  %656 = vadd.xlane.f32.xlu0 %v655
  %v657 = vpop.xlane.xlu0 %656
  %v658 = vsel %vm634, %v591, 0.0
  %659 = vadd.xlane.f32.xlu0 %v658
  %v660 = vpop.xlane.xlu0 %659
  %v661 = vsel %vm634, %v596, 0.0
  %662 = vadd.xlane.f32.xlu0 %v661
  %v663 = vpop.xlane.xlu0 %662
  %v664 = vsel %vm634, %v599, 0.0
  %665 = vadd.xlane.f32.xlu0 %v664
  %v666 = vpop.xlane.xlu0 %665
  %v667 = vmul.f32 %v645, 0.015625
  %v668 = vmul.f32 %v648, 0.015625
  %v669 = vmul.f32 %v651, 0.015625
  %v670 = vmul.f32 %v654, 0.015625
  %v671 = vmul.f32 %v657, 0.015625
  %v672 = vmul.f32 %v660, 0.015625
  %v673 = vmul.f32 %v663, 0.015625
  %v674 = vmul.f32 %v666, 0.015625
  %v675 = vsub.f32 %v572, %v667
  %v676 = vsub.f32 %v575, %v668
  %v677 = vsub.f32 %v580, %v669
  %v678 = vsub.f32 %v583, %v670
  %v679 = vsub.f32 %v588, %v671
  %v680 = vsub.f32 %v591, %v672
  %v681 = vsub.f32 %v596, %v673
  %v682 = vsub.f32 %v599, %v674
  %v683 = vmul.f32 %v675, %v675
  %v684 = vmul.f32 %v676, %v676
  %v685 = vmul.f32 %v677, %v677
  %v686 = vmul.f32 %v678, %v678
  %v687 = vmul.f32 %v679, %v679
  %v688 = vmul.f32 %v680, %v680
  %v689 = vmul.f32 %v681, %v681
  %v690 = vmul.f32 %v682, %v682
  %v691 = vsel %vm634, %v683, 0.0
  %692 = vadd.xlane.f32.xlu0 %v691
  %v693 = vpop.xlane.xlu0 %692
  %v694 = vsel %vm634, %v684, 0.0
  %695 = vadd.xlane.f32.xlu0 %v694
  %v696 = vpop.xlane.xlu0 %695
  %v697 = vsel %vm634, %v685, 0.0
  %698 = vadd.xlane.f32.xlu0 %v697
  %v699 = vpop.xlane.xlu0 %698
  %v700 = vsel %vm634, %v686, 0.0
  %701 = vadd.xlane.f32.xlu0 %v700
  %v702 = vpop.xlane.xlu0 %701
  %v703 = vsel %vm634, %v687, 0.0
  %704 = vadd.xlane.f32.xlu0 %v703
  %v705 = vpop.xlane.xlu0 %704
  %v706 = vsel %vm634, %v688, 0.0
  %707 = vadd.xlane.f32.xlu0 %v706
  %v708 = vpop.xlane.xlu0 %707
  %v709 = vsel %vm634, %v689, 0.0
  %710 = vadd.xlane.f32.xlu0 %v709
  %v711 = vpop.xlane.xlu0 %710
  %v712 = vsel %vm634, %v690, 0.0
  %713 = vadd.xlane.f32.xlu0 %v712
  %v714 = vpop.xlane.xlu0 %713
  %v715 = vmul.f32 %v693, 0.015625
  %v716 = vmul.f32 %v696, 0.015625
  %v717 = vmul.f32 %v699, 0.015625
  %v718 = vmul.f32 %v702, 0.015625
  %v719 = vmul.f32 %v705, 0.015625
  %v720 = vmul.f32 %v708, 0.015625
  %v721 = vmul.f32 %v711, 0.015625
  %v722 = vmul.f32 %v714, 0.015625
  %v723 = vld [vmem:[%s3] sm:$0xff]
  %v724 = vld [vmem:[%s3 + $0x8] sm:$0xff]
  %v725 = vld [vmem:[%s3 + $0x10] sm:$0xff]
  %v726 = vld [vmem:[%s3 + $0x18] sm:$0xff]
  %v727 = vld [vmem:[%s3 + $0x20] sm:$0xff]
  %v728 = vld [vmem:[%s3 + $0x28] sm:$0xff]
  %v729 = vld [vmem:[%s3 + $0x30] sm:$0xff]
  %v730 = vld [vmem:[%s3 + $0x38] sm:$0xff]
  %v731 = vadd.f32 %v715, 1e-05
  %v732 = vadd.f32 %v716, 1e-05
  %v733 = vadd.f32 %v717, 1e-05
  %v734 = vadd.f32 %v718, 1e-05
  %v735 = vadd.f32 %v719, 1e-05
  %v736 = vadd.f32 %v720, 1e-05
  %v737 = vadd.f32 %v721, 1e-05
  %v738 = vadd.f32 %v722, 1e-05
  %v739 = vrsqrt.pop %v731
  %v740 = vrsqrt.pop %v732
  %v741 = vrsqrt.pop %v733
  %v742 = vrsqrt.pop %v734
  %v743 = vrsqrt.pop %v735
  %v744 = vrsqrt.pop %v736
  %v745 = vrsqrt.pop %v737
  %v746 = vrsqrt.pop %v738
  %v747 = vmul.f32 %v723, %v739
  %v748 = vmul.f32 %v724, %v740
  %v749 = vmul.f32 %v725, %v741
  %v750 = vmul.f32 %v726, %v742
  %v751 = vmul.f32 %v727, %v743
  %v752 = vmul.f32 %v728, %v744
  %v753 = vmul.f32 %v729, %v745
  %v754 = vmul.f32 %v730, %v746
  %756 = vset.pattern.permute.xlu0 0
  %757 = vperm.xlu0 %756, %v747
  %v758 = vpop.permute.xlu0 %757
  %761 = vset.pattern.permute.xlu0 0
  %762 = vperm.xlu0 %761, %v748
  %v763 = vpop.permute.xlu0 %762
  %766 = vset.pattern.permute.xlu0 0
  %767 = vperm.xlu0 %766, %v749
  %v768 = vpop.permute.xlu0 %767
  %771 = vset.pattern.permute.xlu0 0
  %772 = vperm.xlu0 %771, %v750
  %v773 = vpop.permute.xlu0 %772
  %776 = vset.pattern.permute.xlu0 0
  %777 = vperm.xlu0 %776, %v751
  %v778 = vpop.permute.xlu0 %777
  %781 = vset.pattern.permute.xlu0 0
  %782 = vperm.xlu0 %781, %v752
  %v783 = vpop.permute.xlu0 %782
  %786 = vset.pattern.permute.xlu0 0
  %787 = vperm.xlu0 %786, %v753
  %v788 = vpop.permute.xlu0 %787
  %791 = vset.pattern.permute.xlu0 0
  %792 = vperm.xlu0 %791, %v754
  %v793 = vpop.permute.xlu0 %792
  %v795 = vmul.f32 %v675, %v758
  %v796 = vmul.f32 %v676, %v763
  %v797 = vmul.f32 %v677, %v768
  %v798 = vmul.f32 %v678, %v773
  %v799 = vmul.f32 %v679, %v778
  %v800 = vmul.f32 %v680, %v783
  %v801 = vmul.f32 %v681, %v788
  %v802 = vmul.f32 %v682, %v793
  %v803 = vld [vmem:[%s4] sm:$0xff]
  %v804 = vld [vmem:[%s4 + $0x8] sm:$0xff]
  %v805 = vld [vmem:[%s4 + $0x10] sm:$0xff]
  %v806 = vld [vmem:[%s4 + $0x18] sm:$0xff]
  %v807 = vld [vmem:[%s4 + $0x20] sm:$0xff]
  %v808 = vld [vmem:[%s4 + $0x28] sm:$0xff]
  %v809 = vld [vmem:[%s4 + $0x30] sm:$0xff]
  %v810 = vld [vmem:[%s4 + $0x38] sm:$0xff]
  %812 = vset.pattern.permute.xlu0 0
  %813 = vperm.xlu0 %812, %v803
  %v814 = vpop.permute.xlu0 %813
  %817 = vset.pattern.permute.xlu0 0
  %818 = vperm.xlu0 %817, %v804
  %v819 = vpop.permute.xlu0 %818
  %822 = vset.pattern.permute.xlu0 0
  %823 = vperm.xlu0 %822, %v805
  %v824 = vpop.permute.xlu0 %823
  %827 = vset.pattern.permute.xlu0 0
  %828 = vperm.xlu0 %827, %v806
  %v829 = vpop.permute.xlu0 %828
  %832 = vset.pattern.permute.xlu0 0
  %833 = vperm.xlu0 %832, %v807
  %v834 = vpop.permute.xlu0 %833
  %837 = vset.pattern.permute.xlu0 0
  %838 = vperm.xlu0 %837, %v808
  %v839 = vpop.permute.xlu0 %838
  %842 = vset.pattern.permute.xlu0 0
  %843 = vperm.xlu0 %842, %v809
  %v844 = vpop.permute.xlu0 %843
  %847 = vset.pattern.permute.xlu0 0
  %848 = vperm.xlu0 %847, %v810
  %v849 = vpop.permute.xlu0 %848
  %v851 = vadd.f32 %v795, %v814
  %v852 = vadd.f32 %v796, %v819
  %v853 = vadd.f32 %v797, %v824
  %v854 = vadd.f32 %v798, %v829
  %v855 = vadd.f32 %v799, %v834
  %v856 = vadd.f32 %v800, %v839
  %v857 = vadd.f32 %v801, %v844
  %v858 = vadd.f32 %v802, %v849
  %v859 = vmax.f32 %v851, 0.0
  %v860 = vmax.f32 %v852, 0.0
  %v861 = vmax.f32 %v853, 0.0
  %v862 = vmax.f32 %v854, 0.0
  %v863 = vmax.f32 %v855, 0.0
  %v864 = vmax.f32 %v856, 0.0
  %v865 = vmax.f32 %v857, 0.0
  %v866 = vmax.f32 %v858, 0.0
  %v867 = vpack.c.bf16 %v860, %v859
  %v868 = vpack.c.bf16 %v862, %v861
  %v869 = vpack.c.bf16 %v864, %v863
  %v870 = vpack.c.bf16 %v866, %v865
  %v875 = vunpack.c.l.b16 %v867
  %v876 = vunpack.c.h.b16 %v867
  %v877 = vunpack.c.l.b16 %v868
  %v878 = vunpack.c.h.b16 %v868
  %v879 = vunpack.c.l.b16 %v869
  %v880 = vunpack.c.h.b16 %v869
  %v881 = vunpack.c.l.b16 %v870
  %v882 = vunpack.c.h.b16 %v870
  %v883 = vpack.c.b16 %v875, %v875
  %v884 = vpack.c.b16 %v876, %v876
  %v885 = vpack.c.b16 %v877, %v877
  %v886 = vpack.c.b16 %v878, %v878
  %v887 = vpack.c.b16 %v879, %v879
  %v888 = vpack.c.b16 %v880, %v880
  %v889 = vpack.c.b16 %v881, %v881
  %v890 = vpack.c.b16 %v882, %v882
  %vm899 = vcmask 519168
  %900 = vst.msk [vmem:[%s5] sm:$0xf] %vm899, %v883
  %901 = vst.msk [vmem:[%s5 + $0x4] sm:$0xf] %vm899, %v884
  %902 = vst.msk [vmem:[%s5 + $0x8] sm:$0xf] %vm899, %v885
  %903 = vst.msk [vmem:[%s5 + $0xc] sm:$0xf] %vm899, %v886
  %904 = vst.msk [vmem:[%s5 + $0x10] sm:$0xf] %vm899, %v887
  %905 = vst.msk [vmem:[%s5 + $0x14] sm:$0xf] %vm899, %v888
  %906 = vst.msk [vmem:[%s5 + $0x18] sm:$0xf] %vm899, %v889
  %907 = vst.msk [vmem:[%s5 + $0x1c] sm:$0xf] %vm899, %v890
  // Predicated region
  $region22: #{resnet_iid_forward.33} parent=0 // pred_check
    _
  $region23: #{resnet_iid_forward.33} parent=0 // pred_check_branch
    %909 = sbr.rel (0) target = $region25
  $region24: #{resnet_iid_forward.33} parent=0 // pred_region
    _
  $region25: #{resnet_iid_forward.33} parent=0 // pred_fallthru
    _
  // Predicated region
  $region26: #{resnet_iid_forward.33} parent=0 // pred_check
    _
  $region27: #{resnet_iid_forward.33} parent=0 // pred_check_branch
    %911 = sbr.rel (0) target = $region29
  $region28: #{resnet_iid_forward.33} parent=0 // pred_region
    _
  $region29: #{resnet_iid_forward.33} parent=0 // pred_fallthru
    _
  // Predicated region
  $region30: #{resnet_iid_forward.33} parent=0 // pred_check
    _
  $region31: #{resnet_iid_forward.33} parent=0 // pred_check_branch
    %913 = sbr.rel (0) target = $region33
  $region32: #{resnet_iid_forward.33} parent=0 // pred_region
    _
  $region33: #{resnet_iid_forward.33} parent=0 // pred_fallthru
    _
  // Predicated region
  $region34: #{resnet_iid_forward.33} parent=0 // pred_check
    _
  $region35: #{resnet_iid_forward.33} parent=0 // pred_check_branch
    %915 = sbr.rel (0) target = $region37
  $region36: #{resnet_iid_forward.33} parent=0 // pred_region
    _
  $region37: #{resnet_iid_forward.33} parent=0 // pred_fallthru
    _

// kernel: resnet_iid_forward.34
$region0: #{resnet_iid_forward.34}
  #allocation0 [shape = 'u32[]', space=smem, size = 0x4, offset = 0x4, fixed_abs, tag = 'smem constant byte address 0x4 - core index']
  #allocation1 [shape = 'u32[144,128]{1,0:T(1,128)}', space=vmem, size = 0x12000, scoped, tag = 'internal scratch']
  %s0 = inlined_call_operand.vmem [shape: bf16[576,64], index: 0, kind: input, shape index: {}]
  %s1 = inlined_call_operand.vmem [shape: bf16[64,576], index: 1, kind: input, shape index: {}]
  %s2 = inlined_call_operand.vmem [shape: f32[64,1], index: 2, kind: input, shape index: {}]
  %s3 = inlined_call_operand.vmem [shape: f32[64,1], index: 3, kind: input, shape index: {}]
  %s4 = inlined_call_operand.vmem [shape: f32[64,1], index: 4, kind: input, shape index: {}]
  %s5 = inlined_call_operand.vmem [shape: f32[64,64], index: 5, kind: input, shape index: {}]
  %s6 = inlined_call_operand.vmem [shape: bf16[64,64], index: 6, kind: output, shape index: {}]
  %s7 = sld [smem:[#allocation0]]
  $region34: #{resnet_iid_forward.34} parent=0
    _
  %s9 = ssub.s32 1, %s7
  %s10 = scalar_select 0, %s9, %s7
  // Predicated region
  $region2: #{resnet_iid_forward.34} parent=0 // pred_check
    _
  $region3: #{resnet_iid_forward.34} parent=0 // pred_check_branch
    %12 = sbr.rel (0) target = $region5
  $region4: #{resnet_iid_forward.34} parent=0 // pred_region
    _
  $region5: #{resnet_iid_forward.34} parent=0 // pred_fallthru
    _
  // Predicated region
  $region6: #{resnet_iid_forward.34} parent=0 // pred_check
    _
  $region7: #{resnet_iid_forward.34} parent=0 // pred_check_branch
    %14 = sbr.rel (0) target = $region9
  $region8: #{resnet_iid_forward.34} parent=0 // pred_region
    _
  $region9: #{resnet_iid_forward.34} parent=0 // pred_fallthru
    _
  // Predicated region
  $region10: #{resnet_iid_forward.34} parent=0 // pred_check
    _
  $region11: #{resnet_iid_forward.34} parent=0 // pred_check_branch
    %16 = sbr.rel (0) target = $region13
  $region12: #{resnet_iid_forward.34} parent=0 // pred_region
    _
  $region13: #{resnet_iid_forward.34} parent=0 // pred_fallthru
    _
  // Predicated region
  $region14: #{resnet_iid_forward.34} parent=0 // pred_check
    _
  $region15: #{resnet_iid_forward.34} parent=0 // pred_check_branch
    %18 = sbr.rel (0) target = $region17
  $region16: #{resnet_iid_forward.34} parent=0 // pred_region
    _
  $region17: #{resnet_iid_forward.34} parent=0 // pred_fallthru
    _
  // Predicated region
  $region18: #{resnet_iid_forward.34} parent=0 // pred_check
    _
  $region19: #{resnet_iid_forward.34} parent=0 // pred_check_branch
    %20 = sbr.rel (0) target = $region21
  $region20: #{resnet_iid_forward.34} parent=0 // pred_region
    _
  $region21: #{resnet_iid_forward.34} parent=0 // pred_fallthru
    _
  // Predicated region
  $region22: #{resnet_iid_forward.34} parent=0 // pred_check
    _
  $region23: #{resnet_iid_forward.34} parent=0 // pred_check_branch
    %22 = sbr.rel (0) target = $region25
  $region24: #{resnet_iid_forward.34} parent=0 // pred_region
    _
  $region25: #{resnet_iid_forward.34} parent=0 // pred_fallthru
    _
  %v24 = vld [vmem:[%s1] sm:$0xff]
  %v25 = vld [vmem:[%s1 + $0x8] sm:$0xff]
  %v26 = vld [vmem:[%s1 + $0x10] sm:$0xf]
  %v27 = vld [vmem:[%s1 + $0x14] sm:$0xff]
  %v28 = vld [vmem:[%s1 + $0x1c] sm:$0xff]
  %v29 = vld [vmem:[%s1 + $0x24] sm:$0xf]
  %v30 = vld [vmem:[%s1 + $0x28] sm:$0xff]
  %v31 = vld [vmem:[%s1 + $0x30] sm:$0xff]
  %v32 = vld [vmem:[%s1 + $0x38] sm:$0xf]
  %v33 = vld [vmem:[%s1 + $0x3c] sm:$0xff]
  %v34 = vld [vmem:[%s1 + $0x44] sm:$0xff]
  %v35 = vld [vmem:[%s1 + $0x4c] sm:$0xf]
  %v36 = vld [vmem:[%s1 + $0x50] sm:$0xff]
  %v37 = vld [vmem:[%s1 + $0x58] sm:$0xff]
  %v38 = vld [vmem:[%s1 + $0x60] sm:$0xf]
  %v39 = vld [vmem:[%s1 + $0x64] sm:$0xff]
  %v40 = vld [vmem:[%s1 + $0x6c] sm:$0xff]
  %v41 = vld [vmem:[%s1 + $0x74] sm:$0xf]
  %v42 = vld [vmem:[%s1 + $0x78] sm:$0xff]
  %v43 = vld [vmem:[%s1 + $0x80] sm:$0xff]
  %v44 = vld [vmem:[%s1 + $0x88] sm:$0xf]
  %v45 = vld [vmem:[%s1 + $0x8c] sm:$0xff]
  %v46 = vld [vmem:[%s1 + $0x94] sm:$0xff]
  %v47 = vld [vmem:[%s1 + $0x9c] sm:$0xf]
  %v48 = vld [vmem:[%s0] sm:$0xf]
  %v49 = vld [vmem:[%s0 + $0x4] sm:$0xf]
  %v50 = vld [vmem:[%s0 + $0x8] sm:$0xf]
  %v51 = vld [vmem:[%s0 + $0xc] sm:$0xf]
  %v52 = vld [vmem:[%s0 + $0x10] sm:$0xf]
  %v53 = vld [vmem:[%s0 + $0x14] sm:$0xf]
  %v54 = vld [vmem:[%s0 + $0x18] sm:$0xf]
  %v55 = vld [vmem:[%s0 + $0x1c] sm:$0xf]
  %v56 = vld [vmem:[%s0 + $0x20] sm:$0xf]
  %v57 = vld [vmem:[%s0 + $0x24] sm:$0xf]
  %v58 = vld [vmem:[%s0 + $0x28] sm:$0xf]
  %v59 = vld [vmem:[%s0 + $0x2c] sm:$0xf]
  %v60 = vld [vmem:[%s0 + $0x30] sm:$0xf]
  %v61 = vld [vmem:[%s0 + $0x34] sm:$0xf]
  %v62 = vld [vmem:[%s0 + $0x38] sm:$0xf]
  %v63 = vld [vmem:[%s0 + $0x3c] sm:$0xf]
  %v64 = vld [vmem:[%s0 + $0x40] sm:$0xf]
  %v65 = vld [vmem:[%s0 + $0x44] sm:$0xf]
  %v66 = vld [vmem:[%s0 + $0x48] sm:$0xf]
  %v67 = vld [vmem:[%s0 + $0x4c] sm:$0xf]
  %v68 = vld [vmem:[%s0 + $0x50] sm:$0xf]
  %v69 = vld [vmem:[%s0 + $0x54] sm:$0xf]
  %v70 = vld [vmem:[%s0 + $0x58] sm:$0xf]
  %v71 = vld [vmem:[%s0 + $0x5c] sm:$0xf]
  %v72 = vld [vmem:[%s0 + $0x60] sm:$0xf]
  %v73 = vld [vmem:[%s0 + $0x64] sm:$0xf]
  %v74 = vld [vmem:[%s0 + $0x68] sm:$0xf]
  %v75 = vld [vmem:[%s0 + $0x6c] sm:$0xf]
  %v76 = vld [vmem:[%s0 + $0x70] sm:$0xf]
  %v77 = vld [vmem:[%s0 + $0x74] sm:$0xf]
  %v78 = vld [vmem:[%s0 + $0x78] sm:$0xf]
  %v79 = vld [vmem:[%s0 + $0x7c] sm:$0xf]
  %v80 = vld [vmem:[%s0 + $0x80] sm:$0xf]
  %v81 = vld [vmem:[%s0 + $0x84] sm:$0xf]
  %v82 = vld [vmem:[%s0 + $0x88] sm:$0xf]
  %v83 = vld [vmem:[%s0 + $0x8c] sm:$0xf]
  %v84 = vld [vmem:[%s0 + $0x90] sm:$0xf]
  %v85 = vld [vmem:[%s0 + $0x94] sm:$0xf]
  %v86 = vld [vmem:[%s0 + $0x98] sm:$0xf]
  %v87 = vld [vmem:[%s0 + $0x9c] sm:$0xf]
  %v88 = vld [vmem:[%s0 + $0xa0] sm:$0xf]
  %v89 = vld [vmem:[%s0 + $0xa4] sm:$0xf]
  %v90 = vld [vmem:[%s0 + $0xa8] sm:$0xf]
  %v91 = vld [vmem:[%s0 + $0xac] sm:$0xf]
  %v92 = vld [vmem:[%s0 + $0xb0] sm:$0xf]
  %v93 = vld [vmem:[%s0 + $0xb4] sm:$0xf]
  %v94 = vld [vmem:[%s0 + $0xb8] sm:$0xf]
  %v95 = vld [vmem:[%s0 + $0xbc] sm:$0xf]
  %v96 = vld [vmem:[%s0 + $0xc0] sm:$0xf]
  %v97 = vld [vmem:[%s0 + $0xc4] sm:$0xf]
  %v98 = vld [vmem:[%s0 + $0xc8] sm:$0xf]
  %v99 = vld [vmem:[%s0 + $0xcc] sm:$0xf]
  %v100 = vld [vmem:[%s0 + $0xd0] sm:$0xf]
  %v101 = vld [vmem:[%s0 + $0xd4] sm:$0xf]
  %v102 = vld [vmem:[%s0 + $0xd8] sm:$0xf]
  %v103 = vld [vmem:[%s0 + $0xdc] sm:$0xf]
  %v104 = vld [vmem:[%s0 + $0xe0] sm:$0xf]
  %v105 = vld [vmem:[%s0 + $0xe4] sm:$0xf]
  %v106 = vld [vmem:[%s0 + $0xe8] sm:$0xf]
  %v107 = vld [vmem:[%s0 + $0xec] sm:$0xf]
  %v108 = vld [vmem:[%s0 + $0xf0] sm:$0xf]
  %v109 = vld [vmem:[%s0 + $0xf4] sm:$0xf]
  %v110 = vld [vmem:[%s0 + $0xf8] sm:$0xf]
  %v111 = vld [vmem:[%s0 + $0xfc] sm:$0xf]
  %v112 = vld [vmem:[%s0 + $0x100] sm:$0xf]
  %v113 = vld [vmem:[%s0 + $0x104] sm:$0xf]
  %v114 = vld [vmem:[%s0 + $0x108] sm:$0xf]
  %v115 = vld [vmem:[%s0 + $0x10c] sm:$0xf]
  %v116 = vld [vmem:[%s0 + $0x110] sm:$0xf]
  %v117 = vld [vmem:[%s0 + $0x114] sm:$0xf]
  %v118 = vld [vmem:[%s0 + $0x118] sm:$0xf]
  %v119 = vld [vmem:[%s0 + $0x11c] sm:$0xf]
  %v120 = vld [vmem:[%s2] sm:$0xff]
  %v121 = vld [vmem:[%s2 + $0x8] sm:$0xff]
  %v122 = vld [vmem:[%s2 + $0x10] sm:$0xff]
  %v123 = vld [vmem:[%s2 + $0x18] sm:$0xff]
  %v124 = vld [vmem:[%s2 + $0x20] sm:$0xff]
  %v125 = vld [vmem:[%s2 + $0x28] sm:$0xff]
  %v126 = vld [vmem:[%s2 + $0x30] sm:$0xff]
  %v127 = vld [vmem:[%s2 + $0x38] sm:$0xff]
  %129 = vset.pattern.permute.xlu0 0
  %130 = vperm.xlu0 %129, %v120
  %v131 = vpop.permute.xlu0 %130
  %134 = vset.pattern.permute.xlu0 0
  %135 = vperm.xlu0 %134, %v121
  %v136 = vpop.permute.xlu0 %135
  %139 = vset.pattern.permute.xlu0 0
  %140 = vperm.xlu0 %139, %v122
  %v141 = vpop.permute.xlu0 %140
  %144 = vset.pattern.permute.xlu0 0
  %145 = vperm.xlu0 %144, %v123
  %v146 = vpop.permute.xlu0 %145
  %149 = vset.pattern.permute.xlu0 0
  %150 = vperm.xlu0 %149, %v124
  %v151 = vpop.permute.xlu0 %150
  %154 = vset.pattern.permute.xlu0 0
  %155 = vperm.xlu0 %154, %v125
  %v156 = vpop.permute.xlu0 %155
  %159 = vset.pattern.permute.xlu0 0
  %160 = vperm.xlu0 %159, %v126
  %v161 = vpop.permute.xlu0 %160
  %164 = vset.pattern.permute.xlu0 0
  %165 = vperm.xlu0 %164, %v127
  %v166 = vpop.permute.xlu0 %165
  %v192 = vunpack.c.l.b16 %v24
  %v193 = vunpack.c.h.b16 %v24
  %v194 = vunpack.c.l.b16 %v25
  %v195 = vunpack.c.h.b16 %v25
  %v196 = vunpack.c.l.b16 %v26
  %v197 = vunpack.c.l.b16 %v27
  %v198 = vunpack.c.h.b16 %v27
  %v199 = vunpack.c.l.b16 %v28
  %v200 = vunpack.c.h.b16 %v28
  %v201 = vunpack.c.l.b16 %v29
  %v202 = vunpack.c.l.b16 %v30
  %v203 = vunpack.c.h.b16 %v30
  %v204 = vunpack.c.l.b16 %v31
  %v205 = vunpack.c.h.b16 %v31
  %v206 = vunpack.c.l.b16 %v32
  %v207 = vunpack.c.l.b16 %v33
  %v208 = vunpack.c.h.b16 %v33
  %v209 = vunpack.c.l.b16 %v34
  %v210 = vunpack.c.h.b16 %v34
  %v211 = vunpack.c.l.b16 %v35
  %v212 = vunpack.c.l.b16 %v36
  %v213 = vunpack.c.h.b16 %v36
  %v214 = vunpack.c.l.b16 %v37
  %v215 = vunpack.c.h.b16 %v37
  %v216 = vunpack.c.l.b16 %v38
  %v217 = vunpack.c.l.b16 %v39
  %v218 = vunpack.c.h.b16 %v39
  %v219 = vunpack.c.l.b16 %v40
  %v220 = vunpack.c.h.b16 %v40
  %v221 = vunpack.c.l.b16 %v41
  %v222 = vunpack.c.l.b16 %v42
  %v223 = vunpack.c.h.b16 %v42
  %v224 = vunpack.c.l.b16 %v43
  %v225 = vunpack.c.h.b16 %v43
  %v226 = vunpack.c.l.b16 %v44
  %v227 = vunpack.c.l.b16 %v45
  %v228 = vunpack.c.h.b16 %v45
  %v229 = vunpack.c.l.b16 %v46
  %v230 = vunpack.c.h.b16 %v46
  %v231 = vunpack.c.l.b16 %v47
  %v232 = vpack.c.b16 %v197, %v192
  %v233 = vpack.c.b16 %v198, %v193
  %v234 = vpack.c.b16 %v199, %v194
  %v235 = vpack.c.b16 %v200, %v195
  %v236 = vpack.c.b16 %v201, %v196
  %v237 = vpack.c.b16 %v207, %v202
  %v238 = vpack.c.b16 %v208, %v203
  %v239 = vpack.c.b16 %v209, %v204
  %v240 = vpack.c.b16 %v210, %v205
  %v241 = vpack.c.b16 %v211, %v206
  %v242 = vpack.c.b16 %v217, %v212
  %v243 = vpack.c.b16 %v218, %v213
  %v244 = vpack.c.b16 %v219, %v214
  %v245 = vpack.c.b16 %v220, %v215
  %v246 = vpack.c.b16 %v221, %v216
  %v247 = vpack.c.b16 %v227, %v222
  %v248 = vpack.c.b16 %v228, %v223
  %v249 = vpack.c.b16 %v229, %v224
  %v250 = vpack.c.b16 %v230, %v225
  %v251 = vpack.c.b16 %v231, %v226
  %v340 = vunpack.c.l.b16 %v48
  %v341 = vunpack.c.l.b16 %v49
  %v342 = vunpack.c.l.b16 %v50
  %v343 = vunpack.c.l.b16 %v51
  %v344 = vunpack.c.l.b16 %v52
  %v345 = vunpack.c.l.b16 %v53
  %v346 = vunpack.c.l.b16 %v54
  %v347 = vunpack.c.l.b16 %v55
  %v348 = vunpack.c.l.b16 %v56
  %v349 = vunpack.c.l.b16 %v57
  %v350 = vunpack.c.l.b16 %v58
  %v351 = vunpack.c.l.b16 %v59
  %v352 = vunpack.c.l.b16 %v60
  %v353 = vunpack.c.l.b16 %v61
  %v354 = vunpack.c.l.b16 %v62
  %v355 = vunpack.c.l.b16 %v63
  %v356 = vunpack.c.l.b16 %v64
  %v357 = vunpack.c.l.b16 %v65
  %v358 = vunpack.c.l.b16 %v66
  %v359 = vunpack.c.l.b16 %v67
  %v360 = vunpack.c.l.b16 %v68
  %v361 = vunpack.c.l.b16 %v69
  %v362 = vunpack.c.l.b16 %v70
  %v363 = vunpack.c.l.b16 %v71
  %v364 = vunpack.c.l.b16 %v72
  %v365 = vunpack.c.l.b16 %v73
  %v366 = vunpack.c.l.b16 %v74
  %v367 = vunpack.c.l.b16 %v75
  %v368 = vunpack.c.l.b16 %v76
  %v369 = vunpack.c.l.b16 %v77
  %v370 = vunpack.c.l.b16 %v78
  %v371 = vunpack.c.l.b16 %v79
  %v372 = vunpack.c.l.b16 %v80
  %v373 = vunpack.c.l.b16 %v81
  %v374 = vunpack.c.l.b16 %v82
  %v375 = vunpack.c.l.b16 %v83
  %v376 = vunpack.c.l.b16 %v84
  %v377 = vunpack.c.l.b16 %v85
  %v378 = vunpack.c.l.b16 %v86
  %v379 = vunpack.c.l.b16 %v87
  %v380 = vunpack.c.l.b16 %v88
  %v381 = vunpack.c.l.b16 %v89
  %v382 = vunpack.c.l.b16 %v90
  %v383 = vunpack.c.l.b16 %v91
  %v384 = vunpack.c.l.b16 %v92
  %v385 = vunpack.c.l.b16 %v93
  %v386 = vunpack.c.l.b16 %v94
  %v387 = vunpack.c.l.b16 %v95
  %v388 = vunpack.c.l.b16 %v96
  %v389 = vunpack.c.l.b16 %v97
  %v390 = vunpack.c.l.b16 %v98
  %v391 = vunpack.c.l.b16 %v99
  %v392 = vunpack.c.l.b16 %v100
  %v393 = vunpack.c.l.b16 %v101
  %v394 = vunpack.c.l.b16 %v102
  %v395 = vunpack.c.l.b16 %v103
  %v396 = vunpack.c.l.b16 %v104
  %v397 = vunpack.c.l.b16 %v105
  %v398 = vunpack.c.l.b16 %v106
  %v399 = vunpack.c.l.b16 %v107
  %v400 = vunpack.c.l.b16 %v108
  %v401 = vunpack.c.l.b16 %v109
  %v402 = vunpack.c.l.b16 %v110
  %v403 = vunpack.c.l.b16 %v111
  %v404 = vunpack.c.l.b16 %v112
  %v405 = vunpack.c.l.b16 %v113
  %v406 = vunpack.c.l.b16 %v114
  %v407 = vunpack.c.l.b16 %v115
  %v408 = vunpack.c.l.b16 %v116
  %v409 = vunpack.c.l.b16 %v117
  %v410 = vunpack.c.l.b16 %v118
  %v411 = vunpack.c.l.b16 %v119
  %v412 = vpack.c.b16 %v341, %v340
  %v413 = vpack.c.b16 %v343, %v342
  %v414 = vpack.c.b16 %v345, %v344
  %v415 = vpack.c.b16 %v347, %v346
  %v416 = vpack.c.b16 %v349, %v348
  %v417 = vpack.c.b16 %v351, %v350
  %v418 = vpack.c.b16 %v353, %v352
  %v419 = vpack.c.b16 %v355, %v354
  %v420 = vpack.c.b16 %v357, %v356
  %v421 = vpack.c.b16 %v359, %v358
  %v422 = vpack.c.b16 %v361, %v360
  %v423 = vpack.c.b16 %v363, %v362
  %v424 = vpack.c.b16 %v365, %v364
  %v425 = vpack.c.b16 %v367, %v366
  %v426 = vpack.c.b16 %v369, %v368
  %v427 = vpack.c.b16 %v371, %v370
  %v428 = vpack.c.b16 %v373, %v372
  %v429 = vpack.c.b16 %v375, %v374
  %v430 = vpack.c.b16 %v377, %v376
  %v431 = vpack.c.b16 %v379, %v378
  %v432 = vpack.c.b16 %v381, %v380
  %v433 = vpack.c.b16 %v383, %v382
  %v434 = vpack.c.b16 %v385, %v384
  %v435 = vpack.c.b16 %v387, %v386
  %v436 = vpack.c.b16 %v389, %v388
  %v437 = vpack.c.b16 %v391, %v390
  %v438 = vpack.c.b16 %v393, %v392
  %v439 = vpack.c.b16 %v395, %v394
  %v440 = vpack.c.b16 %v397, %v396
  %v441 = vpack.c.b16 %v399, %v398
  %v442 = vpack.c.b16 %v401, %v400
  %v443 = vpack.c.b16 %v403, %v402
  %v444 = vpack.c.b16 %v405, %v404
  %v445 = vpack.c.b16 %v407, %v406
  %v446 = vpack.c.b16 %v409, %v408
  %v447 = vpack.c.b16 %v411, %v410
  %vm484 = vcmask 523264
  %v486 = vsel %vm484, %v236, 0
  %v489 = vsel %vm484, %v241, 0
  %v492 = vsel %vm484, %v246, 0
  %v495 = vsel %vm484, %v251, 0
  %497 = vmatprep.subr.bf16.mxu0 0
  %498 = vmatpush1.bf16.msra.mxu0 %v412
  %499 = vmatprep.subr.bf16.mxu0 0
  %500 = vmatpush1.bf16.msra.mxu0 %v413
  %501 = vmatprep.subr.bf16.mxu0 0
  %502 = vmatpush1.bf16.msra.mxu0 %v414
  %503 = vmatprep.subr.bf16.mxu0 0
  %504 = vmatpush1.bf16.msra.mxu0 %v415
  %505 = vmatprep.subr.bf16.mxu0 0
  %506 = vmatpush1.bf16.msra.mxu0 %v416
  %507 = vmatprep.subr.bf16.mxu0 0
  %508 = vmatpush1.bf16.msra.mxu0 %v417
  %509 = vmatprep.subr.bf16.mxu0 0
  %510 = vmatpush1.bf16.msra.mxu0 %v418
  %511 = vmatprep.subr.bf16.mxu0 0
  %512 = vmatpush1.bf16.msra.mxu0 %v419
  %513 = vmatprep.subr.bf16.mxu0 0
  %514 = vmatpush1.bf16.msra.mxu0 %v420
  %515 = vmatprep.subr.bf16.mxu0 0
  %516 = vmatpush1.bf16.msra.mxu0 %v421
  %517 = vmatprep.subr.bf16.mxu0 0
  %518 = vmatpush1.bf16.msra.mxu0 %v422
  %519 = vmatprep.subr.bf16.mxu0 0
  %520 = vmatpush1.bf16.msra.mxu0 %v423
  %521 = vmatprep.subr.bf16.mxu0 0
  %522 = vmatpush1.bf16.msra.mxu0 %v424
  %523 = vmatprep.subr.bf16.mxu0 0
  %524 = vmatpush1.bf16.msra.mxu0 %v425
  %525 = vmatprep.subr.bf16.mxu0 0
  %526 = vmatpush1.bf16.msra.mxu0 %v426
  %527 = vmatprep.subr.bf16.mxu0 0
  %528 = vmatpush1.bf16.msra.mxu0 %v427
  %529 = vmatprep.mubr.bf16.mxu0 %v233
  %530 = vmatmul.mubr.bf16.gmra.mrb[0].mxu0 %v232
  %v531 = vpop.f32.mrb[0].mxu0
  %v532 = vadd.f32 %v131, %v531
  %v533 = vpop.f32.mrb[0].mxu0
  %v534 = vpop.f32.mrb[0].mxu0
  %v535 = vadd.f32 %v136, %v534
  %v536 = vpop.f32.mrb[0].mxu0
  %537 = vmatprep.mubr.bf16.mxu0 %v238
  %538 = vmatmul.mubr.bf16.gmra.mrb[0].mxu0 %v237
  %v539 = vpop.f32.mrb[0].mxu0
  %v540 = vadd.f32 %v141, %v539
  %v541 = vpop.f32.mrb[0].mxu0
  %v542 = vpop.f32.mrb[0].mxu0
  %v543 = vadd.f32 %v146, %v542
  %v544 = vpop.f32.mrb[0].mxu0
  %545 = vmatprep.mubr.bf16.mxu0 %v243
  %546 = vmatmul.mubr.bf16.gmra.mrb[0].mxu0 %v242
  %v547 = vpop.f32.mrb[0].mxu0
  %v548 = vadd.f32 %v151, %v547
  %v549 = vpop.f32.mrb[0].mxu0
  %v550 = vpop.f32.mrb[0].mxu0
  %v551 = vadd.f32 %v156, %v550
  %v552 = vpop.f32.mrb[0].mxu0
  %553 = vmatprep.mubr.bf16.mxu0 %v248
  %554 = vmatmul.mubr.bf16.gmra.mrb[0].mxu0 %v247
  %v555 = vpop.f32.mrb[0].mxu0
  %v556 = vadd.f32 %v161, %v555
  %v557 = vpop.f32.mrb[0].mxu0
  %v558 = vpop.f32.mrb[0].mxu0
  %v559 = vadd.f32 %v166, %v558
  %v560 = vpop.f32.mrb[0].mxu0
  %561 = vdwg.mxu0
  %562 = vmatprep.subr.bf16.mxu0 0
  %563 = vmatpush1.bf16.msra.mxu0 %v428
  %564 = vmatprep.subr.bf16.mxu0 0
  %565 = vmatpush1.bf16.msra.mxu0 %v429
  %566 = vmatprep.subr.bf16.mxu0 0
  %567 = vmatpush1.bf16.msra.mxu0 %v430
  %568 = vmatprep.subr.bf16.mxu0 0
  %569 = vmatpush1.bf16.msra.mxu0 %v431
  %570 = vmatprep.subr.bf16.mxu0 0
  %571 = vmatpush1.bf16.msra.mxu0 %v432
  %572 = vmatprep.subr.bf16.mxu0 0
  %573 = vmatpush1.bf16.msra.mxu0 %v433
  %574 = vmatprep.subr.bf16.mxu0 0
  %575 = vmatpush1.bf16.msra.mxu0 %v434
  %576 = vmatprep.subr.bf16.mxu0 0
  %577 = vmatpush1.bf16.msra.mxu0 %v435
  %578 = vmatprep.subr.bf16.mxu0 0
  %579 = vmatpush1.bf16.msra.mxu0 %v436
  %580 = vmatprep.subr.bf16.mxu0 0
  %581 = vmatpush1.bf16.msra.mxu0 %v437
  %582 = vmatprep.subr.bf16.mxu0 0
  %583 = vmatpush1.bf16.msra.mxu0 %v438
  %584 = vmatprep.subr.bf16.mxu0 0
  %585 = vmatpush1.bf16.msra.mxu0 %v439
  %586 = vmatprep.subr.bf16.mxu0 0
  %587 = vmatpush1.bf16.msra.mxu0 %v440
  %588 = vmatprep.subr.bf16.mxu0 0
  %589 = vmatpush1.bf16.msra.mxu0 %v441
  %590 = vmatprep.subr.bf16.mxu0 0
  %591 = vmatpush1.bf16.msra.mxu0 %v442
  %592 = vmatprep.subr.bf16.mxu0 0
  %593 = vmatpush1.bf16.msra.mxu0 %v443
  %594 = vmatprep.mubr.bf16.mxu0 %v235
  %595 = vmatmul.mubr.bf16.gmra.mrb[0].mxu0 %v234
  %v596 = vpop.f32.mrb[0].mxu0
  %v597 = vadd.f32 %v532, %v596
  %v598 = vpop.f32.mrb[0].mxu0
  %v599 = vpop.f32.mrb[0].mxu0
  %v600 = vadd.f32 %v535, %v599
  %v601 = vpop.f32.mrb[0].mxu0
  %602 = vmatprep.mubr.bf16.mxu0 %v240
  %603 = vmatmul.mubr.bf16.gmra.mrb[0].mxu0 %v239
  %v604 = vpop.f32.mrb[0].mxu0
  %v605 = vadd.f32 %v540, %v604
  %v606 = vpop.f32.mrb[0].mxu0
  %v607 = vpop.f32.mrb[0].mxu0
  %v608 = vadd.f32 %v543, %v607
  %v609 = vpop.f32.mrb[0].mxu0
  %610 = vmatprep.mubr.bf16.mxu0 %v245
  %611 = vmatmul.mubr.bf16.gmra.mrb[0].mxu0 %v244
  %v612 = vpop.f32.mrb[0].mxu0
  %v613 = vadd.f32 %v548, %v612
  %v614 = vpop.f32.mrb[0].mxu0
  %v615 = vpop.f32.mrb[0].mxu0
  %v616 = vadd.f32 %v551, %v615
  %v617 = vpop.f32.mrb[0].mxu0
  %618 = vmatprep.mubr.bf16.mxu0 %v250
  %619 = vmatmul.mubr.bf16.gmra.mrb[0].mxu0 %v249
  %v620 = vpop.f32.mrb[0].mxu0
  %v621 = vadd.f32 %v556, %v620
  %v622 = vpop.f32.mrb[0].mxu0
  %v623 = vpop.f32.mrb[0].mxu0
  %v624 = vadd.f32 %v559, %v623
  %v625 = vpop.f32.mrb[0].mxu0
  %626 = vdwg.mxu0
  %627 = vmatprep.subr.bf16.mxu0 0
  %628 = vmatpush1.bf16.msra.mxu0 %v444
  %629 = vmatprep.subr.bf16.mxu0 0
  %630 = vmatpush1.bf16.msra.mxu0 %v445
  %631 = vmatprep.subr.bf16.mxu0 0
  %632 = vmatpush1.bf16.msra.mxu0 %v446
  %633 = vmatprep.subr.bf16.mxu0 0
  %634 = vmatpush1.bf16.msra.mxu0 %v447
  %635 = vmatprep.subr.bf16.mxu0 0
  %636 = vmatpush1.bf16.msra.mxu0 0
  %637 = vmatprep.subr.bf16.mxu0 0
  %638 = vmatpush1.bf16.msra.mxu0 0
  %639 = vmatprep.subr.bf16.mxu0 0
  %640 = vmatpush1.bf16.msra.mxu0 0
  %641 = vmatprep.subr.bf16.mxu0 0
  %642 = vmatpush1.bf16.msra.mxu0 0
  %643 = vmatprep.subr.bf16.mxu0 0
  %644 = vmatpush1.bf16.msra.mxu0 0
  %645 = vmatprep.subr.bf16.mxu0 0
  %646 = vmatpush1.bf16.msra.mxu0 0
  %647 = vmatprep.subr.bf16.mxu0 0
  %648 = vmatpush1.bf16.msra.mxu0 0
  %649 = vmatprep.subr.bf16.mxu0 0
  %650 = vmatpush1.bf16.msra.mxu0 0
  %651 = vmatprep.subr.bf16.mxu0 0
  %652 = vmatpush1.bf16.msra.mxu0 0
  %653 = vmatprep.subr.bf16.mxu0 0
  %654 = vmatpush1.bf16.msra.mxu0 0
  %655 = vmatprep.subr.bf16.mxu0 0
  %656 = vmatpush1.bf16.msra.mxu0 0
  %657 = vmatprep.subr.bf16.mxu0 0
  %658 = vmatpush1.bf16.msra.mxu0 0
  %659 = vmatprep.mubr.bf16.mxu0 0
  %660 = vmatmul.mubr.bf16.gmra.mrb[0].mxu0 %v486
  %v661 = vpop.f32.mrb[0].mxu0
  %v662 = vadd.f32 %v597, %v661
  %v663 = vpop.f32.mrb[0].mxu0
  %v664 = vpop.f32.mrb[0].mxu0
  %v665 = vadd.f32 %v600, %v664
  %v666 = vpop.f32.mrb[0].mxu0
  %667 = vmatprep.mubr.bf16.mxu0 0
  %668 = vmatmul.mubr.bf16.gmra.mrb[0].mxu0 %v489
  %v669 = vpop.f32.mrb[0].mxu0
  %v670 = vadd.f32 %v605, %v669
  %v671 = vpop.f32.mrb[0].mxu0
  %v672 = vpop.f32.mrb[0].mxu0
  %v673 = vadd.f32 %v608, %v672
  %v674 = vpop.f32.mrb[0].mxu0
  %675 = vmatprep.mubr.bf16.mxu0 0
  %676 = vmatmul.mubr.bf16.gmra.mrb[0].mxu0 %v492
  %v677 = vpop.f32.mrb[0].mxu0
  %v678 = vadd.f32 %v613, %v677
  %v679 = vpop.f32.mrb[0].mxu0
  %v680 = vpop.f32.mrb[0].mxu0
  %v681 = vadd.f32 %v616, %v680
  %v682 = vpop.f32.mrb[0].mxu0
  %683 = vmatprep.mubr.bf16.mxu0 0
  %684 = vmatmul.mubr.bf16.gmra.mrb[0].mxu0 %v495
  %v685 = vpop.f32.mrb[0].mxu0
  %v686 = vadd.f32 %v621, %v685
  %v687 = vpop.f32.mrb[0].mxu0
  %v688 = vpop.f32.mrb[0].mxu0
  %v689 = vadd.f32 %v624, %v688
  %v690 = vpop.f32.mrb[0].mxu0
  %691 = vdwg.mxu0
  %v692 = vsel %vm484, %v662, 0.0
  %693 = vadd.xlane.f32.xlu0 %v692
  %v694 = vpop.xlane.xlu0 %693
  %v695 = vsel %vm484, %v665, 0.0
  %696 = vadd.xlane.f32.xlu0 %v695
  %v697 = vpop.xlane.xlu0 %696
  %v698 = vsel %vm484, %v670, 0.0
  %699 = vadd.xlane.f32.xlu0 %v698
  %v700 = vpop.xlane.xlu0 %699
  %v701 = vsel %vm484, %v673, 0.0
  %702 = vadd.xlane.f32.xlu0 %v701
  %v703 = vpop.xlane.xlu0 %702
  %v704 = vsel %vm484, %v678, 0.0
  %705 = vadd.xlane.f32.xlu0 %v704
  %v706 = vpop.xlane.xlu0 %705
  %v707 = vsel %vm484, %v681, 0.0
  %708 = vadd.xlane.f32.xlu0 %v707
  %v709 = vpop.xlane.xlu0 %708
  %v710 = vsel %vm484, %v686, 0.0
  %711 = vadd.xlane.f32.xlu0 %v710
  %v712 = vpop.xlane.xlu0 %711
  %v713 = vsel %vm484, %v689, 0.0
  %714 = vadd.xlane.f32.xlu0 %v713
  %v715 = vpop.xlane.xlu0 %714
  %v716 = vmul.f32 %v694, 0.015625
  %v717 = vmul.f32 %v697, 0.015625
  %v718 = vmul.f32 %v700, 0.015625
  %v719 = vmul.f32 %v703, 0.015625
  %v720 = vmul.f32 %v706, 0.015625
  %v721 = vmul.f32 %v709, 0.015625
  %v722 = vmul.f32 %v712, 0.015625
  %v723 = vmul.f32 %v715, 0.015625
  %v724 = vsub.f32 %v662, %v716
  %v725 = vsub.f32 %v665, %v717
  %v726 = vsub.f32 %v670, %v718
  %v727 = vsub.f32 %v673, %v719
  %v728 = vsub.f32 %v678, %v720
  %v729 = vsub.f32 %v681, %v721
  %v730 = vsub.f32 %v686, %v722
  %v731 = vsub.f32 %v689, %v723
  %v732 = vmul.f32 %v724, %v724
  %v733 = vmul.f32 %v725, %v725
  %v734 = vmul.f32 %v726, %v726
  %v735 = vmul.f32 %v727, %v727
  %v736 = vmul.f32 %v728, %v728
  %v737 = vmul.f32 %v729, %v729
  %v738 = vmul.f32 %v730, %v730
  %v739 = vmul.f32 %v731, %v731
  %v740 = vsel %vm484, %v732, 0.0
  %741 = vadd.xlane.f32.xlu0 %v740
  %v742 = vpop.xlane.xlu0 %741
  %v743 = vsel %vm484, %v733, 0.0
  %744 = vadd.xlane.f32.xlu0 %v743
  %v745 = vpop.xlane.xlu0 %744
  %v746 = vsel %vm484, %v734, 0.0
  %747 = vadd.xlane.f32.xlu0 %v746
  %v748 = vpop.xlane.xlu0 %747
  %v749 = vsel %vm484, %v735, 0.0
  %750 = vadd.xlane.f32.xlu0 %v749
  %v751 = vpop.xlane.xlu0 %750
  %v752 = vsel %vm484, %v736, 0.0
  %753 = vadd.xlane.f32.xlu0 %v752
  %v754 = vpop.xlane.xlu0 %753
  %v755 = vsel %vm484, %v737, 0.0
  %756 = vadd.xlane.f32.xlu0 %v755
  %v757 = vpop.xlane.xlu0 %756
  %v758 = vsel %vm484, %v738, 0.0
  %759 = vadd.xlane.f32.xlu0 %v758
  %v760 = vpop.xlane.xlu0 %759
  %v761 = vsel %vm484, %v739, 0.0
  %762 = vadd.xlane.f32.xlu0 %v761
  %v763 = vpop.xlane.xlu0 %762
  %v764 = vmul.f32 %v742, 0.015625
  %v765 = vmul.f32 %v745, 0.015625
  %v766 = vmul.f32 %v748, 0.015625
  %v767 = vmul.f32 %v751, 0.015625
  %v768 = vmul.f32 %v754, 0.015625
  %v769 = vmul.f32 %v757, 0.015625
  %v770 = vmul.f32 %v760, 0.015625
  %v771 = vmul.f32 %v763, 0.015625
  %v772 = vld [vmem:[%s3] sm:$0xff]
  %v773 = vld [vmem:[%s3 + $0x8] sm:$0xff]
  %v774 = vld [vmem:[%s3 + $0x10] sm:$0xff]
  %v775 = vld [vmem:[%s3 + $0x18] sm:$0xff]
  %v776 = vld [vmem:[%s3 + $0x20] sm:$0xff]
  %v777 = vld [vmem:[%s3 + $0x28] sm:$0xff]
  %v778 = vld [vmem:[%s3 + $0x30] sm:$0xff]
  %v779 = vld [vmem:[%s3 + $0x38] sm:$0xff]
  %v780 = vadd.f32 %v764, 1e-05
  %v781 = vadd.f32 %v765, 1e-05
  %v782 = vadd.f32 %v766, 1e-05
  %v783 = vadd.f32 %v767, 1e-05
  %v784 = vadd.f32 %v768, 1e-05
  %v785 = vadd.f32 %v769, 1e-05
  %v786 = vadd.f32 %v770, 1e-05
  %v787 = vadd.f32 %v771, 1e-05
  %v788 = vrsqrt.pop %v780
  %v789 = vrsqrt.pop %v781
  %v790 = vrsqrt.pop %v782
  %v791 = vrsqrt.pop %v783
  %v792 = vrsqrt.pop %v784
  %v793 = vrsqrt.pop %v785
  %v794 = vrsqrt.pop %v786
  %v795 = vrsqrt.pop %v787
  %v796 = vmul.f32 %v772, %v788
  %v797 = vmul.f32 %v773, %v789
  %v798 = vmul.f32 %v774, %v790
  %v799 = vmul.f32 %v775, %v791
  %v800 = vmul.f32 %v776, %v792
  %v801 = vmul.f32 %v777, %v793
  %v802 = vmul.f32 %v778, %v794
  %v803 = vmul.f32 %v779, %v795
  %805 = vset.pattern.permute.xlu0 0
  %806 = vperm.xlu0 %805, %v796
  %v807 = vpop.permute.xlu0 %806
  %810 = vset.pattern.permute.xlu0 0
  %811 = vperm.xlu0 %810, %v797
  %v812 = vpop.permute.xlu0 %811
  %815 = vset.pattern.permute.xlu0 0
  %816 = vperm.xlu0 %815, %v798
  %v817 = vpop.permute.xlu0 %816
  %820 = vset.pattern.permute.xlu0 0
  %821 = vperm.xlu0 %820, %v799
  %v822 = vpop.permute.xlu0 %821
  %825 = vset.pattern.permute.xlu0 0
  %826 = vperm.xlu0 %825, %v800
  %v827 = vpop.permute.xlu0 %826
  %830 = vset.pattern.permute.xlu0 0
  %831 = vperm.xlu0 %830, %v801
  %v832 = vpop.permute.xlu0 %831
  %835 = vset.pattern.permute.xlu0 0
  %836 = vperm.xlu0 %835, %v802
  %v837 = vpop.permute.xlu0 %836
  %840 = vset.pattern.permute.xlu0 0
  %841 = vperm.xlu0 %840, %v803
  %v842 = vpop.permute.xlu0 %841
  %v844 = vmul.f32 %v724, %v807
  %v845 = vmul.f32 %v725, %v812
  %v846 = vmul.f32 %v726, %v817
  %v847 = vmul.f32 %v727, %v822
  %v848 = vmul.f32 %v728, %v827
  %v849 = vmul.f32 %v729, %v832
  %v850 = vmul.f32 %v730, %v837
  %v851 = vmul.f32 %v731, %v842
  %v852 = vld [vmem:[%s4] sm:$0xff]
  %v853 = vld [vmem:[%s4 + $0x8] sm:$0xff]
  %v854 = vld [vmem:[%s4 + $0x10] sm:$0xff]
  %v855 = vld [vmem:[%s4 + $0x18] sm:$0xff]
  %v856 = vld [vmem:[%s4 + $0x20] sm:$0xff]
  %v857 = vld [vmem:[%s4 + $0x28] sm:$0xff]
  %v858 = vld [vmem:[%s4 + $0x30] sm:$0xff]
  %v859 = vld [vmem:[%s4 + $0x38] sm:$0xff]
  %861 = vset.pattern.permute.xlu0 0
  %862 = vperm.xlu0 %861, %v852
  %v863 = vpop.permute.xlu0 %862
  %866 = vset.pattern.permute.xlu0 0
  %867 = vperm.xlu0 %866, %v853
  %v868 = vpop.permute.xlu0 %867
  %871 = vset.pattern.permute.xlu0 0
  %872 = vperm.xlu0 %871, %v854
  %v873 = vpop.permute.xlu0 %872
  %876 = vset.pattern.permute.xlu0 0
  %877 = vperm.xlu0 %876, %v855
  %v878 = vpop.permute.xlu0 %877
  %881 = vset.pattern.permute.xlu0 0
  %882 = vperm.xlu0 %881, %v856
  %v883 = vpop.permute.xlu0 %882
  %886 = vset.pattern.permute.xlu0 0
  %887 = vperm.xlu0 %886, %v857
  %v888 = vpop.permute.xlu0 %887
  %891 = vset.pattern.permute.xlu0 0
  %892 = vperm.xlu0 %891, %v858
  %v893 = vpop.permute.xlu0 %892
  %896 = vset.pattern.permute.xlu0 0
  %897 = vperm.xlu0 %896, %v859
  %v898 = vpop.permute.xlu0 %897
  %v900 = vadd.f32 %v844, %v863
  %v901 = vadd.f32 %v845, %v868
  %v902 = vadd.f32 %v846, %v873
  %v903 = vadd.f32 %v847, %v878
  %v904 = vadd.f32 %v848, %v883
  %v905 = vadd.f32 %v849, %v888
  %v906 = vadd.f32 %v850, %v893
  %v907 = vadd.f32 %v851, %v898
  %v908 = vld [vmem:[%s5] sm:$0xff]
  %v909 = vld [vmem:[%s5 + $0x8] sm:$0xff]
  %v910 = vld [vmem:[%s5 + $0x10] sm:$0xff]
  %v911 = vld [vmem:[%s5 + $0x18] sm:$0xff]
  %v912 = vld [vmem:[%s5 + $0x20] sm:$0xff]
  %v913 = vld [vmem:[%s5 + $0x28] sm:$0xff]
  %v914 = vld [vmem:[%s5 + $0x30] sm:$0xff]
  %v915 = vld [vmem:[%s5 + $0x38] sm:$0xff]
  %v916 = vadd.f32 %v900, %v908
  %v917 = vadd.f32 %v901, %v909
  %v918 = vadd.f32 %v902, %v910
  %v919 = vadd.f32 %v903, %v911
  %v920 = vadd.f32 %v904, %v912
  %v921 = vadd.f32 %v905, %v913
  %v922 = vadd.f32 %v906, %v914
  %v923 = vadd.f32 %v907, %v915
  %v924 = vmax.f32 %v916, 0.0
  %v925 = vmax.f32 %v917, 0.0
  %v926 = vmax.f32 %v918, 0.0
  %v927 = vmax.f32 %v919, 0.0
  %v928 = vmax.f32 %v920, 0.0
  %v929 = vmax.f32 %v921, 0.0
  %v930 = vmax.f32 %v922, 0.0
  %v931 = vmax.f32 %v923, 0.0
  %v932 = vpack.c.bf16 %v925, %v924
  %v933 = vpack.c.bf16 %v927, %v926
  %v934 = vpack.c.bf16 %v929, %v928
  %v935 = vpack.c.bf16 %v931, %v930
  %v940 = vunpack.c.l.b16 %v932
  %v941 = vunpack.c.h.b16 %v932
  %v942 = vunpack.c.l.b16 %v933
  %v943 = vunpack.c.h.b16 %v933
  %v944 = vunpack.c.l.b16 %v934
  %v945 = vunpack.c.h.b16 %v934
  %v946 = vunpack.c.l.b16 %v935
  %v947 = vunpack.c.h.b16 %v935
  %v948 = vpack.c.b16 %v940, %v940
  %v949 = vpack.c.b16 %v941, %v941
  %v950 = vpack.c.b16 %v942, %v942
  %v951 = vpack.c.b16 %v943, %v943
  %v952 = vpack.c.b16 %v944, %v944
  %v953 = vpack.c.b16 %v945, %v945
  %v954 = vpack.c.b16 %v946, %v946
  %v955 = vpack.c.b16 %v947, %v947
  %vm964 = vcmask 519168
  %965 = vst.msk [vmem:[%s6] sm:$0xf] %vm964, %v948
  %966 = vst.msk [vmem:[%s6 + $0x4] sm:$0xf] %vm964, %v949
  %967 = vst.msk [vmem:[%s6 + $0x8] sm:$0xf] %vm964, %v950
  %968 = vst.msk [vmem:[%s6 + $0xc] sm:$0xf] %vm964, %v951
  %969 = vst.msk [vmem:[%s6 + $0x10] sm:$0xf] %vm964, %v952
  %970 = vst.msk [vmem:[%s6 + $0x14] sm:$0xf] %vm964, %v953
  %971 = vst.msk [vmem:[%s6 + $0x18] sm:$0xf] %vm964, %v954
  %972 = vst.msk [vmem:[%s6 + $0x1c] sm:$0xf] %vm964, %v955
  // Predicated region
  $region26: #{resnet_iid_forward.34} parent=0 // pred_check
    _
  $region27: #{resnet_iid_forward.34} parent=0 // pred_check_branch
    %974 = sbr.rel (0) target = $region29
  $region28: #{resnet_iid_forward.34} parent=0 // pred_region
    _
  $region29: #{resnet_iid_forward.34} parent=0 // pred_fallthru
    _
  // Predicated region
  $region30: #{resnet_iid_forward.34} parent=0 // pred_check
    _
  $region31: #{resnet_iid_forward.34} parent=0 // pred_check_branch
    %976 = sbr.rel (0) target = $region33
  $region32: #{resnet_iid_forward.34} parent=0 // pred_region
    _
  $region33: #{resnet_iid_forward.34} parent=0 // pred_fallthru
    _

// kernel: resnet_iid_forward.35
$region0: #{resnet_iid_forward.35}
  #allocation0 [shape = 'u32[]', space=smem, size = 0x4, offset = 0x4, fixed_abs, tag = 'smem constant byte address 0x4 - core index']
  #allocation1 [shape = 'u32[144,128]{1,0:T(1,128)}', space=vmem, size = 0x12000, scoped, tag = 'internal scratch']
  %s0 = inlined_call_operand.vmem [shape: bf16[576,64], index: 0, kind: input, shape index: {}]
  %s1 = inlined_call_operand.vmem [shape: bf16[64,576], index: 1, kind: input, shape index: {}]
  %s2 = inlined_call_operand.vmem [shape: f32[64,1], index: 2, kind: input, shape index: {}]
  %s3 = inlined_call_operand.vmem [shape: f32[64,1], index: 3, kind: input, shape index: {}]
  %s4 = inlined_call_operand.vmem [shape: f32[64,1], index: 4, kind: input, shape index: {}]
  %s5 = inlined_call_operand.vmem [shape: bf16[64,64], index: 5, kind: output, shape index: {}]
  %s6 = sld [smem:[#allocation0]]
  $region30: #{resnet_iid_forward.35} parent=0
    _
  %s8 = ssub.s32 1, %s6
  %s9 = scalar_select 0, %s8, %s6
  // Predicated region
  $region2: #{resnet_iid_forward.35} parent=0 // pred_check
    _
  $region3: #{resnet_iid_forward.35} parent=0 // pred_check_branch
    %11 = sbr.rel (0) target = $region5
  $region4: #{resnet_iid_forward.35} parent=0 // pred_region
    _
  $region5: #{resnet_iid_forward.35} parent=0 // pred_fallthru
    _
  // Predicated region
  $region6: #{resnet_iid_forward.35} parent=0 // pred_check
    _
  $region7: #{resnet_iid_forward.35} parent=0 // pred_check_branch
    %13 = sbr.rel (0) target = $region9
  $region8: #{resnet_iid_forward.35} parent=0 // pred_region
    _
  $region9: #{resnet_iid_forward.35} parent=0 // pred_fallthru
    _
  // Predicated region
  $region10: #{resnet_iid_forward.35} parent=0 // pred_check
    _
  $region11: #{resnet_iid_forward.35} parent=0 // pred_check_branch
    %15 = sbr.rel (0) target = $region13
  $region12: #{resnet_iid_forward.35} parent=0 // pred_region
    _
  $region13: #{resnet_iid_forward.35} parent=0 // pred_fallthru
    _
  // Predicated region
  $region14: #{resnet_iid_forward.35} parent=0 // pred_check
    _
  $region15: #{resnet_iid_forward.35} parent=0 // pred_check_branch
    %17 = sbr.rel (0) target = $region17
  $region16: #{resnet_iid_forward.35} parent=0 // pred_region
    _
  $region17: #{resnet_iid_forward.35} parent=0 // pred_fallthru
    _
  // Predicated region
  $region18: #{resnet_iid_forward.35} parent=0 // pred_check
    _
  $region19: #{resnet_iid_forward.35} parent=0 // pred_check_branch
    %19 = sbr.rel (0) target = $region21
  $region20: #{resnet_iid_forward.35} parent=0 // pred_region
    _
  $region21: #{resnet_iid_forward.35} parent=0 // pred_fallthru
    _
  %v21 = vld [vmem:[%s1] sm:$0xff]
  %v22 = vld [vmem:[%s1 + $0x8] sm:$0xff]
  %v23 = vld [vmem:[%s1 + $0x10] sm:$0xf]
  %v24 = vld [vmem:[%s1 + $0x14] sm:$0xff]
  %v25 = vld [vmem:[%s1 + $0x1c] sm:$0xff]
  %v26 = vld [vmem:[%s1 + $0x24] sm:$0xf]
  %v27 = vld [vmem:[%s1 + $0x28] sm:$0xff]
  %v28 = vld [vmem:[%s1 + $0x30] sm:$0xff]
  %v29 = vld [vmem:[%s1 + $0x38] sm:$0xf]
  %v30 = vld [vmem:[%s1 + $0x3c] sm:$0xff]
  %v31 = vld [vmem:[%s1 + $0x44] sm:$0xff]
  %v32 = vld [vmem:[%s1 + $0x4c] sm:$0xf]
  %v33 = vld [vmem:[%s1 + $0x50] sm:$0xff]
  %v34 = vld [vmem:[%s1 + $0x58] sm:$0xff]
  %v35 = vld [vmem:[%s1 + $0x60] sm:$0xf]
  %v36 = vld [vmem:[%s1 + $0x64] sm:$0xff]
  %v37 = vld [vmem:[%s1 + $0x6c] sm:$0xff]
  %v38 = vld [vmem:[%s1 + $0x74] sm:$0xf]
  %v39 = vld [vmem:[%s1 + $0x78] sm:$0xff]
  %v40 = vld [vmem:[%s1 + $0x80] sm:$0xff]
  %v41 = vld [vmem:[%s1 + $0x88] sm:$0xf]
  %v42 = vld [vmem:[%s1 + $0x8c] sm:$0xff]
  %v43 = vld [vmem:[%s1 + $0x94] sm:$0xff]
  %v44 = vld [vmem:[%s1 + $0x9c] sm:$0xf]
  %v45 = vld [vmem:[%s0] sm:$0xf]
  %v46 = vld [vmem:[%s0 + $0x4] sm:$0xf]
  %v47 = vld [vmem:[%s0 + $0x8] sm:$0xf]
  %v48 = vld [vmem:[%s0 + $0xc] sm:$0xf]
  %v49 = vld [vmem:[%s0 + $0x10] sm:$0xf]
  %v50 = vld [vmem:[%s0 + $0x14] sm:$0xf]
  %v51 = vld [vmem:[%s0 + $0x18] sm:$0xf]
  %v52 = vld [vmem:[%s0 + $0x1c] sm:$0xf]
  %v53 = vld [vmem:[%s0 + $0x20] sm:$0xf]
  %v54 = vld [vmem:[%s0 + $0x24] sm:$0xf]
  %v55 = vld [vmem:[%s0 + $0x28] sm:$0xf]
  %v56 = vld [vmem:[%s0 + $0x2c] sm:$0xf]
  %v57 = vld [vmem:[%s0 + $0x30] sm:$0xf]
  %v58 = vld [vmem:[%s0 + $0x34] sm:$0xf]
  %v59 = vld [vmem:[%s0 + $0x38] sm:$0xf]
  %v60 = vld [vmem:[%s0 + $0x3c] sm:$0xf]
  %v61 = vld [vmem:[%s0 + $0x40] sm:$0xf]
  %v62 = vld [vmem:[%s0 + $0x44] sm:$0xf]
  %v63 = vld [vmem:[%s0 + $0x48] sm:$0xf]
  %v64 = vld [vmem:[%s0 + $0x4c] sm:$0xf]
  %v65 = vld [vmem:[%s0 + $0x50] sm:$0xf]
  %v66 = vld [vmem:[%s0 + $0x54] sm:$0xf]
  %v67 = vld [vmem:[%s0 + $0x58] sm:$0xf]
  %v68 = vld [vmem:[%s0 + $0x5c] sm:$0xf]
  %v69 = vld [vmem:[%s0 + $0x60] sm:$0xf]
  %v70 = vld [vmem:[%s0 + $0x64] sm:$0xf]
  %v71 = vld [vmem:[%s0 + $0x68] sm:$0xf]
  %v72 = vld [vmem:[%s0 + $0x6c] sm:$0xf]
  %v73 = vld [vmem:[%s0 + $0x70] sm:$0xf]
  %v74 = vld [vmem:[%s0 + $0x74] sm:$0xf]
  %v75 = vld [vmem:[%s0 + $0x78] sm:$0xf]
  %v76 = vld [vmem:[%s0 + $0x7c] sm:$0xf]
  %v77 = vld [vmem:[%s0 + $0x80] sm:$0xf]
  %v78 = vld [vmem:[%s0 + $0x84] sm:$0xf]
  %v79 = vld [vmem:[%s0 + $0x88] sm:$0xf]
  %v80 = vld [vmem:[%s0 + $0x8c] sm:$0xf]
  %v81 = vld [vmem:[%s0 + $0x90] sm:$0xf]
  %v82 = vld [vmem:[%s0 + $0x94] sm:$0xf]
  %v83 = vld [vmem:[%s0 + $0x98] sm:$0xf]
  %v84 = vld [vmem:[%s0 + $0x9c] sm:$0xf]
  %v85 = vld [vmem:[%s0 + $0xa0] sm:$0xf]
  %v86 = vld [vmem:[%s0 + $0xa4] sm:$0xf]
  %v87 = vld [vmem:[%s0 + $0xa8] sm:$0xf]
  %v88 = vld [vmem:[%s0 + $0xac] sm:$0xf]
  %v89 = vld [vmem:[%s0 + $0xb0] sm:$0xf]
  %v90 = vld [vmem:[%s0 + $0xb4] sm:$0xf]
  %v91 = vld [vmem:[%s0 + $0xb8] sm:$0xf]
  %v92 = vld [vmem:[%s0 + $0xbc] sm:$0xf]
  %v93 = vld [vmem:[%s0 + $0xc0] sm:$0xf]
  %v94 = vld [vmem:[%s0 + $0xc4] sm:$0xf]
  %v95 = vld [vmem:[%s0 + $0xc8] sm:$0xf]
  %v96 = vld [vmem:[%s0 + $0xcc] sm:$0xf]
  %v97 = vld [vmem:[%s0 + $0xd0] sm:$0xf]
  %v98 = vld [vmem:[%s0 + $0xd4] sm:$0xf]
  %v99 = vld [vmem:[%s0 + $0xd8] sm:$0xf]
  %v100 = vld [vmem:[%s0 + $0xdc] sm:$0xf]
  %v101 = vld [vmem:[%s0 + $0xe0] sm:$0xf]
  %v102 = vld [vmem:[%s0 + $0xe4] sm:$0xf]
  %v103 = vld [vmem:[%s0 + $0xe8] sm:$0xf]
  %v104 = vld [vmem:[%s0 + $0xec] sm:$0xf]
  %v105 = vld [vmem:[%s0 + $0xf0] sm:$0xf]
  %v106 = vld [vmem:[%s0 + $0xf4] sm:$0xf]
  %v107 = vld [vmem:[%s0 + $0xf8] sm:$0xf]
  %v108 = vld [vmem:[%s0 + $0xfc] sm:$0xf]
  %v109 = vld [vmem:[%s0 + $0x100] sm:$0xf]
  %v110 = vld [vmem:[%s0 + $0x104] sm:$0xf]
  %v111 = vld [vmem:[%s0 + $0x108] sm:$0xf]
  %v112 = vld [vmem:[%s0 + $0x10c] sm:$0xf]
  %v113 = vld [vmem:[%s0 + $0x110] sm:$0xf]
  %v114 = vld [vmem:[%s0 + $0x114] sm:$0xf]
  %v115 = vld [vmem:[%s0 + $0x118] sm:$0xf]
  %v116 = vld [vmem:[%s0 + $0x11c] sm:$0xf]
  %v117 = vld [vmem:[%s2] sm:$0xff]
  %v118 = vld [vmem:[%s2 + $0x8] sm:$0xff]
  %v119 = vld [vmem:[%s2 + $0x10] sm:$0xff]
  %v120 = vld [vmem:[%s2 + $0x18] sm:$0xff]
  %v121 = vld [vmem:[%s2 + $0x20] sm:$0xff]
  %v122 = vld [vmem:[%s2 + $0x28] sm:$0xff]
  %v123 = vld [vmem:[%s2 + $0x30] sm:$0xff]
  %v124 = vld [vmem:[%s2 + $0x38] sm:$0xff]
  %126 = vset.pattern.permute.xlu0 0
  %127 = vperm.xlu0 %126, %v117
  %v128 = vpop.permute.xlu0 %127
  %131 = vset.pattern.permute.xlu0 0
  %132 = vperm.xlu0 %131, %v118
  %v133 = vpop.permute.xlu0 %132
  %136 = vset.pattern.permute.xlu0 0
  %137 = vperm.xlu0 %136, %v119
  %v138 = vpop.permute.xlu0 %137
  %141 = vset.pattern.permute.xlu0 0
  %142 = vperm.xlu0 %141, %v120
  %v143 = vpop.permute.xlu0 %142
  %146 = vset.pattern.permute.xlu0 0
  %147 = vperm.xlu0 %146, %v121
  %v148 = vpop.permute.xlu0 %147
  %151 = vset.pattern.permute.xlu0 0
  %152 = vperm.xlu0 %151, %v122
  %v153 = vpop.permute.xlu0 %152
  %156 = vset.pattern.permute.xlu0 0
  %157 = vperm.xlu0 %156, %v123
  %v158 = vpop.permute.xlu0 %157
  %161 = vset.pattern.permute.xlu0 0
  %162 = vperm.xlu0 %161, %v124
  %v163 = vpop.permute.xlu0 %162
  %v189 = vunpack.c.l.b16 %v21
  %v190 = vunpack.c.h.b16 %v21
  %v191 = vunpack.c.l.b16 %v22
  %v192 = vunpack.c.h.b16 %v22
  %v193 = vunpack.c.l.b16 %v23
  %v194 = vunpack.c.l.b16 %v24
  %v195 = vunpack.c.h.b16 %v24
  %v196 = vunpack.c.l.b16 %v25
  %v197 = vunpack.c.h.b16 %v25
  %v198 = vunpack.c.l.b16 %v26
  %v199 = vunpack.c.l.b16 %v27
  %v200 = vunpack.c.h.b16 %v27
  %v201 = vunpack.c.l.b16 %v28
  %v202 = vunpack.c.h.b16 %v28
  %v203 = vunpack.c.l.b16 %v29
  %v204 = vunpack.c.l.b16 %v30
  %v205 = vunpack.c.h.b16 %v30
  %v206 = vunpack.c.l.b16 %v31
  %v207 = vunpack.c.h.b16 %v31
  %v208 = vunpack.c.l.b16 %v32
  %v209 = vunpack.c.l.b16 %v33
  %v210 = vunpack.c.h.b16 %v33
  %v211 = vunpack.c.l.b16 %v34
  %v212 = vunpack.c.h.b16 %v34
  %v213 = vunpack.c.l.b16 %v35
  %v214 = vunpack.c.l.b16 %v36
  %v215 = vunpack.c.h.b16 %v36
  %v216 = vunpack.c.l.b16 %v37
  %v217 = vunpack.c.h.b16 %v37
  %v218 = vunpack.c.l.b16 %v38
  %v219 = vunpack.c.l.b16 %v39
  %v220 = vunpack.c.h.b16 %v39
  %v221 = vunpack.c.l.b16 %v40
  %v222 = vunpack.c.h.b16 %v40
  %v223 = vunpack.c.l.b16 %v41
  %v224 = vunpack.c.l.b16 %v42
  %v225 = vunpack.c.h.b16 %v42
  %v226 = vunpack.c.l.b16 %v43
  %v227 = vunpack.c.h.b16 %v43
  %v228 = vunpack.c.l.b16 %v44
  %v229 = vpack.c.b16 %v194, %v189
  %v230 = vpack.c.b16 %v195, %v190
  %v231 = vpack.c.b16 %v196, %v191
  %v232 = vpack.c.b16 %v197, %v192
  %v233 = vpack.c.b16 %v198, %v193
  %v234 = vpack.c.b16 %v204, %v199
  %v235 = vpack.c.b16 %v205, %v200
  %v236 = vpack.c.b16 %v206, %v201
  %v237 = vpack.c.b16 %v207, %v202
  %v238 = vpack.c.b16 %v208, %v203
  %v239 = vpack.c.b16 %v214, %v209
  %v240 = vpack.c.b16 %v215, %v210
  %v241 = vpack.c.b16 %v216, %v211
  %v242 = vpack.c.b16 %v217, %v212
  %v243 = vpack.c.b16 %v218, %v213
  %v244 = vpack.c.b16 %v224, %v219
  %v245 = vpack.c.b16 %v225, %v220
  %v246 = vpack.c.b16 %v226, %v221
  %v247 = vpack.c.b16 %v227, %v222
  %v248 = vpack.c.b16 %v228, %v223
  %v337 = vunpack.c.l.b16 %v45
  %v338 = vunpack.c.l.b16 %v46
  %v339 = vunpack.c.l.b16 %v47
  %v340 = vunpack.c.l.b16 %v48
  %v341 = vunpack.c.l.b16 %v49
  %v342 = vunpack.c.l.b16 %v50
  %v343 = vunpack.c.l.b16 %v51
  %v344 = vunpack.c.l.b16 %v52
  %v345 = vunpack.c.l.b16 %v53
  %v346 = vunpack.c.l.b16 %v54
  %v347 = vunpack.c.l.b16 %v55
  %v348 = vunpack.c.l.b16 %v56
  %v349 = vunpack.c.l.b16 %v57
  %v350 = vunpack.c.l.b16 %v58
  %v351 = vunpack.c.l.b16 %v59
  %v352 = vunpack.c.l.b16 %v60
  %v353 = vunpack.c.l.b16 %v61
  %v354 = vunpack.c.l.b16 %v62
  %v355 = vunpack.c.l.b16 %v63
  %v356 = vunpack.c.l.b16 %v64
  %v357 = vunpack.c.l.b16 %v65
  %v358 = vunpack.c.l.b16 %v66
  %v359 = vunpack.c.l.b16 %v67
  %v360 = vunpack.c.l.b16 %v68
  %v361 = vunpack.c.l.b16 %v69
  %v362 = vunpack.c.l.b16 %v70
  %v363 = vunpack.c.l.b16 %v71
  %v364 = vunpack.c.l.b16 %v72
  %v365 = vunpack.c.l.b16 %v73
  %v366 = vunpack.c.l.b16 %v74
  %v367 = vunpack.c.l.b16 %v75
  %v368 = vunpack.c.l.b16 %v76
  %v369 = vunpack.c.l.b16 %v77
  %v370 = vunpack.c.l.b16 %v78
  %v371 = vunpack.c.l.b16 %v79
  %v372 = vunpack.c.l.b16 %v80
  %v373 = vunpack.c.l.b16 %v81
  %v374 = vunpack.c.l.b16 %v82
  %v375 = vunpack.c.l.b16 %v83
  %v376 = vunpack.c.l.b16 %v84
  %v377 = vunpack.c.l.b16 %v85
  %v378 = vunpack.c.l.b16 %v86
  %v379 = vunpack.c.l.b16 %v87
  %v380 = vunpack.c.l.b16 %v88
  %v381 = vunpack.c.l.b16 %v89
  %v382 = vunpack.c.l.b16 %v90
  %v383 = vunpack.c.l.b16 %v91
  %v384 = vunpack.c.l.b16 %v92
  %v385 = vunpack.c.l.b16 %v93
  %v386 = vunpack.c.l.b16 %v94
  %v387 = vunpack.c.l.b16 %v95
  %v388 = vunpack.c.l.b16 %v96
  %v389 = vunpack.c.l.b16 %v97
  %v390 = vunpack.c.l.b16 %v98
  %v391 = vunpack.c.l.b16 %v99
  %v392 = vunpack.c.l.b16 %v100
  %v393 = vunpack.c.l.b16 %v101
  %v394 = vunpack.c.l.b16 %v102
  %v395 = vunpack.c.l.b16 %v103
  %v396 = vunpack.c.l.b16 %v104
  %v397 = vunpack.c.l.b16 %v105
  %v398 = vunpack.c.l.b16 %v106
  %v399 = vunpack.c.l.b16 %v107
  %v400 = vunpack.c.l.b16 %v108
  %v401 = vunpack.c.l.b16 %v109
  %v402 = vunpack.c.l.b16 %v110
  %v403 = vunpack.c.l.b16 %v111
  %v404 = vunpack.c.l.b16 %v112
  %v405 = vunpack.c.l.b16 %v113
  %v406 = vunpack.c.l.b16 %v114
  %v407 = vunpack.c.l.b16 %v115
  %v408 = vunpack.c.l.b16 %v116
  %v409 = vpack.c.b16 %v338, %v337
  %v410 = vpack.c.b16 %v340, %v339
  %v411 = vpack.c.b16 %v342, %v341
  %v412 = vpack.c.b16 %v344, %v343
  %v413 = vpack.c.b16 %v346, %v345
  %v414 = vpack.c.b16 %v348, %v347
  %v415 = vpack.c.b16 %v350, %v349
  %v416 = vpack.c.b16 %v352, %v351
  %v417 = vpack.c.b16 %v354, %v353
  %v418 = vpack.c.b16 %v356, %v355
  %v419 = vpack.c.b16 %v358, %v357
  %v420 = vpack.c.b16 %v360, %v359
  %v421 = vpack.c.b16 %v362, %v361
  %v422 = vpack.c.b16 %v364, %v363
  %v423 = vpack.c.b16 %v366, %v365
  %v424 = vpack.c.b16 %v368, %v367
  %v425 = vpack.c.b16 %v370, %v369
  %v426 = vpack.c.b16 %v372, %v371
  %v427 = vpack.c.b16 %v374, %v373
  %v428 = vpack.c.b16 %v376, %v375
  %v429 = vpack.c.b16 %v378, %v377
  %v430 = vpack.c.b16 %v380, %v379
  %v431 = vpack.c.b16 %v382, %v381
  %v432 = vpack.c.b16 %v384, %v383
  %v433 = vpack.c.b16 %v386, %v385
  %v434 = vpack.c.b16 %v388, %v387
  %v435 = vpack.c.b16 %v390, %v389
  %v436 = vpack.c.b16 %v392, %v391
  %v437 = vpack.c.b16 %v394, %v393
  %v438 = vpack.c.b16 %v396, %v395
  %v439 = vpack.c.b16 %v398, %v397
  %v440 = vpack.c.b16 %v400, %v399
  %v441 = vpack.c.b16 %v402, %v401
  %v442 = vpack.c.b16 %v404, %v403
  %v443 = vpack.c.b16 %v406, %v405
  %v444 = vpack.c.b16 %v408, %v407
  %vm481 = vcmask 523264
  %v483 = vsel %vm481, %v233, 0
  %v486 = vsel %vm481, %v238, 0
  %v489 = vsel %vm481, %v243, 0
  %v492 = vsel %vm481, %v248, 0
  %494 = vmatprep.subr.bf16.mxu0 0
  %495 = vmatpush1.bf16.msra.mxu0 %v409
  %496 = vmatprep.subr.bf16.mxu0 0
  %497 = vmatpush1.bf16.msra.mxu0 %v410
  %498 = vmatprep.subr.bf16.mxu0 0
  %499 = vmatpush1.bf16.msra.mxu0 %v411
  %500 = vmatprep.subr.bf16.mxu0 0
  %501 = vmatpush1.bf16.msra.mxu0 %v412
  %502 = vmatprep.subr.bf16.mxu0 0
  %503 = vmatpush1.bf16.msra.mxu0 %v413
  %504 = vmatprep.subr.bf16.mxu0 0
  %505 = vmatpush1.bf16.msra.mxu0 %v414
  %506 = vmatprep.subr.bf16.mxu0 0
  %507 = vmatpush1.bf16.msra.mxu0 %v415
  %508 = vmatprep.subr.bf16.mxu0 0
  %509 = vmatpush1.bf16.msra.mxu0 %v416
  %510 = vmatprep.subr.bf16.mxu0 0
  %511 = vmatpush1.bf16.msra.mxu0 %v417
  %512 = vmatprep.subr.bf16.mxu0 0
  %513 = vmatpush1.bf16.msra.mxu0 %v418
  %514 = vmatprep.subr.bf16.mxu0 0
  %515 = vmatpush1.bf16.msra.mxu0 %v419
  %516 = vmatprep.subr.bf16.mxu0 0
  %517 = vmatpush1.bf16.msra.mxu0 %v420
  %518 = vmatprep.subr.bf16.mxu0 0
  %519 = vmatpush1.bf16.msra.mxu0 %v421
  %520 = vmatprep.subr.bf16.mxu0 0
  %521 = vmatpush1.bf16.msra.mxu0 %v422
  %522 = vmatprep.subr.bf16.mxu0 0
  %523 = vmatpush1.bf16.msra.mxu0 %v423
  %524 = vmatprep.subr.bf16.mxu0 0
  %525 = vmatpush1.bf16.msra.mxu0 %v424
  %526 = vmatprep.mubr.bf16.mxu0 %v230
  %527 = vmatmul.mubr.bf16.gmra.mrb[0].mxu0 %v229
  %v528 = vpop.f32.mrb[0].mxu0
  %v529 = vadd.f32 %v128, %v528
  %v530 = vpop.f32.mrb[0].mxu0
  %v531 = vpop.f32.mrb[0].mxu0
  %v532 = vadd.f32 %v133, %v531
  %v533 = vpop.f32.mrb[0].mxu0
  %534 = vmatprep.mubr.bf16.mxu0 %v235
  %535 = vmatmul.mubr.bf16.gmra.mrb[0].mxu0 %v234
  %v536 = vpop.f32.mrb[0].mxu0
  %v537 = vadd.f32 %v138, %v536
  %v538 = vpop.f32.mrb[0].mxu0
  %v539 = vpop.f32.mrb[0].mxu0
  %v540 = vadd.f32 %v143, %v539
  %v541 = vpop.f32.mrb[0].mxu0
  %542 = vmatprep.mubr.bf16.mxu0 %v240
  %543 = vmatmul.mubr.bf16.gmra.mrb[0].mxu0 %v239
  %v544 = vpop.f32.mrb[0].mxu0
  %v545 = vadd.f32 %v148, %v544
  %v546 = vpop.f32.mrb[0].mxu0
  %v547 = vpop.f32.mrb[0].mxu0
  %v548 = vadd.f32 %v153, %v547
  %v549 = vpop.f32.mrb[0].mxu0
  %550 = vmatprep.mubr.bf16.mxu0 %v245
  %551 = vmatmul.mubr.bf16.gmra.mrb[0].mxu0 %v244
  %v552 = vpop.f32.mrb[0].mxu0
  %v553 = vadd.f32 %v158, %v552
  %v554 = vpop.f32.mrb[0].mxu0
  %v555 = vpop.f32.mrb[0].mxu0
  %v556 = vadd.f32 %v163, %v555
  %v557 = vpop.f32.mrb[0].mxu0
  %558 = vdwg.mxu0
  %559 = vmatprep.subr.bf16.mxu0 0
  %560 = vmatpush1.bf16.msra.mxu0 %v425
  %561 = vmatprep.subr.bf16.mxu0 0
  %562 = vmatpush1.bf16.msra.mxu0 %v426
  %563 = vmatprep.subr.bf16.mxu0 0
  %564 = vmatpush1.bf16.msra.mxu0 %v427
  %565 = vmatprep.subr.bf16.mxu0 0
  %566 = vmatpush1.bf16.msra.mxu0 %v428
  %567 = vmatprep.subr.bf16.mxu0 0
  %568 = vmatpush1.bf16.msra.mxu0 %v429
  %569 = vmatprep.subr.bf16.mxu0 0
  %570 = vmatpush1.bf16.msra.mxu0 %v430
  %571 = vmatprep.subr.bf16.mxu0 0
  %572 = vmatpush1.bf16.msra.mxu0 %v431
  %573 = vmatprep.subr.bf16.mxu0 0
  %574 = vmatpush1.bf16.msra.mxu0 %v432
  %575 = vmatprep.subr.bf16.mxu0 0
  %576 = vmatpush1.bf16.msra.mxu0 %v433
  %577 = vmatprep.subr.bf16.mxu0 0
  %578 = vmatpush1.bf16.msra.mxu0 %v434
  %579 = vmatprep.subr.bf16.mxu0 0
  %580 = vmatpush1.bf16.msra.mxu0 %v435
  %581 = vmatprep.subr.bf16.mxu0 0
  %582 = vmatpush1.bf16.msra.mxu0 %v436
  %583 = vmatprep.subr.bf16.mxu0 0
  %584 = vmatpush1.bf16.msra.mxu0 %v437
  %585 = vmatprep.subr.bf16.mxu0 0
  %586 = vmatpush1.bf16.msra.mxu0 %v438
  %587 = vmatprep.subr.bf16.mxu0 0
  %588 = vmatpush1.bf16.msra.mxu0 %v439
  %589 = vmatprep.subr.bf16.mxu0 0
  %590 = vmatpush1.bf16.msra.mxu0 %v440
  %591 = vmatprep.mubr.bf16.mxu0 %v232
  %592 = vmatmul.mubr.bf16.gmra.mrb[0].mxu0 %v231
  %v593 = vpop.f32.mrb[0].mxu0
  %v594 = vadd.f32 %v529, %v593
  %v595 = vpop.f32.mrb[0].mxu0
  %v596 = vpop.f32.mrb[0].mxu0
  %v597 = vadd.f32 %v532, %v596
  %v598 = vpop.f32.mrb[0].mxu0
  %599 = vmatprep.mubr.bf16.mxu0 %v237
  %600 = vmatmul.mubr.bf16.gmra.mrb[0].mxu0 %v236
  %v601 = vpop.f32.mrb[0].mxu0
  %v602 = vadd.f32 %v537, %v601
  %v603 = vpop.f32.mrb[0].mxu0
  %v604 = vpop.f32.mrb[0].mxu0
  %v605 = vadd.f32 %v540, %v604
  %v606 = vpop.f32.mrb[0].mxu0
  %607 = vmatprep.mubr.bf16.mxu0 %v242
  %608 = vmatmul.mubr.bf16.gmra.mrb[0].mxu0 %v241
  %v609 = vpop.f32.mrb[0].mxu0
  %v610 = vadd.f32 %v545, %v609
  %v611 = vpop.f32.mrb[0].mxu0
  %v612 = vpop.f32.mrb[0].mxu0
  %v613 = vadd.f32 %v548, %v612
  %v614 = vpop.f32.mrb[0].mxu0
  %615 = vmatprep.mubr.bf16.mxu0 %v247
  %616 = vmatmul.mubr.bf16.gmra.mrb[0].mxu0 %v246
  %v617 = vpop.f32.mrb[0].mxu0
  %v618 = vadd.f32 %v553, %v617
  %v619 = vpop.f32.mrb[0].mxu0
  %v620 = vpop.f32.mrb[0].mxu0
  %v621 = vadd.f32 %v556, %v620
  %v622 = vpop.f32.mrb[0].mxu0
  %623 = vdwg.mxu0
  %624 = vmatprep.subr.bf16.mxu0 0
  %625 = vmatpush1.bf16.msra.mxu0 %v441
  %626 = vmatprep.subr.bf16.mxu0 0
  %627 = vmatpush1.bf16.msra.mxu0 %v442
  %628 = vmatprep.subr.bf16.mxu0 0
  %629 = vmatpush1.bf16.msra.mxu0 %v443
  %630 = vmatprep.subr.bf16.mxu0 0
  %631 = vmatpush1.bf16.msra.mxu0 %v444
  %632 = vmatprep.subr.bf16.mxu0 0
  %633 = vmatpush1.bf16.msra.mxu0 0
  %634 = vmatprep.subr.bf16.mxu0 0
  %635 = vmatpush1.bf16.msra.mxu0 0
  %636 = vmatprep.subr.bf16.mxu0 0
  %637 = vmatpush1.bf16.msra.mxu0 0
  %638 = vmatprep.subr.bf16.mxu0 0
  %639 = vmatpush1.bf16.msra.mxu0 0
  %640 = vmatprep.subr.bf16.mxu0 0
  %641 = vmatpush1.bf16.msra.mxu0 0
  %642 = vmatprep.subr.bf16.mxu0 0
  %643 = vmatpush1.bf16.msra.mxu0 0
  %644 = vmatprep.subr.bf16.mxu0 0
  %645 = vmatpush1.bf16.msra.mxu0 0
  %646 = vmatprep.subr.bf16.mxu0 0
  %647 = vmatpush1.bf16.msra.mxu0 0
  %648 = vmatprep.subr.bf16.mxu0 0
  %649 = vmatpush1.bf16.msra.mxu0 0
  %650 = vmatprep.subr.bf16.mxu0 0
  %651 = vmatpush1.bf16.msra.mxu0 0
  %652 = vmatprep.subr.bf16.mxu0 0
  %653 = vmatpush1.bf16.msra.mxu0 0
  %654 = vmatprep.subr.bf16.mxu0 0
  %655 = vmatpush1.bf16.msra.mxu0 0
  %656 = vmatprep.mubr.bf16.mxu0 0
  %657 = vmatmul.mubr.bf16.gmra.mrb[0].mxu0 %v483
  %v658 = vpop.f32.mrb[0].mxu0
  %v659 = vadd.f32 %v594, %v658
  %v660 = vpop.f32.mrb[0].mxu0
  %v661 = vpop.f32.mrb[0].mxu0
  %v662 = vadd.f32 %v597, %v661
  %v663 = vpop.f32.mrb[0].mxu0
  %664 = vmatprep.mubr.bf16.mxu0 0
  %665 = vmatmul.mubr.bf16.gmra.mrb[0].mxu0 %v486
  %v666 = vpop.f32.mrb[0].mxu0
  %v667 = vadd.f32 %v602, %v666
  %v668 = vpop.f32.mrb[0].mxu0
  %v669 = vpop.f32.mrb[0].mxu0
  %v670 = vadd.f32 %v605, %v669
  %v671 = vpop.f32.mrb[0].mxu0
  %672 = vmatprep.mubr.bf16.mxu0 0
  %673 = vmatmul.mubr.bf16.gmra.mrb[0].mxu0 %v489
  %v674 = vpop.f32.mrb[0].mxu0
  %v675 = vadd.f32 %v610, %v674
  %v676 = vpop.f32.mrb[0].mxu0
  %v677 = vpop.f32.mrb[0].mxu0
  %v678 = vadd.f32 %v613, %v677
  %v679 = vpop.f32.mrb[0].mxu0
  %680 = vmatprep.mubr.bf16.mxu0 0
  %681 = vmatmul.mubr.bf16.gmra.mrb[0].mxu0 %v492
  %v682 = vpop.f32.mrb[0].mxu0
  %v683 = vadd.f32 %v618, %v682
  %v684 = vpop.f32.mrb[0].mxu0
  %v685 = vpop.f32.mrb[0].mxu0
  %v686 = vadd.f32 %v621, %v685
  %v687 = vpop.f32.mrb[0].mxu0
  %688 = vdwg.mxu0
  %v689 = vsel %vm481, %v659, 0.0
  %690 = vadd.xlane.f32.xlu0 %v689
  %v691 = vpop.xlane.xlu0 %690
  %v692 = vsel %vm481, %v662, 0.0
  %693 = vadd.xlane.f32.xlu0 %v692
  %v694 = vpop.xlane.xlu0 %693
  %v695 = vsel %vm481, %v667, 0.0
  %696 = vadd.xlane.f32.xlu0 %v695
  %v697 = vpop.xlane.xlu0 %696
  %v698 = vsel %vm481, %v670, 0.0
  %699 = vadd.xlane.f32.xlu0 %v698
  %v700 = vpop.xlane.xlu0 %699
  %v701 = vsel %vm481, %v675, 0.0
  %702 = vadd.xlane.f32.xlu0 %v701
  %v703 = vpop.xlane.xlu0 %702
  %v704 = vsel %vm481, %v678, 0.0
  %705 = vadd.xlane.f32.xlu0 %v704
  %v706 = vpop.xlane.xlu0 %705
  %v707 = vsel %vm481, %v683, 0.0
  %708 = vadd.xlane.f32.xlu0 %v707
  %v709 = vpop.xlane.xlu0 %708
  %v710 = vsel %vm481, %v686, 0.0
  %711 = vadd.xlane.f32.xlu0 %v710
  %v712 = vpop.xlane.xlu0 %711
  %v713 = vmul.f32 %v691, 0.015625
  %v714 = vmul.f32 %v694, 0.015625
  %v715 = vmul.f32 %v697, 0.015625
  %v716 = vmul.f32 %v700, 0.015625
  %v717 = vmul.f32 %v703, 0.015625
  %v718 = vmul.f32 %v706, 0.015625
  %v719 = vmul.f32 %v709, 0.015625
  %v720 = vmul.f32 %v712, 0.015625
  %v721 = vsub.f32 %v659, %v713
  %v722 = vsub.f32 %v662, %v714
  %v723 = vsub.f32 %v667, %v715
  %v724 = vsub.f32 %v670, %v716
  %v725 = vsub.f32 %v675, %v717
  %v726 = vsub.f32 %v678, %v718
  %v727 = vsub.f32 %v683, %v719
  %v728 = vsub.f32 %v686, %v720
  %v729 = vmul.f32 %v721, %v721
  %v730 = vmul.f32 %v722, %v722
  %v731 = vmul.f32 %v723, %v723
  %v732 = vmul.f32 %v724, %v724
  %v733 = vmul.f32 %v725, %v725
  %v734 = vmul.f32 %v726, %v726
  %v735 = vmul.f32 %v727, %v727
  %v736 = vmul.f32 %v728, %v728
  %v737 = vsel %vm481, %v729, 0.0
  %738 = vadd.xlane.f32.xlu0 %v737
  %v739 = vpop.xlane.xlu0 %738
  %v740 = vsel %vm481, %v730, 0.0
  %741 = vadd.xlane.f32.xlu0 %v740
  %v742 = vpop.xlane.xlu0 %741
  %v743 = vsel %vm481, %v731, 0.0
  %744 = vadd.xlane.f32.xlu0 %v743
  %v745 = vpop.xlane.xlu0 %744
  %v746 = vsel %vm481, %v732, 0.0
  %747 = vadd.xlane.f32.xlu0 %v746
  %v748 = vpop.xlane.xlu0 %747
  %v749 = vsel %vm481, %v733, 0.0
  %750 = vadd.xlane.f32.xlu0 %v749
  %v751 = vpop.xlane.xlu0 %750
  %v752 = vsel %vm481, %v734, 0.0
  %753 = vadd.xlane.f32.xlu0 %v752
  %v754 = vpop.xlane.xlu0 %753
  %v755 = vsel %vm481, %v735, 0.0
  %756 = vadd.xlane.f32.xlu0 %v755
  %v757 = vpop.xlane.xlu0 %756
  %v758 = vsel %vm481, %v736, 0.0
  %759 = vadd.xlane.f32.xlu0 %v758
  %v760 = vpop.xlane.xlu0 %759
  %v761 = vmul.f32 %v739, 0.015625
  %v762 = vmul.f32 %v742, 0.015625
  %v763 = vmul.f32 %v745, 0.015625
  %v764 = vmul.f32 %v748, 0.015625
  %v765 = vmul.f32 %v751, 0.015625
  %v766 = vmul.f32 %v754, 0.015625
  %v767 = vmul.f32 %v757, 0.015625
  %v768 = vmul.f32 %v760, 0.015625
  %v769 = vld [vmem:[%s3] sm:$0xff]
  %v770 = vld [vmem:[%s3 + $0x8] sm:$0xff]
  %v771 = vld [vmem:[%s3 + $0x10] sm:$0xff]
  %v772 = vld [vmem:[%s3 + $0x18] sm:$0xff]
  %v773 = vld [vmem:[%s3 + $0x20] sm:$0xff]
  %v774 = vld [vmem:[%s3 + $0x28] sm:$0xff]
  %v775 = vld [vmem:[%s3 + $0x30] sm:$0xff]
  %v776 = vld [vmem:[%s3 + $0x38] sm:$0xff]
  %v777 = vadd.f32 %v761, 1e-05
  %v778 = vadd.f32 %v762, 1e-05
  %v779 = vadd.f32 %v763, 1e-05
  %v780 = vadd.f32 %v764, 1e-05
  %v781 = vadd.f32 %v765, 1e-05
  %v782 = vadd.f32 %v766, 1e-05
  %v783 = vadd.f32 %v767, 1e-05
  %v784 = vadd.f32 %v768, 1e-05
  %v785 = vrsqrt.pop %v777
  %v786 = vrsqrt.pop %v778
  %v787 = vrsqrt.pop %v779
  %v788 = vrsqrt.pop %v780
  %v789 = vrsqrt.pop %v781
  %v790 = vrsqrt.pop %v782
  %v791 = vrsqrt.pop %v783
  %v792 = vrsqrt.pop %v784
  %v793 = vmul.f32 %v769, %v785
  %v794 = vmul.f32 %v770, %v786
  %v795 = vmul.f32 %v771, %v787
  %v796 = vmul.f32 %v772, %v788
  %v797 = vmul.f32 %v773, %v789
  %v798 = vmul.f32 %v774, %v790
  %v799 = vmul.f32 %v775, %v791
  %v800 = vmul.f32 %v776, %v792
  %802 = vset.pattern.permute.xlu0 0
  %803 = vperm.xlu0 %802, %v793
  %v804 = vpop.permute.xlu0 %803
  %807 = vset.pattern.permute.xlu0 0
  %808 = vperm.xlu0 %807, %v794
  %v809 = vpop.permute.xlu0 %808
  %812 = vset.pattern.permute.xlu0 0
  %813 = vperm.xlu0 %812, %v795
  %v814 = vpop.permute.xlu0 %813
  %817 = vset.pattern.permute.xlu0 0
  %818 = vperm.xlu0 %817, %v796
  %v819 = vpop.permute.xlu0 %818
  %822 = vset.pattern.permute.xlu0 0
  %823 = vperm.xlu0 %822, %v797
  %v824 = vpop.permute.xlu0 %823
  %827 = vset.pattern.permute.xlu0 0
  %828 = vperm.xlu0 %827, %v798
  %v829 = vpop.permute.xlu0 %828
  %832 = vset.pattern.permute.xlu0 0
  %833 = vperm.xlu0 %832, %v799
  %v834 = vpop.permute.xlu0 %833
  %837 = vset.pattern.permute.xlu0 0
  %838 = vperm.xlu0 %837, %v800
  %v839 = vpop.permute.xlu0 %838
  %v841 = vmul.f32 %v721, %v804
  %v842 = vmul.f32 %v722, %v809
  %v843 = vmul.f32 %v723, %v814
  %v844 = vmul.f32 %v724, %v819
  %v845 = vmul.f32 %v725, %v824
  %v846 = vmul.f32 %v726, %v829
  %v847 = vmul.f32 %v727, %v834
  %v848 = vmul.f32 %v728, %v839
  %v849 = vld [vmem:[%s4] sm:$0xff]
  %v850 = vld [vmem:[%s4 + $0x8] sm:$0xff]
  %v851 = vld [vmem:[%s4 + $0x10] sm:$0xff]
  %v852 = vld [vmem:[%s4 + $0x18] sm:$0xff]
  %v853 = vld [vmem:[%s4 + $0x20] sm:$0xff]
  %v854 = vld [vmem:[%s4 + $0x28] sm:$0xff]
  %v855 = vld [vmem:[%s4 + $0x30] sm:$0xff]
  %v856 = vld [vmem:[%s4 + $0x38] sm:$0xff]
  %858 = vset.pattern.permute.xlu0 0
  %859 = vperm.xlu0 %858, %v849
  %v860 = vpop.permute.xlu0 %859
  %863 = vset.pattern.permute.xlu0 0
  %864 = vperm.xlu0 %863, %v850
  %v865 = vpop.permute.xlu0 %864
  %868 = vset.pattern.permute.xlu0 0
  %869 = vperm.xlu0 %868, %v851
  %v870 = vpop.permute.xlu0 %869
  %873 = vset.pattern.permute.xlu0 0
  %874 = vperm.xlu0 %873, %v852
  %v875 = vpop.permute.xlu0 %874
  %878 = vset.pattern.permute.xlu0 0
  %879 = vperm.xlu0 %878, %v853
  %v880 = vpop.permute.xlu0 %879
  %883 = vset.pattern.permute.xlu0 0
  %884 = vperm.xlu0 %883, %v854
  %v885 = vpop.permute.xlu0 %884
  %888 = vset.pattern.permute.xlu0 0
  %889 = vperm.xlu0 %888, %v855
  %v890 = vpop.permute.xlu0 %889
  %893 = vset.pattern.permute.xlu0 0
  %894 = vperm.xlu0 %893, %v856
  %v895 = vpop.permute.xlu0 %894
  %v897 = vadd.f32 %v841, %v860
  %v898 = vadd.f32 %v842, %v865
  %v899 = vadd.f32 %v843, %v870
  %v900 = vadd.f32 %v844, %v875
  %v901 = vadd.f32 %v845, %v880
  %v902 = vadd.f32 %v846, %v885
  %v903 = vadd.f32 %v847, %v890
  %v904 = vadd.f32 %v848, %v895
  %v905 = vmax.f32 %v897, 0.0
  %v906 = vmax.f32 %v898, 0.0
  %v907 = vmax.f32 %v899, 0.0
  %v908 = vmax.f32 %v900, 0.0
  %v909 = vmax.f32 %v901, 0.0
  %v910 = vmax.f32 %v902, 0.0
  %v911 = vmax.f32 %v903, 0.0
  %v912 = vmax.f32 %v904, 0.0
  %v913 = vpack.c.bf16 %v906, %v905
  %v914 = vpack.c.bf16 %v908, %v907
  %v915 = vpack.c.bf16 %v910, %v909
  %v916 = vpack.c.bf16 %v912, %v911
  %v921 = vunpack.c.l.b16 %v913
  %v922 = vunpack.c.h.b16 %v913
  %v923 = vunpack.c.l.b16 %v914
  %v924 = vunpack.c.h.b16 %v914
  %v925 = vunpack.c.l.b16 %v915
  %v926 = vunpack.c.h.b16 %v915
  %v927 = vunpack.c.l.b16 %v916
  %v928 = vunpack.c.h.b16 %v916
  %v929 = vpack.c.b16 %v921, %v921
  %v930 = vpack.c.b16 %v922, %v922
  %v931 = vpack.c.b16 %v923, %v923
  %v932 = vpack.c.b16 %v924, %v924
  %v933 = vpack.c.b16 %v925, %v925
  %v934 = vpack.c.b16 %v926, %v926
  %v935 = vpack.c.b16 %v927, %v927
  %v936 = vpack.c.b16 %v928, %v928
  %vm945 = vcmask 519168
  %946 = vst.msk [vmem:[%s5] sm:$0xf] %vm945, %v929
  %947 = vst.msk [vmem:[%s5 + $0x4] sm:$0xf] %vm945, %v930
  %948 = vst.msk [vmem:[%s5 + $0x8] sm:$0xf] %vm945, %v931
  %949 = vst.msk [vmem:[%s5 + $0xc] sm:$0xf] %vm945, %v932
  %950 = vst.msk [vmem:[%s5 + $0x10] sm:$0xf] %vm945, %v933
  %951 = vst.msk [vmem:[%s5 + $0x14] sm:$0xf] %vm945, %v934
  %952 = vst.msk [vmem:[%s5 + $0x18] sm:$0xf] %vm945, %v935
  %953 = vst.msk [vmem:[%s5 + $0x1c] sm:$0xf] %vm945, %v936
  // Predicated region
  $region22: #{resnet_iid_forward.35} parent=0 // pred_check
    _
  $region23: #{resnet_iid_forward.35} parent=0 // pred_check_branch
    %955 = sbr.rel (0) target = $region25
  $region24: #{resnet_iid_forward.35} parent=0 // pred_region
    _
  $region25: #{resnet_iid_forward.35} parent=0 // pred_fallthru
    _
  // Predicated region
  $region26: #{resnet_iid_forward.35} parent=0 // pred_check
    _
  $region27: #{resnet_iid_forward.35} parent=0 // pred_check_branch
    %957 = sbr.rel (0) target = $region29
  $region28: #{resnet_iid_forward.35} parent=0 // pred_region
    _
  $region29: #{resnet_iid_forward.35} parent=0 // pred_fallthru
    _

// kernel: resnet_iid_forward.36
$region0: #{resnet_iid_forward.36}
  #allocation0 [shape = 'u32[]', space=smem, size = 0x4, offset = 0x4, fixed_abs, tag = 'smem constant byte address 0x4 - core index']
  #allocation1 [shape = 'u32[144,128]{1,0:T(1,128)}', space=vmem, size = 0x12000, scoped, tag = 'internal scratch']
  %s0 = inlined_call_operand.vmem [shape: bf16[576,64], index: 0, kind: input, shape index: {}]
  %s1 = inlined_call_operand.vmem [shape: bf16[64,576], index: 1, kind: input, shape index: {}]
  %s2 = inlined_call_operand.vmem [shape: f32[64,1], index: 2, kind: input, shape index: {}]
  %s3 = inlined_call_operand.vmem [shape: f32[64,1], index: 3, kind: input, shape index: {}]
  %s4 = inlined_call_operand.vmem [shape: f32[64,1], index: 4, kind: input, shape index: {}]
  %s5 = inlined_call_operand.vmem [shape: bf16[64,64], index: 5, kind: input, shape index: {}]
  %s6 = inlined_call_operand.vmem [shape: bf16[64,64], index: 6, kind: output, shape index: {}]
  %s7 = sld [smem:[#allocation0]]
  $region34: #{resnet_iid_forward.36} parent=0
    _
  %s9 = ssub.s32 1, %s7
  %s10 = scalar_select 0, %s9, %s7
  // Predicated region
  $region2: #{resnet_iid_forward.36} parent=0 // pred_check
    _
  $region3: #{resnet_iid_forward.36} parent=0 // pred_check_branch
    %12 = sbr.rel (0) target = $region5
  $region4: #{resnet_iid_forward.36} parent=0 // pred_region
    _
  $region5: #{resnet_iid_forward.36} parent=0 // pred_fallthru
    _
  // Predicated region
  $region6: #{resnet_iid_forward.36} parent=0 // pred_check
    _
  $region7: #{resnet_iid_forward.36} parent=0 // pred_check_branch
    %14 = sbr.rel (0) target = $region9
  $region8: #{resnet_iid_forward.36} parent=0 // pred_region
    _
  $region9: #{resnet_iid_forward.36} parent=0 // pred_fallthru
    _
  // Predicated region
  $region10: #{resnet_iid_forward.36} parent=0 // pred_check
    _
  $region11: #{resnet_iid_forward.36} parent=0 // pred_check_branch
    %16 = sbr.rel (0) target = $region13
  $region12: #{resnet_iid_forward.36} parent=0 // pred_region
    _
  $region13: #{resnet_iid_forward.36} parent=0 // pred_fallthru
    _
  // Predicated region
  $region14: #{resnet_iid_forward.36} parent=0 // pred_check
    _
  $region15: #{resnet_iid_forward.36} parent=0 // pred_check_branch
    %18 = sbr.rel (0) target = $region17
  $region16: #{resnet_iid_forward.36} parent=0 // pred_region
    _
  $region17: #{resnet_iid_forward.36} parent=0 // pred_fallthru
    _
  // Predicated region
  $region18: #{resnet_iid_forward.36} parent=0 // pred_check
    _
  $region19: #{resnet_iid_forward.36} parent=0 // pred_check_branch
    %20 = sbr.rel (0) target = $region21
  $region20: #{resnet_iid_forward.36} parent=0 // pred_region
    _
  $region21: #{resnet_iid_forward.36} parent=0 // pred_fallthru
    _
  // Predicated region
  $region22: #{resnet_iid_forward.36} parent=0 // pred_check
    _
  $region23: #{resnet_iid_forward.36} parent=0 // pred_check_branch
    %22 = sbr.rel (0) target = $region25
  $region24: #{resnet_iid_forward.36} parent=0 // pred_region
    _
  $region25: #{resnet_iid_forward.36} parent=0 // pred_fallthru
    _
  %v24 = vld [vmem:[%s1] sm:$0xff]
  %v25 = vld [vmem:[%s1 + $0x8] sm:$0xff]
  %v26 = vld [vmem:[%s1 + $0x10] sm:$0xf]
  %v27 = vld [vmem:[%s1 + $0x14] sm:$0xff]
  %v28 = vld [vmem:[%s1 + $0x1c] sm:$0xff]
  %v29 = vld [vmem:[%s1 + $0x24] sm:$0xf]
  %v30 = vld [vmem:[%s1 + $0x28] sm:$0xff]
  %v31 = vld [vmem:[%s1 + $0x30] sm:$0xff]
  %v32 = vld [vmem:[%s1 + $0x38] sm:$0xf]
  %v33 = vld [vmem:[%s1 + $0x3c] sm:$0xff]
  %v34 = vld [vmem:[%s1 + $0x44] sm:$0xff]
  %v35 = vld [vmem:[%s1 + $0x4c] sm:$0xf]
  %v36 = vld [vmem:[%s1 + $0x50] sm:$0xff]
  %v37 = vld [vmem:[%s1 + $0x58] sm:$0xff]
  %v38 = vld [vmem:[%s1 + $0x60] sm:$0xf]
  %v39 = vld [vmem:[%s1 + $0x64] sm:$0xff]
  %v40 = vld [vmem:[%s1 + $0x6c] sm:$0xff]
  %v41 = vld [vmem:[%s1 + $0x74] sm:$0xf]
  %v42 = vld [vmem:[%s1 + $0x78] sm:$0xff]
  %v43 = vld [vmem:[%s1 + $0x80] sm:$0xff]
  %v44 = vld [vmem:[%s1 + $0x88] sm:$0xf]
  %v45 = vld [vmem:[%s1 + $0x8c] sm:$0xff]
  %v46 = vld [vmem:[%s1 + $0x94] sm:$0xff]
  %v47 = vld [vmem:[%s1 + $0x9c] sm:$0xf]
  %v48 = vld [vmem:[%s0] sm:$0xf]
  %v49 = vld [vmem:[%s0 + $0x4] sm:$0xf]
  %v50 = vld [vmem:[%s0 + $0x8] sm:$0xf]
  %v51 = vld [vmem:[%s0 + $0xc] sm:$0xf]
  %v52 = vld [vmem:[%s0 + $0x10] sm:$0xf]
  %v53 = vld [vmem:[%s0 + $0x14] sm:$0xf]
  %v54 = vld [vmem:[%s0 + $0x18] sm:$0xf]
  %v55 = vld [vmem:[%s0 + $0x1c] sm:$0xf]
  %v56 = vld [vmem:[%s0 + $0x20] sm:$0xf]
  %v57 = vld [vmem:[%s0 + $0x24] sm:$0xf]
  %v58 = vld [vmem:[%s0 + $0x28] sm:$0xf]
  %v59 = vld [vmem:[%s0 + $0x2c] sm:$0xf]
  %v60 = vld [vmem:[%s0 + $0x30] sm:$0xf]
  %v61 = vld [vmem:[%s0 + $0x34] sm:$0xf]
  %v62 = vld [vmem:[%s0 + $0x38] sm:$0xf]
  %v63 = vld [vmem:[%s0 + $0x3c] sm:$0xf]
  %v64 = vld [vmem:[%s0 + $0x40] sm:$0xf]
  %v65 = vld [vmem:[%s0 + $0x44] sm:$0xf]
  %v66 = vld [vmem:[%s0 + $0x48] sm:$0xf]
  %v67 = vld [vmem:[%s0 + $0x4c] sm:$0xf]
  %v68 = vld [vmem:[%s0 + $0x50] sm:$0xf]
  %v69 = vld [vmem:[%s0 + $0x54] sm:$0xf]
  %v70 = vld [vmem:[%s0 + $0x58] sm:$0xf]
  %v71 = vld [vmem:[%s0 + $0x5c] sm:$0xf]
  %v72 = vld [vmem:[%s0 + $0x60] sm:$0xf]
  %v73 = vld [vmem:[%s0 + $0x64] sm:$0xf]
  %v74 = vld [vmem:[%s0 + $0x68] sm:$0xf]
  %v75 = vld [vmem:[%s0 + $0x6c] sm:$0xf]
  %v76 = vld [vmem:[%s0 + $0x70] sm:$0xf]
  %v77 = vld [vmem:[%s0 + $0x74] sm:$0xf]
  %v78 = vld [vmem:[%s0 + $0x78] sm:$0xf]
  %v79 = vld [vmem:[%s0 + $0x7c] sm:$0xf]
  %v80 = vld [vmem:[%s0 + $0x80] sm:$0xf]
  %v81 = vld [vmem:[%s0 + $0x84] sm:$0xf]
  %v82 = vld [vmem:[%s0 + $0x88] sm:$0xf]
  %v83 = vld [vmem:[%s0 + $0x8c] sm:$0xf]
  %v84 = vld [vmem:[%s0 + $0x90] sm:$0xf]
  %v85 = vld [vmem:[%s0 + $0x94] sm:$0xf]
  %v86 = vld [vmem:[%s0 + $0x98] sm:$0xf]
  %v87 = vld [vmem:[%s0 + $0x9c] sm:$0xf]
  %v88 = vld [vmem:[%s0 + $0xa0] sm:$0xf]
  %v89 = vld [vmem:[%s0 + $0xa4] sm:$0xf]
  %v90 = vld [vmem:[%s0 + $0xa8] sm:$0xf]
  %v91 = vld [vmem:[%s0 + $0xac] sm:$0xf]
  %v92 = vld [vmem:[%s0 + $0xb0] sm:$0xf]
  %v93 = vld [vmem:[%s0 + $0xb4] sm:$0xf]
  %v94 = vld [vmem:[%s0 + $0xb8] sm:$0xf]
  %v95 = vld [vmem:[%s0 + $0xbc] sm:$0xf]
  %v96 = vld [vmem:[%s0 + $0xc0] sm:$0xf]
  %v97 = vld [vmem:[%s0 + $0xc4] sm:$0xf]
  %v98 = vld [vmem:[%s0 + $0xc8] sm:$0xf]
  %v99 = vld [vmem:[%s0 + $0xcc] sm:$0xf]
  %v100 = vld [vmem:[%s0 + $0xd0] sm:$0xf]
  %v101 = vld [vmem:[%s0 + $0xd4] sm:$0xf]
  %v102 = vld [vmem:[%s0 + $0xd8] sm:$0xf]
  %v103 = vld [vmem:[%s0 + $0xdc] sm:$0xf]
  %v104 = vld [vmem:[%s0 + $0xe0] sm:$0xf]
  %v105 = vld [vmem:[%s0 + $0xe4] sm:$0xf]
  %v106 = vld [vmem:[%s0 + $0xe8] sm:$0xf]
  %v107 = vld [vmem:[%s0 + $0xec] sm:$0xf]
  %v108 = vld [vmem:[%s0 + $0xf0] sm:$0xf]
  %v109 = vld [vmem:[%s0 + $0xf4] sm:$0xf]
  %v110 = vld [vmem:[%s0 + $0xf8] sm:$0xf]
  %v111 = vld [vmem:[%s0 + $0xfc] sm:$0xf]
  %v112 = vld [vmem:[%s0 + $0x100] sm:$0xf]
  %v113 = vld [vmem:[%s0 + $0x104] sm:$0xf]
  %v114 = vld [vmem:[%s0 + $0x108] sm:$0xf]
  %v115 = vld [vmem:[%s0 + $0x10c] sm:$0xf]
  %v116 = vld [vmem:[%s0 + $0x110] sm:$0xf]
  %v117 = vld [vmem:[%s0 + $0x114] sm:$0xf]
  %v118 = vld [vmem:[%s0 + $0x118] sm:$0xf]
  %v119 = vld [vmem:[%s0 + $0x11c] sm:$0xf]
  %v120 = vld [vmem:[%s2] sm:$0xff]
  %v121 = vld [vmem:[%s2 + $0x8] sm:$0xff]
  %v122 = vld [vmem:[%s2 + $0x10] sm:$0xff]
  %v123 = vld [vmem:[%s2 + $0x18] sm:$0xff]
  %v124 = vld [vmem:[%s2 + $0x20] sm:$0xff]
  %v125 = vld [vmem:[%s2 + $0x28] sm:$0xff]
  %v126 = vld [vmem:[%s2 + $0x30] sm:$0xff]
  %v127 = vld [vmem:[%s2 + $0x38] sm:$0xff]
  %129 = vset.pattern.permute.xlu0 0
  %130 = vperm.xlu0 %129, %v120
  %v131 = vpop.permute.xlu0 %130
  %134 = vset.pattern.permute.xlu0 0
  %135 = vperm.xlu0 %134, %v121
  %v136 = vpop.permute.xlu0 %135
  %139 = vset.pattern.permute.xlu0 0
  %140 = vperm.xlu0 %139, %v122
  %v141 = vpop.permute.xlu0 %140
  %144 = vset.pattern.permute.xlu0 0
  %145 = vperm.xlu0 %144, %v123
  %v146 = vpop.permute.xlu0 %145
  %149 = vset.pattern.permute.xlu0 0
  %150 = vperm.xlu0 %149, %v124
  %v151 = vpop.permute.xlu0 %150
  %154 = vset.pattern.permute.xlu0 0
  %155 = vperm.xlu0 %154, %v125
  %v156 = vpop.permute.xlu0 %155
  %159 = vset.pattern.permute.xlu0 0
  %160 = vperm.xlu0 %159, %v126
  %v161 = vpop.permute.xlu0 %160
  %164 = vset.pattern.permute.xlu0 0
  %165 = vperm.xlu0 %164, %v127
  %v166 = vpop.permute.xlu0 %165
  %v192 = vunpack.c.l.b16 %v24
  %v193 = vunpack.c.h.b16 %v24
  %v194 = vunpack.c.l.b16 %v25
  %v195 = vunpack.c.h.b16 %v25
  %v196 = vunpack.c.l.b16 %v26
  %v197 = vunpack.c.l.b16 %v27
  %v198 = vunpack.c.h.b16 %v27
  %v199 = vunpack.c.l.b16 %v28
  %v200 = vunpack.c.h.b16 %v28
  %v201 = vunpack.c.l.b16 %v29
  %v202 = vunpack.c.l.b16 %v30
  %v203 = vunpack.c.h.b16 %v30
  %v204 = vunpack.c.l.b16 %v31
  %v205 = vunpack.c.h.b16 %v31
  %v206 = vunpack.c.l.b16 %v32
  %v207 = vunpack.c.l.b16 %v33
  %v208 = vunpack.c.h.b16 %v33
  %v209 = vunpack.c.l.b16 %v34
  %v210 = vunpack.c.h.b16 %v34
  %v211 = vunpack.c.l.b16 %v35
  %v212 = vunpack.c.l.b16 %v36
  %v213 = vunpack.c.h.b16 %v36
  %v214 = vunpack.c.l.b16 %v37
  %v215 = vunpack.c.h.b16 %v37
  %v216 = vunpack.c.l.b16 %v38
  %v217 = vunpack.c.l.b16 %v39
  %v218 = vunpack.c.h.b16 %v39
  %v219 = vunpack.c.l.b16 %v40
  %v220 = vunpack.c.h.b16 %v40
  %v221 = vunpack.c.l.b16 %v41
  %v222 = vunpack.c.l.b16 %v42
  %v223 = vunpack.c.h.b16 %v42
  %v224 = vunpack.c.l.b16 %v43
  %v225 = vunpack.c.h.b16 %v43
  %v226 = vunpack.c.l.b16 %v44
  %v227 = vunpack.c.l.b16 %v45
  %v228 = vunpack.c.h.b16 %v45
  %v229 = vunpack.c.l.b16 %v46
  %v230 = vunpack.c.h.b16 %v46
  %v231 = vunpack.c.l.b16 %v47
  %v232 = vpack.c.b16 %v197, %v192
  %v233 = vpack.c.b16 %v198, %v193
  %v234 = vpack.c.b16 %v199, %v194
  %v235 = vpack.c.b16 %v200, %v195
  %v236 = vpack.c.b16 %v201, %v196
  %v237 = vpack.c.b16 %v207, %v202
  %v238 = vpack.c.b16 %v208, %v203
  %v239 = vpack.c.b16 %v209, %v204
  %v240 = vpack.c.b16 %v210, %v205
  %v241 = vpack.c.b16 %v211, %v206
  %v242 = vpack.c.b16 %v217, %v212
  %v243 = vpack.c.b16 %v218, %v213
  %v244 = vpack.c.b16 %v219, %v214
  %v245 = vpack.c.b16 %v220, %v215
  %v246 = vpack.c.b16 %v221, %v216
  %v247 = vpack.c.b16 %v227, %v222
  %v248 = vpack.c.b16 %v228, %v223
  %v249 = vpack.c.b16 %v229, %v224
  %v250 = vpack.c.b16 %v230, %v225
  %v251 = vpack.c.b16 %v231, %v226
  %v340 = vunpack.c.l.b16 %v48
  %v341 = vunpack.c.l.b16 %v49
  %v342 = vunpack.c.l.b16 %v50
  %v343 = vunpack.c.l.b16 %v51
  %v344 = vunpack.c.l.b16 %v52
  %v345 = vunpack.c.l.b16 %v53
  %v346 = vunpack.c.l.b16 %v54
  %v347 = vunpack.c.l.b16 %v55
  %v348 = vunpack.c.l.b16 %v56
  %v349 = vunpack.c.l.b16 %v57
  %v350 = vunpack.c.l.b16 %v58
  %v351 = vunpack.c.l.b16 %v59
  %v352 = vunpack.c.l.b16 %v60
  %v353 = vunpack.c.l.b16 %v61
  %v354 = vunpack.c.l.b16 %v62
  %v355 = vunpack.c.l.b16 %v63
  %v356 = vunpack.c.l.b16 %v64
  %v357 = vunpack.c.l.b16 %v65
  %v358 = vunpack.c.l.b16 %v66
  %v359 = vunpack.c.l.b16 %v67
  %v360 = vunpack.c.l.b16 %v68
  %v361 = vunpack.c.l.b16 %v69
  %v362 = vunpack.c.l.b16 %v70
  %v363 = vunpack.c.l.b16 %v71
  %v364 = vunpack.c.l.b16 %v72
  %v365 = vunpack.c.l.b16 %v73
  %v366 = vunpack.c.l.b16 %v74
  %v367 = vunpack.c.l.b16 %v75
  %v368 = vunpack.c.l.b16 %v76
  %v369 = vunpack.c.l.b16 %v77
  %v370 = vunpack.c.l.b16 %v78
  %v371 = vunpack.c.l.b16 %v79
  %v372 = vunpack.c.l.b16 %v80
  %v373 = vunpack.c.l.b16 %v81
  %v374 = vunpack.c.l.b16 %v82
  %v375 = vunpack.c.l.b16 %v83
  %v376 = vunpack.c.l.b16 %v84
  %v377 = vunpack.c.l.b16 %v85
  %v378 = vunpack.c.l.b16 %v86
  %v379 = vunpack.c.l.b16 %v87
  %v380 = vunpack.c.l.b16 %v88
  %v381 = vunpack.c.l.b16 %v89
  %v382 = vunpack.c.l.b16 %v90
  %v383 = vunpack.c.l.b16 %v91
  %v384 = vunpack.c.l.b16 %v92
  %v385 = vunpack.c.l.b16 %v93
  %v386 = vunpack.c.l.b16 %v94
  %v387 = vunpack.c.l.b16 %v95
  %v388 = vunpack.c.l.b16 %v96
  %v389 = vunpack.c.l.b16 %v97
  %v390 = vunpack.c.l.b16 %v98
  %v391 = vunpack.c.l.b16 %v99
  %v392 = vunpack.c.l.b16 %v100
  %v393 = vunpack.c.l.b16 %v101
  %v394 = vunpack.c.l.b16 %v102
  %v395 = vunpack.c.l.b16 %v103
  %v396 = vunpack.c.l.b16 %v104
  %v397 = vunpack.c.l.b16 %v105
  %v398 = vunpack.c.l.b16 %v106
  %v399 = vunpack.c.l.b16 %v107
  %v400 = vunpack.c.l.b16 %v108
  %v401 = vunpack.c.l.b16 %v109
  %v402 = vunpack.c.l.b16 %v110
  %v403 = vunpack.c.l.b16 %v111
  %v404 = vunpack.c.l.b16 %v112
  %v405 = vunpack.c.l.b16 %v113
  %v406 = vunpack.c.l.b16 %v114
  %v407 = vunpack.c.l.b16 %v115
  %v408 = vunpack.c.l.b16 %v116
  %v409 = vunpack.c.l.b16 %v117
  %v410 = vunpack.c.l.b16 %v118
  %v411 = vunpack.c.l.b16 %v119
  %v412 = vpack.c.b16 %v341, %v340
  %v413 = vpack.c.b16 %v343, %v342
  %v414 = vpack.c.b16 %v345, %v344
  %v415 = vpack.c.b16 %v347, %v346
  %v416 = vpack.c.b16 %v349, %v348
  %v417 = vpack.c.b16 %v351, %v350
  %v418 = vpack.c.b16 %v353, %v352
  %v419 = vpack.c.b16 %v355, %v354
  %v420 = vpack.c.b16 %v357, %v356
  %v421 = vpack.c.b16 %v359, %v358
  %v422 = vpack.c.b16 %v361, %v360
  %v423 = vpack.c.b16 %v363, %v362
  %v424 = vpack.c.b16 %v365, %v364
  %v425 = vpack.c.b16 %v367, %v366
  %v426 = vpack.c.b16 %v369, %v368
  %v427 = vpack.c.b16 %v371, %v370
  %v428 = vpack.c.b16 %v373, %v372
  %v429 = vpack.c.b16 %v375, %v374
  %v430 = vpack.c.b16 %v377, %v376
  %v431 = vpack.c.b16 %v379, %v378
  %v432 = vpack.c.b16 %v381, %v380
  %v433 = vpack.c.b16 %v383, %v382
  %v434 = vpack.c.b16 %v385, %v384
  %v435 = vpack.c.b16 %v387, %v386
  %v436 = vpack.c.b16 %v389, %v388
  %v437 = vpack.c.b16 %v391, %v390
  %v438 = vpack.c.b16 %v393, %v392
  %v439 = vpack.c.b16 %v395, %v394
  %v440 = vpack.c.b16 %v397, %v396
  %v441 = vpack.c.b16 %v399, %v398
  %v442 = vpack.c.b16 %v401, %v400
  %v443 = vpack.c.b16 %v403, %v402
  %v444 = vpack.c.b16 %v405, %v404
  %v445 = vpack.c.b16 %v407, %v406
  %v446 = vpack.c.b16 %v409, %v408
  %v447 = vpack.c.b16 %v411, %v410
  %vm484 = vcmask 523264
  %v486 = vsel %vm484, %v236, 0
  %v489 = vsel %vm484, %v241, 0
  %v492 = vsel %vm484, %v246, 0
  %v495 = vsel %vm484, %v251, 0
  %497 = vmatprep.subr.bf16.mxu0 0
  %498 = vmatpush1.bf16.msra.mxu0 %v412
  %499 = vmatprep.subr.bf16.mxu0 0
  %500 = vmatpush1.bf16.msra.mxu0 %v413
  %501 = vmatprep.subr.bf16.mxu0 0
  %502 = vmatpush1.bf16.msra.mxu0 %v414
  %503 = vmatprep.subr.bf16.mxu0 0
  %504 = vmatpush1.bf16.msra.mxu0 %v415
  %505 = vmatprep.subr.bf16.mxu0 0
  %506 = vmatpush1.bf16.msra.mxu0 %v416
  %507 = vmatprep.subr.bf16.mxu0 0
  %508 = vmatpush1.bf16.msra.mxu0 %v417
  %509 = vmatprep.subr.bf16.mxu0 0
  %510 = vmatpush1.bf16.msra.mxu0 %v418
  %511 = vmatprep.subr.bf16.mxu0 0
  %512 = vmatpush1.bf16.msra.mxu0 %v419
  %513 = vmatprep.subr.bf16.mxu0 0
  %514 = vmatpush1.bf16.msra.mxu0 %v420
  %515 = vmatprep.subr.bf16.mxu0 0
  %516 = vmatpush1.bf16.msra.mxu0 %v421
  %517 = vmatprep.subr.bf16.mxu0 0
  %518 = vmatpush1.bf16.msra.mxu0 %v422
  %519 = vmatprep.subr.bf16.mxu0 0
  %520 = vmatpush1.bf16.msra.mxu0 %v423
  %521 = vmatprep.subr.bf16.mxu0 0
  %522 = vmatpush1.bf16.msra.mxu0 %v424
  %523 = vmatprep.subr.bf16.mxu0 0
  %524 = vmatpush1.bf16.msra.mxu0 %v425
  %525 = vmatprep.subr.bf16.mxu0 0
  %526 = vmatpush1.bf16.msra.mxu0 %v426
  %527 = vmatprep.subr.bf16.mxu0 0
  %528 = vmatpush1.bf16.msra.mxu0 %v427
  %529 = vmatprep.mubr.bf16.mxu0 %v233
  %530 = vmatmul.mubr.bf16.gmra.mrb[0].mxu0 %v232
  %v531 = vpop.f32.mrb[0].mxu0
  %v532 = vadd.f32 %v131, %v531
  %v533 = vpop.f32.mrb[0].mxu0
  %v534 = vpop.f32.mrb[0].mxu0
  %v535 = vadd.f32 %v136, %v534
  %v536 = vpop.f32.mrb[0].mxu0
  %537 = vmatprep.mubr.bf16.mxu0 %v238
  %538 = vmatmul.mubr.bf16.gmra.mrb[0].mxu0 %v237
  %v539 = vpop.f32.mrb[0].mxu0
  %v540 = vadd.f32 %v141, %v539
  %v541 = vpop.f32.mrb[0].mxu0
  %v542 = vpop.f32.mrb[0].mxu0
  %v543 = vadd.f32 %v146, %v542
  %v544 = vpop.f32.mrb[0].mxu0
  %545 = vmatprep.mubr.bf16.mxu0 %v243
  %546 = vmatmul.mubr.bf16.gmra.mrb[0].mxu0 %v242
  %v547 = vpop.f32.mrb[0].mxu0
  %v548 = vadd.f32 %v151, %v547
  %v549 = vpop.f32.mrb[0].mxu0
  %v550 = vpop.f32.mrb[0].mxu0
  %v551 = vadd.f32 %v156, %v550
  %v552 = vpop.f32.mrb[0].mxu0
  %553 = vmatprep.mubr.bf16.mxu0 %v248
  %554 = vmatmul.mubr.bf16.gmra.mrb[0].mxu0 %v247
  %v555 = vpop.f32.mrb[0].mxu0
  %v556 = vadd.f32 %v161, %v555
  %v557 = vpop.f32.mrb[0].mxu0
  %v558 = vpop.f32.mrb[0].mxu0
  %v559 = vadd.f32 %v166, %v558
  %v560 = vpop.f32.mrb[0].mxu0
  %561 = vdwg.mxu0
  %562 = vmatprep.subr.bf16.mxu0 0
  %563 = vmatpush1.bf16.msra.mxu0 %v428
  %564 = vmatprep.subr.bf16.mxu0 0
  %565 = vmatpush1.bf16.msra.mxu0 %v429
  %566 = vmatprep.subr.bf16.mxu0 0
  %567 = vmatpush1.bf16.msra.mxu0 %v430
  %568 = vmatprep.subr.bf16.mxu0 0
  %569 = vmatpush1.bf16.msra.mxu0 %v431
  %570 = vmatprep.subr.bf16.mxu0 0
  %571 = vmatpush1.bf16.msra.mxu0 %v432
  %572 = vmatprep.subr.bf16.mxu0 0
  %573 = vmatpush1.bf16.msra.mxu0 %v433
  %574 = vmatprep.subr.bf16.mxu0 0
  %575 = vmatpush1.bf16.msra.mxu0 %v434
  %576 = vmatprep.subr.bf16.mxu0 0
  %577 = vmatpush1.bf16.msra.mxu0 %v435
  %578 = vmatprep.subr.bf16.mxu0 0
  %579 = vmatpush1.bf16.msra.mxu0 %v436
  %580 = vmatprep.subr.bf16.mxu0 0
  %581 = vmatpush1.bf16.msra.mxu0 %v437
  %582 = vmatprep.subr.bf16.mxu0 0
  %583 = vmatpush1.bf16.msra.mxu0 %v438
  %584 = vmatprep.subr.bf16.mxu0 0
  %585 = vmatpush1.bf16.msra.mxu0 %v439
  %586 = vmatprep.subr.bf16.mxu0 0
  %587 = vmatpush1.bf16.msra.mxu0 %v440
  %588 = vmatprep.subr.bf16.mxu0 0
  %589 = vmatpush1.bf16.msra.mxu0 %v441
  %590 = vmatprep.subr.bf16.mxu0 0
  %591 = vmatpush1.bf16.msra.mxu0 %v442
  %592 = vmatprep.subr.bf16.mxu0 0
  %593 = vmatpush1.bf16.msra.mxu0 %v443
  %594 = vmatprep.mubr.bf16.mxu0 %v235
  %595 = vmatmul.mubr.bf16.gmra.mrb[0].mxu0 %v234
  %v596 = vpop.f32.mrb[0].mxu0
  %v597 = vadd.f32 %v532, %v596
  %v598 = vpop.f32.mrb[0].mxu0
  %v599 = vpop.f32.mrb[0].mxu0
  %v600 = vadd.f32 %v535, %v599
  %v601 = vpop.f32.mrb[0].mxu0
  %602 = vmatprep.mubr.bf16.mxu0 %v240
  %603 = vmatmul.mubr.bf16.gmra.mrb[0].mxu0 %v239
  %v604 = vpop.f32.mrb[0].mxu0
  %v605 = vadd.f32 %v540, %v604
  %v606 = vpop.f32.mrb[0].mxu0
  %v607 = vpop.f32.mrb[0].mxu0
  %v608 = vadd.f32 %v543, %v607
  %v609 = vpop.f32.mrb[0].mxu0
  %610 = vmatprep.mubr.bf16.mxu0 %v245
  %611 = vmatmul.mubr.bf16.gmra.mrb[0].mxu0 %v244
  %v612 = vpop.f32.mrb[0].mxu0
  %v613 = vadd.f32 %v548, %v612
  %v614 = vpop.f32.mrb[0].mxu0
  %v615 = vpop.f32.mrb[0].mxu0
  %v616 = vadd.f32 %v551, %v615
  %v617 = vpop.f32.mrb[0].mxu0
  %618 = vmatprep.mubr.bf16.mxu0 %v250
  %619 = vmatmul.mubr.bf16.gmra.mrb[0].mxu0 %v249
  %v620 = vpop.f32.mrb[0].mxu0
  %v621 = vadd.f32 %v556, %v620
  %v622 = vpop.f32.mrb[0].mxu0
  %v623 = vpop.f32.mrb[0].mxu0
  %v624 = vadd.f32 %v559, %v623
  %v625 = vpop.f32.mrb[0].mxu0
  %626 = vdwg.mxu0
  %627 = vmatprep.subr.bf16.mxu0 0
  %628 = vmatpush1.bf16.msra.mxu0 %v444
  %629 = vmatprep.subr.bf16.mxu0 0
  %630 = vmatpush1.bf16.msra.mxu0 %v445
  %631 = vmatprep.subr.bf16.mxu0 0
  %632 = vmatpush1.bf16.msra.mxu0 %v446
  %633 = vmatprep.subr.bf16.mxu0 0
  %634 = vmatpush1.bf16.msra.mxu0 %v447
  %635 = vmatprep.subr.bf16.mxu0 0
  %636 = vmatpush1.bf16.msra.mxu0 0
  %637 = vmatprep.subr.bf16.mxu0 0
  %638 = vmatpush1.bf16.msra.mxu0 0
  %639 = vmatprep.subr.bf16.mxu0 0
  %640 = vmatpush1.bf16.msra.mxu0 0
  %641 = vmatprep.subr.bf16.mxu0 0
  %642 = vmatpush1.bf16.msra.mxu0 0
  %643 = vmatprep.subr.bf16.mxu0 0
  %644 = vmatpush1.bf16.msra.mxu0 0
  %645 = vmatprep.subr.bf16.mxu0 0
  %646 = vmatpush1.bf16.msra.mxu0 0
  %647 = vmatprep.subr.bf16.mxu0 0
  %648 = vmatpush1.bf16.msra.mxu0 0
  %649 = vmatprep.subr.bf16.mxu0 0
  %650 = vmatpush1.bf16.msra.mxu0 0
  %651 = vmatprep.subr.bf16.mxu0 0
  %652 = vmatpush1.bf16.msra.mxu0 0
  %653 = vmatprep.subr.bf16.mxu0 0
  %654 = vmatpush1.bf16.msra.mxu0 0
  %655 = vmatprep.subr.bf16.mxu0 0
  %656 = vmatpush1.bf16.msra.mxu0 0
  %657 = vmatprep.subr.bf16.mxu0 0
  %658 = vmatpush1.bf16.msra.mxu0 0
  %659 = vmatprep.mubr.bf16.mxu0 0
  %660 = vmatmul.mubr.bf16.gmra.mrb[0].mxu0 %v486
  %v661 = vpop.f32.mrb[0].mxu0
  %v662 = vadd.f32 %v597, %v661
  %v663 = vpop.f32.mrb[0].mxu0
  %v664 = vpop.f32.mrb[0].mxu0
  %v665 = vadd.f32 %v600, %v664
  %v666 = vpop.f32.mrb[0].mxu0
  %667 = vmatprep.mubr.bf16.mxu0 0
  %668 = vmatmul.mubr.bf16.gmra.mrb[0].mxu0 %v489
  %v669 = vpop.f32.mrb[0].mxu0
  %v670 = vadd.f32 %v605, %v669
  %v671 = vpop.f32.mrb[0].mxu0
  %v672 = vpop.f32.mrb[0].mxu0
  %v673 = vadd.f32 %v608, %v672
  %v674 = vpop.f32.mrb[0].mxu0
  %675 = vmatprep.mubr.bf16.mxu0 0
  %676 = vmatmul.mubr.bf16.gmra.mrb[0].mxu0 %v492
  %v677 = vpop.f32.mrb[0].mxu0
  %v678 = vadd.f32 %v613, %v677
  %v679 = vpop.f32.mrb[0].mxu0
  %v680 = vpop.f32.mrb[0].mxu0
  %v681 = vadd.f32 %v616, %v680
  %v682 = vpop.f32.mrb[0].mxu0
  %683 = vmatprep.mubr.bf16.mxu0 0
  %684 = vmatmul.mubr.bf16.gmra.mrb[0].mxu0 %v495
  %v685 = vpop.f32.mrb[0].mxu0
  %v686 = vadd.f32 %v621, %v685
  %v687 = vpop.f32.mrb[0].mxu0
  %v688 = vpop.f32.mrb[0].mxu0
  %v689 = vadd.f32 %v624, %v688
  %v690 = vpop.f32.mrb[0].mxu0
  %691 = vdwg.mxu0
  %v692 = vsel %vm484, %v662, 0.0
  %693 = vadd.xlane.f32.xlu0 %v692
  %v694 = vpop.xlane.xlu0 %693
  %v695 = vsel %vm484, %v665, 0.0
  %696 = vadd.xlane.f32.xlu0 %v695
  %v697 = vpop.xlane.xlu0 %696
  %v698 = vsel %vm484, %v670, 0.0
  %699 = vadd.xlane.f32.xlu0 %v698
  %v700 = vpop.xlane.xlu0 %699
  %v701 = vsel %vm484, %v673, 0.0
  %702 = vadd.xlane.f32.xlu0 %v701
  %v703 = vpop.xlane.xlu0 %702
  %v704 = vsel %vm484, %v678, 0.0
  %705 = vadd.xlane.f32.xlu0 %v704
  %v706 = vpop.xlane.xlu0 %705
  %v707 = vsel %vm484, %v681, 0.0
  %708 = vadd.xlane.f32.xlu0 %v707
  %v709 = vpop.xlane.xlu0 %708
  %v710 = vsel %vm484, %v686, 0.0
  %711 = vadd.xlane.f32.xlu0 %v710
  %v712 = vpop.xlane.xlu0 %711
  %v713 = vsel %vm484, %v689, 0.0
  %714 = vadd.xlane.f32.xlu0 %v713
  %v715 = vpop.xlane.xlu0 %714
  %v716 = vmul.f32 %v694, 0.015625
  %v717 = vmul.f32 %v697, 0.015625
  %v718 = vmul.f32 %v700, 0.015625
  %v719 = vmul.f32 %v703, 0.015625
  %v720 = vmul.f32 %v706, 0.015625
  %v721 = vmul.f32 %v709, 0.015625
  %v722 = vmul.f32 %v712, 0.015625
  %v723 = vmul.f32 %v715, 0.015625
  %v724 = vsub.f32 %v662, %v716
  %v725 = vsub.f32 %v665, %v717
  %v726 = vsub.f32 %v670, %v718
  %v727 = vsub.f32 %v673, %v719
  %v728 = vsub.f32 %v678, %v720
  %v729 = vsub.f32 %v681, %v721
  %v730 = vsub.f32 %v686, %v722
  %v731 = vsub.f32 %v689, %v723
  %v732 = vmul.f32 %v724, %v724
  %v733 = vmul.f32 %v725, %v725
  %v734 = vmul.f32 %v726, %v726
  %v735 = vmul.f32 %v727, %v727
  %v736 = vmul.f32 %v728, %v728
  %v737 = vmul.f32 %v729, %v729
  %v738 = vmul.f32 %v730, %v730
  %v739 = vmul.f32 %v731, %v731
  %v740 = vsel %vm484, %v732, 0.0
  %741 = vadd.xlane.f32.xlu0 %v740
  %v742 = vpop.xlane.xlu0 %741
  %v743 = vsel %vm484, %v733, 0.0
  %744 = vadd.xlane.f32.xlu0 %v743
  %v745 = vpop.xlane.xlu0 %744
  %v746 = vsel %vm484, %v734, 0.0
  %747 = vadd.xlane.f32.xlu0 %v746
  %v748 = vpop.xlane.xlu0 %747
  %v749 = vsel %vm484, %v735, 0.0
  %750 = vadd.xlane.f32.xlu0 %v749
  %v751 = vpop.xlane.xlu0 %750
  %v752 = vsel %vm484, %v736, 0.0
  %753 = vadd.xlane.f32.xlu0 %v752
  %v754 = vpop.xlane.xlu0 %753
  %v755 = vsel %vm484, %v737, 0.0
  %756 = vadd.xlane.f32.xlu0 %v755
  %v757 = vpop.xlane.xlu0 %756
  %v758 = vsel %vm484, %v738, 0.0
  %759 = vadd.xlane.f32.xlu0 %v758
  %v760 = vpop.xlane.xlu0 %759
  %v761 = vsel %vm484, %v739, 0.0
  %762 = vadd.xlane.f32.xlu0 %v761
  %v763 = vpop.xlane.xlu0 %762
  %v764 = vmul.f32 %v742, 0.015625
  %v765 = vmul.f32 %v745, 0.015625
  %v766 = vmul.f32 %v748, 0.015625
  %v767 = vmul.f32 %v751, 0.015625
  %v768 = vmul.f32 %v754, 0.015625
  %v769 = vmul.f32 %v757, 0.015625
  %v770 = vmul.f32 %v760, 0.015625
  %v771 = vmul.f32 %v763, 0.015625
  %v772 = vld [vmem:[%s3] sm:$0xff]
  %v773 = vld [vmem:[%s3 + $0x8] sm:$0xff]
  %v774 = vld [vmem:[%s3 + $0x10] sm:$0xff]
  %v775 = vld [vmem:[%s3 + $0x18] sm:$0xff]
  %v776 = vld [vmem:[%s3 + $0x20] sm:$0xff]
  %v777 = vld [vmem:[%s3 + $0x28] sm:$0xff]
  %v778 = vld [vmem:[%s3 + $0x30] sm:$0xff]
  %v779 = vld [vmem:[%s3 + $0x38] sm:$0xff]
  %v780 = vadd.f32 %v764, 1e-05
  %v781 = vadd.f32 %v765, 1e-05
  %v782 = vadd.f32 %v766, 1e-05
  %v783 = vadd.f32 %v767, 1e-05
  %v784 = vadd.f32 %v768, 1e-05
  %v785 = vadd.f32 %v769, 1e-05
  %v786 = vadd.f32 %v770, 1e-05
  %v787 = vadd.f32 %v771, 1e-05
  %v788 = vrsqrt.pop %v780
  %v789 = vrsqrt.pop %v781
  %v790 = vrsqrt.pop %v782
  %v791 = vrsqrt.pop %v783
  %v792 = vrsqrt.pop %v784
  %v793 = vrsqrt.pop %v785
  %v794 = vrsqrt.pop %v786
  %v795 = vrsqrt.pop %v787
  %v796 = vmul.f32 %v772, %v788
  %v797 = vmul.f32 %v773, %v789
  %v798 = vmul.f32 %v774, %v790
  %v799 = vmul.f32 %v775, %v791
  %v800 = vmul.f32 %v776, %v792
  %v801 = vmul.f32 %v777, %v793
  %v802 = vmul.f32 %v778, %v794
  %v803 = vmul.f32 %v779, %v795
  %805 = vset.pattern.permute.xlu0 0
  %806 = vperm.xlu0 %805, %v796
  %v807 = vpop.permute.xlu0 %806
  %810 = vset.pattern.permute.xlu0 0
  %811 = vperm.xlu0 %810, %v797
  %v812 = vpop.permute.xlu0 %811
  %815 = vset.pattern.permute.xlu0 0
  %816 = vperm.xlu0 %815, %v798
  %v817 = vpop.permute.xlu0 %816
  %820 = vset.pattern.permute.xlu0 0
  %821 = vperm.xlu0 %820, %v799
  %v822 = vpop.permute.xlu0 %821
  %825 = vset.pattern.permute.xlu0 0
  %826 = vperm.xlu0 %825, %v800
  %v827 = vpop.permute.xlu0 %826
  %830 = vset.pattern.permute.xlu0 0
  %831 = vperm.xlu0 %830, %v801
  %v832 = vpop.permute.xlu0 %831
  %835 = vset.pattern.permute.xlu0 0
  %836 = vperm.xlu0 %835, %v802
  %v837 = vpop.permute.xlu0 %836
  %840 = vset.pattern.permute.xlu0 0
  %841 = vperm.xlu0 %840, %v803
  %v842 = vpop.permute.xlu0 %841
  %v844 = vmul.f32 %v724, %v807
  %v845 = vmul.f32 %v725, %v812
  %v846 = vmul.f32 %v726, %v817
  %v847 = vmul.f32 %v727, %v822
  %v848 = vmul.f32 %v728, %v827
  %v849 = vmul.f32 %v729, %v832
  %v850 = vmul.f32 %v730, %v837
  %v851 = vmul.f32 %v731, %v842
  %v852 = vld [vmem:[%s4] sm:$0xff]
  %v853 = vld [vmem:[%s4 + $0x8] sm:$0xff]
  %v854 = vld [vmem:[%s4 + $0x10] sm:$0xff]
  %v855 = vld [vmem:[%s4 + $0x18] sm:$0xff]
  %v856 = vld [vmem:[%s4 + $0x20] sm:$0xff]
  %v857 = vld [vmem:[%s4 + $0x28] sm:$0xff]
  %v858 = vld [vmem:[%s4 + $0x30] sm:$0xff]
  %v859 = vld [vmem:[%s4 + $0x38] sm:$0xff]
  %861 = vset.pattern.permute.xlu0 0
  %862 = vperm.xlu0 %861, %v852
  %v863 = vpop.permute.xlu0 %862
  %866 = vset.pattern.permute.xlu0 0
  %867 = vperm.xlu0 %866, %v853
  %v868 = vpop.permute.xlu0 %867
  %871 = vset.pattern.permute.xlu0 0
  %872 = vperm.xlu0 %871, %v854
  %v873 = vpop.permute.xlu0 %872
  %876 = vset.pattern.permute.xlu0 0
  %877 = vperm.xlu0 %876, %v855
  %v878 = vpop.permute.xlu0 %877
  %881 = vset.pattern.permute.xlu0 0
  %882 = vperm.xlu0 %881, %v856
  %v883 = vpop.permute.xlu0 %882
  %886 = vset.pattern.permute.xlu0 0
  %887 = vperm.xlu0 %886, %v857
  %v888 = vpop.permute.xlu0 %887
  %891 = vset.pattern.permute.xlu0 0
  %892 = vperm.xlu0 %891, %v858
  %v893 = vpop.permute.xlu0 %892
  %896 = vset.pattern.permute.xlu0 0
  %897 = vperm.xlu0 %896, %v859
  %v898 = vpop.permute.xlu0 %897
  %v900 = vadd.f32 %v844, %v863
  %v901 = vadd.f32 %v845, %v868
  %v902 = vadd.f32 %v846, %v873
  %v903 = vadd.f32 %v847, %v878
  %v904 = vadd.f32 %v848, %v883
  %v905 = vadd.f32 %v849, %v888
  %v906 = vadd.f32 %v850, %v893
  %v907 = vadd.f32 %v851, %v898
  %v908 = vld [vmem:[%s5] sm:$0xf]
  %v909 = vld [vmem:[%s5 + $0x4] sm:$0xf]
  %v910 = vld [vmem:[%s5 + $0x8] sm:$0xf]
  %v911 = vld [vmem:[%s5 + $0xc] sm:$0xf]
  %v912 = vld [vmem:[%s5 + $0x10] sm:$0xf]
  %v913 = vld [vmem:[%s5 + $0x14] sm:$0xf]
  %v914 = vld [vmem:[%s5 + $0x18] sm:$0xf]
  %v915 = vld [vmem:[%s5 + $0x1c] sm:$0xf]
  %v916 = vunpack.c.l.bf16 %v908
  %v917 = vunpack.c.l.bf16 %v909
  %v918 = vunpack.c.l.bf16 %v910
  %v919 = vunpack.c.l.bf16 %v911
  %v920 = vunpack.c.l.bf16 %v912
  %v921 = vunpack.c.l.bf16 %v913
  %v922 = vunpack.c.l.bf16 %v914
  %v923 = vunpack.c.l.bf16 %v915
  %v924 = vadd.f32 %v900, %v916
  %v925 = vadd.f32 %v901, %v917
  %v926 = vadd.f32 %v902, %v918
  %v927 = vadd.f32 %v903, %v919
  %v928 = vadd.f32 %v904, %v920
  %v929 = vadd.f32 %v905, %v921
  %v930 = vadd.f32 %v906, %v922
  %v931 = vadd.f32 %v907, %v923
  %v932 = vmax.f32 %v924, 0.0
  %v933 = vmax.f32 %v925, 0.0
  %v934 = vmax.f32 %v926, 0.0
  %v935 = vmax.f32 %v927, 0.0
  %v936 = vmax.f32 %v928, 0.0
  %v937 = vmax.f32 %v929, 0.0
  %v938 = vmax.f32 %v930, 0.0
  %v939 = vmax.f32 %v931, 0.0
  %v940 = vpack.c.bf16 %v933, %v932
  %v941 = vpack.c.bf16 %v935, %v934
  %v942 = vpack.c.bf16 %v937, %v936
  %v943 = vpack.c.bf16 %v939, %v938
  %v948 = vunpack.c.l.b16 %v940
  %v949 = vunpack.c.h.b16 %v940
  %v950 = vunpack.c.l.b16 %v941
  %v951 = vunpack.c.h.b16 %v941
  %v952 = vunpack.c.l.b16 %v942
  %v953 = vunpack.c.h.b16 %v942
  %v954 = vunpack.c.l.b16 %v943
  %v955 = vunpack.c.h.b16 %v943
  %v956 = vpack.c.b16 %v948, %v948
  %v957 = vpack.c.b16 %v949, %v949
  %v958 = vpack.c.b16 %v950, %v950
  %v959 = vpack.c.b16 %v951, %v951
  %v960 = vpack.c.b16 %v952, %v952
  %v961 = vpack.c.b16 %v953, %v953
  %v962 = vpack.c.b16 %v954, %v954
  %v963 = vpack.c.b16 %v955, %v955
  %vm972 = vcmask 519168
  %973 = vst.msk [vmem:[%s6] sm:$0xf] %vm972, %v956
  %974 = vst.msk [vmem:[%s6 + $0x4] sm:$0xf] %vm972, %v957
  %975 = vst.msk [vmem:[%s6 + $0x8] sm:$0xf] %vm972, %v958
  %976 = vst.msk [vmem:[%s6 + $0xc] sm:$0xf] %vm972, %v959
  %977 = vst.msk [vmem:[%s6 + $0x10] sm:$0xf] %vm972, %v960
  %978 = vst.msk [vmem:[%s6 + $0x14] sm:$0xf] %vm972, %v961
  %979 = vst.msk [vmem:[%s6 + $0x18] sm:$0xf] %vm972, %v962
  %980 = vst.msk [vmem:[%s6 + $0x1c] sm:$0xf] %vm972, %v963
  // Predicated region
  $region26: #{resnet_iid_forward.36} parent=0 // pred_check
    _
  $region27: #{resnet_iid_forward.36} parent=0 // pred_check_branch
    %982 = sbr.rel (0) target = $region29
  $region28: #{resnet_iid_forward.36} parent=0 // pred_region
    _
  $region29: #{resnet_iid_forward.36} parent=0 // pred_fallthru
    _
  // Predicated region
  $region30: #{resnet_iid_forward.36} parent=0 // pred_check
    _
  $region31: #{resnet_iid_forward.36} parent=0 // pred_check_branch
    %984 = sbr.rel (0) target = $region33
  $region32: #{resnet_iid_forward.36} parent=0 // pred_region
    _
  $region33: #{resnet_iid_forward.36} parent=0 // pred_fallthru
    _

// kernel: resnet_iid_forward.37
$region0: #{resnet_iid_forward.37}
  #allocation0 [shape = 'u32[]', space=smem, size = 0x4, offset = 0x4, fixed_abs, tag = 'smem constant byte address 0x4 - core index']
  #allocation1 [shape = 'u32[144,128]{1,0:T(1,128)}', space=vmem, size = 0x12000, scoped, tag = 'internal scratch']
  %s0 = inlined_call_operand.vmem [shape: bf16[64,2,32], index: 0, kind: input, shape index: {}]
  %s1 = inlined_call_operand.vmem [shape: f32[8,64], index: 1, kind: input, shape index: {}]
  %s2 = inlined_call_operand.vmem [shape: f32[8,1], index: 2, kind: input, shape index: {}]
  %s3 = inlined_call_operand.vmem [shape: f32[8,2], index: 3, kind: output, shape index: {}]
  %s4 = sld [smem:[#allocation0]]
  $region22: #{resnet_iid_forward.37} parent=0
    _
  %s6 = ssub.s32 1, %s4
  %s7 = scalar_select 0, %s6, %s4
  // Predicated region
  $region2: #{resnet_iid_forward.37} parent=0 // pred_check
    _
  $region3: #{resnet_iid_forward.37} parent=0 // pred_check_branch
    %9 = sbr.rel (0) target = $region5
  $region4: #{resnet_iid_forward.37} parent=0 // pred_region
    _
  $region5: #{resnet_iid_forward.37} parent=0 // pred_fallthru
    _
  // Predicated region
  $region6: #{resnet_iid_forward.37} parent=0 // pred_check
    _
  $region7: #{resnet_iid_forward.37} parent=0 // pred_check_branch
    %11 = sbr.rel (0) target = $region9
  $region8: #{resnet_iid_forward.37} parent=0 // pred_region
    _
  $region9: #{resnet_iid_forward.37} parent=0 // pred_fallthru
    _
  // Predicated region
  $region10: #{resnet_iid_forward.37} parent=0 // pred_check
    _
  $region11: #{resnet_iid_forward.37} parent=0 // pred_check_branch
    %13 = sbr.rel (0) target = $region13
  $region12: #{resnet_iid_forward.37} parent=0 // pred_region
    _
  $region13: #{resnet_iid_forward.37} parent=0 // pred_fallthru
    _
  %v14 = vld [vmem:[%s0] sm:$0x1]
  %v15 = vld [vmem:[%s0 + $0x1] sm:$0x1]
  %v16 = vld [vmem:[%s0 + $0x2] sm:$0x1]
  %v17 = vld [vmem:[%s0 + $0x3] sm:$0x1]
  %v18 = vld [vmem:[%s0 + $0x4] sm:$0x1]
  %v19 = vld [vmem:[%s0 + $0x5] sm:$0x1]
  %v20 = vld [vmem:[%s0 + $0x6] sm:$0x1]
  %v21 = vld [vmem:[%s0 + $0x7] sm:$0x1]
  %v22 = vld [vmem:[%s0 + $0x8] sm:$0x1]
  %v23 = vld [vmem:[%s0 + $0x9] sm:$0x1]
  %v24 = vld [vmem:[%s0 + $0xa] sm:$0x1]
  %v25 = vld [vmem:[%s0 + $0xb] sm:$0x1]
  %v26 = vld [vmem:[%s0 + $0xc] sm:$0x1]
  %v27 = vld [vmem:[%s0 + $0xd] sm:$0x1]
  %v28 = vld [vmem:[%s0 + $0xe] sm:$0x1]
  %v29 = vld [vmem:[%s0 + $0xf] sm:$0x1]
  %v30 = vld [vmem:[%s0 + $0x10] sm:$0x1]
  %v31 = vld [vmem:[%s0 + $0x11] sm:$0x1]
  %v32 = vld [vmem:[%s0 + $0x12] sm:$0x1]
  %v33 = vld [vmem:[%s0 + $0x13] sm:$0x1]
  %v34 = vld [vmem:[%s0 + $0x14] sm:$0x1]
  %v35 = vld [vmem:[%s0 + $0x15] sm:$0x1]
  %v36 = vld [vmem:[%s0 + $0x16] sm:$0x1]
  %v37 = vld [vmem:[%s0 + $0x17] sm:$0x1]
  %v38 = vld [vmem:[%s0 + $0x18] sm:$0x1]
  %v39 = vld [vmem:[%s0 + $0x19] sm:$0x1]
  %v40 = vld [vmem:[%s0 + $0x1a] sm:$0x1]
  %v41 = vld [vmem:[%s0 + $0x1b] sm:$0x1]
  %v42 = vld [vmem:[%s0 + $0x1c] sm:$0x1]
  %v43 = vld [vmem:[%s0 + $0x1d] sm:$0x1]
  %v44 = vld [vmem:[%s0 + $0x1e] sm:$0x1]
  %v45 = vld [vmem:[%s0 + $0x1f] sm:$0x1]
  %v46 = vld [vmem:[%s0 + $0x20] sm:$0x1]
  %v47 = vld [vmem:[%s0 + $0x21] sm:$0x1]
  %v48 = vld [vmem:[%s0 + $0x22] sm:$0x1]
  %v49 = vld [vmem:[%s0 + $0x23] sm:$0x1]
  %v50 = vld [vmem:[%s0 + $0x24] sm:$0x1]
  %v51 = vld [vmem:[%s0 + $0x25] sm:$0x1]
  %v52 = vld [vmem:[%s0 + $0x26] sm:$0x1]
  %v53 = vld [vmem:[%s0 + $0x27] sm:$0x1]
  %v54 = vld [vmem:[%s0 + $0x28] sm:$0x1]
  %v55 = vld [vmem:[%s0 + $0x29] sm:$0x1]
  %v56 = vld [vmem:[%s0 + $0x2a] sm:$0x1]
  %v57 = vld [vmem:[%s0 + $0x2b] sm:$0x1]
  %v58 = vld [vmem:[%s0 + $0x2c] sm:$0x1]
  %v59 = vld [vmem:[%s0 + $0x2d] sm:$0x1]
  %v60 = vld [vmem:[%s0 + $0x2e] sm:$0x1]
  %v61 = vld [vmem:[%s0 + $0x2f] sm:$0x1]
  %v62 = vld [vmem:[%s0 + $0x30] sm:$0x1]
  %v63 = vld [vmem:[%s0 + $0x31] sm:$0x1]
  %v64 = vld [vmem:[%s0 + $0x32] sm:$0x1]
  %v65 = vld [vmem:[%s0 + $0x33] sm:$0x1]
  %v66 = vld [vmem:[%s0 + $0x34] sm:$0x1]
  %v67 = vld [vmem:[%s0 + $0x35] sm:$0x1]
  %v68 = vld [vmem:[%s0 + $0x36] sm:$0x1]
  %v69 = vld [vmem:[%s0 + $0x37] sm:$0x1]
  %v70 = vld [vmem:[%s0 + $0x38] sm:$0x1]
  %v71 = vld [vmem:[%s0 + $0x39] sm:$0x1]
  %v72 = vld [vmem:[%s0 + $0x3a] sm:$0x1]
  %v73 = vld [vmem:[%s0 + $0x3b] sm:$0x1]
  %v74 = vld [vmem:[%s0 + $0x3c] sm:$0x1]
  %v75 = vld [vmem:[%s0 + $0x3d] sm:$0x1]
  %v76 = vld [vmem:[%s0 + $0x3e] sm:$0x1]
  %v77 = vld [vmem:[%s0 + $0x3f] sm:$0x1]
  %v78 = vunpack.c.l.bf16 %v14
  %v79 = vunpack.c.l.bf16 %v15
  %v80 = vunpack.c.l.bf16 %v16
  %v81 = vunpack.c.l.bf16 %v17
  %v82 = vunpack.c.l.bf16 %v18
  %v83 = vunpack.c.l.bf16 %v19
  %v84 = vunpack.c.l.bf16 %v20
  %v85 = vunpack.c.l.bf16 %v21
  %v86 = vunpack.c.l.bf16 %v22
  %v87 = vunpack.c.l.bf16 %v23
  %v88 = vunpack.c.l.bf16 %v24
  %v89 = vunpack.c.l.bf16 %v25
  %v90 = vunpack.c.l.bf16 %v26
  %v91 = vunpack.c.l.bf16 %v27
  %v92 = vunpack.c.l.bf16 %v28
  %v93 = vunpack.c.l.bf16 %v29
  %v94 = vunpack.c.l.bf16 %v30
  %v95 = vunpack.c.l.bf16 %v31
  %v96 = vunpack.c.l.bf16 %v32
  %v97 = vunpack.c.l.bf16 %v33
  %v98 = vunpack.c.l.bf16 %v34
  %v99 = vunpack.c.l.bf16 %v35
  %v100 = vunpack.c.l.bf16 %v36
  %v101 = vunpack.c.l.bf16 %v37
  %v102 = vunpack.c.l.bf16 %v38
  %v103 = vunpack.c.l.bf16 %v39
  %v104 = vunpack.c.l.bf16 %v40
  %v105 = vunpack.c.l.bf16 %v41
  %v106 = vunpack.c.l.bf16 %v42
  %v107 = vunpack.c.l.bf16 %v43
  %v108 = vunpack.c.l.bf16 %v44
  %v109 = vunpack.c.l.bf16 %v45
  %v110 = vunpack.c.l.bf16 %v46
  %v111 = vunpack.c.l.bf16 %v47
  %v112 = vunpack.c.l.bf16 %v48
  %v113 = vunpack.c.l.bf16 %v49
  %v114 = vunpack.c.l.bf16 %v50
  %v115 = vunpack.c.l.bf16 %v51
  %v116 = vunpack.c.l.bf16 %v52
  %v117 = vunpack.c.l.bf16 %v53
  %v118 = vunpack.c.l.bf16 %v54
  %v119 = vunpack.c.l.bf16 %v55
  %v120 = vunpack.c.l.bf16 %v56
  %v121 = vunpack.c.l.bf16 %v57
  %v122 = vunpack.c.l.bf16 %v58
  %v123 = vunpack.c.l.bf16 %v59
  %v124 = vunpack.c.l.bf16 %v60
  %v125 = vunpack.c.l.bf16 %v61
  %v126 = vunpack.c.l.bf16 %v62
  %v127 = vunpack.c.l.bf16 %v63
  %v128 = vunpack.c.l.bf16 %v64
  %v129 = vunpack.c.l.bf16 %v65
  %v130 = vunpack.c.l.bf16 %v66
  %v131 = vunpack.c.l.bf16 %v67
  %v132 = vunpack.c.l.bf16 %v68
  %v133 = vunpack.c.l.bf16 %v69
  %v134 = vunpack.c.l.bf16 %v70
  %v135 = vunpack.c.l.bf16 %v71
  %v136 = vunpack.c.l.bf16 %v72
  %v137 = vunpack.c.l.bf16 %v73
  %v138 = vunpack.c.l.bf16 %v74
  %v139 = vunpack.c.l.bf16 %v75
  %v140 = vunpack.c.l.bf16 %v76
  %v141 = vunpack.c.l.bf16 %v77
  %vm142 = vcmask 254976
  %v143 = vsel %vm142, %v78, 0.0
  %144 = vadd.xlane.f32.xlu0 %v143
  %v145 = vpop.xlane.xlu0 %144
  %v146 = vsel %vm142, %v79, 0.0
  %147 = vadd.xlane.f32.xlu0 %v146
  %v148 = vpop.xlane.xlu0 %147
  %v149 = vsel %vm142, %v80, 0.0
  %150 = vadd.xlane.f32.xlu0 %v149
  %v151 = vpop.xlane.xlu0 %150
  %v152 = vsel %vm142, %v81, 0.0
  %153 = vadd.xlane.f32.xlu0 %v152
  %v154 = vpop.xlane.xlu0 %153
  %v155 = vsel %vm142, %v82, 0.0
  %156 = vadd.xlane.f32.xlu0 %v155
  %v157 = vpop.xlane.xlu0 %156
  %v158 = vsel %vm142, %v83, 0.0
  %159 = vadd.xlane.f32.xlu0 %v158
  %v160 = vpop.xlane.xlu0 %159
  %v161 = vsel %vm142, %v84, 0.0
  %162 = vadd.xlane.f32.xlu0 %v161
  %v163 = vpop.xlane.xlu0 %162
  %v164 = vsel %vm142, %v85, 0.0
  %165 = vadd.xlane.f32.xlu0 %v164
  %v166 = vpop.xlane.xlu0 %165
  %v167 = vsel %vm142, %v86, 0.0
  %168 = vadd.xlane.f32.xlu0 %v167
  %v169 = vpop.xlane.xlu0 %168
  %v170 = vsel %vm142, %v87, 0.0
  %171 = vadd.xlane.f32.xlu0 %v170
  %v172 = vpop.xlane.xlu0 %171
  %v173 = vsel %vm142, %v88, 0.0
  %174 = vadd.xlane.f32.xlu0 %v173
  %v175 = vpop.xlane.xlu0 %174
  %v176 = vsel %vm142, %v89, 0.0
  %177 = vadd.xlane.f32.xlu0 %v176
  %v178 = vpop.xlane.xlu0 %177
  %v179 = vsel %vm142, %v90, 0.0
  %180 = vadd.xlane.f32.xlu0 %v179
  %v181 = vpop.xlane.xlu0 %180
  %v182 = vsel %vm142, %v91, 0.0
  %183 = vadd.xlane.f32.xlu0 %v182
  %v184 = vpop.xlane.xlu0 %183
  %v185 = vsel %vm142, %v92, 0.0
  %186 = vadd.xlane.f32.xlu0 %v185
  %v187 = vpop.xlane.xlu0 %186
  %v188 = vsel %vm142, %v93, 0.0
  %189 = vadd.xlane.f32.xlu0 %v188
  %v190 = vpop.xlane.xlu0 %189
  %v191 = vsel %vm142, %v94, 0.0
  %192 = vadd.xlane.f32.xlu0 %v191
  %v193 = vpop.xlane.xlu0 %192
  %v194 = vsel %vm142, %v95, 0.0
  %195 = vadd.xlane.f32.xlu0 %v194
  %v196 = vpop.xlane.xlu0 %195
  %v197 = vsel %vm142, %v96, 0.0
  %198 = vadd.xlane.f32.xlu0 %v197
  %v199 = vpop.xlane.xlu0 %198
  %v200 = vsel %vm142, %v97, 0.0
  %201 = vadd.xlane.f32.xlu0 %v200
  %v202 = vpop.xlane.xlu0 %201
  %v203 = vsel %vm142, %v98, 0.0
  %204 = vadd.xlane.f32.xlu0 %v203
  %v205 = vpop.xlane.xlu0 %204
  %v206 = vsel %vm142, %v99, 0.0
  %207 = vadd.xlane.f32.xlu0 %v206
  %v208 = vpop.xlane.xlu0 %207
  %v209 = vsel %vm142, %v100, 0.0
  %210 = vadd.xlane.f32.xlu0 %v209
  %v211 = vpop.xlane.xlu0 %210
  %v212 = vsel %vm142, %v101, 0.0
  %213 = vadd.xlane.f32.xlu0 %v212
  %v214 = vpop.xlane.xlu0 %213
  %v215 = vsel %vm142, %v102, 0.0
  %216 = vadd.xlane.f32.xlu0 %v215
  %v217 = vpop.xlane.xlu0 %216
  %v218 = vsel %vm142, %v103, 0.0
  %219 = vadd.xlane.f32.xlu0 %v218
  %v220 = vpop.xlane.xlu0 %219
  %v221 = vsel %vm142, %v104, 0.0
  %222 = vadd.xlane.f32.xlu0 %v221
  %v223 = vpop.xlane.xlu0 %222
  %v224 = vsel %vm142, %v105, 0.0
  %225 = vadd.xlane.f32.xlu0 %v224
  %v226 = vpop.xlane.xlu0 %225
  %v227 = vsel %vm142, %v106, 0.0
  %228 = vadd.xlane.f32.xlu0 %v227
  %v229 = vpop.xlane.xlu0 %228
  %v230 = vsel %vm142, %v107, 0.0
  %231 = vadd.xlane.f32.xlu0 %v230
  %v232 = vpop.xlane.xlu0 %231
  %v233 = vsel %vm142, %v108, 0.0
  %234 = vadd.xlane.f32.xlu0 %v233
  %v235 = vpop.xlane.xlu0 %234
  %v236 = vsel %vm142, %v109, 0.0
  %237 = vadd.xlane.f32.xlu0 %v236
  %v238 = vpop.xlane.xlu0 %237
  %v239 = vsel %vm142, %v110, 0.0
  %240 = vadd.xlane.f32.xlu0 %v239
  %v241 = vpop.xlane.xlu0 %240
  %v242 = vsel %vm142, %v111, 0.0
  %243 = vadd.xlane.f32.xlu0 %v242
  %v244 = vpop.xlane.xlu0 %243
  %v245 = vsel %vm142, %v112, 0.0
  %246 = vadd.xlane.f32.xlu0 %v245
  %v247 = vpop.xlane.xlu0 %246
  %v248 = vsel %vm142, %v113, 0.0
  %249 = vadd.xlane.f32.xlu0 %v248
  %v250 = vpop.xlane.xlu0 %249
  %v251 = vsel %vm142, %v114, 0.0
  %252 = vadd.xlane.f32.xlu0 %v251
  %v253 = vpop.xlane.xlu0 %252
  %v254 = vsel %vm142, %v115, 0.0
  %255 = vadd.xlane.f32.xlu0 %v254
  %v256 = vpop.xlane.xlu0 %255
  %v257 = vsel %vm142, %v116, 0.0
  %258 = vadd.xlane.f32.xlu0 %v257
  %v259 = vpop.xlane.xlu0 %258
  %v260 = vsel %vm142, %v117, 0.0
  %261 = vadd.xlane.f32.xlu0 %v260
  %v262 = vpop.xlane.xlu0 %261
  %v263 = vsel %vm142, %v118, 0.0
  %264 = vadd.xlane.f32.xlu0 %v263
  %v265 = vpop.xlane.xlu0 %264
  %v266 = vsel %vm142, %v119, 0.0
  %267 = vadd.xlane.f32.xlu0 %v266
  %v268 = vpop.xlane.xlu0 %267
  %v269 = vsel %vm142, %v120, 0.0
  %270 = vadd.xlane.f32.xlu0 %v269
  %v271 = vpop.xlane.xlu0 %270
  %v272 = vsel %vm142, %v121, 0.0
  %273 = vadd.xlane.f32.xlu0 %v272
  %v274 = vpop.xlane.xlu0 %273
  %v275 = vsel %vm142, %v122, 0.0
  %276 = vadd.xlane.f32.xlu0 %v275
  %v277 = vpop.xlane.xlu0 %276
  %v278 = vsel %vm142, %v123, 0.0
  %279 = vadd.xlane.f32.xlu0 %v278
  %v280 = vpop.xlane.xlu0 %279
  %v281 = vsel %vm142, %v124, 0.0
  %282 = vadd.xlane.f32.xlu0 %v281
  %v283 = vpop.xlane.xlu0 %282
  %v284 = vsel %vm142, %v125, 0.0
  %285 = vadd.xlane.f32.xlu0 %v284
  %v286 = vpop.xlane.xlu0 %285
  %v287 = vsel %vm142, %v126, 0.0
  %288 = vadd.xlane.f32.xlu0 %v287
  %v289 = vpop.xlane.xlu0 %288
  %v290 = vsel %vm142, %v127, 0.0
  %291 = vadd.xlane.f32.xlu0 %v290
  %v292 = vpop.xlane.xlu0 %291
  %v293 = vsel %vm142, %v128, 0.0
  %294 = vadd.xlane.f32.xlu0 %v293
  %v295 = vpop.xlane.xlu0 %294
  %v296 = vsel %vm142, %v129, 0.0
  %297 = vadd.xlane.f32.xlu0 %v296
  %v298 = vpop.xlane.xlu0 %297
  %v299 = vsel %vm142, %v130, 0.0
  %300 = vadd.xlane.f32.xlu0 %v299
  %v301 = vpop.xlane.xlu0 %300
  %v302 = vsel %vm142, %v131, 0.0
  %303 = vadd.xlane.f32.xlu0 %v302
  %v304 = vpop.xlane.xlu0 %303
  %v305 = vsel %vm142, %v132, 0.0
  %306 = vadd.xlane.f32.xlu0 %v305
  %v307 = vpop.xlane.xlu0 %306
  %v308 = vsel %vm142, %v133, 0.0
  %309 = vadd.xlane.f32.xlu0 %v308
  %v310 = vpop.xlane.xlu0 %309
  %v311 = vsel %vm142, %v134, 0.0
  %312 = vadd.xlane.f32.xlu0 %v311
  %v313 = vpop.xlane.xlu0 %312
  %v314 = vsel %vm142, %v135, 0.0
  %315 = vadd.xlane.f32.xlu0 %v314
  %v316 = vpop.xlane.xlu0 %315
  %v317 = vsel %vm142, %v136, 0.0
  %318 = vadd.xlane.f32.xlu0 %v317
  %v319 = vpop.xlane.xlu0 %318
  %v320 = vsel %vm142, %v137, 0.0
  %321 = vadd.xlane.f32.xlu0 %v320
  %v322 = vpop.xlane.xlu0 %321
  %v323 = vsel %vm142, %v138, 0.0
  %324 = vadd.xlane.f32.xlu0 %v323
  %v325 = vpop.xlane.xlu0 %324
  %v326 = vsel %vm142, %v139, 0.0
  %327 = vadd.xlane.f32.xlu0 %v326
  %v328 = vpop.xlane.xlu0 %327
  %v329 = vsel %vm142, %v140, 0.0
  %330 = vadd.xlane.f32.xlu0 %v329
  %v331 = vpop.xlane.xlu0 %330
  %v332 = vsel %vm142, %v141, 0.0
  %333 = vadd.xlane.f32.xlu0 %v332
  %v334 = vpop.xlane.xlu0 %333
  %v335 = vrcp.pop 32.0
  %v336 = vmul.f32 %v145, %v335
  %v337 = vmul.f32 %v148, %v335
  %v338 = vmul.f32 %v151, %v335
  %v339 = vmul.f32 %v154, %v335
  %v340 = vmul.f32 %v157, %v335
  %v341 = vmul.f32 %v160, %v335
  %v342 = vmul.f32 %v163, %v335
  %v343 = vmul.f32 %v166, %v335
  %v344 = vmul.f32 %v169, %v335
  %v345 = vmul.f32 %v172, %v335
  %v346 = vmul.f32 %v175, %v335
  %v347 = vmul.f32 %v178, %v335
  %v348 = vmul.f32 %v181, %v335
  %v349 = vmul.f32 %v184, %v335
  %v350 = vmul.f32 %v187, %v335
  %v351 = vmul.f32 %v190, %v335
  %v352 = vmul.f32 %v193, %v335
  %v353 = vmul.f32 %v196, %v335
  %v354 = vmul.f32 %v199, %v335
  %v355 = vmul.f32 %v202, %v335
  %v356 = vmul.f32 %v205, %v335
  %v357 = vmul.f32 %v208, %v335
  %v358 = vmul.f32 %v211, %v335
  %v359 = vmul.f32 %v214, %v335
  %v360 = vmul.f32 %v217, %v335
  %v361 = vmul.f32 %v220, %v335
  %v362 = vmul.f32 %v223, %v335
  %v363 = vmul.f32 %v226, %v335
  %v364 = vmul.f32 %v229, %v335
  %v365 = vmul.f32 %v232, %v335
  %v366 = vmul.f32 %v235, %v335
  %v367 = vmul.f32 %v238, %v335
  %v368 = vmul.f32 %v241, %v335
  %v369 = vmul.f32 %v244, %v335
  %v370 = vmul.f32 %v247, %v335
  %v371 = vmul.f32 %v250, %v335
  %v372 = vmul.f32 %v253, %v335
  %v373 = vmul.f32 %v256, %v335
  %v374 = vmul.f32 %v259, %v335
  %v375 = vmul.f32 %v262, %v335
  %v376 = vmul.f32 %v265, %v335
  %v377 = vmul.f32 %v268, %v335
  %v378 = vmul.f32 %v271, %v335
  %v379 = vmul.f32 %v274, %v335
  %v380 = vmul.f32 %v277, %v335
  %v381 = vmul.f32 %v280, %v335
  %v382 = vmul.f32 %v283, %v335
  %v383 = vmul.f32 %v286, %v335
  %v384 = vmul.f32 %v289, %v335
  %v385 = vmul.f32 %v292, %v335
  %v386 = vmul.f32 %v295, %v335
  %v387 = vmul.f32 %v298, %v335
  %v388 = vmul.f32 %v301, %v335
  %v389 = vmul.f32 %v304, %v335
  %v390 = vmul.f32 %v307, %v335
  %v391 = vmul.f32 %v310, %v335
  %v392 = vmul.f32 %v313, %v335
  %v393 = vmul.f32 %v316, %v335
  %v394 = vmul.f32 %v319, %v335
  %v395 = vmul.f32 %v322, %v335
  %v396 = vmul.f32 %v325, %v335
  %v397 = vmul.f32 %v328, %v335
  %v398 = vmul.f32 %v331, %v335
  %v399 = vmul.f32 %v334, %v335
  %v400 = vld [vmem:[%s1] sm:$0xff]
  %v401 = vld [vmem:[%s2] sm:$0xff]
  %403 = vset.pattern.permute.xlu0 0
  %404 = vperm.xlu0 %403, %v401
  %v405 = vpop.permute.xlu0 %404
  %v471 = vlaneseq
  %v472 = vand.u32 %v471, 127
  %v473 = vlaneseq
  %v474 = vshrl.u32 %v473, 7
  %v475 = vsub.s32 %v472, %v474
  %v476 = vrot.slane %v336, %v475
  %v477 = vlaneseq
  %v478 = vshrl.u32 %v477, 7
  %v479 = vsub.s32 %v472, %v478
  %v480 = vrot.slane %v337, %v479
  %v481 = vlaneseq
  %v482 = vshrl.u32 %v481, 7
  %v483 = vsub.s32 %v472, %v482
  %v484 = vrot.slane %v338, %v483
  %v485 = vlaneseq
  %v486 = vshrl.u32 %v485, 7
  %v487 = vsub.s32 %v472, %v486
  %v488 = vrot.slane %v339, %v487
  %v489 = vlaneseq
  %v490 = vshrl.u32 %v489, 7
  %v491 = vsub.s32 %v472, %v490
  %v492 = vrot.slane %v340, %v491
  %v493 = vlaneseq
  %v494 = vshrl.u32 %v493, 7
  %v495 = vsub.s32 %v472, %v494
  %v496 = vrot.slane %v341, %v495
  %v497 = vlaneseq
  %v498 = vshrl.u32 %v497, 7
  %v499 = vsub.s32 %v472, %v498
  %v500 = vrot.slane %v342, %v499
  %v501 = vlaneseq
  %v502 = vshrl.u32 %v501, 7
  %v503 = vsub.s32 %v472, %v502
  %v504 = vrot.slane %v343, %v503
  %v505 = vlaneseq
  %v506 = vshrl.u32 %v505, 7
  %v507 = vsub.s32 %v472, %v506
  %v508 = vrot.slane %v344, %v507
  %v509 = vlaneseq
  %v510 = vshrl.u32 %v509, 7
  %v511 = vsub.s32 %v472, %v510
  %v512 = vrot.slane %v345, %v511
  %v513 = vlaneseq
  %v514 = vshrl.u32 %v513, 7
  %v515 = vsub.s32 %v472, %v514
  %v516 = vrot.slane %v346, %v515
  %v517 = vlaneseq
  %v518 = vshrl.u32 %v517, 7
  %v519 = vsub.s32 %v472, %v518
  %v520 = vrot.slane %v347, %v519
  %v521 = vlaneseq
  %v522 = vshrl.u32 %v521, 7
  %v523 = vsub.s32 %v472, %v522
  %v524 = vrot.slane %v348, %v523
  %v525 = vlaneseq
  %v526 = vshrl.u32 %v525, 7
  %v527 = vsub.s32 %v472, %v526
  %v528 = vrot.slane %v349, %v527
  %v529 = vlaneseq
  %v530 = vshrl.u32 %v529, 7
  %v531 = vsub.s32 %v472, %v530
  %v532 = vrot.slane %v350, %v531
  %v533 = vlaneseq
  %v534 = vshrl.u32 %v533, 7
  %v535 = vsub.s32 %v472, %v534
  %v536 = vrot.slane %v351, %v535
  %v537 = vlaneseq
  %v538 = vshrl.u32 %v537, 7
  %v539 = vsub.s32 %v472, %v538
  %v540 = vrot.slane %v352, %v539
  %v541 = vlaneseq
  %v542 = vshrl.u32 %v541, 7
  %v543 = vsub.s32 %v472, %v542
  %v544 = vrot.slane %v353, %v543
  %v545 = vlaneseq
  %v546 = vshrl.u32 %v545, 7
  %v547 = vsub.s32 %v472, %v546
  %v548 = vrot.slane %v354, %v547
  %v549 = vlaneseq
  %v550 = vshrl.u32 %v549, 7
  %v551 = vsub.s32 %v472, %v550
  %v552 = vrot.slane %v355, %v551
  %v553 = vlaneseq
  %v554 = vshrl.u32 %v553, 7
  %v555 = vsub.s32 %v472, %v554
  %v556 = vrot.slane %v356, %v555
  %v557 = vlaneseq
  %v558 = vshrl.u32 %v557, 7
  %v559 = vsub.s32 %v472, %v558
  %v560 = vrot.slane %v357, %v559
  %v561 = vlaneseq
  %v562 = vshrl.u32 %v561, 7
  %v563 = vsub.s32 %v472, %v562
  %v564 = vrot.slane %v358, %v563
  %v565 = vlaneseq
  %v566 = vshrl.u32 %v565, 7
  %v567 = vsub.s32 %v472, %v566
  %v568 = vrot.slane %v359, %v567
  %v569 = vlaneseq
  %v570 = vshrl.u32 %v569, 7
  %v571 = vsub.s32 %v472, %v570
  %v572 = vrot.slane %v360, %v571
  %v573 = vlaneseq
  %v574 = vshrl.u32 %v573, 7
  %v575 = vsub.s32 %v472, %v574
  %v576 = vrot.slane %v361, %v575
  %v577 = vlaneseq
  %v578 = vshrl.u32 %v577, 7
  %v579 = vsub.s32 %v472, %v578
  %v580 = vrot.slane %v362, %v579
  %v581 = vlaneseq
  %v582 = vshrl.u32 %v581, 7
  %v583 = vsub.s32 %v472, %v582
  %v584 = vrot.slane %v363, %v583
  %v585 = vlaneseq
  %v586 = vshrl.u32 %v585, 7
  %v587 = vsub.s32 %v472, %v586
  %v588 = vrot.slane %v364, %v587
  %v589 = vlaneseq
  %v590 = vshrl.u32 %v589, 7
  %v591 = vsub.s32 %v472, %v590
  %v592 = vrot.slane %v365, %v591
  %v593 = vlaneseq
  %v594 = vshrl.u32 %v593, 7
  %v595 = vsub.s32 %v472, %v594
  %v596 = vrot.slane %v366, %v595
  %v597 = vlaneseq
  %v598 = vshrl.u32 %v597, 7
  %v599 = vsub.s32 %v472, %v598
  %v600 = vrot.slane %v367, %v599
  %v601 = vlaneseq
  %v602 = vshrl.u32 %v601, 7
  %v603 = vsub.s32 %v472, %v602
  %v604 = vrot.slane %v368, %v603
  %v605 = vlaneseq
  %v606 = vshrl.u32 %v605, 7
  %v607 = vsub.s32 %v472, %v606
  %v608 = vrot.slane %v369, %v607
  %v609 = vlaneseq
  %v610 = vshrl.u32 %v609, 7
  %v611 = vsub.s32 %v472, %v610
  %v612 = vrot.slane %v370, %v611
  %v613 = vlaneseq
  %v614 = vshrl.u32 %v613, 7
  %v615 = vsub.s32 %v472, %v614
  %v616 = vrot.slane %v371, %v615
  %v617 = vlaneseq
  %v618 = vshrl.u32 %v617, 7
  %v619 = vsub.s32 %v472, %v618
  %v620 = vrot.slane %v372, %v619
  %v621 = vlaneseq
  %v622 = vshrl.u32 %v621, 7
  %v623 = vsub.s32 %v472, %v622
  %v624 = vrot.slane %v373, %v623
  %v625 = vlaneseq
  %v626 = vshrl.u32 %v625, 7
  %v627 = vsub.s32 %v472, %v626
  %v628 = vrot.slane %v374, %v627
  %v629 = vlaneseq
  %v630 = vshrl.u32 %v629, 7
  %v631 = vsub.s32 %v472, %v630
  %v632 = vrot.slane %v375, %v631
  %v633 = vlaneseq
  %v634 = vshrl.u32 %v633, 7
  %v635 = vsub.s32 %v472, %v634
  %v636 = vrot.slane %v376, %v635
  %v637 = vlaneseq
  %v638 = vshrl.u32 %v637, 7
  %v639 = vsub.s32 %v472, %v638
  %v640 = vrot.slane %v377, %v639
  %v641 = vlaneseq
  %v642 = vshrl.u32 %v641, 7
  %v643 = vsub.s32 %v472, %v642
  %v644 = vrot.slane %v378, %v643
  %v645 = vlaneseq
  %v646 = vshrl.u32 %v645, 7
  %v647 = vsub.s32 %v472, %v646
  %v648 = vrot.slane %v379, %v647
  %v649 = vlaneseq
  %v650 = vshrl.u32 %v649, 7
  %v651 = vsub.s32 %v472, %v650
  %v652 = vrot.slane %v380, %v651
  %v653 = vlaneseq
  %v654 = vshrl.u32 %v653, 7
  %v655 = vsub.s32 %v472, %v654
  %v656 = vrot.slane %v381, %v655
  %v657 = vlaneseq
  %v658 = vshrl.u32 %v657, 7
  %v659 = vsub.s32 %v472, %v658
  %v660 = vrot.slane %v382, %v659
  %v661 = vlaneseq
  %v662 = vshrl.u32 %v661, 7
  %v663 = vsub.s32 %v472, %v662
  %v664 = vrot.slane %v383, %v663
  %v665 = vlaneseq
  %v666 = vshrl.u32 %v665, 7
  %v667 = vsub.s32 %v472, %v666
  %v668 = vrot.slane %v384, %v667
  %v669 = vlaneseq
  %v670 = vshrl.u32 %v669, 7
  %v671 = vsub.s32 %v472, %v670
  %v672 = vrot.slane %v385, %v671
  %v673 = vlaneseq
  %v674 = vshrl.u32 %v673, 7
  %v675 = vsub.s32 %v472, %v674
  %v676 = vrot.slane %v386, %v675
  %v677 = vlaneseq
  %v678 = vshrl.u32 %v677, 7
  %v679 = vsub.s32 %v472, %v678
  %v680 = vrot.slane %v387, %v679
  %v681 = vlaneseq
  %v682 = vshrl.u32 %v681, 7
  %v683 = vsub.s32 %v472, %v682
  %v684 = vrot.slane %v388, %v683
  %v685 = vlaneseq
  %v686 = vshrl.u32 %v685, 7
  %v687 = vsub.s32 %v472, %v686
  %v688 = vrot.slane %v389, %v687
  %v689 = vlaneseq
  %v690 = vshrl.u32 %v689, 7
  %v691 = vsub.s32 %v472, %v690
  %v692 = vrot.slane %v390, %v691
  %v693 = vlaneseq
  %v694 = vshrl.u32 %v693, 7
  %v695 = vsub.s32 %v472, %v694
  %v696 = vrot.slane %v391, %v695
  %v697 = vlaneseq
  %v698 = vshrl.u32 %v697, 7
  %v699 = vsub.s32 %v472, %v698
  %v700 = vrot.slane %v392, %v699
  %v701 = vlaneseq
  %v702 = vshrl.u32 %v701, 7
  %v703 = vsub.s32 %v472, %v702
  %v704 = vrot.slane %v393, %v703
  %v705 = vlaneseq
  %v706 = vshrl.u32 %v705, 7
  %v707 = vsub.s32 %v472, %v706
  %v708 = vrot.slane %v394, %v707
  %v709 = vlaneseq
  %v710 = vshrl.u32 %v709, 7
  %v711 = vsub.s32 %v472, %v710
  %v712 = vrot.slane %v395, %v711
  %v713 = vlaneseq
  %v714 = vshrl.u32 %v713, 7
  %v715 = vsub.s32 %v472, %v714
  %v716 = vrot.slane %v396, %v715
  %v717 = vlaneseq
  %v718 = vshrl.u32 %v717, 7
  %v719 = vsub.s32 %v472, %v718
  %v720 = vrot.slane %v397, %v719
  %v721 = vlaneseq
  %v722 = vshrl.u32 %v721, 7
  %v723 = vsub.s32 %v472, %v722
  %v724 = vrot.slane %v398, %v723
  %v725 = vlaneseq
  %v726 = vshrl.u32 %v725, 7
  %v727 = vsub.s32 %v472, %v726
  %v728 = vrot.slane %v399, %v727
  %vm729 = vcmask 1041409
  %v730 = vsel %vm729, %v480, %v476
  %vm731 = vcmask 1042434
  %v732 = vsel %vm731, %v484, %v730
  %vm733 = vcmask 1043459
  %v734 = vsel %vm733, %v488, %v732
  %vm735 = vcmask 1044484
  %v736 = vsel %vm735, %v492, %v734
  %vm737 = vcmask 1045509
  %v738 = vsel %vm737, %v496, %v736
  %vm739 = vcmask 1046534
  %v740 = vsel %vm739, %v500, %v738
  %vm741 = vcmask 1047559
  %v742 = vsel %vm741, %v504, %v740
  %v743 = vsel %vm729, %v512, %v508
  %v744 = vsel %vm731, %v516, %v743
  %v745 = vsel %vm733, %v520, %v744
  %v746 = vsel %vm735, %v524, %v745
  %v747 = vsel %vm737, %v528, %v746
  %v748 = vsel %vm739, %v532, %v747
  %v749 = vsel %vm741, %v536, %v748
  %v750 = vsel %vm729, %v544, %v540
  %v751 = vsel %vm731, %v548, %v750
  %v752 = vsel %vm733, %v552, %v751
  %v753 = vsel %vm735, %v556, %v752
  %v754 = vsel %vm737, %v560, %v753
  %v755 = vsel %vm739, %v564, %v754
  %v756 = vsel %vm741, %v568, %v755
  %v757 = vsel %vm729, %v576, %v572
  %v758 = vsel %vm731, %v580, %v757
  %v759 = vsel %vm733, %v584, %v758
  %v760 = vsel %vm735, %v588, %v759
  %v761 = vsel %vm737, %v592, %v760
  %v762 = vsel %vm739, %v596, %v761
  %v763 = vsel %vm741, %v600, %v762
  %v764 = vsel %vm729, %v608, %v604
  %v765 = vsel %vm731, %v612, %v764
  %v766 = vsel %vm733, %v616, %v765
  %v767 = vsel %vm735, %v620, %v766
  %v768 = vsel %vm737, %v624, %v767
  %v769 = vsel %vm739, %v628, %v768
  %v770 = vsel %vm741, %v632, %v769
  %v771 = vsel %vm729, %v640, %v636
  %v772 = vsel %vm731, %v644, %v771
  %v773 = vsel %vm733, %v648, %v772
  %v774 = vsel %vm735, %v652, %v773
  %v775 = vsel %vm737, %v656, %v774
  %v776 = vsel %vm739, %v660, %v775
  %v777 = vsel %vm741, %v664, %v776
  %v778 = vsel %vm729, %v672, %v668
  %v779 = vsel %vm731, %v676, %v778
  %v780 = vsel %vm733, %v680, %v779
  %v781 = vsel %vm735, %v684, %v780
  %v782 = vsel %vm737, %v688, %v781
  %v783 = vsel %vm739, %v692, %v782
  %v784 = vsel %vm741, %v696, %v783
  %v785 = vsel %vm729, %v704, %v700
  %v786 = vsel %vm731, %v708, %v785
  %v787 = vsel %vm733, %v712, %v786
  %v788 = vsel %vm735, %v716, %v787
  %v789 = vsel %vm737, %v720, %v788
  %v790 = vsel %vm739, %v724, %v789
  %v791 = vsel %vm741, %v728, %v790
  %vm800 = vcmask 523264
  %v802 = vsel %vm800, %v400, 0
  %804 = vmatprep.subr.mxu0 0.0
  %805 = vmatpush1.msra.mxu0 %v742
  %806 = vmatprep.subr.mxu0 0.0
  %807 = vmatpush1.msra.mxu0 %v749
  %808 = vmatprep.subr.mxu0 0.0
  %809 = vmatpush1.msra.mxu0 %v756
  %810 = vmatprep.subr.mxu0 0.0
  %811 = vmatpush1.msra.mxu0 %v763
  %812 = vmatprep.subr.mxu0 0.0
  %813 = vmatpush1.msra.mxu0 %v770
  %814 = vmatprep.subr.mxu0 0.0
  %815 = vmatpush1.msra.mxu0 %v777
  %816 = vmatprep.subr.mxu0 0.0
  %817 = vmatpush1.msra.mxu0 %v784
  %818 = vmatprep.subr.mxu0 0.0
  %819 = vmatpush1.msra.mxu0 %v791
  %820 = vmatprep.subr.mxu0 0.0
  %821 = vmatpush1.msra.mxu0 0.0
  %822 = vmatprep.subr.mxu0 0.0
  %823 = vmatpush1.msra.mxu0 0.0
  %824 = vmatprep.subr.mxu0 0.0
  %825 = vmatpush1.msra.mxu0 0.0
  %826 = vmatprep.subr.mxu0 0.0
  %827 = vmatpush1.msra.mxu0 0.0
  %828 = vmatprep.subr.mxu0 0.0
  %829 = vmatpush1.msra.mxu0 0.0
  %830 = vmatprep.subr.mxu0 0.0
  %831 = vmatpush1.msra.mxu0 0.0
  %832 = vmatprep.subr.mxu0 0.0
  %833 = vmatpush1.msra.mxu0 0.0
  %834 = vmatprep.subr.mxu0 0.0
  %835 = vmatpush1.msra.mxu0 0.0
  %836 = vmatprep.subr.mxu0 0.0
  %837 = vmatpush1.msra.mxu0 0.0
  %838 = vmatprep.subr.mxu0 0.0
  %839 = vmatpush1.msra.mxu0 0.0
  %840 = vmatprep.subr.mxu0 0.0
  %841 = vmatpush1.msra.mxu0 0.0
  %842 = vmatprep.subr.mxu0 0.0
  %843 = vmatpush1.msra.mxu0 0.0
  %844 = vmatprep.subr.mxu0 0.0
  %845 = vmatpush1.msra.mxu0 0.0
  %846 = vmatprep.subr.mxu0 0.0
  %847 = vmatpush1.msra.mxu0 0.0
  %848 = vmatprep.subr.mxu0 0.0
  %849 = vmatpush1.msra.mxu0 0.0
  %850 = vmatprep.subr.mxu0 0.0
  %851 = vmatpush1.msra.mxu0 0.0
  %852 = vmatprep.subr.mxu0 0.0
  %853 = vmatpush1.msra.mxu0 0.0
  %854 = vmatprep.subr.mxu0 0.0
  %855 = vmatpush1.msra.mxu0 0.0
  %856 = vmatprep.subr.mxu0 0.0
  %857 = vmatpush1.msra.mxu0 0.0
  %858 = vmatprep.subr.mxu0 0.0
  %859 = vmatpush1.msra.mxu0 0.0
  %860 = vmatprep.subr.mxu0 0.0
  %861 = vmatpush1.msra.mxu0 0.0
  %862 = vmatprep.subr.mxu0 0.0
  %863 = vmatpush1.msra.mxu0 0.0
  %864 = vmatprep.subr.mxu0 0.0
  %865 = vmatpush1.msra.mxu0 0.0
  %866 = vmatprep.subr.mxu0 0.0
  %867 = vmatpush1.msra.mxu0 0.0
  %868 = vmatprep.mubr.f32.mxu0 0.0
  %869 = vmatmul.mubr.f32.gmra.mrb[0].mxu0 %v802
  %v870 = vpop.f32.mrb[0].mxu0
  %v871 = vadd.f32 %v405, %v870
  %v872 = vpop.f32.mrb[0].mxu0
  %873 = vdwg.mxu0
  %vm874 = vcmask 15360
  %875 = vst.msk [vmem:[%s3] sm:$0xff] %vm874, %v871
  // Predicated region
  $region14: #{resnet_iid_forward.37} parent=0 // pred_check
    _
  $region15: #{resnet_iid_forward.37} parent=0 // pred_check_branch
    %877 = sbr.rel (0) target = $region17
  $region16: #{resnet_iid_forward.37} parent=0 // pred_region
    _
  $region17: #{resnet_iid_forward.37} parent=0 // pred_fallthru
    _
  // Predicated region
  $region18: #{resnet_iid_forward.37} parent=0 // pred_check
    _
  $region19: #{resnet_iid_forward.37} parent=0 // pred_check_branch
    %879 = sbr.rel (0) target = $region21
  $region20: #{resnet_iid_forward.37} parent=0 // pred_region
    _
  $region21: #{resnet_iid_forward.37} parent=0 // pred_fallthru
    _

</llo_original>
